<compile_context>
chip_gen: v6e
topology: v6e:2x2x1
jax: 0.10.0
libtpu: 0.0.40
codegen_flags: <defaults>
</compile_context>

<pallas_src>
import functools

import jax
import jax.numpy as jnp
from jax.experimental import pallas as pl
from jax.experimental.pallas import tpu as pltpu

BN_EPS = 1e-5
LANES = 128                            # pad the fc class dim to a full lane group
FC_TILE = 8192                         # contraction tile for the fc matmul
TILE_BUDGET_BYTES = 12 * 1024 * 1024   # per-grid-step working-set target
VMEM_LIMIT_BYTES = 48 * 1024 * 1024    # explicit scoped-VMEM request (ok on v5e/v6e/v7x)


def _pick_row_tile(h, bytes_per_row, *, even=False, budget=TILE_BUDGET_BYTES):
    """Largest divisor of h whose per-step working set fits the VMEM budget."""
    cands = [t for t in range(h, 0, -1) if h % t == 0 and (not even or t % 2 == 0)]
    assert cands, f"no valid row tile for h={h} (even={even})"
    for t in cands:
        if t * bytes_per_row <= budget:
            return t
    return cands[-1]


def _fc_tiling(f):
    """(k-tile, #k-steps, padded feature dim, #parallel K chunks) for the fc."""
    tf = min(FC_TILE, f)
    gk = -(-f // tf)
    if gk > 1 and gk % 2 == 1:
        gk += 1                        # even #steps so the K stream splits over 2 cores
    nsplit = 2 if gk >= 2 else 1
    return tf, gk, gk * tf, nsplit


# ---------------------------------------------------------------------------
# Kernels
# ---------------------------------------------------------------------------
def _conv3x3_kernel(xtop_ref, x_ref, xbot_ref, w_ref, b_ref, *out_refs,
                    apply_relu, emit_stats):
    if emit_stats:
        o_ref, stat_ref = out_refs
    else:
        (o_ref,) = out_refs

    i = pl.program_id(1)
    last = pl.num_programs(1) - 1
    _, th, w, cin = x_ref.shape
    cout = o_ref.shape[-1]

    # (th+2) haloed rows; 1-row halos come from clamped index_maps and are
    # zero-masked at the image borders (no HBM-level padding copy).
    top = jnp.where(i == 0, jnp.zeros_like(xtop_ref[0]), xtop_ref[0])       # (1, w, cin)
    bot = jnp.where(i == last, jnp.zeros_like(xbot_ref[0]), xbot_ref[0])    # (1, w, cin)
    xin = jnp.concatenate([top, x_ref[0], bot], axis=0)                     # (th+2, w, cin)

    # dy -> contraction dim via one 3-way channel concat of row-shifted views
    # (outer-dim slices are cheap), then flatten pixels for the MXU.
    xcat = jnp.concatenate([xin[0:th], xin[1:th + 1], xin[2:th + 2]], axis=-1)
    patches = xcat.reshape(th * w, 3 * cin)                                 # (px, 3*cin)

    # dx (+-1 pixel in W) == +-1 row shift of the flattened pixel matrix:
    # one XLU rotate + a W-border mask per dx, 3 accumulating MXU matmuls.
    col = jax.lax.broadcasted_iota(jnp.int32, (th, w, 1), 1).reshape(th * w, 1)
    acc = jnp.dot(patches, w_ref[1], preferred_element_type=jnp.float32)    # dx = 1
    left = jnp.where(col == 0, 0.0, pltpu.roll(patches, shift=1, axis=0))
    acc += jnp.dot(left, w_ref[0], preferred_element_type=jnp.float32)      # dx = 0 (x[.., xw-1])
    right = jnp.where(col == w - 1, 0.0,
                      pltpu.roll(patches, shift=th * w - 1, axis=0))
    acc += jnp.dot(right, w_ref[2], preferred_element_type=jnp.float32)     # dx = 2 (x[.., xw+1])
    acc = acc + b_ref[...]                                                  # (px, cout)

    if emit_stats:
        # per-tile partial sums for the (training-mode) BatchNorm statistics
        s1 = jnp.sum(acc, axis=0, keepdims=True)
        s2 = jnp.sum(acc * acc, axis=0, keepdims=True)
        stat_ref[...] = jnp.concatenate([s1, s2], axis=0)[None, None]       # (1, 1, 2, cout)
    if apply_relu:
        acc = jnp.maximum(acc, 0.0)
    o_ref[...] = acc.reshape(1, th, w, cout)


def _bn_act_kernel(x_ref, scale_ref, shift_ref, o_ref, *, pool):
    # Pure elementwise affine + ReLU (+ 2x2 MaxPool); scale/shift precomputed.
    y = jnp.maximum(x_ref[0] * scale_ref[...] + shift_ref[...], 0.0)        # (th, w, c)
    if pool:
        th, w, c = y.shape
        y = y.reshape(th // 2, 2, w, c).max(axis=1)
        y = y.reshape(th // 2, w // 2, 2, c).max(axis=2)
        # TODO(synk): strided sublane slices would avoid the W-split relayout here.
    o_ref[...] = y[None]


def _fc_kernel(x_ref, w_ref, o_ref, acc_ref):
    k = pl.program_id(1)

    @pl.when(k == 0)
    def _():
        acc_ref[...] = jnp.zeros_like(acc_ref)

    acc_ref[...] += jnp.dot(x_ref[...], w_ref[...],
                            preferred_element_type=jnp.float32)

    @pl.when(k == pl.num_programs(1) - 1)
    def _():
        o_ref[...] = acc_ref[...][None]


# ---------------------------------------------------------------------------
# Wrappers (grid / BlockSpec plumbing)
# ---------------------------------------------------------------------------
def conv3x3(x, w3, b, *, apply_relu=False, emit_stats=False):
    # x: (N, H, W, Cin) NHWC, w3: (3 [dx], 3*Cin [dy,cin], Cout), b: (Cout,)
    n, h, w, cin = x.shape
    cout = w3.shape[-1]
    assert w3.shape == (3, 3 * cin, cout)
    th = _pick_row_tile(h, 4 * w * (9 * cin + 3 * cout))
    g = h // th

    kern = functools.partial(_conv3x3_kernel, apply_relu=apply_relu,
                             emit_stats=emit_stats)
    in_specs = [
        # one halo row above (clamped at the top border, masked in-kernel)
        pl.BlockSpec((1, 1, w, cin),
                     lambda ni, i: (ni, jnp.maximum(i * th - 1, 0), 0, 0)),
        # the th rows this tile produces
        pl.BlockSpec((1, th, w, cin), lambda ni, i: (ni, i, 0, 0)),
        # one halo row below (clamped at the bottom border, masked in-kernel)
        pl.BlockSpec((1, 1, w, cin),
                     lambda ni, i: (ni, jnp.minimum((i + 1) * th, h - 1), 0, 0)),
        # weights / bias stay VMEM-resident across the whole grid
        pl.BlockSpec((3, 3 * cin, cout), lambda ni, i: (0, 0, 0)),
        pl.BlockSpec((1, cout), lambda ni, i: (0, 0)),
    ]
    out_shape = jax.ShapeDtypeStruct((n, h, w, cout), jnp.float32)
    out_specs = pl.BlockSpec((1, th, w, cout), lambda ni, i: (ni, i, 0, 0))
    if emit_stats:
        out_shape = (out_shape, jax.ShapeDtypeStruct((n, g, 2, cout), jnp.float32))
        out_specs = (out_specs,
                     pl.BlockSpec((1, 1, 2, cout), lambda ni, i: (ni, i, 0, 0)))

    return pl.pallas_call(
        kern,
        grid=(n, g),
        in_specs=in_specs,
        out_specs=out_specs,
        out_shape=out_shape,
        compiler_params=pltpu.CompilerParams(
            dimension_semantics=("parallel", "parallel"),
            vmem_limit_bytes=VMEM_LIMIT_BYTES),
    )(x, x, x, w3, b.reshape(1, cout))


def _bn_scale_shift(stats, gamma, beta, count):
    # stats: (N, G, 2, C) per-tile partial (sum, sum_sq) -> per-channel affine.
    tot = jnp.sum(stats, axis=(0, 1))                         # (2, C)
    mean = tot[0] / count
    var = tot[1] / count - mean * mean                        # biased var (training-mode BN)
    scale = gamma * jax.lax.rsqrt(var + BN_EPS)
    shift = beta - mean * scale
    return scale.reshape(1, -1), shift.reshape(1, -1)


def bn_relu(x, scale, shift, *, pool):
    n, h, w, c = x.shape
    th = _pick_row_tile(h, 4 * w * 5 * c, even=pool)
    g = h // th
    oh, ow = (h // 2, w // 2) if pool else (h, w)
    ot = th // 2 if pool else th
    return pl.pallas_call(
        functools.partial(_bn_act_kernel, pool=pool),
        grid=(n, g),
        in_specs=[
            pl.BlockSpec((1, th, w, c), lambda ni, i: (ni, i, 0, 0)),
            pl.BlockSpec((1, c), lambda ni, i: (0, 0)),
            pl.BlockSpec((1, c), lambda ni, i: (0, 0)),
        ],
        out_specs=pl.BlockSpec((1, ot, ow, c), lambda ni, i: (ni, i, 0, 0)),
        out_shape=jax.ShapeDtypeStruct((n, oh, ow, c), jnp.float32),
        compiler_params=pltpu.CompilerParams(
            dimension_semantics=("parallel", "parallel"),
            vmem_limit_bytes=VMEM_LIMIT_BYTES),
    )(x, scale, shift)


def fc_layer(x2d, w_pad, b_pad, num_classes):
    n, f = x2d.shape
    kp = w_pad.shape[-1]
    tf, gk, f_pad, nsplit = _fc_tiling(f)
    assert w_pad.shape[0] == f_pad, "fc weight must be padded via prepare_params"
    if f_pad > f:
        x2d = jnp.pad(x2d, ((0, 0), (0, f_pad - f)))
    gk_per = gk // nsplit

    out = pl.pallas_call(
        _fc_kernel,
        grid=(nsplit, gk_per),
        in_specs=[
            pl.BlockSpec((n, tf), lambda p, k: (0, p * gk_per + k)),
            pl.BlockSpec((tf, kp), lambda p, k: (p * gk_per + k, 0)),
        ],
        out_specs=pl.BlockSpec((1, n, kp), lambda p, k: (p, 0, 0)),
        out_shape=jax.ShapeDtypeStruct((nsplit, n, kp), jnp.float32),
        scratch_shapes=[pltpu.VMEM((n, kp), jnp.float32)],
        compiler_params=pltpu.CompilerParams(
            dimension_semantics=("parallel", "arbitrary"),
            vmem_limit_bytes=VMEM_LIMIT_BYTES),
    )(x2d, w_pad)
    return (jnp.sum(out, axis=0) + b_pad)[:, :num_classes]


# ---------------------------------------------------------------------------
# Forward pass + parameter handling
# ---------------------------------------------------------------------------
def classify_forward(x_nchw, p, num_classes=2):
    # NCHW -> NHWC at the API boundary only.
    x = jnp.transpose(x_nchw, (0, 2, 3, 1))
    y1, s1 = conv3x3(x, p["w1"], p["b1"], emit_stats=True)         # conv1 (+ BN partials)
    sc1, sh1 = _bn_scale_shift(s1, p["g1"], p["bt1"],
                               count=y1.shape[0] * y1.shape[1] * y1.shape[2])
    x = bn_relu(y1, sc1, sh1, pool=True)                           # bn1 + relu1 + pool (fused)
    x = conv3x3(x, p["w2"], p["b2"], apply_relu=True)              # conv2 + relu2 (fused)
    y3, s3 = conv3x3(x, p["w3"], p["b3"], emit_stats=True)         # conv3 (+ BN partials)
    sc3, sh3 = _bn_scale_shift(s3, p["g3"], p["bt3"],
                               count=y3.shape[0] * y3.shape[1] * y3.shape[2])
    x = bn_relu(y3, sc3, sh3, pool=False)                          # bn3 + relu3 (fused)
    flat = x.reshape(x.shape[0], -1)                               # HWC flatten (fc weight pre-permuted)
    return fc_layer(flat, p["fcw"], p["fcb"], num_classes)         # fc


def init_raw_params(key, spatial, num_classes=2):
    """Parameters in the original PyTorch layouts."""
    ks = jax.random.split(key, 4)
    s = 0.05
    pooled = spatial // 2
    fc_in = 32 * pooled * pooled
    return {
        "conv1_w": s * jax.random.normal(ks[0], (12, 3, 3, 3), jnp.float32),
        "conv1_b": jnp.zeros((12,), jnp.float32),
        "bn1_g": jnp.ones((12,), jnp.float32),
        "bn1_b": jnp.zeros((12,), jnp.float32),
        "conv2_w": s * jax.random.normal(ks[1], (20, 12, 3, 3), jnp.float32),
        "conv2_b": jnp.zeros((20,), jnp.float32),
        "conv3_w": s * jax.random.normal(ks[2], (32, 20, 3, 3), jnp.float32),
        "conv3_b": jnp.zeros((32,), jnp.float32),
        "bn3_g": jnp.ones((32,), jnp.float32),
        "bn3_b": jnp.zeros((32,), jnp.float32),
        "fc_w": s * jax.random.normal(ks[3], (num_classes, fc_in), jnp.float32),
        "fc_b": jnp.zeros((num_classes,), jnp.float32),
    }


def prepare_params(raw, spatial, num_classes=2, fc_weight_dtype=jnp.float32):
    """One-time weight re-layout (done at load time, not per forward)."""
    pooled = spatial // 2
    fc_in = 32 * pooled * pooled

    def conv_w(w):
        # PyTorch (Cout, Cin, kh, kw) -> (kw [dx], kh*Cin [dy,cin], Cout) to match
        # the kernel's dy-concat patches and per-dx matmuls.
        co, ci, kh, kw = w.shape
        return jnp.transpose(w, (3, 2, 1, 0)).reshape(kw, kh * ci, co)

    # fc: re-index PyTorch's CHW-flatten columns to our HWC flatten, pad the
    # class dim to 128 lanes (lane-dense store) and the feature dim to the fc
    # tiling (guards the non-divisible case at any input size).
    k = raw["fc_w"].shape[0]
    wf = raw["fc_w"].reshape(k, 32, pooled, pooled)
    wf = jnp.transpose(wf, (2, 3, 1, 0)).reshape(fc_in, k)
    wf = jnp.pad(wf, ((0, 0), (0, LANES - k)))
    _, _, f_pad, _ = _fc_tiling(fc_in)
    if f_pad > fc_in:
        wf = jnp.pad(wf, ((0, f_pad - fc_in), (0, 0)))
    # fc_weight_dtype=jnp.bfloat16 halves the dominant HBM stream (off by default: exact f32)
    wf = wf.astype(fc_weight_dtype)
    bf = jnp.pad(raw["fc_b"], (0, LANES - k)).reshape(1, LANES)

    return {
        "w1": conv_w(raw["conv1_w"]), "b1": raw["conv1_b"],
        "g1": raw["bn1_g"], "bt1": raw["bn1_b"],
        "w2": conv_w(raw["conv2_w"]), "b2": raw["conv2_b"],
        "w3": conv_w(raw["conv3_w"]), "b3": raw["conv3_b"],
        "g3": raw["bn3_g"], "bt3": raw["bn3_b"],
        "fcw": wf, "fcb": bf,
    }


# ---------------------------------------------------------------------------
# Plain-XLA reference of the PyTorch forward (training-mode BatchNorm)
# ---------------------------------------------------------------------------
def _reference_forward(x_nchw, raw, num_classes=2):
    hi = jax.lax.Precision.HIGHEST

    def conv(x, w, b):
        y = jax.lax.conv_general_dilated(
            x, w, window_strides=(1, 1), padding=((1, 1), (1, 1)),
            dimension_numbers=("NCHW", "OIHW", "NCHW"), precision=hi)
        return y + b[None, :, None, None]

    def bn(x, g, b):
        mean = x.mean(axis=(0, 2, 3), keepdims=True)
        var = ((x - mean) ** 2).mean(axis=(0, 2, 3), keepdims=True)
        return ((x - mean) * jax.lax.rsqrt(var + BN_EPS) * g[None, :, None, None]
                + b[None, :, None, None])

    y = conv(x_nchw, raw["conv1_w"], raw["conv1_b"])
    y = jax.nn.relu(bn(y, raw["bn1_g"], raw["bn1_b"]))
    y = jax.lax.reduce_window(y, -jnp.inf, jax.lax.max,
                              (1, 1, 2, 2), (1, 1, 2, 2), "VALID")
    y = jax.nn.relu(conv(y, raw["conv2_w"], raw["conv2_b"]))
    y = conv(y, raw["conv3_w"], raw["conv3_b"])
    y = jax.nn.relu(bn(y, raw["bn3_g"], raw["bn3_b"]))
    flat = y.reshape(y.shape[0], -1)                              # CHW flatten (PyTorch order)
    return jnp.dot(flat, raw["fc_w"].T, precision=hi) + raw["fc_b"]


if __name__ == "__main__":
    key = jax.random.PRNGKey(0)
    k_x, k_p = jax.random.split(key)

    # Small shapes consistent with the module: N=2, C=3, H=W=16
    # (the original 224x224 -> fc in_features 32*112*112 scales to 32*8*8 here).
    N, C, H, W = 2, 3, 16, 16
    x = jax.random.normal(k_x, (N, C, H, W), jnp.float32)
    raw = init_raw_params(k_p, spatial=H, num_classes=2)
    params = prepare_params(raw, spatial=H, num_classes=2)

    logits = jax.jit(classify_forward)(x, params)
    jax.block_until_ready(logits)

    assert logits.shape == (N, 2), logits.shape
    assert bool(jnp.all(jnp.isfinite(logits)))

    ref = _reference_forward(x, raw)
    max_err = float(jnp.max(jnp.abs(logits - ref)))
    assert jnp.allclose(logits, ref, rtol=5e-2, atol=5e-2), (
        "mismatch vs XLA reference", max_err)
    print("KERNEL_OK")
</pallas_src>

<mosaic_0001>
module attributes {stable_mosaic.version = 11 : i64} {
  func.func @_bn_act_kernel(%arg0: i32, %arg1: i32, %arg2: memref<1x16x16x12xf32, #tpu.memory_space<vmem>>, %arg3: memref<1x12xf32, #tpu.memory_space<vmem>>, %arg4: memref<1x12xf32, #tpu.memory_space<vmem>>, %arg5: memref<1x8x8x12xf32, #tpu.memory_space<vmem>>) attributes {dimension_semantics = [#tpu.dimension_semantics<parallel>, #tpu.dimension_semantics<parallel>], iteration_bounds = array<i64: 2, 1>, scalar_prefetch = 0 : i64, scratch_operands = 0 : i64, tpu.core_type = #tpu.core_type<tc>, window_params = [{transform_indices = @transform_0, window_bounds = array<i64: 1, 16, 16, 12>}, {pipeline_mode = #tpu.pipeline_mode<synchronous>, transform_indices = @transform_1, window_bounds = array<i64: 1, 12>}, {pipeline_mode = #tpu.pipeline_mode<synchronous>, transform_indices = @transform_2, window_bounds = array<i64: 1, 12>}, {transform_indices = @transform_3, window_bounds = array<i64: 1, 8, 8, 12>}]} {
    %c0 = arith.constant 0 : index
    %c0_0 = arith.constant 0 : index
    %c0_1 = arith.constant 0 : index
    %c0_2 = arith.constant 0 : index
    %0 = vector.load %arg2[%c0, %c0_0, %c0_1, %c0_2] : memref<1x16x16x12xf32, #tpu.memory_space<vmem>>, vector<1x16x16x12xf32>
    %1 = vector.shape_cast %0 : vector<1x16x16x12xf32> to vector<16x16x12xf32>
    %c0_3 = arith.constant 0 : index
    %c0_4 = arith.constant 0 : index
    %2 = vector.load %arg3[%c0_3, %c0_4] : memref<1x12xf32, #tpu.memory_space<vmem>>, vector<1x12xf32>
    %3 = vector.shape_cast %2 : vector<1x12xf32> to vector<1x1x12xf32>
    %4 = vector.broadcast %3 : vector<1x1x12xf32> to vector<16x16x12xf32>
    %5 = arith.mulf %1, %4 : vector<16x16x12xf32>
    %c0_5 = arith.constant 0 : index
    %c0_6 = arith.constant 0 : index
    %6 = vector.load %arg4[%c0_5, %c0_6] : memref<1x12xf32, #tpu.memory_space<vmem>>, vector<1x12xf32>
    %7 = vector.shape_cast %6 : vector<1x12xf32> to vector<1x1x12xf32>
    %8 = vector.broadcast %7 : vector<1x1x12xf32> to vector<16x16x12xf32>
    %9 = arith.addf %5, %8 : vector<16x16x12xf32>
    %cst = arith.constant 0.000000e+00 : f32
    %10 = vector.broadcast %cst : f32 to vector<16x16x12xf32>
    %11 = arith.maximumf %9, %10 : vector<16x16x12xf32>
    %12 = vector.shape_cast %11 : vector<16x16x12xf32> to vector<8x2x16x12xf32>
    %cst_7 = arith.constant dense<0xFF800000> : vector<8x16x12xf32>
    %13 = vector.multi_reduction <maximumf>, %12, %cst_7 [1] : vector<8x2x16x12xf32> to vector<8x16x12xf32>
    %14 = vector.shape_cast %13 : vector<8x16x12xf32> to vector<8x8x2x12xf32>
    %cst_8 = arith.constant dense<0xFF800000> : vector<8x8x12xf32>
    %15 = vector.multi_reduction <maximumf>, %14, %cst_8 [2] : vector<8x8x2x12xf32> to vector<8x8x12xf32>
    %16 = vector.shape_cast %15 : vector<8x8x12xf32> to vector<1x8x8x12xf32>
    %c0_9 = arith.constant 0 : index
    %c0_10 = arith.constant 0 : index
    %c0_11 = arith.constant 0 : index
    %c0_12 = arith.constant 0 : index
    %17 = vector.load %arg5[%c0_9, %c0_10, %c0_11, %c0_12] : memref<1x8x8x12xf32, #tpu.memory_space<vmem>>, vector<1x8x8x12xf32>
    tpu.vector_store %arg5[%c0_9, %c0_10, %c0_11, %c0_12], %16 {strides = array<i32>} : memref<1x8x8x12xf32, #tpu.memory_space<vmem>>, vector<1x8x8x12xf32>,
    return
  }
  func.func @transform_0(%arg0: i32, %arg1: i32) -> (i32, i32, i32, i32) {
    %c0_i32 = arith.constant 0 : i32
    %c0_i32_0 = arith.constant 0 : i32
    %c0_i32_1 = arith.constant 0 : i32
    return %arg0, %arg1, %c0_i32, %c0_i32_0 : i32, i32, i32, i32
  }
  func.func @transform_1(%arg0: i32, %arg1: i32) -> (i32, i32) {
    %c0_i32 = arith.constant 0 : i32
    %c0_i32_0 = arith.constant 0 : i32
    %c0_i32_1 = arith.constant 0 : i32
    return %c0_i32, %c0_i32_0 : i32, i32
  }
  func.func @transform_2(%arg0: i32, %arg1: i32) -> (i32, i32) {
    %c0_i32 = arith.constant 0 : i32
    %c0_i32_0 = arith.constant 0 : i32
    %c0_i32_1 = arith.constant 0 : i32
    return %c0_i32, %c0_i32_0 : i32, i32
  }
  func.func @transform_3(%arg0: i32, %arg1: i32) -> (i32, i32, i32, i32) {
    %c0_i32 = arith.constant 0 : i32
    %c0_i32_0 = arith.constant 0 : i32
    %c0_i32_1 = arith.constant 0 : i32
    return %arg0, %arg1, %c0_i32, %c0_i32_0 : i32, i32, i32, i32
  }
}

module attributes {stable_mosaic.version = 11 : i64} {
  func.func @_conv3x3_kernel(%arg0: i32, %arg1: i32, %arg2: memref<1x1x16x3xf32, #tpu.memory_space<vmem>>, %arg3: memref<1x16x16x3xf32, #tpu.memory_space<vmem>>, %arg4: memref<1x1x16x3xf32, #tpu.memory_space<vmem>>, %arg5: memref<3x9x12xf32, #tpu.memory_space<vmem>>, %arg6: memref<1x12xf32, #tpu.memory_space<vmem>>, %arg7: memref<1x16x16x12xf32, #tpu.memory_space<vmem>>, %arg8: memref<1x1x2x12xf32, #tpu.memory_space<vmem>>) attributes {dimension_semantics = [#tpu.dimension_semantics<parallel>, #tpu.dimension_semantics<parallel>], iteration_bounds = array<i64: 2, 1>, scalar_prefetch = 0 : i64, scratch_operands = 0 : i64, tpu.core_type = #tpu.core_type<tc>, window_params = [{transform_indices = @transform_0, window_bounds = array<i64: 1, 1, 16, 3>}, {transform_indices = @transform_1, window_bounds = array<i64: 1, 16, 16, 3>}, {transform_indices = @transform_2, window_bounds = array<i64: 1, 1, 16, 3>}, {pipeline_mode = #tpu.pipeline_mode<synchronous>, transform_indices = @transform_3, window_bounds = array<i64: 3, 9, 12>}, {pipeline_mode = #tpu.pipeline_mode<synchronous>, transform_indices = @transform_4, window_bounds = array<i64: 1, 12>}, {transform_indices = @transform_5, window_bounds = array<i64: 1, 16, 16, 12>}, {transform_indices = @transform_6, window_bounds = array<i64: 1, 1, 2, 12>}]} {
    %c0_i32 = arith.constant 0 : i32
    %0 = arith.cmpi eq, %arg1, %c0_i32 : i32
    %cst = arith.constant 0.000000e+00 : f32
    %1 = vector.broadcast %cst : f32 to vector<1x16x3xf32>
    %c0 = arith.constant 0 : index
    %c0_0 = arith.constant 0 : index
    %c0_1 = arith.constant 0 : index
    %c0_2 = arith.constant 0 : index
    %2 = vector.load %arg2[%c0, %c0_0, %c0_1, %c0_2] : memref<1x1x16x3xf32, #tpu.memory_space<vmem>>, vector<1x1x16x3xf32>
    %3 = vector.shape_cast %2 : vector<1x1x16x3xf32> to vector<1x16x3xf32>
    %4 = arith.select %0, %1, %3 : vector<1x16x3xf32>
    %c0_i32_3 = arith.constant 0 : i32
    %5 = arith.cmpi eq, %arg1, %c0_i32_3 : i32
    %cst_4 = arith.constant 0.000000e+00 : f32
    %6 = vector.broadcast %cst_4 : f32 to vector<1x16x3xf32>
    %c0_5 = arith.constant 0 : index
    %c0_6 = arith.constant 0 : index
    %c0_7 = arith.constant 0 : index
    %c0_8 = arith.constant 0 : index
    %7 = vector.load %arg4[%c0_5, %c0_6, %c0_7, %c0_8] : memref<1x1x16x3xf32, #tpu.memory_space<vmem>>, vector<1x1x16x3xf32>
    %8 = vector.shape_cast %7 : vector<1x1x16x3xf32> to vector<1x16x3xf32>
    %9 = arith.select %5, %6, %8 : vector<1x16x3xf32>
    %c0_9 = arith.constant 0 : index
    %c0_10 = arith.constant 0 : index
    %c0_11 = arith.constant 0 : index
    %c0_12 = arith.constant 0 : index
    %10 = vector.load %arg3[%c0_9, %c0_10, %c0_11, %c0_12] : memref<1x16x16x3xf32, #tpu.memory_space<vmem>>, vector<1x16x16x3xf32>
    %11 = vector.shape_cast %10 : vector<1x16x16x3xf32> to vector<16x16x3xf32>
    %12 = tpu.concatenate %4, %11, %9 in 0 : vector<1x16x3xf32>, vector<16x16x3xf32>, vector<1x16x3xf32> -> vector<18x16x3xf32>
    %13 = vector.extract_strided_slice %12 {offsets = [0, 0, 0], sizes = [16, 16, 3], strides = [1, 1, 1]} : vector<18x16x3xf32> to vector<16x16x3xf32>
    %14 = vector.extract_strided_slice %12 {offsets = [1, 0, 0], sizes = [16, 16, 3], strides = [1, 1, 1]} : vector<18x16x3xf32> to vector<16x16x3xf32>
    %15 = vector.extract_strided_slice %12 {offsets = [2, 0, 0], sizes = [16, 16, 3], strides = [1, 1, 1]} : vector<18x16x3xf32> to vector<16x16x3xf32>
    %16 = tpu.concatenate %13, %14, %15 in 2 : vector<16x16x3xf32>, vector<16x16x3xf32>, vector<16x16x3xf32> -> vector<16x16x9xf32>
    %17 = vector.shape_cast %16 : vector<16x16x9xf32> to vector<256x9xf32>
    %18 = tpu.iota {dimensions = array<i32: 1>} : vector<16x16x1xi32>
    %19 = vector.shape_cast %18 : vector<16x16x1xi32> to vector<256x1xi32>
    %c1 = arith.constant 1 : index
    %c0_13 = arith.constant 0 : index
    %c0_14 = arith.constant 0 : index
    %20 = vector.load %arg5[%c1, %c0_13, %c0_14] : memref<3x9x12xf32, #tpu.memory_space<vmem>>, vector<1x9x12xf32>
    %21 = vector.shape_cast %20 : vector<1x9x12xf32> to vector<9x12xf32>
    %cst_15 = arith.constant dense<0.000000e+00> : vector<256x12xf32>
    %22 = tpu.matmul %17, %21, %cst_15 {dimension_numbers = #tpu.dot_dimension_numbers<[1], [0], [0], [1], [0, 0, 1, 1], [], []>} : vector<256x9xf32>, vector<9x12xf32>, vector<256x12xf32> -> vector<256x12xf32>
    %c0_i32_16 = arith.constant 0 : i32
    %23 = vector.broadcast %c0_i32_16 : i32 to vector<256x1xi32>
    %24 = arith.cmpi eq, %19, %23 : vector<256x1xi32>
    %c1_i32 = arith.constant 1 : i32
    %25 = tpu.dynamic_rotate %17 by %c1_i32 dim 0 : vector<256x9xf32>, i32 -> vector<256x9xf32>
    %cst_17 = arith.constant 0.000000e+00 : f32
    %26 = vector.shape_cast %24 : vector<256x1xi1> to vector<256x1xi1>
    %27 = vector.broadcast %26 : vector<256x1xi1> to vector<256x9xi1>
    %28 = vector.broadcast %cst_17 : f32 to vector<256x9xf32>
    %29 = arith.select %27, %28, %25 : vector<256x9xi1>, vector<256x9xf32>
    %c0_18 = arith.constant 0 : index
    %c0_19 = arith.constant 0 : index
    %c0_20 = arith.constant 0 : index
    %30 = vector.load %arg5[%c0_18, %c0_19, %c0_20] : memref<3x9x12xf32, #tpu.memory_space<vmem>>, vector<1x9x12xf32>
    %31 = vector.shape_cast %30 : vector<1x9x12xf32> to vector<9x12xf32>
    %cst_21 = arith.constant dense<0.000000e+00> : vector<256x12xf32>
    %32 = tpu.matmul %29, %31, %cst_21 {dimension_numbers = #tpu.dot_dimension_numbers<[1], [0], [0], [1], [0, 0, 1, 1], [], []>} : vector<256x9xf32>, vector<9x12xf32>, vector<256x12xf32> -> vector<256x12xf32>
    %33 = arith.addf %22, %32 : vector<256x12xf32>
    %c15_i32 = arith.constant 15 : i32
    %34 = vector.broadcast %c15_i32 : i32 to vector<256x1xi32>
    %35 = arith.cmpi eq, %19, %34 : vector<256x1xi32>
    %c255_i32 = arith.constant 255 : i32
    %36 = tpu.dynamic_rotate %17 by %c255_i32 dim 0 : vector<256x9xf32>, i32 -> vector<256x9xf32>
    %cst_22 = arith.constant 0.000000e+00 : f32
    %37 = vector.shape_cast %35 : vector<256x1xi1> to vector<256x1xi1>
    %38 = vector.broadcast %37 : vector<256x1xi1> to vector<256x9xi1>
    %39 = vector.broadcast %cst_22 : f32 to vector<256x9xf32>
    %40 = arith.select %38, %39, %36 : vector<256x9xi1>, vector<256x9xf32>
    %c2 = arith.constant 2 : index
    %c0_23 = arith.constant 0 : index
    %c0_24 = arith.constant 0 : index
    %41 = vector.load %arg5[%c2, %c0_23, %c0_24] : memref<3x9x12xf32, #tpu.memory_space<vmem>>, vector<1x9x12xf32>
    %42 = vector.shape_cast %41 : vector<1x9x12xf32> to vector<9x12xf32>
    %cst_25 = arith.constant dense<0.000000e+00> : vector<256x12xf32>
    %43 = tpu.matmul %40, %42, %cst_25 {dimension_numbers = #tpu.dot_dimension_numbers<[1], [0], [0], [1], [0, 0, 1, 1], [], []>} : vector<256x9xf32>, vector<9x12xf32>, vector<256x12xf32> -> vector<256x12xf32>
    %44 = arith.addf %33, %43 : vector<256x12xf32>
    %c0_26 = arith.constant 0 : index
    %c0_27 = arith.constant 0 : index
    %45 = vector.load %arg6[%c0_26, %c0_27] : memref<1x12xf32, #tpu.memory_space<vmem>>, vector<1x12xf32>
    %46 = vector.broadcast %45 : vector<1x12xf32> to vector<256x12xf32>
    %47 = arith.addf %44, %46 : vector<256x12xf32>
    %cst_28 = arith.constant dense<0.000000e+00> : vector<12xf32>
    %48 = vector.multi_reduction <add>, %47, %cst_28 [0] : vector<256x12xf32> to vector<12xf32>
    %49 = vector.shape_cast %48 : vector<12xf32> to vector<1x12xf32>
    %50 = arith.mulf %47, %47 : vector<256x12xf32>
    %cst_29 = arith.constant dense<0.000000e+00> : vector<12xf32>
    %51 = vector.multi_reduction <add>, %50, %cst_29 [0] : vector<256x12xf32> to vector<12xf32>
    %52 = vector.shape_cast %51 : vector<12xf32> to vector<1x12xf32>
    %53 = tpu.concatenate %49, %52 in 0 : vector<1x12xf32>, vector<1x12xf32> -> vector<2x12xf32>
    %54 = vector.shape_cast %53 : vector<2x12xf32> to vector<1x1x2x12xf32>
    %c0_30 = arith.constant 0 : index
    %c0_31 = arith.constant 0 : index
    %c0_32 = arith.constant 0 : index
    %c0_33 = arith.constant 0 : index
    %55 = vector.load %arg8[%c0_30, %c0_31, %c0_32, %c0_33] : memref<1x1x2x12xf32, #tpu.memory_space<vmem>>, vector<1x1x2x12xf32>
    tpu.vector_store %arg8[%c0_30, %c0_31, %c0_32, %c0_33], %54 {strides = array<i32>} : memref<1x1x2x12xf32, #tpu.memory_space<vmem>>, vector<1x1x2x12xf32>,
    %56 = vector.shape_cast %47 : vector<256x12xf32> to vector<1x16x16x12xf32>
    %c0_34 = arith.constant 0 : index
    %c0_35 = arith.constant 0 : index
    %c0_36 = arith.constant 0 : index
    %c0_37 = arith.constant 0 : index
    %57 = vector.load %arg7[%c0_34, %c0_35, %c0_36, %c0_37] : memref<1x16x16x12xf32, #tpu.memory_space<vmem>>, vector<1x16x16x12xf32>
    tpu.vector_store %arg7[%c0_34, %c0_35, %c0_36, %c0_37], %56 {strides = array<i32>} : memref<1x16x16x12xf32, #tpu.memory_space<vmem>>, vector<1x16x16x12xf32>,
    return
  }
  func.func @transform_0(%arg0: i32, %arg1: i32) -> (i32, i32, i32, i32) {
    %c16_i32 = arith.constant 16 : i32
    %0 = arith.muli %arg1, %c16_i32 : i32
    %c1_i32 = arith.constant 1 : i32
    %1 = arith.subi %0, %c1_i32 : i32
    %c0_i32 = arith.constant 0 : i32
    %2 = arith.maxsi %1, %c0_i32 : i32
    %c0_i32_0 = arith.constant 0 : i32
    %c0_i32_1 = arith.constant 0 : i32
    %c0_i32_2 = arith.constant 0 : i32
    return %arg0, %2, %c0_i32_0, %c0_i32_1 : i32, i32, i32, i32
  }
  func.func @transform_1(%arg0: i32, %arg1: i32) -> (i32, i32, i32, i32) {
    %c0_i32 = arith.constant 0 : i32
    %c0_i32_0 = arith.constant 0 : i32
    %c0_i32_1 = arith.constant 0 : i32
    return %arg0, %arg1, %c0_i32, %c0_i32_0 : i32, i32, i32, i32
  }
  func.func @transform_2(%arg0: i32, %arg1: i32) -> (i32, i32, i32, i32) {
    %c1_i32 = arith.constant 1 : i32
    %0 = arith.addi %arg1, %c1_i32 : i32
    %c16_i32 = arith.constant 16 : i32
    %1 = arith.muli %0, %c16_i32 : i32
    %c15_i32 = arith.constant 15 : i32
    %2 = arith.minsi %1, %c15_i32 : i32
    %c0_i32 = arith.constant 0 : i32
    %c0_i32_0 = arith.constant 0 : i32
    %c0_i32_1 = arith.constant 0 : i32
    return %arg0, %2, %c0_i32, %c0_i32_0 : i32, i32, i32, i32
  }
  func.func @transform_3(%arg0: i32, %arg1: i32) -> (i32, i32, i32) {
    %c0_i32 = arith.constant 0 : i32
    %c0_i32_0 = arith.constant 0 : i32
    %c0_i32_1 = arith.constant 0 : i32
    %c0_i32_2 = arith.constant 0 : i32
    return %c0_i32, %c0_i32_0, %c0_i32_1 : i32, i32, i32
  }
  func.func @transform_4(%arg0: i32, %arg1: i32) -> (i32, i32) {
    %c0_i32 = arith.constant 0 : i32
    %c0_i32_0 = arith.constant 0 : i32
    %c0_i32_1 = arith.constant 0 : i32
    return %c0_i32, %c0_i32_0 : i32, i32
  }
  func.func @transform_5(%arg0: i32, %arg1: i32) -> (i32, i32, i32, i32) {
    %c0_i32 = arith.constant 0 : i32
    %c0_i32_0 = arith.constant 0 : i32
    %c0_i32_1 = arith.constant 0 : i32
    return %arg0, %arg1, %c0_i32, %c0_i32_0 : i32, i32, i32, i32
  }
  func.func @transform_6(%arg0: i32, %arg1: i32) -> (i32, i32, i32, i32) {
    %c0_i32 = arith.constant 0 : i32
    %c0_i32_0 = arith.constant 0 : i32
    %c0_i32_1 = arith.constant 0 : i32
    return %arg0, %arg1, %c0_i32, %c0_i32_0 : i32, i32, i32, i32
  }
}

module attributes {stable_mosaic.version = 11 : i64} {
  func.func @_conv3x3_kernel(%arg0: i32, %arg1: i32, %arg2: memref<1x1x8x12xf32, #tpu.memory_space<vmem>>, %arg3: memref<1x8x8x12xf32, #tpu.memory_space<vmem>>, %arg4: memref<1x1x8x12xf32, #tpu.memory_space<vmem>>, %arg5: memref<3x36x20xf32, #tpu.memory_space<vmem>>, %arg6: memref<1x20xf32, #tpu.memory_space<vmem>>, %arg7: memref<1x8x8x20xf32, #tpu.memory_space<vmem>>) attributes {dimension_semantics = [#tpu.dimension_semantics<parallel>, #tpu.dimension_semantics<parallel>], iteration_bounds = array<i64: 2, 1>, scalar_prefetch = 0 : i64, scratch_operands = 0 : i64, tpu.core_type = #tpu.core_type<tc>, window_params = [{transform_indices = @transform_0, window_bounds = array<i64: 1, 1, 8, 12>}, {transform_indices = @transform_1, window_bounds = array<i64: 1, 8, 8, 12>}, {transform_indices = @transform_2, window_bounds = array<i64: 1, 1, 8, 12>}, {pipeline_mode = #tpu.pipeline_mode<synchronous>, transform_indices = @transform_3, window_bounds = array<i64: 3, 36, 20>}, {pipeline_mode = #tpu.pipeline_mode<synchronous>, transform_indices = @transform_4, window_bounds = array<i64: 1, 20>}, {transform_indices = @transform_5, window_bounds = array<i64: 1, 8, 8, 20>}]} {
    %c0_i32 = arith.constant 0 : i32
    %0 = arith.cmpi eq, %arg1, %c0_i32 : i32
    %cst = arith.constant 0.000000e+00 : f32
    %1 = vector.broadcast %cst : f32 to vector<1x8x12xf32>
    %c0 = arith.constant 0 : index
    %c0_0 = arith.constant 0 : index
    %c0_1 = arith.constant 0 : index
    %c0_2 = arith.constant 0 : index
    %2 = vector.load %arg2[%c0, %c0_0, %c0_1, %c0_2] : memref<1x1x8x12xf32, #tpu.memory_space<vmem>>, vector<1x1x8x12xf32>
    %3 = vector.shape_cast %2 : vector<1x1x8x12xf32> to vector<1x8x12xf32>
    %4 = arith.select %0, %1, %3 : vector<1x8x12xf32>
    %c0_i32_3 = arith.constant 0 : i32
    %5 = arith.cmpi eq, %arg1, %c0_i32_3 : i32
    %cst_4 = arith.constant 0.000000e+00 : f32
    %6 = vector.broadcast %cst_4 : f32 to vector<1x8x12xf32>
    %c0_5 = arith.constant 0 : index
    %c0_6 = arith.constant 0 : index
    %c0_7 = arith.constant 0 : index
    %c0_8 = arith.constant 0 : index
    %7 = vector.load %arg4[%c0_5, %c0_6, %c0_7, %c0_8] : memref<1x1x8x12xf32, #tpu.memory_space<vmem>>, vector<1x1x8x12xf32>
    %8 = vector.shape_cast %7 : vector<1x1x8x12xf32> to vector<1x8x12xf32>
    %9 = arith.select %5, %6, %8 : vector<1x8x12xf32>
    %c0_9 = arith.constant 0 : index
    %c0_10 = arith.constant 0 : index
    %c0_11 = arith.constant 0 : index
    %c0_12 = arith.constant 0 : index
    %10 = vector.load %arg3[%c0_9, %c0_10, %c0_11, %c0_12] : memref<1x8x8x12xf32, #tpu.memory_space<vmem>>, vector<1x8x8x12xf32>
    %11 = vector.shape_cast %10 : vector<1x8x8x12xf32> to vector<8x8x12xf32>
    %12 = tpu.concatenate %4, %11, %9 in 0 : vector<1x8x12xf32>, vector<8x8x12xf32>, vector<1x8x12xf32> -> vector<10x8x12xf32>
    %13 = vector.extract_strided_slice %12 {offsets = [0, 0, 0], sizes = [8, 8, 12], strides = [1, 1, 1]} : vector<10x8x12xf32> to vector<8x8x12xf32>
    %14 = vector.extract_strided_slice %12 {offsets = [1, 0, 0], sizes = [8, 8, 12], strides = [1, 1, 1]} : vector<10x8x12xf32> to vector<8x8x12xf32>
    %15 = vector.extract_strided_slice %12 {offsets = [2, 0, 0], sizes = [8, 8, 12], strides = [1, 1, 1]} : vector<10x8x12xf32> to vector<8x8x12xf32>
    %16 = tpu.concatenate %13, %14, %15 in 2 : vector<8x8x12xf32>, vector<8x8x12xf32>, vector<8x8x12xf32> -> vector<8x8x36xf32>
    %17 = vector.shape_cast %16 : vector<8x8x36xf32> to vector<64x36xf32>
    %18 = tpu.iota {dimensions = array<i32: 1>} : vector<8x8x1xi32>
    %19 = vector.shape_cast %18 : vector<8x8x1xi32> to vector<64x1xi32>
    %c1 = arith.constant 1 : index
    %c0_13 = arith.constant 0 : index
    %c0_14 = arith.constant 0 : index
    %20 = vector.load %arg5[%c1, %c0_13, %c0_14] : memref<3x36x20xf32, #tpu.memory_space<vmem>>, vector<1x36x20xf32>
    %21 = vector.shape_cast %20 : vector<1x36x20xf32> to vector<36x20xf32>
    %cst_15 = arith.constant dense<0.000000e+00> : vector<64x20xf32>
    %22 = tpu.matmul %17, %21, %cst_15 {dimension_numbers = #tpu.dot_dimension_numbers<[1], [0], [0], [1], [0, 0, 1, 1], [], []>} : vector<64x36xf32>, vector<36x20xf32>, vector<64x20xf32> -> vector<64x20xf32>
    %c0_i32_16 = arith.constant 0 : i32
    %23 = vector.broadcast %c0_i32_16 : i32 to vector<64x1xi32>
    %24 = arith.cmpi eq, %19, %23 : vector<64x1xi32>
    %c1_i32 = arith.constant 1 : i32
    %25 = tpu.dynamic_rotate %17 by %c1_i32 dim 0 : vector<64x36xf32>, i32 -> vector<64x36xf32>
    %cst_17 = arith.constant 0.000000e+00 : f32
    %26 = vector.shape_cast %24 : vector<64x1xi1> to vector<64x1xi1>
    %27 = vector.broadcast %26 : vector<64x1xi1> to vector<64x36xi1>
    %28 = vector.broadcast %cst_17 : f32 to vector<64x36xf32>
    %29 = arith.select %27, %28, %25 : vector<64x36xi1>, vector<64x36xf32>
    %c0_18 = arith.constant 0 : index
    %c0_19 = arith.constant 0 : index
    %c0_20 = arith.constant 0 : index
    %30 = vector.load %arg5[%c0_18, %c0_19, %c0_20] : memref<3x36x20xf32, #tpu.memory_space<vmem>>, vector<1x36x20xf32>
    %31 = vector.shape_cast %30 : vector<1x36x20xf32> to vector<36x20xf32>
    %cst_21 = arith.constant dense<0.000000e+00> : vector<64x20xf32>
    %32 = tpu.matmul %29, %31, %cst_21 {dimension_numbers = #tpu.dot_dimension_numbers<[1], [0], [0], [1], [0, 0, 1, 1], [], []>} : vector<64x36xf32>, vector<36x20xf32>, vector<64x20xf32> -> vector<64x20xf32>
    %33 = arith.addf %22, %32 : vector<64x20xf32>
    %c7_i32 = arith.constant 7 : i32
    %34 = vector.broadcast %c7_i32 : i32 to vector<64x1xi32>
    %35 = arith.cmpi eq, %19, %34 : vector<64x1xi32>
    %c63_i32 = arith.constant 63 : i32
    %36 = tpu.dynamic_rotate %17 by %c63_i32 dim 0 : vector<64x36xf32>, i32 -> vector<64x36xf32>
    %cst_22 = arith.constant 0.000000e+00 : f32
    %37 = vector.shape_cast %35 : vector<64x1xi1> to vector<64x1xi1>
    %38 = vector.broadcast %37 : vector<64x1xi1> to vector<64x36xi1>
    %39 = vector.broadcast %cst_22 : f32 to vector<64x36xf32>
    %40 = arith.select %38, %39, %36 : vector<64x36xi1>, vector<64x36xf32>
    %c2 = arith.constant 2 : index
    %c0_23 = arith.constant 0 : index
    %c0_24 = arith.constant 0 : index
    %41 = vector.load %arg5[%c2, %c0_23, %c0_24] : memref<3x36x20xf32, #tpu.memory_space<vmem>>, vector<1x36x20xf32>
    %42 = vector.shape_cast %41 : vector<1x36x20xf32> to vector<36x20xf32>
    %cst_25 = arith.constant dense<0.000000e+00> : vector<64x20xf32>
    %43 = tpu.matmul %40, %42, %cst_25 {dimension_numbers = #tpu.dot_dimension_numbers<[1], [0], [0], [1], [0, 0, 1, 1], [], []>} : vector<64x36xf32>, vector<36x20xf32>, vector<64x20xf32> -> vector<64x20xf32>
    %44 = arith.addf %33, %43 : vector<64x20xf32>
    %c0_26 = arith.constant 0 : index
    %c0_27 = arith.constant 0 : index
    %45 = vector.load %arg6[%c0_26, %c0_27] : memref<1x20xf32, #tpu.memory_space<vmem>>, vector<1x20xf32>
    %46 = vector.broadcast %45 : vector<1x20xf32> to vector<64x20xf32>
    %47 = arith.addf %44, %46 : vector<64x20xf32>
    %cst_28 = arith.constant 0.000000e+00 : f32
    %48 = vector.broadcast %cst_28 : f32 to vector<64x20xf32>
    %49 = arith.maximumf %47, %48 : vector<64x20xf32>
    %50 = vector.shape_cast %49 : vector<64x20xf32> to vector<1x8x8x20xf32>
    %c0_29 = arith.constant 0 : index
    %c0_30 = arith.constant 0 : index
    %c0_31 = arith.constant 0 : index
    %c0_32 = arith.constant 0 : index
    %51 = vector.load %arg7[%c0_29, %c0_30, %c0_31, %c0_32] : memref<1x8x8x20xf32, #tpu.memory_space<vmem>>, vector<1x8x8x20xf32>
    tpu.vector_store %arg7[%c0_29, %c0_30, %c0_31, %c0_32], %50 {strides = array<i32>} : memref<1x8x8x20xf32, #tpu.memory_space<vmem>>, vector<1x8x8x20xf32>,
    return
  }
  func.func @transform_0(%arg0: i32, %arg1: i32) -> (i32, i32, i32, i32) {
    %c8_i32 = arith.constant 8 : i32
    %0 = arith.muli %arg1, %c8_i32 : i32
    %c1_i32 = arith.constant 1 : i32
    %1 = arith.subi %0, %c1_i32 : i32
    %c0_i32 = arith.constant 0 : i32
    %2 = arith.maxsi %1, %c0_i32 : i32
    %c0_i32_0 = arith.constant 0 : i32
    %c0_i32_1 = arith.constant 0 : i32
    %c0_i32_2 = arith.constant 0 : i32
    return %arg0, %2, %c0_i32_0, %c0_i32_1 : i32, i32, i32, i32
  }
  func.func @transform_1(%arg0: i32, %arg1: i32) -> (i32, i32, i32, i32) {
    %c0_i32 = arith.constant 0 : i32
    %c0_i32_0 = arith.constant 0 : i32
    %c0_i32_1 = arith.constant 0 : i32
    return %arg0, %arg1, %c0_i32, %c0_i32_0 : i32, i32, i32, i32
  }
  func.func @transform_2(%arg0: i32, %arg1: i32) -> (i32, i32, i32, i32) {
    %c1_i32 = arith.constant 1 : i32
    %0 = arith.addi %arg1, %c1_i32 : i32
    %c8_i32 = arith.constant 8 : i32
    %1 = arith.muli %0, %c8_i32 : i32
    %c7_i32 = arith.constant 7 : i32
    %2 = arith.minsi %1, %c7_i32 : i32
    %c0_i32 = arith.constant 0 : i32
    %c0_i32_0 = arith.constant 0 : i32
    %c0_i32_1 = arith.constant 0 : i32
    return %arg0, %2, %c0_i32, %c0_i32_0 : i32, i32, i32, i32
  }
  func.func @transform_3(%arg0: i32, %arg1: i32) -> (i32, i32, i32) {
    %c0_i32 = arith.constant 0 : i32
    %c0_i32_0 = arith.constant 0 : i32
    %c0_i32_1 = arith.constant 0 : i32
    %c0_i32_2 = arith.constant 0 : i32
    return %c0_i32, %c0_i32_0, %c0_i32_1 : i32, i32, i32
  }
  func.func @transform_4(%arg0: i32, %arg1: i32) -> (i32, i32) {
    %c0_i32 = arith.constant 0 : i32
    %c0_i32_0 = arith.constant 0 : i32
    %c0_i32_1 = arith.constant 0 : i32
    return %c0_i32, %c0_i32_0 : i32, i32
  }
  func.func @transform_5(%arg0: i32, %arg1: i32) -> (i32, i32, i32, i32) {
    %c0_i32 = arith.constant 0 : i32
    %c0_i32_0 = arith.constant 0 : i32
    %c0_i32_1 = arith.constant 0 : i32
    return %arg0, %arg1, %c0_i32, %c0_i32_0 : i32, i32, i32, i32
  }
}

module attributes {stable_mosaic.version = 11 : i64} {
  func.func @_conv3x3_kernel(%arg0: i32, %arg1: i32, %arg2: memref<1x1x8x20xf32, #tpu.memory_space<vmem>>, %arg3: memref<1x8x8x20xf32, #tpu.memory_space<vmem>>, %arg4: memref<1x1x8x20xf32, #tpu.memory_space<vmem>>, %arg5: memref<3x60x32xf32, #tpu.memory_space<vmem>>, %arg6: memref<1x32xf32, #tpu.memory_space<vmem>>, %arg7: memref<1x8x8x32xf32, #tpu.memory_space<vmem>>, %arg8: memref<1x1x2x32xf32, #tpu.memory_space<vmem>>) attributes {dimension_semantics = [#tpu.dimension_semantics<parallel>, #tpu.dimension_semantics<parallel>], iteration_bounds = array<i64: 2, 1>, scalar_prefetch = 0 : i64, scratch_operands = 0 : i64, tpu.core_type = #tpu.core_type<tc>, window_params = [{transform_indices = @transform_0, window_bounds = array<i64: 1, 1, 8, 20>}, {transform_indices = @transform_1, window_bounds = array<i64: 1, 8, 8, 20>}, {transform_indices = @transform_2, window_bounds = array<i64: 1, 1, 8, 20>}, {pipeline_mode = #tpu.pipeline_mode<synchronous>, transform_indices = @transform_3, window_bounds = array<i64: 3, 60, 32>}, {pipeline_mode = #tpu.pipeline_mode<synchronous>, transform_indices = @transform_4, window_bounds = array<i64: 1, 32>}, {transform_indices = @transform_5, window_bounds = array<i64: 1, 8, 8, 32>}, {transform_indices = @transform_6, window_bounds = array<i64: 1, 1, 2, 32>}]} {
    %c0_i32 = arith.constant 0 : i32
    %0 = arith.cmpi eq, %arg1, %c0_i32 : i32
    %cst = arith.constant 0.000000e+00 : f32
    %1 = vector.broadcast %cst : f32 to vector<1x8x20xf32>
    %c0 = arith.constant 0 : index
    %c0_0 = arith.constant 0 : index
    %c0_1 = arith.constant 0 : index
    %c0_2 = arith.constant 0 : index
    %2 = vector.load %arg2[%c0, %c0_0, %c0_1, %c0_2] : memref<1x1x8x20xf32, #tpu.memory_space<vmem>>, vector<1x1x8x20xf32>
    %3 = vector.shape_cast %2 : vector<1x1x8x20xf32> to vector<1x8x20xf32>
    %4 = arith.select %0, %1, %3 : vector<1x8x20xf32>
    %c0_i32_3 = arith.constant 0 : i32
    %5 = arith.cmpi eq, %arg1, %c0_i32_3 : i32
    %cst_4 = arith.constant 0.000000e+00 : f32
    %6 = vector.broadcast %cst_4 : f32 to vector<1x8x20xf32>
    %c0_5 = arith.constant 0 : index
    %c0_6 = arith.constant 0 : index
    %c0_7 = arith.constant 0 : index
    %c0_8 = arith.constant 0 : index
    %7 = vector.load %arg4[%c0_5, %c0_6, %c0_7, %c0_8] : memref<1x1x8x20xf32, #tpu.memory_space<vmem>>, vector<1x1x8x20xf32>
    %8 = vector.shape_cast %7 : vector<1x1x8x20xf32> to vector<1x8x20xf32>
    %9 = arith.select %5, %6, %8 : vector<1x8x20xf32>
    %c0_9 = arith.constant 0 : index
    %c0_10 = arith.constant 0 : index
    %c0_11 = arith.constant 0 : index
    %c0_12 = arith.constant 0 : index
    %10 = vector.load %arg3[%c0_9, %c0_10, %c0_11, %c0_12] : memref<1x8x8x20xf32, #tpu.memory_space<vmem>>, vector<1x8x8x20xf32>
    %11 = vector.shape_cast %10 : vector<1x8x8x20xf32> to vector<8x8x20xf32>
    %12 = tpu.concatenate %4, %11, %9 in 0 : vector<1x8x20xf32>, vector<8x8x20xf32>, vector<1x8x20xf32> -> vector<10x8x20xf32>
    %13 = vector.extract_strided_slice %12 {offsets = [0, 0, 0], sizes = [8, 8, 20], strides = [1, 1, 1]} : vector<10x8x20xf32> to vector<8x8x20xf32>
    %14 = vector.extract_strided_slice %12 {offsets = [1, 0, 0], sizes = [8, 8, 20], strides = [1, 1, 1]} : vector<10x8x20xf32> to vector<8x8x20xf32>
    %15 = vector.extract_strided_slice %12 {offsets = [2, 0, 0], sizes = [8, 8, 20], strides = [1, 1, 1]} : vector<10x8x20xf32> to vector<8x8x20xf32>
    %16 = tpu.concatenate %13, %14, %15 in 2 : vector<8x8x20xf32>, vector<8x8x20xf32>, vector<8x8x20xf32> -> vector<8x8x60xf32>
    %17 = vector.shape_cast %16 : vector<8x8x60xf32> to vector<64x60xf32>
    %18 = tpu.iota {dimensions = array<i32: 1>} : vector<8x8x1xi32>
    %19 = vector.shape_cast %18 : vector<8x8x1xi32> to vector<64x1xi32>
    %c1 = arith.constant 1 : index
    %c0_13 = arith.constant 0 : index
    %c0_14 = arith.constant 0 : index
    %20 = vector.load %arg5[%c1, %c0_13, %c0_14] : memref<3x60x32xf32, #tpu.memory_space<vmem>>, vector<1x60x32xf32>
    %21 = vector.shape_cast %20 : vector<1x60x32xf32> to vector<60x32xf32>
    %cst_15 = arith.constant dense<0.000000e+00> : vector<64x32xf32>
    %22 = tpu.matmul %17, %21, %cst_15 {dimension_numbers = #tpu.dot_dimension_numbers<[1], [0], [0], [1], [0, 0, 1, 1], [], []>} : vector<64x60xf32>, vector<60x32xf32>, vector<64x32xf32> -> vector<64x32xf32>
    %c0_i32_16 = arith.constant 0 : i32
    %23 = vector.broadcast %c0_i32_16 : i32 to vector<64x1xi32>
    %24 = arith.cmpi eq, %19, %23 : vector<64x1xi32>
    %c1_i32 = arith.constant 1 : i32
    %25 = tpu.dynamic_rotate %17 by %c1_i32 dim 0 : vector<64x60xf32>, i32 -> vector<64x60xf32>
    %cst_17 = arith.constant 0.000000e+00 : f32
    %26 = vector.shape_cast %24 : vector<64x1xi1> to vector<64x1xi1>
    %27 = vector.broadcast %26 : vector<64x1xi1> to vector<64x60xi1>
    %28 = vector.broadcast %cst_17 : f32 to vector<64x60xf32>
    %29 = arith.select %27, %28, %25 : vector<64x60xi1>, vector<64x60xf32>
    %c0_18 = arith.constant 0 : index
    %c0_19 = arith.constant 0 : index
    %c0_20 = arith.constant 0 : index
    %30 = vector.load %arg5[%c0_18, %c0_19, %c0_20] : memref<3x60x32xf32, #tpu.memory_space<vmem>>, vector<1x60x32xf32>
    %31 = vector.shape_cast %30 : vector<1x60x32xf32> to vector<60x32xf32>
    %cst_21 = arith.constant dense<0.000000e+00> : vector<64x32xf32>
    %32 = tpu.matmul %29, %31, %cst_21 {dimension_numbers = #tpu.dot_dimension_numbers<[1], [0], [0], [1], [0, 0, 1, 1], [], []>} : vector<64x60xf32>, vector<60x32xf32>, vector<64x32xf32> -> vector<64x32xf32>
    %33 = arith.addf %22, %32 : vector<64x32xf32>
    %c7_i32 = arith.constant 7 : i32
    %34 = vector.broadcast %c7_i32 : i32 to vector<64x1xi32>
    %35 = arith.cmpi eq, %19, %34 : vector<64x1xi32>
    %c63_i32 = arith.constant 63 : i32
    %36 = tpu.dynamic_rotate %17 by %c63_i32 dim 0 : vector<64x60xf32>, i32 -> vector<64x60xf32>
    %cst_22 = arith.constant 0.000000e+00 : f32
    %37 = vector.shape_cast %35 : vector<64x1xi1> to vector<64x1xi1>
    %38 = vector.broadcast %37 : vector<64x1xi1> to vector<64x60xi1>
    %39 = vector.broadcast %cst_22 : f32 to vector<64x60xf32>
    %40 = arith.select %38, %39, %36 : vector<64x60xi1>, vector<64x60xf32>
    %c2 = arith.constant 2 : index
    %c0_23 = arith.constant 0 : index
    %c0_24 = arith.constant 0 : index
    %41 = vector.load %arg5[%c2, %c0_23, %c0_24] : memref<3x60x32xf32, #tpu.memory_space<vmem>>, vector<1x60x32xf32>
    %42 = vector.shape_cast %41 : vector<1x60x32xf32> to vector<60x32xf32>
    %cst_25 = arith.constant dense<0.000000e+00> : vector<64x32xf32>
    %43 = tpu.matmul %40, %42, %cst_25 {dimension_numbers = #tpu.dot_dimension_numbers<[1], [0], [0], [1], [0, 0, 1, 1], [], []>} : vector<64x60xf32>, vector<60x32xf32>, vector<64x32xf32> -> vector<64x32xf32>
    %44 = arith.addf %33, %43 : vector<64x32xf32>
    %c0_26 = arith.constant 0 : index
    %c0_27 = arith.constant 0 : index
    %45 = vector.load %arg6[%c0_26, %c0_27] : memref<1x32xf32, #tpu.memory_space<vmem>>, vector<1x32xf32>
    %46 = vector.broadcast %45 : vector<1x32xf32> to vector<64x32xf32>
    %47 = arith.addf %44, %46 : vector<64x32xf32>
    %cst_28 = arith.constant dense<0.000000e+00> : vector<32xf32>
    %48 = vector.multi_reduction <add>, %47, %cst_28 [0] : vector<64x32xf32> to vector<32xf32>
    %49 = vector.shape_cast %48 : vector<32xf32> to vector<1x32xf32>
    %50 = arith.mulf %47, %47 : vector<64x32xf32>
    %cst_29 = arith.constant dense<0.000000e+00> : vector<32xf32>
    %51 = vector.multi_reduction <add>, %50, %cst_29 [0] : vector<64x32xf32> to vector<32xf32>
    %52 = vector.shape_cast %51 : vector<32xf32> to vector<1x32xf32>
    %53 = tpu.concatenate %49, %52 in 0 : vector<1x32xf32>, vector<1x32xf32> -> vector<2x32xf32>
    %54 = vector.shape_cast %53 : vector<2x32xf32> to vector<1x1x2x32xf32>
    %c0_30 = arith.constant 0 : index
    %c0_31 = arith.constant 0 : index
    %c0_32 = arith.constant 0 : index
    %c0_33 = arith.constant 0 : index
    %55 = vector.load %arg8[%c0_30, %c0_31, %c0_32, %c0_33] : memref<1x1x2x32xf32, #tpu.memory_space<vmem>>, vector<1x1x2x32xf32>
    tpu.vector_store %arg8[%c0_30, %c0_31, %c0_32, %c0_33], %54 {strides = array<i32>} : memref<1x1x2x32xf32, #tpu.memory_space<vmem>>, vector<1x1x2x32xf32>,
    %56 = vector.shape_cast %47 : vector<64x32xf32> to vector<1x8x8x32xf32>
    %c0_34 = arith.constant 0 : index
    %c0_35 = arith.constant 0 : index
    %c0_36 = arith.constant 0 : index
    %c0_37 = arith.constant 0 : index
    %57 = vector.load %arg7[%c0_34, %c0_35, %c0_36, %c0_37] : memref<1x8x8x32xf32, #tpu.memory_space<vmem>>, vector<1x8x8x32xf32>
    tpu.vector_store %arg7[%c0_34, %c0_35, %c0_36, %c0_37], %56 {strides = array<i32>} : memref<1x8x8x32xf32, #tpu.memory_space<vmem>>, vector<1x8x8x32xf32>,
    return
  }
  func.func @transform_0(%arg0: i32, %arg1: i32) -> (i32, i32, i32, i32) {
    %c8_i32 = arith.constant 8 : i32
    %0 = arith.muli %arg1, %c8_i32 : i32
    %c1_i32 = arith.constant 1 : i32
    %1 = arith.subi %0, %c1_i32 : i32
    %c0_i32 = arith.constant 0 : i32
    %2 = arith.maxsi %1, %c0_i32 : i32
    %c0_i32_0 = arith.constant 0 : i32
    %c0_i32_1 = arith.constant 0 : i32
    %c0_i32_2 = arith.constant 0 : i32
    return %arg0, %2, %c0_i32_0, %c0_i32_1 : i32, i32, i32, i32
  }
  func.func @transform_1(%arg0: i32, %arg1: i32) -> (i32, i32, i32, i32) {
    %c0_i32 = arith.constant 0 : i32
    %c0_i32_0 = arith.constant 0 : i32
    %c0_i32_1 = arith.constant 0 : i32
    return %arg0, %arg1, %c0_i32, %c0_i32_0 : i32, i32, i32, i32
  }
  func.func @transform_2(%arg0: i32, %arg1: i32) -> (i32, i32, i32, i32) {
    %c1_i32 = arith.constant 1 : i32
    %0 = arith.addi %arg1, %c1_i32 : i32
    %c8_i32 = arith.constant 8 : i32
    %1 = arith.muli %0, %c8_i32 : i32
    %c7_i32 = arith.constant 7 : i32
    %2 = arith.minsi %1, %c7_i32 : i32
    %c0_i32 = arith.constant 0 : i32
    %c0_i32_0 = arith.constant 0 : i32
    %c0_i32_1 = arith.constant 0 : i32
    return %arg0, %2, %c0_i32, %c0_i32_0 : i32, i32, i32, i32
  }
  func.func @transform_3(%arg0: i32, %arg1: i32) -> (i32, i32, i32) {
    %c0_i32 = arith.constant 0 : i32
    %c0_i32_0 = arith.constant 0 : i32
    %c0_i32_1 = arith.constant 0 : i32
    %c0_i32_2 = arith.constant 0 : i32
    return %c0_i32, %c0_i32_0, %c0_i32_1 : i32, i32, i32
  }
  func.func @transform_4(%arg0: i32, %arg1: i32) -> (i32, i32) {
    %c0_i32 = arith.constant 0 : i32
    %c0_i32_0 = arith.constant 0 : i32
    %c0_i32_1 = arith.constant 0 : i32
    return %c0_i32, %c0_i32_0 : i32, i32
  }
  func.func @transform_5(%arg0: i32, %arg1: i32) -> (i32, i32, i32, i32) {
    %c0_i32 = arith.constant 0 : i32
    %c0_i32_0 = arith.constant 0 : i32
    %c0_i32_1 = arith.constant 0 : i32
    return %arg0, %arg1, %c0_i32, %c0_i32_0 : i32, i32, i32, i32
  }
  func.func @transform_6(%arg0: i32, %arg1: i32) -> (i32, i32, i32, i32) {
    %c0_i32 = arith.constant 0 : i32
    %c0_i32_0 = arith.constant 0 : i32
    %c0_i32_1 = arith.constant 0 : i32
    return %arg0, %arg1, %c0_i32, %c0_i32_0 : i32, i32, i32, i32
  }
}

module attributes {stable_mosaic.version = 11 : i64} {
  func.func @_bn_act_kernel(%arg0: i32, %arg1: i32, %arg2: memref<1x8x8x32xf32, #tpu.memory_space<vmem>>, %arg3: memref<1x32xf32, #tpu.memory_space<vmem>>, %arg4: memref<1x32xf32, #tpu.memory_space<vmem>>, %arg5: memref<1x8x8x32xf32, #tpu.memory_space<vmem>>) attributes {dimension_semantics = [#tpu.dimension_semantics<parallel>, #tpu.dimension_semantics<parallel>], iteration_bounds = array<i64: 2, 1>, scalar_prefetch = 0 : i64, scratch_operands = 0 : i64, tpu.core_type = #tpu.core_type<tc>, window_params = [{transform_indices = @transform_0, window_bounds = array<i64: 1, 8, 8, 32>}, {pipeline_mode = #tpu.pipeline_mode<synchronous>, transform_indices = @transform_1, window_bounds = array<i64: 1, 32>}, {pipeline_mode = #tpu.pipeline_mode<synchronous>, transform_indices = @transform_2, window_bounds = array<i64: 1, 32>}, {transform_indices = @transform_3, window_bounds = array<i64: 1, 8, 8, 32>}]} {
    %c0 = arith.constant 0 : index
    %c0_0 = arith.constant 0 : index
    %c0_1 = arith.constant 0 : index
    %c0_2 = arith.constant 0 : index
    %0 = vector.load %arg2[%c0, %c0_0, %c0_1, %c0_2] : memref<1x8x8x32xf32, #tpu.memory_space<vmem>>, vector<1x8x8x32xf32>
    %1 = vector.shape_cast %0 : vector<1x8x8x32xf32> to vector<8x8x32xf32>
    %c0_3 = arith.constant 0 : index
    %c0_4 = arith.constant 0 : index
    %2 = vector.load %arg3[%c0_3, %c0_4] : memref<1x32xf32, #tpu.memory_space<vmem>>, vector<1x32xf32>
    %3 = vector.shape_cast %2 : vector<1x32xf32> to vector<1x1x32xf32>
    %4 = vector.broadcast %3 : vector<1x1x32xf32> to vector<8x8x32xf32>
    %5 = arith.mulf %1, %4 : vector<8x8x32xf32>
    %c0_5 = arith.constant 0 : index
    %c0_6 = arith.constant 0 : index
    %6 = vector.load %arg4[%c0_5, %c0_6] : memref<1x32xf32, #tpu.memory_space<vmem>>, vector<1x32xf32>
    %7 = vector.shape_cast %6 : vector<1x32xf32> to vector<1x1x32xf32>
    %8 = vector.broadcast %7 : vector<1x1x32xf32> to vector<8x8x32xf32>
    %9 = arith.addf %5, %8 : vector<8x8x32xf32>
    %cst = arith.constant 0.000000e+00 : f32
    %10 = vector.broadcast %cst : f32 to vector<8x8x32xf32>
    %11 = arith.maximumf %9, %10 : vector<8x8x32xf32>
    %12 = vector.shape_cast %11 : vector<8x8x32xf32> to vector<1x8x8x32xf32>
    %c0_7 = arith.constant 0 : index
    %c0_8 = arith.constant 0 : index
    %c0_9 = arith.constant 0 : index
    %c0_10 = arith.constant 0 : index
    %13 = vector.load %arg5[%c0_7, %c0_8, %c0_9, %c0_10] : memref<1x8x8x32xf32, #tpu.memory_space<vmem>>, vector<1x8x8x32xf32>
    tpu.vector_store %arg5[%c0_7, %c0_8, %c0_9, %c0_10], %12 {strides = array<i32>} : memref<1x8x8x32xf32, #tpu.memory_space<vmem>>, vector<1x8x8x32xf32>,
    return
  }
  func.func @transform_0(%arg0: i32, %arg1: i32) -> (i32, i32, i32, i32) {
    %c0_i32 = arith.constant 0 : i32
    %c0_i32_0 = arith.constant 0 : i32
    %c0_i32_1 = arith.constant 0 : i32
    return %arg0, %arg1, %c0_i32, %c0_i32_0 : i32, i32, i32, i32
  }
  func.func @transform_1(%arg0: i32, %arg1: i32) -> (i32, i32) {
    %c0_i32 = arith.constant 0 : i32
    %c0_i32_0 = arith.constant 0 : i32
    %c0_i32_1 = arith.constant 0 : i32
    return %c0_i32, %c0_i32_0 : i32, i32
  }
  func.func @transform_2(%arg0: i32, %arg1: i32) -> (i32, i32) {
    %c0_i32 = arith.constant 0 : i32
    %c0_i32_0 = arith.constant 0 : i32
    %c0_i32_1 = arith.constant 0 : i32
    return %c0_i32, %c0_i32_0 : i32, i32
  }
  func.func @transform_3(%arg0: i32, %arg1: i32) -> (i32, i32, i32, i32) {
    %c0_i32 = arith.constant 0 : i32
    %c0_i32_0 = arith.constant 0 : i32
    %c0_i32_1 = arith.constant 0 : i32
    return %arg0, %arg1, %c0_i32, %c0_i32_0 : i32, i32, i32, i32
  }
}

module attributes {stable_mosaic.version = 11 : i64} {
  func.func @_fc_kernel(%arg0: i32, %arg1: i32, %arg2: memref<2x2048xf32, #tpu.memory_space<vmem>>, %arg3: memref<2048x128xf32, #tpu.memory_space<vmem>>, %arg4: memref<1x2x128xf32, #tpu.memory_space<vmem>>, %arg5: memref<2x128xf32, #tpu.memory_space<vmem>>) attributes {dimension_semantics = [#tpu.dimension_semantics<parallel>, #tpu.dimension_semantics<arbitrary>], iteration_bounds = array<i64: 1, 1>, scalar_prefetch = 0 : i64, scratch_operands = 1 : i64, tpu.core_type = #tpu.core_type<tc>, window_params = [{transform_indices = @transform_0, window_bounds = array<i64: 2, 2048>}, {transform_indices = @transform_1, window_bounds = array<i64: 2048, 128>}, {transform_indices = @transform_2, window_bounds = array<i64: 1, 2, 128>}]} {
    %c0_i32 = arith.constant 0 : i32
    %0 = arith.cmpi eq, %arg1, %c0_i32 : i32
    %1 = arith.extui %0 : i1 to i32
    %c0_i32_0 = arith.constant 0 : i32
    %2 = arith.cmpi ne, %1, %c0_i32_0 : i32
    scf.if %2 {
      %cst_10 = arith.constant 0.000000e+00 : f32
      %12 = vector.broadcast %cst_10 : f32 to vector<2x128xf32>
      %c0_11 = arith.constant 0 : index
      %c0_12 = arith.constant 0 : index
      %13 = vector.load %arg5[%c0_11, %c0_12] : memref<2x128xf32, #tpu.memory_space<vmem>>, vector<2x128xf32>
      tpu.vector_store %arg5[%c0_11, %c0_12], %12 {strides = array<i32>} : memref<2x128xf32, #tpu.memory_space<vmem>>, vector<2x128xf32>,
    } else {
    }
    %c0 = arith.constant 0 : index
    %c0_1 = arith.constant 0 : index
    %3 = vector.load %arg5[%c0, %c0_1] : memref<2x128xf32, #tpu.memory_space<vmem>>, vector<2x128xf32>
    %c0_2 = arith.constant 0 : index
    %c0_3 = arith.constant 0 : index
    %4 = vector.load %arg2[%c0_2, %c0_3] : memref<2x2048xf32, #tpu.memory_space<vmem>>, vector<2x2048xf32>
    %c0_4 = arith.constant 0 : index
    %c0_5 = arith.constant 0 : index
    %5 = vector.load %arg3[%c0_4, %c0_5] : memref<2048x128xf32, #tpu.memory_space<vmem>>, vector<2048x128xf32>
    %cst = arith.constant dense<0.000000e+00> : vector<2x128xf32>
    %6 = tpu.matmul %4, %5, %cst {dimension_numbers = #tpu.dot_dimension_numbers<[1], [0], [0], [1], [0, 0, 1, 1], [], []>} : vector<2x2048xf32>, vector<2048x128xf32>, vector<2x128xf32> -> vector<2x128xf32>
    %7 = arith.addf %3, %6 : vector<2x128xf32>
    %c0_6 = arith.constant 0 : index
    %c0_7 = arith.constant 0 : index
    %8 = vector.load %arg5[%c0_6, %c0_7] : memref<2x128xf32, #tpu.memory_space<vmem>>, vector<2x128xf32>
    tpu.vector_store %arg5[%c0_6, %c0_7], %7 {strides = array<i32>} : memref<2x128xf32, #tpu.memory_space<vmem>>, vector<2x128xf32>,
    %c0_i32_8 = arith.constant 0 : i32
    %9 = arith.cmpi eq, %arg1, %c0_i32_8 : i32
    %10 = arith.extui %9 : i1 to i32
    %c0_i32_9 = arith.constant 0 : i32
    %11 = arith.cmpi ne, %10, %c0_i32_9 : i32
    scf.if %11 {
      %c0_10 = arith.constant 0 : index
      %c0_11 = arith.constant 0 : index
      %12 = vector.load %arg5[%c0_10, %c0_11] : memref<2x128xf32, #tpu.memory_space<vmem>>, vector<2x128xf32>
      %13 = vector.shape_cast %12 : vector<2x128xf32> to vector<1x2x128xf32>
      %c0_12 = arith.constant 0 : index
      %c0_13 = arith.constant 0 : index
      %c0_14 = arith.constant 0 : index
      %14 = vector.load %arg4[%c0_12, %c0_13, %c0_14] : memref<1x2x128xf32, #tpu.memory_space<vmem>>, vector<1x2x128xf32>
      tpu.vector_store %arg4[%c0_12, %c0_13, %c0_14], %13 {strides = array<i32>} : memref<1x2x128xf32, #tpu.memory_space<vmem>>, vector<1x2x128xf32>,
    } else {
    }
    return
  }
  func.func @transform_0(%arg0: i32, %arg1: i32) -> (i32, i32) {
    %c1_i32 = arith.constant 1 : i32
    %0 = arith.muli %arg0, %c1_i32 : i32
    %1 = arith.addi %0, %arg1 : i32
    %c0_i32 = arith.constant 0 : i32
    %c0_i32_0 = arith.constant 0 : i32
    return %c0_i32, %1 : i32, i32
  }
  func.func @transform_1(%arg0: i32, %arg1: i32) -> (i32, i32) {
    %c1_i32 = arith.constant 1 : i32
    %0 = arith.muli %arg0, %c1_i32 : i32
    %1 = arith.addi %0, %arg1 : i32
    %c0_i32 = arith.constant 0 : i32
    %c0_i32_0 = arith.constant 0 : i32
    return %1, %c0_i32 : i32, i32
  }
  func.func @transform_2(%arg0: i32, %arg1: i32) -> (i32, i32, i32) {
    %c0_i32 = arith.constant 0 : i32
    %c0_i32_0 = arith.constant 0 : i32
    %c0_i32_1 = arith.constant 0 : i32
    return %arg0, %c0_i32, %c0_i32_0 : i32, i32, i32
  }
}

</mosaic_0001>

<llo_original>
// kernel: classify_forward.7
$region0: #{classify_forward.7}
  #allocation0 [shape = 'u32[]', space=smem, size = 0x4, offset = 0x4, fixed_abs, tag = 'smem constant byte address 0x4 - core index']
  #allocation1 [shape = 'u32[144,128]{1,0:T(1,128)}', space=vmem, size = 0x12000, scoped, tag = 'internal scratch']
  %s0 = inlined_call_operand.vmem [shape: f32[2,16,16,12], index: 0, kind: input, shape index: {}]
  %s1 = inlined_call_operand.vmem [shape: f32[1,12], index: 1, kind: input, shape index: {}]
  %s2 = inlined_call_operand.vmem [shape: f32[1,12], index: 2, kind: input, shape index: {}]
  %s3 = inlined_call_operand.vmem [shape: f32[2,8,8,12], index: 3, kind: output, shape index: {}]
  %s4 = sld [smem:[#allocation0]]
  $region45: #{classify_forward.7} parent=0
    _
  %s6 = ssub.s32 1, %s4
  %s7 = scalar_select 0, %s6, %s4
  loop: start=0, step=1, limit=4
  $region2: #{classify_forward.7} parent=0 // loop_pre_header
    _
  $region3: #{classify_forward.7} parent=0 // loop_header
    %s9 = sphi 0, %s13
    %p10 = scmp.ge.s32.totalorder %s9, 4
    %s16 = sphi 0, %s28
    %s17 = sphi 0, %s24
    %s18 = sphi 0, %s16
    %s19 = sphi 0, %s17
    %s20 = sphi 0, %s18
    %s21 = sphi 0, %s19
    %s33 = sphi 0, %s35
    %s36 = sphi 0, %s33
    %s37 = sphi 0, %s36
    %s53 = sphi 0, %s37
    %s57 = sphi 0, %s57
    %s59 = sphi 0, %s57
    %s60 = sphi 0, %s59
    %s74 = sphi 0, %s60
    %s78 = sphi 0, %s78
    %s80 = sphi 0, %s78
    %s81 = sphi 0, %s80
    %s95 = sphi 0, %s81
    %s103 = sphi 0, %s105
    %s106 = sphi 0, %s103
    %s107 = sphi 0, %s106
    %s123 = sphi 0, %s107
  $region4: #{classify_forward.7} parent=0 // loop_header_branch
    %12 = sbr.rel (%p10) target = $region8
  $region5: #{classify_forward.7} parent=0 // loop_body
    %s14 = ssub.s32 %s9, 1
    %s15 = ssub.s32 %s9, 2
    %s22 = sadd.s32 1, %s17
    %p23 = scmp.ge.s32.totalorder %s22, 1
    %s24 = scalar_select %p23, 0, %s22
    %s25 = sadd.s32 1, %s16
    %s26 = scalar_select %p23, %s25, %s16
    %p27 = scmp.ge.s32.totalorder %s26, 2
    %s28 = scalar_select %p27, 0, %s26
    %s29 = ssub.s32 %s16, %s28
    %s30 = ssub.s32 %s17, %s24
    %s31 = sor.u32 %s29, %s30
    %p32 = scmp.eq.s32.totalorder %s31, 0
    %s34 = sadd.s32 %s33, 1
    %s35 = scalar_select %p32, %s33, %s34
    %p38 = pneg %p32
    %p39 = scmp.eq.s32.totalorder %s9, 1
    %p40 = por %p38, %p39
    %p41 = scmp.ne.s32.totalorder %s33, %s36
    %p42 = scmp.eq.s32.totalorder %s9, 0
    %p43 = por %p41, %p42
    %p44 = scmp.ne.s32.totalorder %s33, %s36
    %p45 = scmp.eq.s32.totalorder %s14, 1
    %p46 = por %p44, %p45
    %p47 = scmp.ne.s32.totalorder %s36, %s37
    %p48 = scmp.eq.s32.totalorder %s14, 0
    %p49 = por %p47, %p48
    %p50 = scmp.ne.s32.totalorder %s36, %s37
    %p51 = scmp.eq.s32.totalorder %s15, 1
    %p52 = por %p50, %p51
    %p54 = scmp.ne.s32.totalorder %s37, %s53
    %p55 = scmp.eq.s32.totalorder %s15, 0
    %p56 = por %p54, %p55
    %s58 = sadd.s32 %s57, 1
    %p61 = scmp.eq.s32.totalorder %s9, 1
    %p62 = scmp.ne.s32.totalorder %s57, %s59
    %p63 = scmp.eq.s32.totalorder %s9, 0
    %p64 = por %p62, %p63
    %p65 = scmp.ne.s32.totalorder %s57, %s59
    %p66 = scmp.eq.s32.totalorder %s14, 1
    %p67 = por %p65, %p66
    %p68 = scmp.ne.s32.totalorder %s59, %s60
    %p69 = scmp.eq.s32.totalorder %s14, 0
    %p70 = por %p68, %p69
    %p71 = scmp.ne.s32.totalorder %s59, %s60
    %p72 = scmp.eq.s32.totalorder %s15, 1
    %p73 = por %p71, %p72
    %p75 = scmp.ne.s32.totalorder %s60, %s74
    %p76 = scmp.eq.s32.totalorder %s15, 0
    %p77 = por %p75, %p76
    %s79 = sadd.s32 %s78, 1
    %p82 = scmp.eq.s32.totalorder %s9, 1
    %p83 = scmp.ne.s32.totalorder %s78, %s80
    %p84 = scmp.eq.s32.totalorder %s9, 0
    %p85 = por %p83, %p84
    %p86 = scmp.ne.s32.totalorder %s78, %s80
    %p87 = scmp.eq.s32.totalorder %s14, 1
    %p88 = por %p86, %p87
    %p89 = scmp.ne.s32.totalorder %s80, %s81
    %p90 = scmp.eq.s32.totalorder %s14, 0
    %p91 = por %p89, %p90
    %p92 = scmp.ne.s32.totalorder %s80, %s81
    %p93 = scmp.eq.s32.totalorder %s15, 1
    %p94 = por %p92, %p93
    %p96 = scmp.ne.s32.totalorder %s81, %s95
    %p97 = scmp.eq.s32.totalorder %s15, 0
    %p98 = por %p96, %p97
    %s99 = ssub.s32 %s16, %s28
    %s100 = ssub.s32 %s17, %s24
    %s101 = sor.u32 %s99, %s100
    %p102 = scmp.eq.s32.totalorder %s101, 0
    %s104 = sadd.s32 %s103, 1
    %s105 = scalar_select %p102, %s103, %s104
    %p108 = pneg %p102
    %p109 = scmp.eq.s32.totalorder %s9, 1
    %p110 = por %p108, %p109
    %p111 = scmp.ne.s32.totalorder %s103, %s106
    %p112 = scmp.eq.s32.totalorder %s9, 0
    %p113 = por %p111, %p112
    %p114 = scmp.ne.s32.totalorder %s103, %s106
    %p115 = scmp.eq.s32.totalorder %s14, 1
    %p116 = por %p114, %p115
    %p117 = scmp.ne.s32.totalorder %s106, %s107
    %p118 = scmp.eq.s32.totalorder %s14, 0
    %p119 = por %p117, %p118
    %p120 = scmp.ne.s32.totalorder %s106, %s107
    %p121 = scmp.eq.s32.totalorder %s15, 1
    %p122 = por %p120, %p121
    %p124 = scmp.ne.s32.totalorder %s107, %s123
    %p125 = scmp.eq.s32.totalorder %s15, 0
    %p126 = por %p124, %p125
    %p127 = scmp.le.s32.totalorder 1, %s9
    %p128 = scmp.lt.s32.totalorder %s9, 3
    %p129 = pnand %p127, %p128
    %p130 = pneg %p129
    // Predicated region
    $region9: #{classify_forward.7} parent=5 // pred_check
      _
    $region10: #{classify_forward.7} parent=5 // pred_check_branch
      %132 = sbr.rel (%p129) target = $region12
    $region11: #{classify_forward.7} parent=5 // pred_region
      %s133 = ssub.s32 %s9, 1
      // Predicated region
      $region13: #{classify_forward.7} parent=11 // pred_check
        %p134 = pneg %p70
      $region14: #{classify_forward.7} parent=11 // pred_check_branch
        %136 = sbr.rel (%p134) target = $region16
      $region15: #{classify_forward.7} parent=11 // pred_region
        _
      $region16: #{classify_forward.7} parent=11 // pred_fallthru
        _
      // Predicated region
      $region17: #{classify_forward.7} parent=11 // pred_check
        %p137 = pneg %p91
      $region18: #{classify_forward.7} parent=11 // pred_check_branch
        %139 = sbr.rel (%p137) target = $region20
      $region19: #{classify_forward.7} parent=11 // pred_region
        _
      $region20: #{classify_forward.7} parent=11 // pred_fallthru
        _
    $region12: #{classify_forward.7} parent=5 // pred_fallthru
      _
    %p140 = scmp.lt.s32.totalorder %s9, 2
    // Predicated region
    $region21: #{classify_forward.7} parent=5 // pred_check
      %p141 = pneg %p140
    $region22: #{classify_forward.7} parent=5 // pred_check_branch
      %143 = sbr.rel (%p141) target = $region24
    $region23: #{classify_forward.7} parent=5 // pred_region
      // Predicated region
      $region25: #{classify_forward.7} parent=23 // pred_check
        %p144 = pneg %p43
      $region26: #{classify_forward.7} parent=23 // pred_check_branch
        %146 = sbr.rel (%p144) target = $region28
      $region27: #{classify_forward.7} parent=23 // pred_region
        %s147 = smul.u32 16, %s17
        %p148 = scmp.lt.s32.totalorder %s16, 1
        %s149 = scalar_select %p148, %s16, 1
        %p150 = scmp.lt.s32.totalorder %s147, 15
        %s151 = scalar_select %p150, %s147, 15
        %s152 = smul.addr %s151, 2
        %s153 = smul.addr %s149, 32
        %s154 = sadd.s32 %s152, %s153
        %s155 = smul.addr %s154, 8
        %s156 = scalar_lea.vmem %s0, %s155
        %s157 = smul.u32 16, %s17
      $region28: #{classify_forward.7} parent=23 // pred_fallthru
        _
    $region24: #{classify_forward.7} parent=5 // pred_fallthru
      _
    %p158 = scmp.le.s32.totalorder 1, %s9
    %p159 = scmp.lt.s32.totalorder %s9, 3
    %p160 = pnand %p158, %p159
    %p161 = pneg %p160
    // Predicated region
    $region29: #{classify_forward.7} parent=5 // pred_check
      _
    $region30: #{classify_forward.7} parent=5 // pred_check_branch
      %163 = sbr.rel (%p160) target = $region32
    $region31: #{classify_forward.7} parent=5 // pred_region
      %s164 = ssub.s32 %s9, 1
      %s165 = smul.u32 16, %s19
      %p166 = scmp.lt.s32.totalorder %s18, 1
      %s167 = scalar_select %p166, %s18, 1
      %p168 = scmp.lt.s32.totalorder %s165, 15
      %s169 = scalar_select %p168, %s165, 15
      %s170 = smul.addr %s169, 2
      %s171 = smul.addr %s167, 32
      %s172 = sadd.s32 %s170, %s171
      %s173 = smul.addr %s172, 8
      %s174 = scalar_lea.vmem %s0, %s173
      %p175 = pneg %p49
      %p176 = pneg %p46
      %p177 = pneg %p70
      %p178 = pneg %p67
      %p179 = pneg %p91
      %p180 = pneg %p88
      %p181 = pneg %p119
      %p182 = pneg %p116
      %s183 = smul.u32 8, %s19
      %p184 = scmp.lt.s32.totalorder %s18, 1
      %s185 = scalar_select %p184, %s18, 1
      %p186 = scmp.lt.s32.totalorder %s183, 7
      %s187 = scalar_select %p186, %s183, 7
      %s188 = smul.addr %s185, 8
      %s189 = sadd.s32 %s187, %s188
      %s190 = smul.addr %s189, 8
      %s191 = scalar_lea.vmem %s3, %s190
      %s192 = smul.u32 16, %s19
      %p193 = scmp.lt.s32.totalorder %s18, 1
      %s194 = scalar_select %p193, %s18, 1
      %p195 = scmp.lt.s32.totalorder %s192, 15
      %s196 = scalar_select %p195, %s192, 15
      %s197 = smul.addr %s196, 2
      %s198 = smul.addr %s194, 32
      %s199 = sadd.s32 %s197, %s198
      %s200 = smul.addr %s199, 8
      %s201 = scalar_lea.vmem %s0, %s200
      %s202 = smul.u32 16, %s19
      %s203 = smul.u32 8, %s19
      %p204 = scmp.lt.s32.totalorder %s18, 1
      %s205 = scalar_select %p204, %s18, 1
      %p206 = scmp.lt.s32.totalorder %s203, 7
      %s207 = scalar_select %p206, %s203, 7
      %s208 = smul.addr %s205, 8
      %s209 = sadd.s32 %s207, %s208
      %s210 = smul.addr %s209, 8
      %s211 = scalar_lea.vmem %s3, %s210
      %s212 = smul.u32 8, %s19
      %v213 = vld [vmem:[%s201] sm:$0xff]
      %v214 = vld [vmem:[%s201 + $0x8] sm:$0xff]
      %v215 = vld [vmem:[%s201 + $0x10] sm:$0xff]
      %v216 = vld [vmem:[%s201 + $0x18] sm:$0xff]
      %v217 = vld [vmem:[%s201 + $0x20] sm:$0xff]
      %v218 = vld [vmem:[%s201 + $0x28] sm:$0xff]
      %v219 = vld [vmem:[%s201 + $0x30] sm:$0xff]
      %v220 = vld [vmem:[%s201 + $0x38] sm:$0xff]
      %v221 = vld [vmem:[%s201 + $0x40] sm:$0xff]
      %v222 = vld [vmem:[%s201 + $0x48] sm:$0xff]
      %v223 = vld [vmem:[%s201 + $0x50] sm:$0xff]
      %v224 = vld [vmem:[%s201 + $0x58] sm:$0xff]
      %v225 = vld [vmem:[%s201 + $0x60] sm:$0xff]
      %v226 = vld [vmem:[%s201 + $0x68] sm:$0xff]
      %v227 = vld [vmem:[%s201 + $0x70] sm:$0xff]
      %v228 = vld [vmem:[%s201 + $0x78] sm:$0xff]
      %v229 = vld [vmem:[%s201 + $0x80] sm:$0xff]
      %v230 = vld [vmem:[%s201 + $0x88] sm:$0xff]
      %v231 = vld [vmem:[%s201 + $0x90] sm:$0xff]
      %v232 = vld [vmem:[%s201 + $0x98] sm:$0xff]
      %v233 = vld [vmem:[%s201 + $0xa0] sm:$0xff]
      %v234 = vld [vmem:[%s201 + $0xa8] sm:$0xff]
      %v235 = vld [vmem:[%s201 + $0xb0] sm:$0xff]
      %v236 = vld [vmem:[%s201 + $0xb8] sm:$0xff]
      %v237 = vld [vmem:[%s201 + $0xc0] sm:$0xff]
      %v238 = vld [vmem:[%s201 + $0xc8] sm:$0xff]
      %v239 = vld [vmem:[%s201 + $0xd0] sm:$0xff]
      %v240 = vld [vmem:[%s201 + $0xd8] sm:$0xff]
      %v241 = vld [vmem:[%s201 + $0xe0] sm:$0xff]
      %v242 = vld [vmem:[%s201 + $0xe8] sm:$0xff]
      %v243 = vld [vmem:[%s201 + $0xf0] sm:$0xff]
      %v244 = vld [vmem:[%s201 + $0xf8] sm:$0xff]
      %v245 = vld [vmem:[%s1] sm:$0x1]
      %v247 = vlaneseq
      %v248 = vshrl.u32 %v247, 7
      %v249 = vsub.s32 0, %v248
      %v250 = vrot.slane %v245, %v249
      %v252 = vmul.f32 %v213, %v250
      %v253 = vmul.f32 %v214, %v250
      %v254 = vmul.f32 %v215, %v250
      %v255 = vmul.f32 %v216, %v250
      %v256 = vmul.f32 %v217, %v250
      %v257 = vmul.f32 %v218, %v250
      %v258 = vmul.f32 %v219, %v250
      %v259 = vmul.f32 %v220, %v250
      %v260 = vmul.f32 %v221, %v250
      %v261 = vmul.f32 %v222, %v250
      %v262 = vmul.f32 %v223, %v250
      %v263 = vmul.f32 %v224, %v250
      %v264 = vmul.f32 %v225, %v250
      %v265 = vmul.f32 %v226, %v250
      %v266 = vmul.f32 %v227, %v250
      %v267 = vmul.f32 %v228, %v250
      %v268 = vmul.f32 %v229, %v250
      %v269 = vmul.f32 %v230, %v250
      %v270 = vmul.f32 %v231, %v250
      %v271 = vmul.f32 %v232, %v250
      %v272 = vmul.f32 %v233, %v250
      %v273 = vmul.f32 %v234, %v250
      %v274 = vmul.f32 %v235, %v250
      %v275 = vmul.f32 %v236, %v250
      %v276 = vmul.f32 %v237, %v250
      %v277 = vmul.f32 %v238, %v250
      %v278 = vmul.f32 %v239, %v250
      %v279 = vmul.f32 %v240, %v250
      %v280 = vmul.f32 %v241, %v250
      %v281 = vmul.f32 %v242, %v250
      %v282 = vmul.f32 %v243, %v250
      %v283 = vmul.f32 %v244, %v250
      %v284 = vld [vmem:[%s2] sm:$0x1]
      %v286 = vlaneseq
      %v287 = vshrl.u32 %v286, 7
      %v288 = vsub.s32 0, %v287
      %v289 = vrot.slane %v284, %v288
      %v291 = vadd.f32 %v252, %v289
      %v292 = vadd.f32 %v253, %v289
      %v293 = vadd.f32 %v254, %v289
      %v294 = vadd.f32 %v255, %v289
      %v295 = vadd.f32 %v256, %v289
      %v296 = vadd.f32 %v257, %v289
      %v297 = vadd.f32 %v258, %v289
      %v298 = vadd.f32 %v259, %v289
      %v299 = vadd.f32 %v260, %v289
      %v300 = vadd.f32 %v261, %v289
      %v301 = vadd.f32 %v262, %v289
      %v302 = vadd.f32 %v263, %v289
      %v303 = vadd.f32 %v264, %v289
      %v304 = vadd.f32 %v265, %v289
      %v305 = vadd.f32 %v266, %v289
      %v306 = vadd.f32 %v267, %v289
      %v307 = vadd.f32 %v268, %v289
      %v308 = vadd.f32 %v269, %v289
      %v309 = vadd.f32 %v270, %v289
      %v310 = vadd.f32 %v271, %v289
      %v311 = vadd.f32 %v272, %v289
      %v312 = vadd.f32 %v273, %v289
      %v313 = vadd.f32 %v274, %v289
      %v314 = vadd.f32 %v275, %v289
      %v315 = vadd.f32 %v276, %v289
      %v316 = vadd.f32 %v277, %v289
      %v317 = vadd.f32 %v278, %v289
      %v318 = vadd.f32 %v279, %v289
      %v319 = vadd.f32 %v280, %v289
      %v320 = vadd.f32 %v281, %v289
      %v321 = vadd.f32 %v282, %v289
      %v322 = vadd.f32 %v283, %v289
      %v323 = vmax.f32 %v291, 0.0
      %v324 = vmax.f32 %v292, 0.0
      %v325 = vmax.f32 %v293, 0.0
      %v326 = vmax.f32 %v294, 0.0
      %v327 = vmax.f32 %v295, 0.0
      %v328 = vmax.f32 %v296, 0.0
      %v329 = vmax.f32 %v297, 0.0
      %v330 = vmax.f32 %v298, 0.0
      %v331 = vmax.f32 %v299, 0.0
      %v332 = vmax.f32 %v300, 0.0
      %v333 = vmax.f32 %v301, 0.0
      %v334 = vmax.f32 %v302, 0.0
      %v335 = vmax.f32 %v303, 0.0
      %v336 = vmax.f32 %v304, 0.0
      %v337 = vmax.f32 %v305, 0.0
      %v338 = vmax.f32 %v306, 0.0
      %v339 = vmax.f32 %v307, 0.0
      %v340 = vmax.f32 %v308, 0.0
      %v341 = vmax.f32 %v309, 0.0
      %v342 = vmax.f32 %v310, 0.0
      %v343 = vmax.f32 %v311, 0.0
      %v344 = vmax.f32 %v312, 0.0
      %v345 = vmax.f32 %v313, 0.0
      %v346 = vmax.f32 %v314, 0.0
      %v347 = vmax.f32 %v315, 0.0
      %v348 = vmax.f32 %v316, 0.0
      %v349 = vmax.f32 %v317, 0.0
      %v350 = vmax.f32 %v318, 0.0
      %v351 = vmax.f32 %v319, 0.0
      %v352 = vmax.f32 %v320, 0.0
      %v353 = vmax.f32 %v321, 0.0
      %v354 = vmax.f32 %v322, 0.0
      %vm355 = vcmask 97280
      %v356 = vsel %vm355, %v323, -inf
      %v357 = vsel %vm355, %v325, -inf
      %v358 = vmax.f32 %v356, %v357
      %v359 = vsel %vm355, %v324, -inf
      %v360 = vsel %vm355, %v326, -inf
      %v361 = vmax.f32 %v359, %v360
      %v362 = vsel %vm355, %v327, -inf
      %v363 = vsel %vm355, %v329, -inf
      %v364 = vmax.f32 %v362, %v363
      %v365 = vsel %vm355, %v328, -inf
      %v366 = vsel %vm355, %v330, -inf
      %v367 = vmax.f32 %v365, %v366
      %v368 = vsel %vm355, %v331, -inf
      %v369 = vsel %vm355, %v333, -inf
      %v370 = vmax.f32 %v368, %v369
      %v371 = vsel %vm355, %v332, -inf
      %v372 = vsel %vm355, %v334, -inf
      %v373 = vmax.f32 %v371, %v372
      %v374 = vsel %vm355, %v335, -inf
      %v375 = vsel %vm355, %v337, -inf
      %v376 = vmax.f32 %v374, %v375
      %v377 = vsel %vm355, %v336, -inf
      %v378 = vsel %vm355, %v338, -inf
      %v379 = vmax.f32 %v377, %v378
      %v380 = vsel %vm355, %v339, -inf
      %v381 = vsel %vm355, %v341, -inf
      %v382 = vmax.f32 %v380, %v381
      %v383 = vsel %vm355, %v340, -inf
      %v384 = vsel %vm355, %v342, -inf
      %v385 = vmax.f32 %v383, %v384
      %v386 = vsel %vm355, %v343, -inf
      %v387 = vsel %vm355, %v345, -inf
      %v388 = vmax.f32 %v386, %v387
      %v389 = vsel %vm355, %v344, -inf
      %v390 = vsel %vm355, %v346, -inf
      %v391 = vmax.f32 %v389, %v390
      %v392 = vsel %vm355, %v347, -inf
      %v393 = vsel %vm355, %v349, -inf
      %v394 = vmax.f32 %v392, %v393
      %v395 = vsel %vm355, %v348, -inf
      %v396 = vsel %vm355, %v350, -inf
      %v397 = vmax.f32 %v395, %v396
      %v398 = vsel %vm355, %v351, -inf
      %v399 = vsel %vm355, %v353, -inf
      %v400 = vmax.f32 %v398, %v399
      %v401 = vsel %vm355, %v352, -inf
      %v402 = vsel %vm355, %v354, -inf
      %v403 = vmax.f32 %v401, %v402
      %v420 = vcombine.high %v358, %v358
      %v422 = vunpack.c.l.s4 1983009808
      %v423 = vunpack.c.0.s8 %v422
      %v424 = vlaneseq
      %v425 = vshrl.u32 %v424, 7
      %v426 = vsub.s32 %v423, %v425
      %v427 = vrot.slane %v358, %v426
      %v429 = vunpack.c.l.s4 1983009808
      %v430 = vunpack.c.0.s8 %v429
      %v431 = vlaneseq
      %v432 = vshrl.u32 %v431, 7
      %v433 = vsub.s32 %v430, %v432
      %v434 = vrot.slane %v420, %v433
      %v435 = vcombine.high %v427, %v427
      %v436 = vcombine.high %v434, %v434
      %v437 = vcombine.high %v361, %v361
      %v439 = vunpack.c.l.s4 1983009808
      %v440 = vunpack.c.0.s8 %v439
      %v441 = vlaneseq
      %v442 = vshrl.u32 %v441, 7
      %v443 = vsub.s32 %v440, %v442
      %v444 = vrot.slane %v361, %v443
      %v446 = vunpack.c.l.s4 1983009808
      %v447 = vunpack.c.0.s8 %v446
      %v448 = vlaneseq
      %v449 = vshrl.u32 %v448, 7
      %v450 = vsub.s32 %v447, %v449
      %v451 = vrot.slane %v437, %v450
      %v452 = vcombine.high %v444, %v444
      %v453 = vcombine.high %v451, %v451
      %v454 = vcombine.high %v364, %v364
      %v456 = vunpack.c.l.s4 1983009808
      %v457 = vunpack.c.0.s8 %v456
      %v458 = vlaneseq
      %v459 = vshrl.u32 %v458, 7
      %v460 = vsub.s32 %v457, %v459
      %v461 = vrot.slane %v364, %v460
      %v463 = vunpack.c.l.s4 1983009808
      %v464 = vunpack.c.0.s8 %v463
      %v465 = vlaneseq
      %v466 = vshrl.u32 %v465, 7
      %v467 = vsub.s32 %v464, %v466
      %v468 = vrot.slane %v454, %v467
      %v469 = vcombine.high %v461, %v461
      %v470 = vcombine.high %v468, %v468
      %v471 = vcombine.high %v367, %v367
      %v473 = vunpack.c.l.s4 1983009808
      %v474 = vunpack.c.0.s8 %v473
      %v475 = vlaneseq
      %v476 = vshrl.u32 %v475, 7
      %v477 = vsub.s32 %v474, %v476
      %v478 = vrot.slane %v367, %v477
      %v480 = vunpack.c.l.s4 1983009808
      %v481 = vunpack.c.0.s8 %v480
      %v482 = vlaneseq
      %v483 = vshrl.u32 %v482, 7
      %v484 = vsub.s32 %v481, %v483
      %v485 = vrot.slane %v471, %v484
      %v486 = vcombine.high %v478, %v478
      %v487 = vcombine.high %v485, %v485
      %v488 = vcombine.high %v370, %v370
      %v490 = vunpack.c.l.s4 1983009808
      %v491 = vunpack.c.0.s8 %v490
      %v492 = vlaneseq
      %v493 = vshrl.u32 %v492, 7
      %v494 = vsub.s32 %v491, %v493
      %v495 = vrot.slane %v370, %v494
      %v497 = vunpack.c.l.s4 1983009808
      %v498 = vunpack.c.0.s8 %v497
      %v499 = vlaneseq
      %v500 = vshrl.u32 %v499, 7
      %v501 = vsub.s32 %v498, %v500
      %v502 = vrot.slane %v488, %v501
      %v503 = vcombine.high %v495, %v495
      %v504 = vcombine.high %v502, %v502
      %v505 = vcombine.high %v373, %v373
      %v507 = vunpack.c.l.s4 1983009808
      %v508 = vunpack.c.0.s8 %v507
      %v509 = vlaneseq
      %v510 = vshrl.u32 %v509, 7
      %v511 = vsub.s32 %v508, %v510
      %v512 = vrot.slane %v373, %v511
      %v514 = vunpack.c.l.s4 1983009808
      %v515 = vunpack.c.0.s8 %v514
      %v516 = vlaneseq
      %v517 = vshrl.u32 %v516, 7
      %v518 = vsub.s32 %v515, %v517
      %v519 = vrot.slane %v505, %v518
      %v520 = vcombine.high %v512, %v512
      %v521 = vcombine.high %v519, %v519
      %v522 = vcombine.high %v376, %v376
      %v524 = vunpack.c.l.s4 1983009808
      %v525 = vunpack.c.0.s8 %v524
      %v526 = vlaneseq
      %v527 = vshrl.u32 %v526, 7
      %v528 = vsub.s32 %v525, %v527
      %v529 = vrot.slane %v376, %v528
      %v531 = vunpack.c.l.s4 1983009808
      %v532 = vunpack.c.0.s8 %v531
      %v533 = vlaneseq
      %v534 = vshrl.u32 %v533, 7
      %v535 = vsub.s32 %v532, %v534
      %v536 = vrot.slane %v522, %v535
      %v537 = vcombine.high %v529, %v529
      %v538 = vcombine.high %v536, %v536
      %v539 = vcombine.high %v379, %v379
      %v541 = vunpack.c.l.s4 1983009808
      %v542 = vunpack.c.0.s8 %v541
      %v543 = vlaneseq
      %v544 = vshrl.u32 %v543, 7
      %v545 = vsub.s32 %v542, %v544
      %v546 = vrot.slane %v379, %v545
      %v548 = vunpack.c.l.s4 1983009808
      %v549 = vunpack.c.0.s8 %v548
      %v550 = vlaneseq
      %v551 = vshrl.u32 %v550, 7
      %v552 = vsub.s32 %v549, %v551
      %v553 = vrot.slane %v539, %v552
      %v554 = vcombine.high %v546, %v546
      %v555 = vcombine.high %v553, %v553
      %v556 = vcombine.high %v382, %v382
      %v558 = vunpack.c.l.s4 1983009808
      %v559 = vunpack.c.0.s8 %v558
      %v560 = vlaneseq
      %v561 = vshrl.u32 %v560, 7
      %v562 = vsub.s32 %v559, %v561
      %v563 = vrot.slane %v382, %v562
      %v565 = vunpack.c.l.s4 1983009808
      %v566 = vunpack.c.0.s8 %v565
      %v567 = vlaneseq
      %v568 = vshrl.u32 %v567, 7
      %v569 = vsub.s32 %v566, %v568
      %v570 = vrot.slane %v556, %v569
      %v571 = vcombine.high %v563, %v563
      %v572 = vcombine.high %v570, %v570
      %v573 = vcombine.high %v385, %v385
      %v575 = vunpack.c.l.s4 1983009808
      %v576 = vunpack.c.0.s8 %v575
      %v577 = vlaneseq
      %v578 = vshrl.u32 %v577, 7
      %v579 = vsub.s32 %v576, %v578
      %v580 = vrot.slane %v385, %v579
      %v582 = vunpack.c.l.s4 1983009808
      %v583 = vunpack.c.0.s8 %v582
      %v584 = vlaneseq
      %v585 = vshrl.u32 %v584, 7
      %v586 = vsub.s32 %v583, %v585
      %v587 = vrot.slane %v573, %v586
      %v588 = vcombine.high %v580, %v580
      %v589 = vcombine.high %v587, %v587
      %v590 = vcombine.high %v388, %v388
      %v592 = vunpack.c.l.s4 1983009808
      %v593 = vunpack.c.0.s8 %v592
      %v594 = vlaneseq
      %v595 = vshrl.u32 %v594, 7
      %v596 = vsub.s32 %v593, %v595
      %v597 = vrot.slane %v388, %v596
      %v599 = vunpack.c.l.s4 1983009808
      %v600 = vunpack.c.0.s8 %v599
      %v601 = vlaneseq
      %v602 = vshrl.u32 %v601, 7
      %v603 = vsub.s32 %v600, %v602
      %v604 = vrot.slane %v590, %v603
      %v605 = vcombine.high %v597, %v597
      %v606 = vcombine.high %v604, %v604
      %v607 = vcombine.high %v391, %v391
      %v609 = vunpack.c.l.s4 1983009808
      %v610 = vunpack.c.0.s8 %v609
      %v611 = vlaneseq
      %v612 = vshrl.u32 %v611, 7
      %v613 = vsub.s32 %v610, %v612
      %v614 = vrot.slane %v391, %v613
      %v616 = vunpack.c.l.s4 1983009808
      %v617 = vunpack.c.0.s8 %v616
      %v618 = vlaneseq
      %v619 = vshrl.u32 %v618, 7
      %v620 = vsub.s32 %v617, %v619
      %v621 = vrot.slane %v607, %v620
      %v622 = vcombine.high %v614, %v614
      %v623 = vcombine.high %v621, %v621
      %v624 = vcombine.high %v394, %v394
      %v626 = vunpack.c.l.s4 1983009808
      %v627 = vunpack.c.0.s8 %v626
      %v628 = vlaneseq
      %v629 = vshrl.u32 %v628, 7
      %v630 = vsub.s32 %v627, %v629
      %v631 = vrot.slane %v394, %v630
      %v633 = vunpack.c.l.s4 1983009808
      %v634 = vunpack.c.0.s8 %v633
      %v635 = vlaneseq
      %v636 = vshrl.u32 %v635, 7
      %v637 = vsub.s32 %v634, %v636
      %v638 = vrot.slane %v624, %v637
      %v639 = vcombine.high %v631, %v631
      %v640 = vcombine.high %v638, %v638
      %v641 = vcombine.high %v397, %v397
      %v643 = vunpack.c.l.s4 1983009808
      %v644 = vunpack.c.0.s8 %v643
      %v645 = vlaneseq
      %v646 = vshrl.u32 %v645, 7
      %v647 = vsub.s32 %v644, %v646
      %v648 = vrot.slane %v397, %v647
      %v650 = vunpack.c.l.s4 1983009808
      %v651 = vunpack.c.0.s8 %v650
      %v652 = vlaneseq
      %v653 = vshrl.u32 %v652, 7
      %v654 = vsub.s32 %v651, %v653
      %v655 = vrot.slane %v641, %v654
      %v656 = vcombine.high %v648, %v648
      %v657 = vcombine.high %v655, %v655
      %v658 = vcombine.high %v400, %v400
      %v660 = vunpack.c.l.s4 1983009808
      %v661 = vunpack.c.0.s8 %v660
      %v662 = vlaneseq
      %v663 = vshrl.u32 %v662, 7
      %v664 = vsub.s32 %v661, %v663
      %v665 = vrot.slane %v400, %v664
      %v667 = vunpack.c.l.s4 1983009808
      %v668 = vunpack.c.0.s8 %v667
      %v669 = vlaneseq
      %v670 = vshrl.u32 %v669, 7
      %v671 = vsub.s32 %v668, %v670
      %v672 = vrot.slane %v658, %v671
      %v673 = vcombine.high %v665, %v665
      %v674 = vcombine.high %v672, %v672
      %v675 = vcombine.high %v403, %v403
      %v677 = vunpack.c.l.s4 1983009808
      %v678 = vunpack.c.0.s8 %v677
      %v679 = vlaneseq
      %v680 = vshrl.u32 %v679, 7
      %v681 = vsub.s32 %v678, %v680
      %v682 = vrot.slane %v403, %v681
      %v684 = vunpack.c.l.s4 1983009808
      %v685 = vunpack.c.0.s8 %v684
      %v686 = vlaneseq
      %v687 = vshrl.u32 %v686, 7
      %v688 = vsub.s32 %v685, %v687
      %v689 = vrot.slane %v675, %v688
      %v690 = vcombine.high %v682, %v682
      %v691 = vcombine.high %v689, %v689
      %vm756 = vcmask 91136
      %v757 = vsel %vm756, %v427, -inf
      %v758 = vrot.slane %v757, 4
      %v759 = vmax.f32 %v757, %v758
      %v760 = vrot.slane %v759, 2
      %v761 = vmax.f32 %v759, %v760
      %v762 = vrot.slane %v761, 1
      %v763 = vmax.f32 %v761, %v762
      %v764 = vsel %vm756, %v435, -inf
      %v765 = vrot.slane %v764, 4
      %v766 = vmax.f32 %v764, %v765
      %v767 = vrot.slane %v766, 2
      %v768 = vmax.f32 %v766, %v767
      %v769 = vrot.slane %v768, 1
      %v770 = vmax.f32 %v768, %v769
      %v771 = vsel %vm756, %v434, -inf
      %v772 = vrot.slane %v771, 4
      %v773 = vmax.f32 %v771, %v772
      %v774 = vrot.slane %v773, 2
      %v775 = vmax.f32 %v773, %v774
      %v776 = vrot.slane %v775, 1
      %v777 = vmax.f32 %v775, %v776
      %v778 = vsel %vm756, %v436, -inf
      %v779 = vrot.slane %v778, 4
      %v780 = vmax.f32 %v778, %v779
      %v781 = vrot.slane %v780, 2
      %v782 = vmax.f32 %v780, %v781
      %v783 = vrot.slane %v782, 1
      %v784 = vmax.f32 %v782, %v783
      %v785 = vsel %vm756, %v444, -inf
      %v786 = vrot.slane %v785, 4
      %v787 = vmax.f32 %v785, %v786
      %v788 = vrot.slane %v787, 2
      %v789 = vmax.f32 %v787, %v788
      %v790 = vrot.slane %v789, 1
      %v791 = vmax.f32 %v789, %v790
      %v792 = vsel %vm756, %v452, -inf
      %v793 = vrot.slane %v792, 4
      %v794 = vmax.f32 %v792, %v793
      %v795 = vrot.slane %v794, 2
      %v796 = vmax.f32 %v794, %v795
      %v797 = vrot.slane %v796, 1
      %v798 = vmax.f32 %v796, %v797
      %v799 = vsel %vm756, %v451, -inf
      %v800 = vrot.slane %v799, 4
      %v801 = vmax.f32 %v799, %v800
      %v802 = vrot.slane %v801, 2
      %v803 = vmax.f32 %v801, %v802
      %v804 = vrot.slane %v803, 1
      %v805 = vmax.f32 %v803, %v804
      %v806 = vsel %vm756, %v453, -inf
      %v807 = vrot.slane %v806, 4
      %v808 = vmax.f32 %v806, %v807
      %v809 = vrot.slane %v808, 2
      %v810 = vmax.f32 %v808, %v809
      %v811 = vrot.slane %v810, 1
      %v812 = vmax.f32 %v810, %v811
      %v813 = vsel %vm756, %v461, -inf
      %v814 = vrot.slane %v813, 4
      %v815 = vmax.f32 %v813, %v814
      %v816 = vrot.slane %v815, 2
      %v817 = vmax.f32 %v815, %v816
      %v818 = vrot.slane %v817, 1
      %v819 = vmax.f32 %v817, %v818
      %v820 = vsel %vm756, %v469, -inf
      %v821 = vrot.slane %v820, 4
      %v822 = vmax.f32 %v820, %v821
      %v823 = vrot.slane %v822, 2
      %v824 = vmax.f32 %v822, %v823
      %v825 = vrot.slane %v824, 1
      %v826 = vmax.f32 %v824, %v825
      %v827 = vsel %vm756, %v468, -inf
      %v828 = vrot.slane %v827, 4
      %v829 = vmax.f32 %v827, %v828
      %v830 = vrot.slane %v829, 2
      %v831 = vmax.f32 %v829, %v830
      %v832 = vrot.slane %v831, 1
      %v833 = vmax.f32 %v831, %v832
      %v834 = vsel %vm756, %v470, -inf
      %v835 = vrot.slane %v834, 4
      %v836 = vmax.f32 %v834, %v835
      %v837 = vrot.slane %v836, 2
      %v838 = vmax.f32 %v836, %v837
      %v839 = vrot.slane %v838, 1
      %v840 = vmax.f32 %v838, %v839
      %v841 = vsel %vm756, %v478, -inf
      %v842 = vrot.slane %v841, 4
      %v843 = vmax.f32 %v841, %v842
      %v844 = vrot.slane %v843, 2
      %v845 = vmax.f32 %v843, %v844
      %v846 = vrot.slane %v845, 1
      %v847 = vmax.f32 %v845, %v846
      %v848 = vsel %vm756, %v486, -inf
      %v849 = vrot.slane %v848, 4
      %v850 = vmax.f32 %v848, %v849
      %v851 = vrot.slane %v850, 2
      %v852 = vmax.f32 %v850, %v851
      %v853 = vrot.slane %v852, 1
      %v854 = vmax.f32 %v852, %v853
      %v855 = vsel %vm756, %v485, -inf
      %v856 = vrot.slane %v855, 4
      %v857 = vmax.f32 %v855, %v856
      %v858 = vrot.slane %v857, 2
      %v859 = vmax.f32 %v857, %v858
      %v860 = vrot.slane %v859, 1
      %v861 = vmax.f32 %v859, %v860
      %v862 = vsel %vm756, %v487, -inf
      %v863 = vrot.slane %v862, 4
      %v864 = vmax.f32 %v862, %v863
      %v865 = vrot.slane %v864, 2
      %v866 = vmax.f32 %v864, %v865
      %v867 = vrot.slane %v866, 1
      %v868 = vmax.f32 %v866, %v867
      %v869 = vsel %vm756, %v495, -inf
      %v870 = vrot.slane %v869, 4
      %v871 = vmax.f32 %v869, %v870
      %v872 = vrot.slane %v871, 2
      %v873 = vmax.f32 %v871, %v872
      %v874 = vrot.slane %v873, 1
      %v875 = vmax.f32 %v873, %v874
      %v876 = vsel %vm756, %v503, -inf
      %v877 = vrot.slane %v876, 4
      %v878 = vmax.f32 %v876, %v877
      %v879 = vrot.slane %v878, 2
      %v880 = vmax.f32 %v878, %v879
      %v881 = vrot.slane %v880, 1
      %v882 = vmax.f32 %v880, %v881
      %v883 = vsel %vm756, %v502, -inf
      %v884 = vrot.slane %v883, 4
      %v885 = vmax.f32 %v883, %v884
      %v886 = vrot.slane %v885, 2
      %v887 = vmax.f32 %v885, %v886
      %v888 = vrot.slane %v887, 1
      %v889 = vmax.f32 %v887, %v888
      %v890 = vsel %vm756, %v504, -inf
      %v891 = vrot.slane %v890, 4
      %v892 = vmax.f32 %v890, %v891
      %v893 = vrot.slane %v892, 2
      %v894 = vmax.f32 %v892, %v893
      %v895 = vrot.slane %v894, 1
      %v896 = vmax.f32 %v894, %v895
      %v897 = vsel %vm756, %v512, -inf
      %v898 = vrot.slane %v897, 4
      %v899 = vmax.f32 %v897, %v898
      %v900 = vrot.slane %v899, 2
      %v901 = vmax.f32 %v899, %v900
      %v902 = vrot.slane %v901, 1
      %v903 = vmax.f32 %v901, %v902
      %v904 = vsel %vm756, %v520, -inf
      %v905 = vrot.slane %v904, 4
      %v906 = vmax.f32 %v904, %v905
      %v907 = vrot.slane %v906, 2
      %v908 = vmax.f32 %v906, %v907
      %v909 = vrot.slane %v908, 1
      %v910 = vmax.f32 %v908, %v909
      %v911 = vsel %vm756, %v519, -inf
      %v912 = vrot.slane %v911, 4
      %v913 = vmax.f32 %v911, %v912
      %v914 = vrot.slane %v913, 2
      %v915 = vmax.f32 %v913, %v914
      %v916 = vrot.slane %v915, 1
      %v917 = vmax.f32 %v915, %v916
      %v918 = vsel %vm756, %v521, -inf
      %v919 = vrot.slane %v918, 4
      %v920 = vmax.f32 %v918, %v919
      %v921 = vrot.slane %v920, 2
      %v922 = vmax.f32 %v920, %v921
      %v923 = vrot.slane %v922, 1
      %v924 = vmax.f32 %v922, %v923
      %v925 = vsel %vm756, %v529, -inf
      %v926 = vrot.slane %v925, 4
      %v927 = vmax.f32 %v925, %v926
      %v928 = vrot.slane %v927, 2
      %v929 = vmax.f32 %v927, %v928
      %v930 = vrot.slane %v929, 1
      %v931 = vmax.f32 %v929, %v930
      %v932 = vsel %vm756, %v537, -inf
      %v933 = vrot.slane %v932, 4
      %v934 = vmax.f32 %v932, %v933
      %v935 = vrot.slane %v934, 2
      %v936 = vmax.f32 %v934, %v935
      %v937 = vrot.slane %v936, 1
      %v938 = vmax.f32 %v936, %v937
      %v939 = vsel %vm756, %v536, -inf
      %v940 = vrot.slane %v939, 4
      %v941 = vmax.f32 %v939, %v940
      %v942 = vrot.slane %v941, 2
      %v943 = vmax.f32 %v941, %v942
      %v944 = vrot.slane %v943, 1
      %v945 = vmax.f32 %v943, %v944
      %v946 = vsel %vm756, %v538, -inf
      %v947 = vrot.slane %v946, 4
      %v948 = vmax.f32 %v946, %v947
      %v949 = vrot.slane %v948, 2
      %v950 = vmax.f32 %v948, %v949
      %v951 = vrot.slane %v950, 1
      %v952 = vmax.f32 %v950, %v951
      %v953 = vsel %vm756, %v546, -inf
      %v954 = vrot.slane %v953, 4
      %v955 = vmax.f32 %v953, %v954
      %v956 = vrot.slane %v955, 2
      %v957 = vmax.f32 %v955, %v956
      %v958 = vrot.slane %v957, 1
      %v959 = vmax.f32 %v957, %v958
      %v960 = vsel %vm756, %v554, -inf
      %v961 = vrot.slane %v960, 4
      %v962 = vmax.f32 %v960, %v961
      %v963 = vrot.slane %v962, 2
      %v964 = vmax.f32 %v962, %v963
      %v965 = vrot.slane %v964, 1
      %v966 = vmax.f32 %v964, %v965
      %v967 = vsel %vm756, %v553, -inf
      %v968 = vrot.slane %v967, 4
      %v969 = vmax.f32 %v967, %v968
      %v970 = vrot.slane %v969, 2
      %v971 = vmax.f32 %v969, %v970
      %v972 = vrot.slane %v971, 1
      %v973 = vmax.f32 %v971, %v972
      %v974 = vsel %vm756, %v555, -inf
      %v975 = vrot.slane %v974, 4
      %v976 = vmax.f32 %v974, %v975
      %v977 = vrot.slane %v976, 2
      %v978 = vmax.f32 %v976, %v977
      %v979 = vrot.slane %v978, 1
      %v980 = vmax.f32 %v978, %v979
      %v981 = vsel %vm756, %v563, -inf
      %v982 = vrot.slane %v981, 4
      %v983 = vmax.f32 %v981, %v982
      %v984 = vrot.slane %v983, 2
      %v985 = vmax.f32 %v983, %v984
      %v986 = vrot.slane %v985, 1
      %v987 = vmax.f32 %v985, %v986
      %v988 = vsel %vm756, %v571, -inf
      %v989 = vrot.slane %v988, 4
      %v990 = vmax.f32 %v988, %v989
      %v991 = vrot.slane %v990, 2
      %v992 = vmax.f32 %v990, %v991
      %v993 = vrot.slane %v992, 1
      %v994 = vmax.f32 %v992, %v993
      %v995 = vsel %vm756, %v570, -inf
      %v996 = vrot.slane %v995, 4
      %v997 = vmax.f32 %v995, %v996
      %v998 = vrot.slane %v997, 2
      %v999 = vmax.f32 %v997, %v998
      %v1000 = vrot.slane %v999, 1
      %v1001 = vmax.f32 %v999, %v1000
      %v1002 = vsel %vm756, %v572, -inf
      %v1003 = vrot.slane %v1002, 4
      %v1004 = vmax.f32 %v1002, %v1003
      %v1005 = vrot.slane %v1004, 2
      %v1006 = vmax.f32 %v1004, %v1005
      %v1007 = vrot.slane %v1006, 1
      %v1008 = vmax.f32 %v1006, %v1007
      %v1009 = vsel %vm756, %v580, -inf
      %v1010 = vrot.slane %v1009, 4
      %v1011 = vmax.f32 %v1009, %v1010
      %v1012 = vrot.slane %v1011, 2
      %v1013 = vmax.f32 %v1011, %v1012
      %v1014 = vrot.slane %v1013, 1
      %v1015 = vmax.f32 %v1013, %v1014
      %v1016 = vsel %vm756, %v588, -inf
      %v1017 = vrot.slane %v1016, 4
      %v1018 = vmax.f32 %v1016, %v1017
      %v1019 = vrot.slane %v1018, 2
      %v1020 = vmax.f32 %v1018, %v1019
      %v1021 = vrot.slane %v1020, 1
      %v1022 = vmax.f32 %v1020, %v1021
      %v1023 = vsel %vm756, %v587, -inf
      %v1024 = vrot.slane %v1023, 4
      %v1025 = vmax.f32 %v1023, %v1024
      %v1026 = vrot.slane %v1025, 2
      %v1027 = vmax.f32 %v1025, %v1026
      %v1028 = vrot.slane %v1027, 1
      %v1029 = vmax.f32 %v1027, %v1028
      %v1030 = vsel %vm756, %v589, -inf
      %v1031 = vrot.slane %v1030, 4
      %v1032 = vmax.f32 %v1030, %v1031
      %v1033 = vrot.slane %v1032, 2
      %v1034 = vmax.f32 %v1032, %v1033
      %v1035 = vrot.slane %v1034, 1
      %v1036 = vmax.f32 %v1034, %v1035
      %v1037 = vsel %vm756, %v597, -inf
      %v1038 = vrot.slane %v1037, 4
      %v1039 = vmax.f32 %v1037, %v1038
      %v1040 = vrot.slane %v1039, 2
      %v1041 = vmax.f32 %v1039, %v1040
      %v1042 = vrot.slane %v1041, 1
      %v1043 = vmax.f32 %v1041, %v1042
      %v1044 = vsel %vm756, %v605, -inf
      %v1045 = vrot.slane %v1044, 4
      %v1046 = vmax.f32 %v1044, %v1045
      %v1047 = vrot.slane %v1046, 2
      %v1048 = vmax.f32 %v1046, %v1047
      %v1049 = vrot.slane %v1048, 1
      %v1050 = vmax.f32 %v1048, %v1049
      %v1051 = vsel %vm756, %v604, -inf
      %v1052 = vrot.slane %v1051, 4
      %v1053 = vmax.f32 %v1051, %v1052
      %v1054 = vrot.slane %v1053, 2
      %v1055 = vmax.f32 %v1053, %v1054
      %v1056 = vrot.slane %v1055, 1
      %v1057 = vmax.f32 %v1055, %v1056
      %v1058 = vsel %vm756, %v606, -inf
      %v1059 = vrot.slane %v1058, 4
      %v1060 = vmax.f32 %v1058, %v1059
      %v1061 = vrot.slane %v1060, 2
      %v1062 = vmax.f32 %v1060, %v1061
      %v1063 = vrot.slane %v1062, 1
      %v1064 = vmax.f32 %v1062, %v1063
      %v1065 = vsel %vm756, %v614, -inf
      %v1066 = vrot.slane %v1065, 4
      %v1067 = vmax.f32 %v1065, %v1066
      %v1068 = vrot.slane %v1067, 2
      %v1069 = vmax.f32 %v1067, %v1068
      %v1070 = vrot.slane %v1069, 1
      %v1071 = vmax.f32 %v1069, %v1070
      %v1072 = vsel %vm756, %v622, -inf
      %v1073 = vrot.slane %v1072, 4
      %v1074 = vmax.f32 %v1072, %v1073
      %v1075 = vrot.slane %v1074, 2
      %v1076 = vmax.f32 %v1074, %v1075
      %v1077 = vrot.slane %v1076, 1
      %v1078 = vmax.f32 %v1076, %v1077
      %v1079 = vsel %vm756, %v621, -inf
      %v1080 = vrot.slane %v1079, 4
      %v1081 = vmax.f32 %v1079, %v1080
      %v1082 = vrot.slane %v1081, 2
      %v1083 = vmax.f32 %v1081, %v1082
      %v1084 = vrot.slane %v1083, 1
      %v1085 = vmax.f32 %v1083, %v1084
      %v1086 = vsel %vm756, %v623, -inf
      %v1087 = vrot.slane %v1086, 4
      %v1088 = vmax.f32 %v1086, %v1087
      %v1089 = vrot.slane %v1088, 2
      %v1090 = vmax.f32 %v1088, %v1089
      %v1091 = vrot.slane %v1090, 1
      %v1092 = vmax.f32 %v1090, %v1091
      %v1093 = vsel %vm756, %v631, -inf
      %v1094 = vrot.slane %v1093, 4
      %v1095 = vmax.f32 %v1093, %v1094
      %v1096 = vrot.slane %v1095, 2
      %v1097 = vmax.f32 %v1095, %v1096
      %v1098 = vrot.slane %v1097, 1
      %v1099 = vmax.f32 %v1097, %v1098
      %v1100 = vsel %vm756, %v639, -inf
      %v1101 = vrot.slane %v1100, 4
      %v1102 = vmax.f32 %v1100, %v1101
      %v1103 = vrot.slane %v1102, 2
      %v1104 = vmax.f32 %v1102, %v1103
      %v1105 = vrot.slane %v1104, 1
      %v1106 = vmax.f32 %v1104, %v1105
      %v1107 = vsel %vm756, %v638, -inf
      %v1108 = vrot.slane %v1107, 4
      %v1109 = vmax.f32 %v1107, %v1108
      %v1110 = vrot.slane %v1109, 2
      %v1111 = vmax.f32 %v1109, %v1110
      %v1112 = vrot.slane %v1111, 1
      %v1113 = vmax.f32 %v1111, %v1112
      %v1114 = vsel %vm756, %v640, -inf
      %v1115 = vrot.slane %v1114, 4
      %v1116 = vmax.f32 %v1114, %v1115
      %v1117 = vrot.slane %v1116, 2
      %v1118 = vmax.f32 %v1116, %v1117
      %v1119 = vrot.slane %v1118, 1
      %v1120 = vmax.f32 %v1118, %v1119
      %v1121 = vsel %vm756, %v648, -inf
      %v1122 = vrot.slane %v1121, 4
      %v1123 = vmax.f32 %v1121, %v1122
      %v1124 = vrot.slane %v1123, 2
      %v1125 = vmax.f32 %v1123, %v1124
      %v1126 = vrot.slane %v1125, 1
      %v1127 = vmax.f32 %v1125, %v1126
      %v1128 = vsel %vm756, %v656, -inf
      %v1129 = vrot.slane %v1128, 4
      %v1130 = vmax.f32 %v1128, %v1129
      %v1131 = vrot.slane %v1130, 2
      %v1132 = vmax.f32 %v1130, %v1131
      %v1133 = vrot.slane %v1132, 1
      %v1134 = vmax.f32 %v1132, %v1133
      %v1135 = vsel %vm756, %v655, -inf
      %v1136 = vrot.slane %v1135, 4
      %v1137 = vmax.f32 %v1135, %v1136
      %v1138 = vrot.slane %v1137, 2
      %v1139 = vmax.f32 %v1137, %v1138
      %v1140 = vrot.slane %v1139, 1
      %v1141 = vmax.f32 %v1139, %v1140
      %v1142 = vsel %vm756, %v657, -inf
      %v1143 = vrot.slane %v1142, 4
      %v1144 = vmax.f32 %v1142, %v1143
      %v1145 = vrot.slane %v1144, 2
      %v1146 = vmax.f32 %v1144, %v1145
      %v1147 = vrot.slane %v1146, 1
      %v1148 = vmax.f32 %v1146, %v1147
      %v1149 = vsel %vm756, %v665, -inf
      %v1150 = vrot.slane %v1149, 4
      %v1151 = vmax.f32 %v1149, %v1150
      %v1152 = vrot.slane %v1151, 2
      %v1153 = vmax.f32 %v1151, %v1152
      %v1154 = vrot.slane %v1153, 1
      %v1155 = vmax.f32 %v1153, %v1154
      %v1156 = vsel %vm756, %v673, -inf
      %v1157 = vrot.slane %v1156, 4
      %v1158 = vmax.f32 %v1156, %v1157
      %v1159 = vrot.slane %v1158, 2
      %v1160 = vmax.f32 %v1158, %v1159
      %v1161 = vrot.slane %v1160, 1
      %v1162 = vmax.f32 %v1160, %v1161
      %v1163 = vsel %vm756, %v672, -inf
      %v1164 = vrot.slane %v1163, 4
      %v1165 = vmax.f32 %v1163, %v1164
      %v1166 = vrot.slane %v1165, 2
      %v1167 = vmax.f32 %v1165, %v1166
      %v1168 = vrot.slane %v1167, 1
      %v1169 = vmax.f32 %v1167, %v1168
      %v1170 = vsel %vm756, %v674, -inf
      %v1171 = vrot.slane %v1170, 4
      %v1172 = vmax.f32 %v1170, %v1171
      %v1173 = vrot.slane %v1172, 2
      %v1174 = vmax.f32 %v1172, %v1173
      %v1175 = vrot.slane %v1174, 1
      %v1176 = vmax.f32 %v1174, %v1175
      %v1177 = vsel %vm756, %v682, -inf
      %v1178 = vrot.slane %v1177, 4
      %v1179 = vmax.f32 %v1177, %v1178
      %v1180 = vrot.slane %v1179, 2
      %v1181 = vmax.f32 %v1179, %v1180
      %v1182 = vrot.slane %v1181, 1
      %v1183 = vmax.f32 %v1181, %v1182
      %v1184 = vsel %vm756, %v690, -inf
      %v1185 = vrot.slane %v1184, 4
      %v1186 = vmax.f32 %v1184, %v1185
      %v1187 = vrot.slane %v1186, 2
      %v1188 = vmax.f32 %v1186, %v1187
      %v1189 = vrot.slane %v1188, 1
      %v1190 = vmax.f32 %v1188, %v1189
      %v1191 = vsel %vm756, %v689, -inf
      %v1192 = vrot.slane %v1191, 4
      %v1193 = vmax.f32 %v1191, %v1192
      %v1194 = vrot.slane %v1193, 2
      %v1195 = vmax.f32 %v1193, %v1194
      %v1196 = vrot.slane %v1195, 1
      %v1197 = vmax.f32 %v1195, %v1196
      %v1198 = vsel %vm756, %v691, -inf
      %v1199 = vrot.slane %v1198, 4
      %v1200 = vmax.f32 %v1198, %v1199
      %v1201 = vrot.slane %v1200, 2
      %v1202 = vmax.f32 %v1200, %v1201
      %v1203 = vrot.slane %v1202, 1
      %v1204 = vmax.f32 %v1202, %v1203
      %vm1269 = vcmask 1041409
      %v1270 = vsel %vm1269, %v770, %v763
      %vm1271 = vcmask 1042434
      %v1272 = vsel %vm1271, %v777, %v1270
      %vm1273 = vcmask 1043459
      %v1274 = vsel %vm1273, %v784, %v1272
      %vm1275 = vcmask 1044484
      %v1276 = vsel %vm1275, %v791, %v1274
      %vm1277 = vcmask 1045509
      %v1278 = vsel %vm1277, %v798, %v1276
      %vm1279 = vcmask 1046534
      %v1280 = vsel %vm1279, %v805, %v1278
      %vm1281 = vcmask 1047559
      %v1282 = vsel %vm1281, %v812, %v1280
      %v1283 = vsel %vm1269, %v826, %v819
      %v1284 = vsel %vm1271, %v833, %v1283
      %v1285 = vsel %vm1273, %v840, %v1284
      %v1286 = vsel %vm1275, %v847, %v1285
      %v1287 = vsel %vm1277, %v854, %v1286
      %v1288 = vsel %vm1279, %v861, %v1287
      %v1289 = vsel %vm1281, %v868, %v1288
      %v1290 = vsel %vm1269, %v882, %v875
      %v1291 = vsel %vm1271, %v889, %v1290
      %v1292 = vsel %vm1273, %v896, %v1291
      %v1293 = vsel %vm1275, %v903, %v1292
      %v1294 = vsel %vm1277, %v910, %v1293
      %v1295 = vsel %vm1279, %v917, %v1294
      %v1296 = vsel %vm1281, %v924, %v1295
      %v1297 = vsel %vm1269, %v938, %v931
      %v1298 = vsel %vm1271, %v945, %v1297
      %v1299 = vsel %vm1273, %v952, %v1298
      %v1300 = vsel %vm1275, %v959, %v1299
      %v1301 = vsel %vm1277, %v966, %v1300
      %v1302 = vsel %vm1279, %v973, %v1301
      %v1303 = vsel %vm1281, %v980, %v1302
      %v1304 = vsel %vm1269, %v994, %v987
      %v1305 = vsel %vm1271, %v1001, %v1304
      %v1306 = vsel %vm1273, %v1008, %v1305
      %v1307 = vsel %vm1275, %v1015, %v1306
      %v1308 = vsel %vm1277, %v1022, %v1307
      %v1309 = vsel %vm1279, %v1029, %v1308
      %v1310 = vsel %vm1281, %v1036, %v1309
      %v1311 = vsel %vm1269, %v1050, %v1043
      %v1312 = vsel %vm1271, %v1057, %v1311
      %v1313 = vsel %vm1273, %v1064, %v1312
      %v1314 = vsel %vm1275, %v1071, %v1313
      %v1315 = vsel %vm1277, %v1078, %v1314
      %v1316 = vsel %vm1279, %v1085, %v1315
      %v1317 = vsel %vm1281, %v1092, %v1316
      %v1318 = vsel %vm1269, %v1106, %v1099
      %v1319 = vsel %vm1271, %v1113, %v1318
      %v1320 = vsel %vm1273, %v1120, %v1319
      %v1321 = vsel %vm1275, %v1127, %v1320
      %v1322 = vsel %vm1277, %v1134, %v1321
      %v1323 = vsel %vm1279, %v1141, %v1322
      %v1324 = vsel %vm1281, %v1148, %v1323
      %v1325 = vsel %vm1269, %v1162, %v1155
      %v1326 = vsel %vm1271, %v1169, %v1325
      %v1327 = vsel %vm1273, %v1176, %v1326
      %v1328 = vsel %vm1275, %v1183, %v1327
      %v1329 = vsel %vm1277, %v1190, %v1328
      %v1330 = vsel %vm1279, %v1197, %v1329
      %v1331 = vsel %vm1281, %v1204, %v1330
      %1340 = vst.msk [vmem:[%s211] sm:$0xff] %vm355, %v1282
      %1341 = vst.msk [vmem:[%s211 + $0x8] sm:$0xff] %vm355, %v1289
      %1342 = vst.msk [vmem:[%s211 + $0x10] sm:$0xff] %vm355, %v1296
      %1343 = vst.msk [vmem:[%s211 + $0x18] sm:$0xff] %vm355, %v1303
      %1344 = vst.msk [vmem:[%s211 + $0x20] sm:$0xff] %vm355, %v1310
      %1345 = vst.msk [vmem:[%s211 + $0x28] sm:$0xff] %vm355, %v1317
      %1346 = vst.msk [vmem:[%s211 + $0x30] sm:$0xff] %vm355, %v1324
      %1347 = vst.msk [vmem:[%s211 + $0x38] sm:$0xff] %vm355, %v1331
      %s1348 = smul.u32 8, %s19
      %p1349 = scmp.lt.s32.totalorder %s18, 1
      %s1350 = scalar_select %p1349, %s18, 1
      %p1351 = scmp.lt.s32.totalorder %s1348, 7
      %s1352 = scalar_select %p1351, %s1348, 7
      %s1353 = smul.addr %s1350, 8
      %s1354 = sadd.s32 %s1352, %s1353
      %s1355 = smul.addr %s1354, 8
      %s1356 = scalar_lea.vmem %s3, %s1355
      // Predicated region
      $region33: #{classify_forward.7} parent=31 // pred_check
        %p1357 = pneg %p116
      $region34: #{classify_forward.7} parent=31 // pred_check_branch
        %1359 = sbr.rel (%p1357) target = $region36
      $region35: #{classify_forward.7} parent=31 // pred_region
        %s1360 = smul.u32 8, %s19
      $region36: #{classify_forward.7} parent=31 // pred_fallthru
        _
    $region32: #{classify_forward.7} parent=5 // pred_fallthru
      _
    %p1361 = scmp.le.s32.totalorder 2, %s9
    // Predicated region
    $region37: #{classify_forward.7} parent=5 // pred_check
      %p1362 = pneg %p1361
    $region38: #{classify_forward.7} parent=5 // pred_check_branch
      %1364 = sbr.rel (%p1362) target = $region40
    $region39: #{classify_forward.7} parent=5 // pred_region
      %s1365 = ssub.s32 %s9, 2
      // Predicated region
      $region41: #{classify_forward.7} parent=39 // pred_check
        %p1366 = pneg %p122
      $region42: #{classify_forward.7} parent=39 // pred_check_branch
        %1368 = sbr.rel (%p1366) target = $region44
      $region43: #{classify_forward.7} parent=39 // pred_region
        %s1369 = smul.u32 8, %s21
        %p1370 = scmp.lt.s32.totalorder %s20, 1
        %s1371 = scalar_select %p1370, %s20, 1
        %p1372 = scmp.lt.s32.totalorder %s1369, 7
        %s1373 = scalar_select %p1372, %s1369, 7
        %s1374 = smul.addr %s1371, 8
        %s1375 = sadd.s32 %s1373, %s1374
        %s1376 = smul.addr %s1375, 8
        %s1377 = scalar_lea.vmem %s3, %s1376
      $region44: #{classify_forward.7} parent=39 // pred_fallthru
        _
    $region40: #{classify_forward.7} parent=5 // pred_fallthru
      _
  $region6: #{classify_forward.7} parent=0 // loop_footer
    %s13 = sadd.s32 1, %s9
  $region7: #{classify_forward.7} parent=0 // loop_footer_branch
    %8 = sbr.rel target = $region3
  $region8: #{classify_forward.7} parent=0 // loop_exit
    _

// kernel: classify_forward.8
$region0: #{classify_forward.8}
  #allocation0 [shape = 'u32[]', space=smem, size = 0x4, offset = 0x4, fixed_abs, tag = 'smem constant byte address 0x4 - core index']
  #allocation1 [shape = 'u32[144,128]{1,0:T(1,128)}', space=vmem, size = 0x12000, scoped, tag = 'internal scratch']
  %s0 = inlined_call_operand.vmem [shape: f32[2,8,8,12], index: 0, kind: input, shape index: {}, may-alias: {0,1,2}]
  %s1 = inlined_call_operand.vmem [shape: f32[2,8,8,12], index: 1, kind: input, shape index: {}, may-alias: {0,1,2}]
  %s2 = inlined_call_operand.vmem [shape: f32[2,8,8,12], index: 2, kind: input, shape index: {}, may-alias: {0,1,2}]
  %s3 = inlined_call_operand.vmem [shape: f32[3,36,20], index: 3, kind: input, shape index: {}]
  %s4 = inlined_call_operand.vmem [shape: f32[1,20], index: 4, kind: input, shape index: {}]
  %s5 = inlined_call_operand.vmem [shape: f32[2,8,8,20], index: 5, kind: output, shape index: {}]
  %s6 = sld [smem:[#allocation0]]
  $region53: #{classify_forward.8} parent=0
    _
  %s8 = ssub.s32 1, %s6
  %s9 = scalar_select 0, %s8, %s6
  loop: start=0, step=1, limit=4
  $region2: #{classify_forward.8} parent=0 // loop_pre_header
    _
  $region3: #{classify_forward.8} parent=0 // loop_header
    %s11 = sphi 0, %s15
    %p12 = scmp.ge.s32.totalorder %s11, 4
    %s18 = sphi 0, %s30
    %s19 = sphi 0, %s26
    %s20 = sphi 0, %s18
    %s21 = sphi 0, %s19
    %s22 = sphi 0, %s20
    %s23 = sphi 0, %s21
    %s43 = sphi 0, %s45
    %s46 = sphi 0, %s43
    %s47 = sphi 0, %s46
    %s63 = sphi 0, %s47
    %s71 = sphi 0, %s73
    %s74 = sphi 0, %s71
    %s75 = sphi 0, %s74
    %s91 = sphi 0, %s75
    %s107 = sphi 0, %s109
    %s110 = sphi 0, %s107
    %s111 = sphi 0, %s110
    %s127 = sphi 0, %s111
    %s131 = sphi 0, %s131
    %s133 = sphi 0, %s131
    %s134 = sphi 0, %s133
    %s148 = sphi 0, %s134
    %s152 = sphi 0, %s152
    %s154 = sphi 0, %s152
    %s155 = sphi 0, %s154
    %s169 = sphi 0, %s155
    %s177 = sphi 0, %s179
    %s180 = sphi 0, %s177
    %s181 = sphi 0, %s180
    %s197 = sphi 0, %s181
  $region4: #{classify_forward.8} parent=0 // loop_header_branch
    %14 = sbr.rel (%p12) target = $region8
  $region5: #{classify_forward.8} parent=0 // loop_body
    %s16 = ssub.s32 %s11, 1
    %s17 = ssub.s32 %s11, 2
    %s24 = sadd.s32 1, %s19
    %p25 = scmp.ge.s32.totalorder %s24, 1
    %s26 = scalar_select %p25, 0, %s24
    %s27 = sadd.s32 1, %s18
    %s28 = scalar_select %p25, %s27, %s18
    %p29 = scmp.ge.s32.totalorder %s28, 2
    %s30 = scalar_select %p29, 0, %s28
    %s31 = smul.u32 %s19, 8
    %s32 = ssub.s32 %s31, 1
    %p33 = scmp.gt.s32.totalorder %s32, 0
    %s34 = scalar_select %p33, %s32, 0
    %s35 = smul.u32 %s26, 8
    %s36 = ssub.s32 %s35, 1
    %p37 = scmp.gt.s32.totalorder %s36, 0
    %s38 = scalar_select %p37, %s36, 0
    %s39 = ssub.s32 %s18, %s30
    %s40 = ssub.s32 %s34, %s38
    %s41 = sor.u32 %s39, %s40
    %p42 = scmp.eq.s32.totalorder %s41, 0
    %s44 = sadd.s32 %s43, 1
    %s45 = scalar_select %p42, %s43, %s44
    %p48 = pneg %p42
    %p49 = scmp.eq.s32.totalorder %s11, 1
    %p50 = por %p48, %p49
    %p51 = scmp.ne.s32.totalorder %s43, %s46
    %p52 = scmp.eq.s32.totalorder %s11, 0
    %p53 = por %p51, %p52
    %p54 = scmp.ne.s32.totalorder %s43, %s46
    %p55 = scmp.eq.s32.totalorder %s16, 1
    %p56 = por %p54, %p55
    %p57 = scmp.ne.s32.totalorder %s46, %s47
    %p58 = scmp.eq.s32.totalorder %s16, 0
    %p59 = por %p57, %p58
    %p60 = scmp.ne.s32.totalorder %s46, %s47
    %p61 = scmp.eq.s32.totalorder %s17, 1
    %p62 = por %p60, %p61
    %p64 = scmp.ne.s32.totalorder %s47, %s63
    %p65 = scmp.eq.s32.totalorder %s17, 0
    %p66 = por %p64, %p65
    %s67 = ssub.s32 %s18, %s30
    %s68 = ssub.s32 %s19, %s26
    %s69 = sor.u32 %s67, %s68
    %p70 = scmp.eq.s32.totalorder %s69, 0
    %s72 = sadd.s32 %s71, 1
    %s73 = scalar_select %p70, %s71, %s72
    %p76 = pneg %p70
    %p77 = scmp.eq.s32.totalorder %s11, 1
    %p78 = por %p76, %p77
    %p79 = scmp.ne.s32.totalorder %s71, %s74
    %p80 = scmp.eq.s32.totalorder %s11, 0
    %p81 = por %p79, %p80
    %p82 = scmp.ne.s32.totalorder %s71, %s74
    %p83 = scmp.eq.s32.totalorder %s16, 1
    %p84 = por %p82, %p83
    %p85 = scmp.ne.s32.totalorder %s74, %s75
    %p86 = scmp.eq.s32.totalorder %s16, 0
    %p87 = por %p85, %p86
    %p88 = scmp.ne.s32.totalorder %s74, %s75
    %p89 = scmp.eq.s32.totalorder %s17, 1
    %p90 = por %p88, %p89
    %p92 = scmp.ne.s32.totalorder %s75, %s91
    %p93 = scmp.eq.s32.totalorder %s17, 0
    %p94 = por %p92, %p93
    %s95 = sadd.s32 %s19, 1
    %s96 = smul.u32 %s95, 8
    %p97 = scmp.lt.s32.totalorder %s96, 7
    %s98 = scalar_select %p97, %s96, 7
    %s99 = sadd.s32 %s26, 1
    %s100 = smul.u32 %s99, 8
    %p101 = scmp.lt.s32.totalorder %s100, 7
    %s102 = scalar_select %p101, %s100, 7
    %s103 = ssub.s32 %s18, %s30
    %s104 = ssub.s32 %s98, %s102
    %s105 = sor.u32 %s103, %s104
    %p106 = scmp.eq.s32.totalorder %s105, 0
    %s108 = sadd.s32 %s107, 1
    %s109 = scalar_select %p106, %s107, %s108
    %p112 = pneg %p106
    %p113 = scmp.eq.s32.totalorder %s11, 1
    %p114 = por %p112, %p113
    %p115 = scmp.ne.s32.totalorder %s107, %s110
    %p116 = scmp.eq.s32.totalorder %s11, 0
    %p117 = por %p115, %p116
    %p118 = scmp.ne.s32.totalorder %s107, %s110
    %p119 = scmp.eq.s32.totalorder %s16, 1
    %p120 = por %p118, %p119
    %p121 = scmp.ne.s32.totalorder %s110, %s111
    %p122 = scmp.eq.s32.totalorder %s16, 0
    %p123 = por %p121, %p122
    %p124 = scmp.ne.s32.totalorder %s110, %s111
    %p125 = scmp.eq.s32.totalorder %s17, 1
    %p126 = por %p124, %p125
    %p128 = scmp.ne.s32.totalorder %s111, %s127
    %p129 = scmp.eq.s32.totalorder %s17, 0
    %p130 = por %p128, %p129
    %s132 = sadd.s32 %s131, 1
    %p135 = scmp.eq.s32.totalorder %s11, 1
    %p136 = scmp.ne.s32.totalorder %s131, %s133
    %p137 = scmp.eq.s32.totalorder %s11, 0
    %p138 = por %p136, %p137
    %p139 = scmp.ne.s32.totalorder %s131, %s133
    %p140 = scmp.eq.s32.totalorder %s16, 1
    %p141 = por %p139, %p140
    %p142 = scmp.ne.s32.totalorder %s133, %s134
    %p143 = scmp.eq.s32.totalorder %s16, 0
    %p144 = por %p142, %p143
    %p145 = scmp.ne.s32.totalorder %s133, %s134
    %p146 = scmp.eq.s32.totalorder %s17, 1
    %p147 = por %p145, %p146
    %p149 = scmp.ne.s32.totalorder %s134, %s148
    %p150 = scmp.eq.s32.totalorder %s17, 0
    %p151 = por %p149, %p150
    %s153 = sadd.s32 %s152, 1
    %p156 = scmp.eq.s32.totalorder %s11, 1
    %p157 = scmp.ne.s32.totalorder %s152, %s154
    %p158 = scmp.eq.s32.totalorder %s11, 0
    %p159 = por %p157, %p158
    %p160 = scmp.ne.s32.totalorder %s152, %s154
    %p161 = scmp.eq.s32.totalorder %s16, 1
    %p162 = por %p160, %p161
    %p163 = scmp.ne.s32.totalorder %s154, %s155
    %p164 = scmp.eq.s32.totalorder %s16, 0
    %p165 = por %p163, %p164
    %p166 = scmp.ne.s32.totalorder %s154, %s155
    %p167 = scmp.eq.s32.totalorder %s17, 1
    %p168 = por %p166, %p167
    %p170 = scmp.ne.s32.totalorder %s155, %s169
    %p171 = scmp.eq.s32.totalorder %s17, 0
    %p172 = por %p170, %p171
    %s173 = ssub.s32 %s18, %s30
    %s174 = ssub.s32 %s19, %s26
    %s175 = sor.u32 %s173, %s174
    %p176 = scmp.eq.s32.totalorder %s175, 0
    %s178 = sadd.s32 %s177, 1
    %s179 = scalar_select %p176, %s177, %s178
    %p182 = pneg %p176
    %p183 = scmp.eq.s32.totalorder %s11, 1
    %p184 = por %p182, %p183
    %p185 = scmp.ne.s32.totalorder %s177, %s180
    %p186 = scmp.eq.s32.totalorder %s11, 0
    %p187 = por %p185, %p186
    %p188 = scmp.ne.s32.totalorder %s177, %s180
    %p189 = scmp.eq.s32.totalorder %s16, 1
    %p190 = por %p188, %p189
    %p191 = scmp.ne.s32.totalorder %s180, %s181
    %p192 = scmp.eq.s32.totalorder %s16, 0
    %p193 = por %p191, %p192
    %p194 = scmp.ne.s32.totalorder %s180, %s181
    %p195 = scmp.eq.s32.totalorder %s17, 1
    %p196 = por %p194, %p195
    %p198 = scmp.ne.s32.totalorder %s181, %s197
    %p199 = scmp.eq.s32.totalorder %s17, 0
    %p200 = por %p198, %p199
    %p201 = scmp.le.s32.totalorder 1, %s11
    %p202 = scmp.lt.s32.totalorder %s11, 3
    %p203 = pnand %p201, %p202
    %p204 = pneg %p203
    // Predicated region
    $region9: #{classify_forward.8} parent=5 // pred_check
      _
    $region10: #{classify_forward.8} parent=5 // pred_check_branch
      %206 = sbr.rel (%p203) target = $region12
    $region11: #{classify_forward.8} parent=5 // pred_region
      %s207 = ssub.s32 %s11, 1
      // Predicated region
      $region13: #{classify_forward.8} parent=11 // pred_check
        %p208 = pneg %p144
      $region14: #{classify_forward.8} parent=11 // pred_check_branch
        %210 = sbr.rel (%p208) target = $region16
      $region15: #{classify_forward.8} parent=11 // pred_region
        _
      $region16: #{classify_forward.8} parent=11 // pred_fallthru
        _
      // Predicated region
      $region17: #{classify_forward.8} parent=11 // pred_check
        %p211 = pneg %p165
      $region18: #{classify_forward.8} parent=11 // pred_check_branch
        %213 = sbr.rel (%p211) target = $region20
      $region19: #{classify_forward.8} parent=11 // pred_region
        _
      $region20: #{classify_forward.8} parent=11 // pred_fallthru
        _
    $region12: #{classify_forward.8} parent=5 // pred_fallthru
      _
    %p214 = scmp.lt.s32.totalorder %s11, 2
    // Predicated region
    $region21: #{classify_forward.8} parent=5 // pred_check
      %p215 = pneg %p214
    $region22: #{classify_forward.8} parent=5 // pred_check_branch
      %217 = sbr.rel (%p215) target = $region24
    $region23: #{classify_forward.8} parent=5 // pred_region
      // Predicated region
      $region25: #{classify_forward.8} parent=23 // pred_check
        %p218 = pneg %p53
      $region26: #{classify_forward.8} parent=23 // pred_check_branch
        %220 = sbr.rel (%p218) target = $region28
      $region27: #{classify_forward.8} parent=23 // pred_region
        %s221 = smul.u32 %s19, 8
        %s222 = ssub.s32 %s221, 1
        %p223 = scmp.gt.s32.totalorder %s222, 0
        %s224 = scalar_select %p223, %s222, 0
        %p225 = scmp.lt.s32.totalorder %s18, 1
        %s226 = scalar_select %p225, %s18, 1
        %p227 = scmp.lt.s32.totalorder %s224, 7
        %s228 = scalar_select %p227, %s224, 7
        %s229 = smul.addr %s226, 8
        %s230 = sadd.s32 %s228, %s229
        %s231 = smul.addr %s230, 8
        %s232 = scalar_lea.vmem %s0, %s231
        %s233 = smul.u32 %s19, 8
        %s234 = ssub.s32 %s233, 1
        %p235 = scmp.gt.s32.totalorder %s234, 0
        %s236 = scalar_select %p235, %s234, 0
      $region28: #{classify_forward.8} parent=23 // pred_fallthru
        _
      // Predicated region
      $region29: #{classify_forward.8} parent=23 // pred_check
        %p237 = pneg %p81
      $region30: #{classify_forward.8} parent=23 // pred_check_branch
        %239 = sbr.rel (%p237) target = $region32
      $region31: #{classify_forward.8} parent=23 // pred_region
        %s240 = smul.u32 8, %s19
        %p241 = scmp.lt.s32.totalorder %s18, 1
        %s242 = scalar_select %p241, %s18, 1
        %p243 = scmp.lt.s32.totalorder %s240, 7
        %s244 = scalar_select %p243, %s240, 7
        %s245 = smul.addr %s242, 8
        %s246 = sadd.s32 %s244, %s245
        %s247 = smul.addr %s246, 8
        %s248 = scalar_lea.vmem %s1, %s247
        %s249 = smul.u32 8, %s19
      $region32: #{classify_forward.8} parent=23 // pred_fallthru
        _
      // Predicated region
      $region33: #{classify_forward.8} parent=23 // pred_check
        %p250 = pneg %p117
      $region34: #{classify_forward.8} parent=23 // pred_check_branch
        %252 = sbr.rel (%p250) target = $region36
      $region35: #{classify_forward.8} parent=23 // pred_region
        %s253 = sadd.s32 %s19, 1
        %s254 = smul.u32 %s253, 8
        %p255 = scmp.lt.s32.totalorder %s254, 7
        %s256 = scalar_select %p255, %s254, 7
        %p257 = scmp.lt.s32.totalorder %s18, 1
        %s258 = scalar_select %p257, %s18, 1
        %p259 = scmp.lt.s32.totalorder %s256, 7
        %s260 = scalar_select %p259, %s256, 7
        %s261 = smul.addr %s258, 8
        %s262 = sadd.s32 %s260, %s261
        %s263 = smul.addr %s262, 8
        %s264 = scalar_lea.vmem %s2, %s263
        %s265 = sadd.s32 %s19, 1
        %s266 = smul.u32 %s265, 8
        %p267 = scmp.lt.s32.totalorder %s266, 7
        %s268 = scalar_select %p267, %s266, 7
      $region36: #{classify_forward.8} parent=23 // pred_fallthru
        _
    $region24: #{classify_forward.8} parent=5 // pred_fallthru
      _
    %p269 = scmp.le.s32.totalorder 1, %s11
    %p270 = scmp.lt.s32.totalorder %s11, 3
    %p271 = pnand %p269, %p270
    %p272 = pneg %p271
    // Predicated region
    $region37: #{classify_forward.8} parent=5 // pred_check
      _
    $region38: #{classify_forward.8} parent=5 // pred_check_branch
      %274 = sbr.rel (%p271) target = $region40
    $region39: #{classify_forward.8} parent=5 // pred_region
      %s275 = ssub.s32 %s11, 1
      %s276 = smul.u32 %s21, 8
      %s277 = ssub.s32 %s276, 1
      %p278 = scmp.gt.s32.totalorder %s277, 0
      %s279 = scalar_select %p278, %s277, 0
      %p280 = scmp.lt.s32.totalorder %s20, 1
      %s281 = scalar_select %p280, %s20, 1
      %p282 = scmp.lt.s32.totalorder %s279, 7
      %s283 = scalar_select %p282, %s279, 7
      %s284 = smul.addr %s281, 8
      %s285 = sadd.s32 %s283, %s284
      %s286 = smul.addr %s285, 8
      %s287 = scalar_lea.vmem %s0, %s286
      %p288 = pneg %p59
      %p289 = pneg %p56
      %s290 = smul.u32 8, %s21
      %p291 = scmp.lt.s32.totalorder %s20, 1
      %s292 = scalar_select %p291, %s20, 1
      %p293 = scmp.lt.s32.totalorder %s290, 7
      %s294 = scalar_select %p293, %s290, 7
      %s295 = smul.addr %s292, 8
      %s296 = sadd.s32 %s294, %s295
      %s297 = smul.addr %s296, 8
      %s298 = scalar_lea.vmem %s1, %s297
      %p299 = pneg %p87
      %p300 = pneg %p84
      %s301 = sadd.s32 %s21, 1
      %s302 = smul.u32 %s301, 8
      %p303 = scmp.lt.s32.totalorder %s302, 7
      %s304 = scalar_select %p303, %s302, 7
      %p305 = scmp.lt.s32.totalorder %s20, 1
      %s306 = scalar_select %p305, %s20, 1
      %p307 = scmp.lt.s32.totalorder %s304, 7
      %s308 = scalar_select %p307, %s304, 7
      %s309 = smul.addr %s306, 8
      %s310 = sadd.s32 %s308, %s309
      %s311 = smul.addr %s310, 8
      %s312 = scalar_lea.vmem %s2, %s311
      %p313 = pneg %p123
      %p314 = pneg %p120
      %p315 = pneg %p144
      %p316 = pneg %p141
      %p317 = pneg %p165
      %p318 = pneg %p162
      %p319 = pneg %p193
      %p320 = pneg %p190
      %s321 = smul.u32 8, %s21
      %p322 = scmp.lt.s32.totalorder %s20, 1
      %s323 = scalar_select %p322, %s20, 1
      %p324 = scmp.lt.s32.totalorder %s321, 7
      %s325 = scalar_select %p324, %s321, 7
      %s326 = smul.addr %s323, 8
      %s327 = sadd.s32 %s325, %s326
      %s328 = smul.addr %s327, 8
      %s329 = scalar_lea.vmem %s5, %s328
      %s330 = smul.u32 %s21, 8
      %s331 = ssub.s32 %s330, 1
      %p332 = scmp.gt.s32.totalorder %s331, 0
      %s333 = scalar_select %p332, %s331, 0
      %p334 = scmp.lt.s32.totalorder %s20, 1
      %s335 = scalar_select %p334, %s20, 1
      %p336 = scmp.lt.s32.totalorder %s333, 7
      %s337 = scalar_select %p336, %s333, 7
      %s338 = smul.addr %s335, 8
      %s339 = sadd.s32 %s337, %s338
      %s340 = smul.addr %s339, 8
      %s341 = scalar_lea.vmem %s0, %s340
      %s342 = smul.u32 %s21, 8
      %s343 = ssub.s32 %s342, 1
      %p344 = scmp.gt.s32.totalorder %s343, 0
      %s345 = scalar_select %p344, %s343, 0
      %s346 = smul.u32 8, %s21
      %p347 = scmp.lt.s32.totalorder %s20, 1
      %s348 = scalar_select %p347, %s20, 1
      %p349 = scmp.lt.s32.totalorder %s346, 7
      %s350 = scalar_select %p349, %s346, 7
      %s351 = smul.addr %s348, 8
      %s352 = sadd.s32 %s350, %s351
      %s353 = smul.addr %s352, 8
      %s354 = scalar_lea.vmem %s1, %s353
      %s355 = smul.u32 8, %s21
      %s356 = sadd.s32 %s21, 1
      %s357 = smul.u32 %s356, 8
      %p358 = scmp.lt.s32.totalorder %s357, 7
      %s359 = scalar_select %p358, %s357, 7
      %p360 = scmp.lt.s32.totalorder %s20, 1
      %s361 = scalar_select %p360, %s20, 1
      %p362 = scmp.lt.s32.totalorder %s359, 7
      %s363 = scalar_select %p362, %s359, 7
      %s364 = smul.addr %s361, 8
      %s365 = sadd.s32 %s363, %s364
      %s366 = smul.addr %s365, 8
      %s367 = scalar_lea.vmem %s2, %s366
      %s368 = sadd.s32 %s21, 1
      %s369 = smul.u32 %s368, 8
      %p370 = scmp.lt.s32.totalorder %s369, 7
      %s371 = scalar_select %p370, %s369, 7
      %s372 = smul.u32 8, %s21
      %p373 = scmp.lt.s32.totalorder %s20, 1
      %s374 = scalar_select %p373, %s20, 1
      %p375 = scmp.lt.s32.totalorder %s372, 7
      %s376 = scalar_select %p375, %s372, 7
      %s377 = smul.addr %s374, 8
      %s378 = sadd.s32 %s376, %s377
      %s379 = smul.addr %s378, 8
      %s380 = scalar_lea.vmem %s5, %s379
      %s381 = smul.u32 8, %s21
      %p382 = scmp.eq.s32.totalorder %s21, 0
      %v383 = vld [vmem:[%s341] sm:$0xff]
      %s384 = scalar_select %p382, 1, 0
      %v385 = vstv %s384
      %vm386 = vcmp.eq.s32.totalorder %v385, 1
      %v387 = vsel %vm386, 0.0, %v383
      %v388 = vld [vmem:[%s367] sm:$0xff]
      %v389 = vsel %vm386, 0.0, %v388
      %v390 = vld [vmem:[%s354] sm:$0xff]
      %v391 = vld [vmem:[%s354 + $0x8] sm:$0xff]
      %v392 = vld [vmem:[%s354 + $0x10] sm:$0xff]
      %v393 = vld [vmem:[%s354 + $0x18] sm:$0xff]
      %v394 = vld [vmem:[%s354 + $0x20] sm:$0xff]
      %v395 = vld [vmem:[%s354 + $0x28] sm:$0xff]
      %v396 = vld [vmem:[%s354 + $0x30] sm:$0xff]
      %v397 = vld [vmem:[%s354 + $0x38] sm:$0xff]
      %406 = vrot.lane.b32.xlu0 %v390, 12
      %v407 = vpop.permute.xlu0 %406
      %408 = vrot.lane.b32.xlu0 %v391, 12
      %v409 = vpop.permute.xlu0 %408
      %410 = vrot.lane.b32.xlu0 %v392, 12
      %v411 = vpop.permute.xlu0 %410
      %412 = vrot.lane.b32.xlu0 %v393, 12
      %v413 = vpop.permute.xlu0 %412
      %414 = vrot.lane.b32.xlu0 %v394, 12
      %v415 = vpop.permute.xlu0 %414
      %416 = vrot.lane.b32.xlu0 %v395, 12
      %v417 = vpop.permute.xlu0 %416
      %418 = vrot.lane.b32.xlu0 %v396, 12
      %v419 = vpop.permute.xlu0 %418
      %420 = vrot.lane.b32.xlu0 %v397, 12
      %v421 = vpop.permute.xlu0 %420
      %431 = vrot.lane.b32.xlu0 %v391, 24
      %v432 = vpop.permute.xlu0 %431
      %433 = vrot.lane.b32.xlu0 %v392, 24
      %v434 = vpop.permute.xlu0 %433
      %435 = vrot.lane.b32.xlu0 %v393, 24
      %v436 = vpop.permute.xlu0 %435
      %437 = vrot.lane.b32.xlu0 %v394, 24
      %v438 = vpop.permute.xlu0 %437
      %439 = vrot.lane.b32.xlu0 %v395, 24
      %v440 = vpop.permute.xlu0 %439
      %441 = vrot.lane.b32.xlu0 %v396, 24
      %v442 = vpop.permute.xlu0 %441
      %443 = vrot.lane.b32.xlu0 %v397, 24
      %v444 = vpop.permute.xlu0 %443
      %445 = vrot.lane.b32.xlu0 %v389, 24
      %v446 = vpop.permute.xlu0 %445
      %vm455 = vcmask 97280
      %v456 = vsel %vm455, %v387, %v407
      %v457 = vsel %vm455, %v390, %v409
      %v458 = vsel %vm455, %v391, %v411
      %v459 = vsel %vm455, %v392, %v413
      %v460 = vsel %vm455, %v393, %v415
      %v461 = vsel %vm455, %v394, %v417
      %v462 = vsel %vm455, %v395, %v419
      %v463 = vsel %vm455, %v396, %v421
      %vm464 = vcmask 195584
      %v465 = vsel %vm464, %v456, %v432
      %v466 = vsel %vm464, %v457, %v434
      %v467 = vsel %vm464, %v458, %v436
      %v468 = vsel %vm464, %v459, %v438
      %v469 = vsel %vm464, %v460, %v440
      %v470 = vsel %vm464, %v461, %v442
      %v471 = vsel %vm464, %v462, %v444
      %v472 = vsel %vm464, %v463, %v446
      %v473 = vlaneseq
      %v474 = vshrl.u32 %v473, 7
      %s475 = scalar_lea.vmem %s3, 40
      %v476 = vld [vmem:[%s475] sm:$0xff]
      %v477 = vld [vmem:[%s475 + $0x8] sm:$0xff]
      %v478 = vld [vmem:[%s475 + $0x10] sm:$0xff]
      %v479 = vld [vmem:[%s475 + $0x18] sm:$0xff]
      %v480 = vld [vmem:[%s475 + $0x20] sm:$0xf]
      %vm481 = vcmp.eq.s32.totalorder %v474, 0
      %v482 = vrot.slane %v465, 7
      %v483 = vrot.slane %v466, 7
      %v484 = vrot.slane %v467, 7
      %v485 = vrot.slane %v468, 7
      %v486 = vrot.slane %v469, 7
      %v487 = vrot.slane %v470, 7
      %v488 = vrot.slane %v471, 7
      %v489 = vrot.slane %v472, 7
      %vm490 = vcmp.lt.s32.totalorder %v474, 1
      %v491 = vsel %vm490, %v488, %v489
      %v492 = vsel %vm490, %v487, %v488
      %v493 = vsel %vm490, %v486, %v487
      %v494 = vsel %vm490, %v485, %v486
      %v495 = vsel %vm490, %v484, %v485
      %v496 = vsel %vm490, %v483, %v484
      %v497 = vsel %vm490, %v482, %v483
      %v498 = vsel %vm490, %v489, %v482
      %v499 = vsel %vm481, 1, 0
      %vm500 = vcmp.eq.s32.totalorder %v499, 1
      %v501 = vsel %vm500, 0.0, %v498
      %v502 = vsel %vm500, 0.0, %v497
      %v503 = vsel %vm500, 0.0, %v496
      %v504 = vsel %vm500, 0.0, %v495
      %v505 = vsel %vm500, 0.0, %v494
      %v506 = vsel %vm500, 0.0, %v493
      %v507 = vsel %vm500, 0.0, %v492
      %v508 = vsel %vm500, 0.0, %v491
      %v509 = vld [vmem:[%s3] sm:$0xff]
      %v510 = vld [vmem:[%s3 + $0x8] sm:$0xff]
      %v511 = vld [vmem:[%s3 + $0x10] sm:$0xff]
      %v512 = vld [vmem:[%s3 + $0x18] sm:$0xff]
      %v513 = vld [vmem:[%s3 + $0x20] sm:$0xf]
      %vm514 = vcmask 293888
      %v516 = vsel %vm514, %v501, 0
      %v519 = vsel %vm514, %v502, 0
      %v522 = vsel %vm514, %v503, 0
      %v525 = vsel %vm514, %v504, 0
      %v528 = vsel %vm514, %v505, 0
      %v531 = vsel %vm514, %v506, 0
      %v534 = vsel %vm514, %v507, 0
      %v537 = vsel %vm514, %v508, 0
      %vm539 = vcmask 1043456
      %v541 = vsel %vm539, %v513, 0
      %543 = vmatprep.subr.mxu0 0.0
      %544 = vmatpush1.msra.mxu0 0.0
      %545 = vmatprep.subr.mxu0 0.0
      %546 = vmatpush1.msra.mxu0 0.0
      %547 = vmatprep.subr.mxu0 0.0
      %548 = vmatpush1.msra.mxu0 0.0
      %549 = vmatprep.subr.mxu0 0.0
      %550 = vmatpush1.msra.mxu0 0.0
      %551 = vmatprep.subr.mxu0 0.0
      %552 = vmatpush1.msra.mxu0 0.0
      %553 = vmatprep.subr.mxu0 0.0
      %554 = vmatpush1.msra.mxu0 0.0
      %555 = vmatprep.subr.mxu0 0.0
      %556 = vmatpush1.msra.mxu0 0.0
      %557 = vmatprep.subr.mxu0 0.0
      %558 = vmatpush1.msra.mxu0 0.0
      %559 = vmatprep.subr.mxu0 0.0
      %560 = vmatpush1.msra.mxu0 0.0
      %561 = vmatprep.subr.mxu0 0.0
      %562 = vmatpush1.msra.mxu0 0.0
      %563 = vmatprep.subr.mxu0 0.0
      %564 = vmatpush1.msra.mxu0 0.0
      %565 = vmatprep.subr.mxu0 0.0
      %566 = vmatpush1.msra.mxu0 %v541
      %567 = vmatprep.subr.mxu0 0.0
      %568 = vmatpush1.msra.mxu0 %v512
      %569 = vmatprep.subr.mxu0 0.0
      %570 = vmatpush1.msra.mxu0 %v511
      %571 = vmatprep.subr.mxu0 0.0
      %572 = vmatpush1.msra.mxu0 %v510
      %573 = vmatprep.subr.mxu0 0.0
      %574 = vmatpush1.msra.mxu0 %v509
      %575 = vmatprep.subr.mxu0 0.0
      %576 = vmatpush2.msra.mxu0 0.0
      %577 = vmatprep.subr.mxu0 0.0
      %578 = vmatpush2.msra.mxu0 0.0
      %579 = vmatprep.subr.mxu0 0.0
      %580 = vmatpush2.msra.mxu0 0.0
      %581 = vmatprep.subr.mxu0 0.0
      %582 = vmatpush2.msra.mxu0 0.0
      %583 = vmatprep.subr.mxu0 0.0
      %584 = vmatpush2.msra.mxu0 0.0
      %585 = vmatprep.subr.mxu0 0.0
      %586 = vmatpush2.msra.mxu0 0.0
      %587 = vmatprep.subr.mxu0 0.0
      %588 = vmatpush2.msra.mxu0 0.0
      %589 = vmatprep.subr.mxu0 0.0
      %590 = vmatpush2.msra.mxu0 0.0
      %591 = vmatprep.subr.mxu0 0.0
      %592 = vmatpush2.msra.mxu0 0.0
      %593 = vmatprep.subr.mxu0 0.0
      %594 = vmatpush2.msra.mxu0 0.0
      %595 = vmatprep.subr.mxu0 0.0
      %596 = vmatpush2.msra.mxu0 0.0
      %597 = vmatprep.subr.mxu0 0.0
      %598 = vmatpush2.msra.mxu0 0.0
      %599 = vmatprep.subr.mxu0 0.0
      %600 = vmatpush2.msra.mxu0 0.0
      %601 = vmatprep.subr.mxu0 0.0
      %602 = vmatpush2.msra.mxu0 0.0
      %603 = vmatprep.subr.mxu0 0.0
      %604 = vmatpush2.msra.mxu0 0.0
      %605 = vmatprep.subr.mxu0 0.0
      %606 = vmatpush2.msra.mxu0 0.0
      %607 = vmatprep.mubr.f32.mxu0 0.0
      %608 = vmatmul.mubr.f32.gmra.mxu0 %v516
      %v609 = vpop.f32.mrf.mxu0
      %v610 = vadd.f32 0.0, %v609
      %v611 = vpop.f32.mrf.mxu0
      %612 = vmatprep.mubr.f32.mxu0 0.0
      %613 = vmatmul.mubr.f32.gmra.mxu0 %v519
      %v614 = vpop.f32.mrf.mxu0
      %v615 = vadd.f32 0.0, %v614
      %v616 = vpop.f32.mrf.mxu0
      %617 = vmatprep.mubr.f32.mxu0 0.0
      %618 = vmatmul.mubr.f32.gmra.mxu0 %v522
      %v619 = vpop.f32.mrf.mxu0
      %v620 = vadd.f32 0.0, %v619
      %v621 = vpop.f32.mrf.mxu0
      %622 = vmatprep.mubr.f32.mxu0 0.0
      %623 = vmatmul.mubr.f32.gmra.mxu0 %v525
      %v624 = vpop.f32.mrf.mxu0
      %v625 = vadd.f32 0.0, %v624
      %v626 = vpop.f32.mrf.mxu0
      %627 = vmatprep.mubr.f32.mxu0 0.0
      %628 = vmatmul.mubr.f32.gmra.mxu0 %v528
      %v629 = vpop.f32.mrf.mxu0
      %v630 = vadd.f32 0.0, %v629
      %v631 = vpop.f32.mrf.mxu0
      %632 = vmatprep.mubr.f32.mxu0 0.0
      %633 = vmatmul.mubr.f32.gmra.mxu0 %v531
      %v634 = vpop.f32.mrf.mxu0
      %v635 = vadd.f32 0.0, %v634
      %v636 = vpop.f32.mrf.mxu0
      %637 = vmatprep.mubr.f32.mxu0 0.0
      %638 = vmatmul.mubr.f32.gmra.mxu0 %v534
      %v639 = vpop.f32.mrf.mxu0
      %v640 = vadd.f32 0.0, %v639
      %v641 = vpop.f32.mrf.mxu0
      %642 = vmatprep.mubr.f32.mxu0 0.0
      %643 = vmatmul.mubr.f32.gmra.mxu0 %v537
      %v644 = vpop.f32.mrf.mxu0
      %v645 = vadd.f32 0.0, %v644
      %v646 = vpop.f32.mrf.mxu0
      %647 = vdwg.mxu0
      %v649 = vsel %vm514, %v465, 0
      %v652 = vsel %vm514, %v466, 0
      %v655 = vsel %vm514, %v467, 0
      %v658 = vsel %vm514, %v468, 0
      %v661 = vsel %vm514, %v469, 0
      %v664 = vsel %vm514, %v470, 0
      %v667 = vsel %vm514, %v471, 0
      %v670 = vsel %vm514, %v472, 0
      %v673 = vsel %vm539, %v480, 0
      %675 = vmatprep.subr.mxu0 0.0
      %676 = vmatpush1.msra.mxu0 0.0
      %677 = vmatprep.subr.mxu0 0.0
      %678 = vmatpush1.msra.mxu0 0.0
      %679 = vmatprep.subr.mxu0 0.0
      %680 = vmatpush1.msra.mxu0 0.0
      %681 = vmatprep.subr.mxu0 0.0
      %682 = vmatpush1.msra.mxu0 0.0
      %683 = vmatprep.subr.mxu0 0.0
      %684 = vmatpush1.msra.mxu0 0.0
      %685 = vmatprep.subr.mxu0 0.0
      %686 = vmatpush1.msra.mxu0 0.0
      %687 = vmatprep.subr.mxu0 0.0
      %688 = vmatpush1.msra.mxu0 0.0
      %689 = vmatprep.subr.mxu0 0.0
      %690 = vmatpush1.msra.mxu0 0.0
      %691 = vmatprep.subr.mxu0 0.0
      %692 = vmatpush1.msra.mxu0 0.0
      %693 = vmatprep.subr.mxu0 0.0
      %694 = vmatpush1.msra.mxu0 0.0
      %695 = vmatprep.subr.mxu0 0.0
      %696 = vmatpush1.msra.mxu0 0.0
      %697 = vmatprep.subr.mxu0 0.0
      %698 = vmatpush1.msra.mxu0 %v673
      %699 = vmatprep.subr.mxu0 0.0
      %700 = vmatpush1.msra.mxu0 %v479
      %701 = vmatprep.subr.mxu0 0.0
      %702 = vmatpush1.msra.mxu0 %v478
      %703 = vmatprep.subr.mxu0 0.0
      %704 = vmatpush1.msra.mxu0 %v477
      %705 = vmatprep.subr.mxu0 0.0
      %706 = vmatpush1.msra.mxu0 %v476
      %707 = vmatprep.subr.mxu0 0.0
      %708 = vmatpush2.msra.mxu0 0.0
      %709 = vmatprep.subr.mxu0 0.0
      %710 = vmatpush2.msra.mxu0 0.0
      %711 = vmatprep.subr.mxu0 0.0
      %712 = vmatpush2.msra.mxu0 0.0
      %713 = vmatprep.subr.mxu0 0.0
      %714 = vmatpush2.msra.mxu0 0.0
      %715 = vmatprep.subr.mxu0 0.0
      %716 = vmatpush2.msra.mxu0 0.0
      %717 = vmatprep.subr.mxu0 0.0
      %718 = vmatpush2.msra.mxu0 0.0
      %719 = vmatprep.subr.mxu0 0.0
      %720 = vmatpush2.msra.mxu0 0.0
      %721 = vmatprep.subr.mxu0 0.0
      %722 = vmatpush2.msra.mxu0 0.0
      %723 = vmatprep.subr.mxu0 0.0
      %724 = vmatpush2.msra.mxu0 0.0
      %725 = vmatprep.subr.mxu0 0.0
      %726 = vmatpush2.msra.mxu0 0.0
      %727 = vmatprep.subr.mxu0 0.0
      %728 = vmatpush2.msra.mxu0 0.0
      %729 = vmatprep.subr.mxu0 0.0
      %730 = vmatpush2.msra.mxu0 0.0
      %731 = vmatprep.subr.mxu0 0.0
      %732 = vmatpush2.msra.mxu0 0.0
      %733 = vmatprep.subr.mxu0 0.0
      %734 = vmatpush2.msra.mxu0 0.0
      %735 = vmatprep.subr.mxu0 0.0
      %736 = vmatpush2.msra.mxu0 0.0
      %737 = vmatprep.subr.mxu0 0.0
      %738 = vmatpush2.msra.mxu0 0.0
      %739 = vmatprep.mubr.f32.mxu0 0.0
      %740 = vmatmul.mubr.f32.gmra.mxu0 %v649
      %v741 = vpop.f32.mrf.mxu0
      %v742 = vadd.f32 %v610, %v741
      %v743 = vpop.f32.mrf.mxu0
      %744 = vmatprep.mubr.f32.mxu0 0.0
      %745 = vmatmul.mubr.f32.gmra.mxu0 %v652
      %v746 = vpop.f32.mrf.mxu0
      %v747 = vadd.f32 %v615, %v746
      %v748 = vpop.f32.mrf.mxu0
      %749 = vmatprep.mubr.f32.mxu0 0.0
      %750 = vmatmul.mubr.f32.gmra.mxu0 %v655
      %v751 = vpop.f32.mrf.mxu0
      %v752 = vadd.f32 %v620, %v751
      %v753 = vpop.f32.mrf.mxu0
      %754 = vmatprep.mubr.f32.mxu0 0.0
      %755 = vmatmul.mubr.f32.gmra.mxu0 %v658
      %v756 = vpop.f32.mrf.mxu0
      %v757 = vadd.f32 %v625, %v756
      %v758 = vpop.f32.mrf.mxu0
      %759 = vmatprep.mubr.f32.mxu0 0.0
      %760 = vmatmul.mubr.f32.gmra.mxu0 %v661
      %v761 = vpop.f32.mrf.mxu0
      %v762 = vadd.f32 %v630, %v761
      %v763 = vpop.f32.mrf.mxu0
      %764 = vmatprep.mubr.f32.mxu0 0.0
      %765 = vmatmul.mubr.f32.gmra.mxu0 %v664
      %v766 = vpop.f32.mrf.mxu0
      %v767 = vadd.f32 %v635, %v766
      %v768 = vpop.f32.mrf.mxu0
      %769 = vmatprep.mubr.f32.mxu0 0.0
      %770 = vmatmul.mubr.f32.gmra.mxu0 %v667
      %v771 = vpop.f32.mrf.mxu0
      %v772 = vadd.f32 %v640, %v771
      %v773 = vpop.f32.mrf.mxu0
      %774 = vmatprep.mubr.f32.mxu0 0.0
      %775 = vmatmul.mubr.f32.gmra.mxu0 %v670
      %v776 = vpop.f32.mrf.mxu0
      %v777 = vadd.f32 %v645, %v776
      %v778 = vpop.f32.mrf.mxu0
      %779 = vdwg.mxu0
      %vm780 = vcmp.eq.s32.totalorder %v474, 7
      %v781 = vrot.slane %v465, 1
      %v782 = vrot.slane %v466, 1
      %v783 = vrot.slane %v467, 1
      %v784 = vrot.slane %v468, 1
      %v785 = vrot.slane %v469, 1
      %v786 = vrot.slane %v470, 1
      %v787 = vrot.slane %v471, 1
      %v788 = vrot.slane %v472, 1
      %vm789 = vcmp.lt.s32.totalorder %v474, 7
      %v790 = vsel %vm789, %v787, %v788
      %v791 = vsel %vm789, %v786, %v787
      %v792 = vsel %vm789, %v785, %v786
      %v793 = vsel %vm789, %v784, %v785
      %v794 = vsel %vm789, %v783, %v784
      %v795 = vsel %vm789, %v782, %v783
      %v796 = vsel %vm789, %v781, %v782
      %v797 = vsel %vm789, %v788, %v781
      %v798 = vsel %vm780, 1, 0
      %vm799 = vcmp.eq.s32.totalorder %v798, 1
      %v800 = vsel %vm799, 0.0, %v796
      %v801 = vsel %vm799, 0.0, %v795
      %v802 = vsel %vm799, 0.0, %v794
      %v803 = vsel %vm799, 0.0, %v793
      %v804 = vsel %vm799, 0.0, %v792
      %v805 = vsel %vm799, 0.0, %v791
      %v806 = vsel %vm799, 0.0, %v790
      %v807 = vsel %vm799, 0.0, %v797
      %s808 = scalar_lea.vmem %s3, 80
      %v809 = vld [vmem:[%s808] sm:$0xff]
      %v810 = vld [vmem:[%s808 + $0x8] sm:$0xff]
      %v811 = vld [vmem:[%s808 + $0x10] sm:$0xff]
      %v812 = vld [vmem:[%s808 + $0x18] sm:$0xff]
      %v813 = vld [vmem:[%s808 + $0x20] sm:$0xf]
      %v815 = vsel %vm514, %v800, 0
      %v818 = vsel %vm514, %v801, 0
      %v821 = vsel %vm514, %v802, 0
      %v824 = vsel %vm514, %v803, 0
      %v827 = vsel %vm514, %v804, 0
      %v830 = vsel %vm514, %v805, 0
      %v833 = vsel %vm514, %v806, 0
      %v836 = vsel %vm514, %v807, 0
      %v839 = vsel %vm539, %v813, 0
      %841 = vmatprep.subr.mxu0 0.0
      %842 = vmatpush1.msra.mxu0 0.0
      %843 = vmatprep.subr.mxu0 0.0
      %844 = vmatpush1.msra.mxu0 0.0
      %845 = vmatprep.subr.mxu0 0.0
      %846 = vmatpush1.msra.mxu0 0.0
      %847 = vmatprep.subr.mxu0 0.0
      %848 = vmatpush1.msra.mxu0 0.0
      %849 = vmatprep.subr.mxu0 0.0
      %850 = vmatpush1.msra.mxu0 0.0
      %851 = vmatprep.subr.mxu0 0.0
      %852 = vmatpush1.msra.mxu0 0.0
      %853 = vmatprep.subr.mxu0 0.0
      %854 = vmatpush1.msra.mxu0 0.0
      %855 = vmatprep.subr.mxu0 0.0
      %856 = vmatpush1.msra.mxu0 0.0
      %857 = vmatprep.subr.mxu0 0.0
      %858 = vmatpush1.msra.mxu0 0.0
      %859 = vmatprep.subr.mxu0 0.0
      %860 = vmatpush1.msra.mxu0 0.0
      %861 = vmatprep.subr.mxu0 0.0
      %862 = vmatpush1.msra.mxu0 0.0
      %863 = vmatprep.subr.mxu0 0.0
      %864 = vmatpush1.msra.mxu0 %v839
      %865 = vmatprep.subr.mxu0 0.0
      %866 = vmatpush1.msra.mxu0 %v812
      %867 = vmatprep.subr.mxu0 0.0
      %868 = vmatpush1.msra.mxu0 %v811
      %869 = vmatprep.subr.mxu0 0.0
      %870 = vmatpush1.msra.mxu0 %v810
      %871 = vmatprep.subr.mxu0 0.0
      %872 = vmatpush1.msra.mxu0 %v809
      %873 = vmatprep.subr.mxu0 0.0
      %874 = vmatpush2.msra.mxu0 0.0
      %875 = vmatprep.subr.mxu0 0.0
      %876 = vmatpush2.msra.mxu0 0.0
      %877 = vmatprep.subr.mxu0 0.0
      %878 = vmatpush2.msra.mxu0 0.0
      %879 = vmatprep.subr.mxu0 0.0
      %880 = vmatpush2.msra.mxu0 0.0
      %881 = vmatprep.subr.mxu0 0.0
      %882 = vmatpush2.msra.mxu0 0.0
      %883 = vmatprep.subr.mxu0 0.0
      %884 = vmatpush2.msra.mxu0 0.0
      %885 = vmatprep.subr.mxu0 0.0
      %886 = vmatpush2.msra.mxu0 0.0
      %887 = vmatprep.subr.mxu0 0.0
      %888 = vmatpush2.msra.mxu0 0.0
      %889 = vmatprep.subr.mxu0 0.0
      %890 = vmatpush2.msra.mxu0 0.0
      %891 = vmatprep.subr.mxu0 0.0
      %892 = vmatpush2.msra.mxu0 0.0
      %893 = vmatprep.subr.mxu0 0.0
      %894 = vmatpush2.msra.mxu0 0.0
      %895 = vmatprep.subr.mxu0 0.0
      %896 = vmatpush2.msra.mxu0 0.0
      %897 = vmatprep.subr.mxu0 0.0
      %898 = vmatpush2.msra.mxu0 0.0
      %899 = vmatprep.subr.mxu0 0.0
      %900 = vmatpush2.msra.mxu0 0.0
      %901 = vmatprep.subr.mxu0 0.0
      %902 = vmatpush2.msra.mxu0 0.0
      %903 = vmatprep.subr.mxu0 0.0
      %904 = vmatpush2.msra.mxu0 0.0
      %905 = vmatprep.mubr.f32.mxu0 0.0
      %906 = vmatmul.mubr.f32.gmra.mxu0 %v815
      %v907 = vpop.f32.mrf.mxu0
      %v908 = vadd.f32 0.0, %v907
      %v909 = vpop.f32.mrf.mxu0
      %910 = vmatprep.mubr.f32.mxu0 0.0
      %911 = vmatmul.mubr.f32.gmra.mxu0 %v818
      %v912 = vpop.f32.mrf.mxu0
      %v913 = vadd.f32 0.0, %v912
      %v914 = vpop.f32.mrf.mxu0
      %915 = vmatprep.mubr.f32.mxu0 0.0
      %916 = vmatmul.mubr.f32.gmra.mxu0 %v821
      %v917 = vpop.f32.mrf.mxu0
      %v918 = vadd.f32 0.0, %v917
      %v919 = vpop.f32.mrf.mxu0
      %920 = vmatprep.mubr.f32.mxu0 0.0
      %921 = vmatmul.mubr.f32.gmra.mxu0 %v824
      %v922 = vpop.f32.mrf.mxu0
      %v923 = vadd.f32 0.0, %v922
      %v924 = vpop.f32.mrf.mxu0
      %925 = vmatprep.mubr.f32.mxu0 0.0
      %926 = vmatmul.mubr.f32.gmra.mxu0 %v827
      %v927 = vpop.f32.mrf.mxu0
      %v928 = vadd.f32 0.0, %v927
      %v929 = vpop.f32.mrf.mxu0
      %930 = vmatprep.mubr.f32.mxu0 0.0
      %931 = vmatmul.mubr.f32.gmra.mxu0 %v830
      %v932 = vpop.f32.mrf.mxu0
      %v933 = vadd.f32 0.0, %v932
      %v934 = vpop.f32.mrf.mxu0
      %935 = vmatprep.mubr.f32.mxu0 0.0
      %936 = vmatmul.mubr.f32.gmra.mxu0 %v833
      %v937 = vpop.f32.mrf.mxu0
      %v938 = vadd.f32 0.0, %v937
      %v939 = vpop.f32.mrf.mxu0
      %940 = vmatprep.mubr.f32.mxu0 0.0
      %941 = vmatmul.mubr.f32.gmra.mxu0 %v836
      %v942 = vpop.f32.mrf.mxu0
      %v943 = vadd.f32 0.0, %v942
      %v944 = vpop.f32.mrf.mxu0
      %945 = vdwg.mxu0
      %v946 = vadd.f32 %v742, %v908
      %v947 = vadd.f32 %v747, %v913
      %v948 = vadd.f32 %v752, %v918
      %v949 = vadd.f32 %v757, %v923
      %v950 = vadd.f32 %v762, %v928
      %v951 = vadd.f32 %v767, %v933
      %v952 = vadd.f32 %v772, %v938
      %v953 = vadd.f32 %v777, %v943
      %v954 = vld [vmem:[%s4] sm:$0x1]
      %v956 = vlaneseq
      %v957 = vshrl.u32 %v956, 7
      %v958 = vsub.s32 0, %v957
      %v959 = vrot.slane %v954, %v958
      %v961 = vadd.f32 %v946, %v959
      %v962 = vadd.f32 %v947, %v959
      %v963 = vadd.f32 %v948, %v959
      %v964 = vadd.f32 %v949, %v959
      %v965 = vadd.f32 %v950, %v959
      %v966 = vadd.f32 %v951, %v959
      %v967 = vadd.f32 %v952, %v959
      %v968 = vadd.f32 %v953, %v959
      %v969 = vmax.f32 %v961, 0.0
      %v970 = vmax.f32 %v962, 0.0
      %v971 = vmax.f32 %v963, 0.0
      %v972 = vmax.f32 %v964, 0.0
      %v973 = vmax.f32 %v965, 0.0
      %v974 = vmax.f32 %v966, 0.0
      %v975 = vmax.f32 %v967, 0.0
      %v976 = vmax.f32 %v968, 0.0
      %vm977 = vcmask 162816
      %978 = vst.msk [vmem:[%s380] sm:$0xff] %vm977, %v969
      %979 = vst.msk [vmem:[%s380 + $0x8] sm:$0xff] %vm977, %v970
      %980 = vst.msk [vmem:[%s380 + $0x10] sm:$0xff] %vm977, %v971
      %981 = vst.msk [vmem:[%s380 + $0x18] sm:$0xff] %vm977, %v972
      %982 = vst.msk [vmem:[%s380 + $0x20] sm:$0xff] %vm977, %v973
      %983 = vst.msk [vmem:[%s380 + $0x28] sm:$0xff] %vm977, %v974
      %984 = vst.msk [vmem:[%s380 + $0x30] sm:$0xff] %vm977, %v975
      %985 = vst.msk [vmem:[%s380 + $0x38] sm:$0xff] %vm977, %v976
      %s986 = smul.u32 8, %s21
      %p987 = scmp.lt.s32.totalorder %s20, 1
      %s988 = scalar_select %p987, %s20, 1
      %p989 = scmp.lt.s32.totalorder %s986, 7
      %s990 = scalar_select %p989, %s986, 7
      %s991 = smul.addr %s988, 8
      %s992 = sadd.s32 %s990, %s991
      %s993 = smul.addr %s992, 8
      %s994 = scalar_lea.vmem %s5, %s993
      // Predicated region
      $region41: #{classify_forward.8} parent=39 // pred_check
        %p995 = pneg %p190
      $region42: #{classify_forward.8} parent=39 // pred_check_branch
        %997 = sbr.rel (%p995) target = $region44
      $region43: #{classify_forward.8} parent=39 // pred_region
        %s998 = smul.u32 8, %s21
      $region44: #{classify_forward.8} parent=39 // pred_fallthru
        _
    $region40: #{classify_forward.8} parent=5 // pred_fallthru
      _
    %p999 = scmp.le.s32.totalorder 2, %s11
    // Predicated region
    $region45: #{classify_forward.8} parent=5 // pred_check
      %p1000 = pneg %p999
    $region46: #{classify_forward.8} parent=5 // pred_check_branch
      %1002 = sbr.rel (%p1000) target = $region48
    $region47: #{classify_forward.8} parent=5 // pred_region
      %s1003 = ssub.s32 %s11, 2
      // Predicated region
      $region49: #{classify_forward.8} parent=47 // pred_check
        %p1004 = pneg %p196
      $region50: #{classify_forward.8} parent=47 // pred_check_branch
        %1006 = sbr.rel (%p1004) target = $region52
      $region51: #{classify_forward.8} parent=47 // pred_region
        %s1007 = smul.u32 8, %s23
        %p1008 = scmp.lt.s32.totalorder %s22, 1
        %s1009 = scalar_select %p1008, %s22, 1
        %p1010 = scmp.lt.s32.totalorder %s1007, 7
        %s1011 = scalar_select %p1010, %s1007, 7
        %s1012 = smul.addr %s1009, 8
        %s1013 = sadd.s32 %s1011, %s1012
        %s1014 = smul.addr %s1013, 8
        %s1015 = scalar_lea.vmem %s5, %s1014
      $region52: #{classify_forward.8} parent=47 // pred_fallthru
        _
    $region48: #{classify_forward.8} parent=5 // pred_fallthru
      _
  $region6: #{classify_forward.8} parent=0 // loop_footer
    %s15 = sadd.s32 1, %s11
  $region7: #{classify_forward.8} parent=0 // loop_footer_branch
    %10 = sbr.rel target = $region3
  $region8: #{classify_forward.8} parent=0 // loop_exit
    _

// kernel: classify_forward.6
$region0: #{classify_forward.6}
  #allocation0 [shape = 'u32[]', space=smem, size = 0x4, offset = 0x4, fixed_abs, tag = 'smem constant byte address 0x4 - core index']
  #allocation1 [shape = 'u32[144,128]{1,0:T(1,128)}', space=vmem, size = 0x12000, scoped, tag = 'internal scratch']
  %s0 = inlined_call_operand.vmem [shape: f32[2,16,16,3], index: 0, kind: input, shape index: {}, may-alias: {0,1,2}]
  %s1 = inlined_call_operand.vmem [shape: f32[2,16,16,3], index: 1, kind: input, shape index: {}, may-alias: {0,1,2}]
  %s2 = inlined_call_operand.vmem [shape: f32[2,16,16,3], index: 2, kind: input, shape index: {}, may-alias: {0,1,2}]
  %s3 = inlined_call_operand.vmem [shape: f32[3,9,12], index: 3, kind: input, shape index: {}]
  %s4 = inlined_call_operand.vmem [shape: f32[1,12], index: 4, kind: input, shape index: {}]
  %s5 = inlined_call_operand.vmem [shape: f32[2,16,16,12], index: 5, kind: output, shape index: {0}]
  %s6 = inlined_call_operand.vmem [shape: f32[2,1,2,12], index: 6, kind: output, shape index: {1}]
  %7 = xla_tuple %s5, %s6
  %s8 = sld [smem:[#allocation0]]
  $region61: #{classify_forward.6} parent=0
    _
  %s10 = ssub.s32 1, %s8
  %s11 = scalar_select 0, %s10, %s8
  loop: start=0, step=1, limit=4
  $region2: #{classify_forward.6} parent=0 // loop_pre_header
    _
  $region3: #{classify_forward.6} parent=0 // loop_header
    %s13 = sphi 0, %s17
    %p14 = scmp.ge.s32.totalorder %s13, 4
    %s20 = sphi 0, %s32
    %s21 = sphi 0, %s28
    %s22 = sphi 0, %s20
    %s23 = sphi 0, %s21
    %s24 = sphi 0, %s22
    %s25 = sphi 0, %s23
    %s45 = sphi 0, %s47
    %s48 = sphi 0, %s45
    %s49 = sphi 0, %s48
    %s65 = sphi 0, %s49
    %s73 = sphi 0, %s75
    %s76 = sphi 0, %s73
    %s77 = sphi 0, %s76
    %s93 = sphi 0, %s77
    %s109 = sphi 0, %s111
    %s112 = sphi 0, %s109
    %s113 = sphi 0, %s112
    %s129 = sphi 0, %s113
    %s133 = sphi 0, %s133
    %s135 = sphi 0, %s133
    %s136 = sphi 0, %s135
    %s150 = sphi 0, %s136
    %s154 = sphi 0, %s154
    %s156 = sphi 0, %s154
    %s157 = sphi 0, %s156
    %s171 = sphi 0, %s157
    %s179 = sphi 0, %s181
    %s182 = sphi 0, %s179
    %s183 = sphi 0, %s182
    %s199 = sphi 0, %s183
    %s207 = sphi 0, %s209
    %s210 = sphi 0, %s207
    %s211 = sphi 0, %s210
    %s227 = sphi 0, %s211
  $region4: #{classify_forward.6} parent=0 // loop_header_branch
    %16 = sbr.rel (%p14) target = $region8
  $region5: #{classify_forward.6} parent=0 // loop_body
    %s18 = ssub.s32 %s13, 1
    %s19 = ssub.s32 %s13, 2
    %s26 = sadd.s32 1, %s21
    %p27 = scmp.ge.s32.totalorder %s26, 1
    %s28 = scalar_select %p27, 0, %s26
    %s29 = sadd.s32 1, %s20
    %s30 = scalar_select %p27, %s29, %s20
    %p31 = scmp.ge.s32.totalorder %s30, 2
    %s32 = scalar_select %p31, 0, %s30
    %s33 = smul.u32 %s21, 16
    %s34 = ssub.s32 %s33, 1
    %p35 = scmp.gt.s32.totalorder %s34, 0
    %s36 = scalar_select %p35, %s34, 0
    %s37 = smul.u32 %s28, 16
    %s38 = ssub.s32 %s37, 1
    %p39 = scmp.gt.s32.totalorder %s38, 0
    %s40 = scalar_select %p39, %s38, 0
    %s41 = ssub.s32 %s20, %s32
    %s42 = ssub.s32 %s36, %s40
    %s43 = sor.u32 %s41, %s42
    %p44 = scmp.eq.s32.totalorder %s43, 0
    %s46 = sadd.s32 %s45, 1
    %s47 = scalar_select %p44, %s45, %s46
    %p50 = pneg %p44
    %p51 = scmp.eq.s32.totalorder %s13, 1
    %p52 = por %p50, %p51
    %p53 = scmp.ne.s32.totalorder %s45, %s48
    %p54 = scmp.eq.s32.totalorder %s13, 0
    %p55 = por %p53, %p54
    %p56 = scmp.ne.s32.totalorder %s45, %s48
    %p57 = scmp.eq.s32.totalorder %s18, 1
    %p58 = por %p56, %p57
    %p59 = scmp.ne.s32.totalorder %s48, %s49
    %p60 = scmp.eq.s32.totalorder %s18, 0
    %p61 = por %p59, %p60
    %p62 = scmp.ne.s32.totalorder %s48, %s49
    %p63 = scmp.eq.s32.totalorder %s19, 1
    %p64 = por %p62, %p63
    %p66 = scmp.ne.s32.totalorder %s49, %s65
    %p67 = scmp.eq.s32.totalorder %s19, 0
    %p68 = por %p66, %p67
    %s69 = ssub.s32 %s20, %s32
    %s70 = ssub.s32 %s21, %s28
    %s71 = sor.u32 %s69, %s70
    %p72 = scmp.eq.s32.totalorder %s71, 0
    %s74 = sadd.s32 %s73, 1
    %s75 = scalar_select %p72, %s73, %s74
    %p78 = pneg %p72
    %p79 = scmp.eq.s32.totalorder %s13, 1
    %p80 = por %p78, %p79
    %p81 = scmp.ne.s32.totalorder %s73, %s76
    %p82 = scmp.eq.s32.totalorder %s13, 0
    %p83 = por %p81, %p82
    %p84 = scmp.ne.s32.totalorder %s73, %s76
    %p85 = scmp.eq.s32.totalorder %s18, 1
    %p86 = por %p84, %p85
    %p87 = scmp.ne.s32.totalorder %s76, %s77
    %p88 = scmp.eq.s32.totalorder %s18, 0
    %p89 = por %p87, %p88
    %p90 = scmp.ne.s32.totalorder %s76, %s77
    %p91 = scmp.eq.s32.totalorder %s19, 1
    %p92 = por %p90, %p91
    %p94 = scmp.ne.s32.totalorder %s77, %s93
    %p95 = scmp.eq.s32.totalorder %s19, 0
    %p96 = por %p94, %p95
    %s97 = sadd.s32 %s21, 1
    %s98 = smul.u32 %s97, 16
    %p99 = scmp.lt.s32.totalorder %s98, 15
    %s100 = scalar_select %p99, %s98, 15
    %s101 = sadd.s32 %s28, 1
    %s102 = smul.u32 %s101, 16
    %p103 = scmp.lt.s32.totalorder %s102, 15
    %s104 = scalar_select %p103, %s102, 15
    %s105 = ssub.s32 %s20, %s32
    %s106 = ssub.s32 %s100, %s104
    %s107 = sor.u32 %s105, %s106
    %p108 = scmp.eq.s32.totalorder %s107, 0
    %s110 = sadd.s32 %s109, 1
    %s111 = scalar_select %p108, %s109, %s110
    %p114 = pneg %p108
    %p115 = scmp.eq.s32.totalorder %s13, 1
    %p116 = por %p114, %p115
    %p117 = scmp.ne.s32.totalorder %s109, %s112
    %p118 = scmp.eq.s32.totalorder %s13, 0
    %p119 = por %p117, %p118
    %p120 = scmp.ne.s32.totalorder %s109, %s112
    %p121 = scmp.eq.s32.totalorder %s18, 1
    %p122 = por %p120, %p121
    %p123 = scmp.ne.s32.totalorder %s112, %s113
    %p124 = scmp.eq.s32.totalorder %s18, 0
    %p125 = por %p123, %p124
    %p126 = scmp.ne.s32.totalorder %s112, %s113
    %p127 = scmp.eq.s32.totalorder %s19, 1
    %p128 = por %p126, %p127
    %p130 = scmp.ne.s32.totalorder %s113, %s129
    %p131 = scmp.eq.s32.totalorder %s19, 0
    %p132 = por %p130, %p131
    %s134 = sadd.s32 %s133, 1
    %p137 = scmp.eq.s32.totalorder %s13, 1
    %p138 = scmp.ne.s32.totalorder %s133, %s135
    %p139 = scmp.eq.s32.totalorder %s13, 0
    %p140 = por %p138, %p139
    %p141 = scmp.ne.s32.totalorder %s133, %s135
    %p142 = scmp.eq.s32.totalorder %s18, 1
    %p143 = por %p141, %p142
    %p144 = scmp.ne.s32.totalorder %s135, %s136
    %p145 = scmp.eq.s32.totalorder %s18, 0
    %p146 = por %p144, %p145
    %p147 = scmp.ne.s32.totalorder %s135, %s136
    %p148 = scmp.eq.s32.totalorder %s19, 1
    %p149 = por %p147, %p148
    %p151 = scmp.ne.s32.totalorder %s136, %s150
    %p152 = scmp.eq.s32.totalorder %s19, 0
    %p153 = por %p151, %p152
    %s155 = sadd.s32 %s154, 1
    %p158 = scmp.eq.s32.totalorder %s13, 1
    %p159 = scmp.ne.s32.totalorder %s154, %s156
    %p160 = scmp.eq.s32.totalorder %s13, 0
    %p161 = por %p159, %p160
    %p162 = scmp.ne.s32.totalorder %s154, %s156
    %p163 = scmp.eq.s32.totalorder %s18, 1
    %p164 = por %p162, %p163
    %p165 = scmp.ne.s32.totalorder %s156, %s157
    %p166 = scmp.eq.s32.totalorder %s18, 0
    %p167 = por %p165, %p166
    %p168 = scmp.ne.s32.totalorder %s156, %s157
    %p169 = scmp.eq.s32.totalorder %s19, 1
    %p170 = por %p168, %p169
    %p172 = scmp.ne.s32.totalorder %s157, %s171
    %p173 = scmp.eq.s32.totalorder %s19, 0
    %p174 = por %p172, %p173
    %s175 = ssub.s32 %s20, %s32
    %s176 = ssub.s32 %s21, %s28
    %s177 = sor.u32 %s175, %s176
    %p178 = scmp.eq.s32.totalorder %s177, 0
    %s180 = sadd.s32 %s179, 1
    %s181 = scalar_select %p178, %s179, %s180
    %p184 = pneg %p178
    %p185 = scmp.eq.s32.totalorder %s13, 1
    %p186 = por %p184, %p185
    %p187 = scmp.ne.s32.totalorder %s179, %s182
    %p188 = scmp.eq.s32.totalorder %s13, 0
    %p189 = por %p187, %p188
    %p190 = scmp.ne.s32.totalorder %s179, %s182
    %p191 = scmp.eq.s32.totalorder %s18, 1
    %p192 = por %p190, %p191
    %p193 = scmp.ne.s32.totalorder %s182, %s183
    %p194 = scmp.eq.s32.totalorder %s18, 0
    %p195 = por %p193, %p194
    %p196 = scmp.ne.s32.totalorder %s182, %s183
    %p197 = scmp.eq.s32.totalorder %s19, 1
    %p198 = por %p196, %p197
    %p200 = scmp.ne.s32.totalorder %s183, %s199
    %p201 = scmp.eq.s32.totalorder %s19, 0
    %p202 = por %p200, %p201
    %s203 = ssub.s32 %s20, %s32
    %s204 = ssub.s32 %s21, %s28
    %s205 = sor.u32 %s203, %s204
    %p206 = scmp.eq.s32.totalorder %s205, 0
    %s208 = sadd.s32 %s207, 1
    %s209 = scalar_select %p206, %s207, %s208
    %p212 = pneg %p206
    %p213 = scmp.eq.s32.totalorder %s13, 1
    %p214 = por %p212, %p213
    %p215 = scmp.ne.s32.totalorder %s207, %s210
    %p216 = scmp.eq.s32.totalorder %s13, 0
    %p217 = por %p215, %p216
    %p218 = scmp.ne.s32.totalorder %s207, %s210
    %p219 = scmp.eq.s32.totalorder %s18, 1
    %p220 = por %p218, %p219
    %p221 = scmp.ne.s32.totalorder %s210, %s211
    %p222 = scmp.eq.s32.totalorder %s18, 0
    %p223 = por %p221, %p222
    %p224 = scmp.ne.s32.totalorder %s210, %s211
    %p225 = scmp.eq.s32.totalorder %s19, 1
    %p226 = por %p224, %p225
    %p228 = scmp.ne.s32.totalorder %s211, %s227
    %p229 = scmp.eq.s32.totalorder %s19, 0
    %p230 = por %p228, %p229
    %p231 = scmp.le.s32.totalorder 1, %s13
    %p232 = scmp.lt.s32.totalorder %s13, 3
    %p233 = pnand %p231, %p232
    %p234 = pneg %p233
    // Predicated region
    $region9: #{classify_forward.6} parent=5 // pred_check
      _
    $region10: #{classify_forward.6} parent=5 // pred_check_branch
      %236 = sbr.rel (%p233) target = $region12
    $region11: #{classify_forward.6} parent=5 // pred_region
      %s237 = ssub.s32 %s13, 1
      // Predicated region
      $region13: #{classify_forward.6} parent=11 // pred_check
        %p238 = pneg %p146
      $region14: #{classify_forward.6} parent=11 // pred_check_branch
        %240 = sbr.rel (%p238) target = $region16
      $region15: #{classify_forward.6} parent=11 // pred_region
        _
      $region16: #{classify_forward.6} parent=11 // pred_fallthru
        _
      // Predicated region
      $region17: #{classify_forward.6} parent=11 // pred_check
        %p241 = pneg %p167
      $region18: #{classify_forward.6} parent=11 // pred_check_branch
        %243 = sbr.rel (%p241) target = $region20
      $region19: #{classify_forward.6} parent=11 // pred_region
        _
      $region20: #{classify_forward.6} parent=11 // pred_fallthru
        _
    $region12: #{classify_forward.6} parent=5 // pred_fallthru
      _
    %p244 = scmp.lt.s32.totalorder %s13, 2
    // Predicated region
    $region21: #{classify_forward.6} parent=5 // pred_check
      %p245 = pneg %p244
    $region22: #{classify_forward.6} parent=5 // pred_check_branch
      %247 = sbr.rel (%p245) target = $region24
    $region23: #{classify_forward.6} parent=5 // pred_region
      // Predicated region
      $region25: #{classify_forward.6} parent=23 // pred_check
        %p248 = pneg %p55
      $region26: #{classify_forward.6} parent=23 // pred_check_branch
        %250 = sbr.rel (%p248) target = $region28
      $region27: #{classify_forward.6} parent=23 // pred_region
        %s251 = smul.u32 %s21, 16
        %s252 = ssub.s32 %s251, 1
        %p253 = scmp.gt.s32.totalorder %s252, 0
        %s254 = scalar_select %p253, %s252, 0
        %p255 = scmp.lt.s32.totalorder %s20, 1
        %s256 = scalar_select %p255, %s20, 1
        %p257 = scmp.lt.s32.totalorder %s254, 15
        %s258 = scalar_select %p257, %s254, 15
        %s259 = smul.addr %s258, 2
        %s260 = smul.addr %s256, 32
        %s261 = sadd.s32 %s259, %s260
        %s262 = smul.addr %s261, 8
        %s263 = scalar_lea.vmem %s0, %s262
        %s264 = smul.u32 %s21, 16
        %s265 = ssub.s32 %s264, 1
        %p266 = scmp.gt.s32.totalorder %s265, 0
        %s267 = scalar_select %p266, %s265, 0
      $region28: #{classify_forward.6} parent=23 // pred_fallthru
        _
      // Predicated region
      $region29: #{classify_forward.6} parent=23 // pred_check
        %p268 = pneg %p83
      $region30: #{classify_forward.6} parent=23 // pred_check_branch
        %270 = sbr.rel (%p268) target = $region32
      $region31: #{classify_forward.6} parent=23 // pred_region
        %s271 = smul.u32 16, %s21
        %p272 = scmp.lt.s32.totalorder %s20, 1
        %s273 = scalar_select %p272, %s20, 1
        %p274 = scmp.lt.s32.totalorder %s271, 15
        %s275 = scalar_select %p274, %s271, 15
        %s276 = smul.addr %s275, 2
        %s277 = smul.addr %s273, 32
        %s278 = sadd.s32 %s276, %s277
        %s279 = smul.addr %s278, 8
        %s280 = scalar_lea.vmem %s1, %s279
        %s281 = smul.u32 16, %s21
      $region32: #{classify_forward.6} parent=23 // pred_fallthru
        _
      // Predicated region
      $region33: #{classify_forward.6} parent=23 // pred_check
        %p282 = pneg %p119
      $region34: #{classify_forward.6} parent=23 // pred_check_branch
        %284 = sbr.rel (%p282) target = $region36
      $region35: #{classify_forward.6} parent=23 // pred_region
        %s285 = sadd.s32 %s21, 1
        %s286 = smul.u32 %s285, 16
        %p287 = scmp.lt.s32.totalorder %s286, 15
        %s288 = scalar_select %p287, %s286, 15
        %p289 = scmp.lt.s32.totalorder %s20, 1
        %s290 = scalar_select %p289, %s20, 1
        %p291 = scmp.lt.s32.totalorder %s288, 15
        %s292 = scalar_select %p291, %s288, 15
        %s293 = smul.addr %s292, 2
        %s294 = smul.addr %s290, 32
        %s295 = sadd.s32 %s293, %s294
        %s296 = smul.addr %s295, 8
        %s297 = scalar_lea.vmem %s2, %s296
        %s298 = sadd.s32 %s21, 1
        %s299 = smul.u32 %s298, 16
        %p300 = scmp.lt.s32.totalorder %s299, 15
        %s301 = scalar_select %p300, %s299, 15
      $region36: #{classify_forward.6} parent=23 // pred_fallthru
        _
    $region24: #{classify_forward.6} parent=5 // pred_fallthru
      _
    %p302 = scmp.le.s32.totalorder 1, %s13
    %p303 = scmp.lt.s32.totalorder %s13, 3
    %p304 = pnand %p302, %p303
    %p305 = pneg %p304
    // Predicated region
    $region37: #{classify_forward.6} parent=5 // pred_check
      _
    $region38: #{classify_forward.6} parent=5 // pred_check_branch
      %307 = sbr.rel (%p304) target = $region40
    $region39: #{classify_forward.6} parent=5 // pred_region
      %s308 = ssub.s32 %s13, 1
      %s309 = smul.u32 %s23, 16
      %s310 = ssub.s32 %s309, 1
      %p311 = scmp.gt.s32.totalorder %s310, 0
      %s312 = scalar_select %p311, %s310, 0
      %p313 = scmp.lt.s32.totalorder %s22, 1
      %s314 = scalar_select %p313, %s22, 1
      %p315 = scmp.lt.s32.totalorder %s312, 15
      %s316 = scalar_select %p315, %s312, 15
      %s317 = smul.addr %s316, 2
      %s318 = smul.addr %s314, 32
      %s319 = sadd.s32 %s317, %s318
      %s320 = smul.addr %s319, 8
      %s321 = scalar_lea.vmem %s0, %s320
      %p322 = pneg %p61
      %p323 = pneg %p58
      %s324 = smul.u32 16, %s23
      %p325 = scmp.lt.s32.totalorder %s22, 1
      %s326 = scalar_select %p325, %s22, 1
      %p327 = scmp.lt.s32.totalorder %s324, 15
      %s328 = scalar_select %p327, %s324, 15
      %s329 = smul.addr %s328, 2
      %s330 = smul.addr %s326, 32
      %s331 = sadd.s32 %s329, %s330
      %s332 = smul.addr %s331, 8
      %s333 = scalar_lea.vmem %s1, %s332
      %p334 = pneg %p89
      %p335 = pneg %p86
      %s336 = sadd.s32 %s23, 1
      %s337 = smul.u32 %s336, 16
      %p338 = scmp.lt.s32.totalorder %s337, 15
      %s339 = scalar_select %p338, %s337, 15
      %p340 = scmp.lt.s32.totalorder %s22, 1
      %s341 = scalar_select %p340, %s22, 1
      %p342 = scmp.lt.s32.totalorder %s339, 15
      %s343 = scalar_select %p342, %s339, 15
      %s344 = smul.addr %s343, 2
      %s345 = smul.addr %s341, 32
      %s346 = sadd.s32 %s344, %s345
      %s347 = smul.addr %s346, 8
      %s348 = scalar_lea.vmem %s2, %s347
      %p349 = pneg %p125
      %p350 = pneg %p122
      %p351 = pneg %p146
      %p352 = pneg %p143
      %p353 = pneg %p167
      %p354 = pneg %p164
      %p355 = pneg %p195
      %p356 = pneg %p192
      %s357 = smul.u32 16, %s23
      %p358 = scmp.lt.s32.totalorder %s22, 1
      %s359 = scalar_select %p358, %s22, 1
      %p360 = scmp.lt.s32.totalorder %s357, 15
      %s361 = scalar_select %p360, %s357, 15
      %s362 = smul.addr %s361, 2
      %s363 = smul.addr %s359, 32
      %s364 = sadd.s32 %s362, %s363
      %s365 = smul.addr %s364, 8
      %s366 = scalar_lea.vmem %s5, %s365
      %p367 = pneg %p223
      %p368 = pneg %p220
      %p369 = scmp.lt.s32.totalorder %s22, 1
      %s370 = scalar_select %p369, %s22, 1
      %p371 = scmp.lt.s32.totalorder %s23, 0
      %s372 = scalar_select %p371, %s23, 0
      %s373 = sadd.s32 %s372, %s370
      %s374 = smul.addr %s373, 2
      %s375 = scalar_lea.vmem %s6, %s374
      %s376 = smul.u32 %s23, 16
      %s377 = ssub.s32 %s376, 1
      %p378 = scmp.gt.s32.totalorder %s377, 0
      %s379 = scalar_select %p378, %s377, 0
      %p380 = scmp.lt.s32.totalorder %s22, 1
      %s381 = scalar_select %p380, %s22, 1
      %p382 = scmp.lt.s32.totalorder %s379, 15
      %s383 = scalar_select %p382, %s379, 15
      %s384 = smul.addr %s383, 2
      %s385 = smul.addr %s381, 32
      %s386 = sadd.s32 %s384, %s385
      %s387 = smul.addr %s386, 8
      %s388 = scalar_lea.vmem %s0, %s387
      %s389 = smul.u32 %s23, 16
      %s390 = ssub.s32 %s389, 1
      %p391 = scmp.gt.s32.totalorder %s390, 0
      %s392 = scalar_select %p391, %s390, 0
      %s393 = smul.u32 16, %s23
      %p394 = scmp.lt.s32.totalorder %s22, 1
      %s395 = scalar_select %p394, %s22, 1
      %p396 = scmp.lt.s32.totalorder %s393, 15
      %s397 = scalar_select %p396, %s393, 15
      %s398 = smul.addr %s397, 2
      %s399 = smul.addr %s395, 32
      %s400 = sadd.s32 %s398, %s399
      %s401 = smul.addr %s400, 8
      %s402 = scalar_lea.vmem %s1, %s401
      %s403 = smul.u32 16, %s23
      %s404 = sadd.s32 %s23, 1
      %s405 = smul.u32 %s404, 16
      %p406 = scmp.lt.s32.totalorder %s405, 15
      %s407 = scalar_select %p406, %s405, 15
      %p408 = scmp.lt.s32.totalorder %s22, 1
      %s409 = scalar_select %p408, %s22, 1
      %p410 = scmp.lt.s32.totalorder %s407, 15
      %s411 = scalar_select %p410, %s407, 15
      %s412 = smul.addr %s411, 2
      %s413 = smul.addr %s409, 32
      %s414 = sadd.s32 %s412, %s413
      %s415 = smul.addr %s414, 8
      %s416 = scalar_lea.vmem %s2, %s415
      %s417 = sadd.s32 %s23, 1
      %s418 = smul.u32 %s417, 16
      %p419 = scmp.lt.s32.totalorder %s418, 15
      %s420 = scalar_select %p419, %s418, 15
      %s421 = smul.u32 16, %s23
      %p422 = scmp.lt.s32.totalorder %s22, 1
      %s423 = scalar_select %p422, %s22, 1
      %p424 = scmp.lt.s32.totalorder %s421, 15
      %s425 = scalar_select %p424, %s421, 15
      %s426 = smul.addr %s425, 2
      %s427 = smul.addr %s423, 32
      %s428 = sadd.s32 %s426, %s427
      %s429 = smul.addr %s428, 8
      %s430 = scalar_lea.vmem %s5, %s429
      %s431 = smul.u32 16, %s23
      %p432 = scmp.lt.s32.totalorder %s22, 1
      %s433 = scalar_select %p432, %s22, 1
      %p434 = scmp.lt.s32.totalorder %s23, 0
      %s435 = scalar_select %p434, %s23, 0
      %s436 = sadd.s32 %s435, %s433
      %s437 = smul.addr %s436, 2
      %s438 = scalar_lea.vmem %s6, %s437
      %p439 = scmp.eq.s32.totalorder %s23, 0
      %v440 = vld [vmem:[%s388] sm:$0xff]
      %v441 = vld [vmem:[%s388 + $0x8] sm:$0xff]
      %s442 = scalar_select %p439, 1, 0
      %v443 = vstv %s442
      %vm444 = vcmp.eq.s32.totalorder %v443, 1
      %v445 = vsel %vm444, 0.0, %v440
      %v446 = vsel %vm444, 0.0, %v441
      %v447 = vld [vmem:[%s416] sm:$0xff]
      %v448 = vld [vmem:[%s416 + $0x8] sm:$0xff]
      %v449 = vsel %vm444, 0.0, %v447
      %v450 = vsel %vm444, 0.0, %v448
      %v451 = vld [vmem:[%s402] sm:$0xff]
      %v452 = vld [vmem:[%s402 + $0x8] sm:$0xff]
      %v453 = vld [vmem:[%s402 + $0x10] sm:$0xff]
      %v454 = vld [vmem:[%s402 + $0x18] sm:$0xff]
      %v455 = vld [vmem:[%s402 + $0x20] sm:$0xff]
      %v456 = vld [vmem:[%s402 + $0x28] sm:$0xff]
      %v457 = vld [vmem:[%s402 + $0x30] sm:$0xff]
      %v458 = vld [vmem:[%s402 + $0x38] sm:$0xff]
      %v459 = vld [vmem:[%s402 + $0x40] sm:$0xff]
      %v460 = vld [vmem:[%s402 + $0x48] sm:$0xff]
      %v461 = vld [vmem:[%s402 + $0x50] sm:$0xff]
      %v462 = vld [vmem:[%s402 + $0x58] sm:$0xff]
      %v463 = vld [vmem:[%s402 + $0x60] sm:$0xff]
      %v464 = vld [vmem:[%s402 + $0x68] sm:$0xff]
      %v465 = vld [vmem:[%s402 + $0x70] sm:$0xff]
      %v466 = vld [vmem:[%s402 + $0x78] sm:$0xff]
      %v467 = vld [vmem:[%s402 + $0x80] sm:$0xff]
      %v468 = vld [vmem:[%s402 + $0x88] sm:$0xff]
      %v469 = vld [vmem:[%s402 + $0x90] sm:$0xff]
      %v470 = vld [vmem:[%s402 + $0x98] sm:$0xff]
      %v471 = vld [vmem:[%s402 + $0xa0] sm:$0xff]
      %v472 = vld [vmem:[%s402 + $0xa8] sm:$0xff]
      %v473 = vld [vmem:[%s402 + $0xb0] sm:$0xff]
      %v474 = vld [vmem:[%s402 + $0xb8] sm:$0xff]
      %v475 = vld [vmem:[%s402 + $0xc0] sm:$0xff]
      %v476 = vld [vmem:[%s402 + $0xc8] sm:$0xff]
      %v477 = vld [vmem:[%s402 + $0xd0] sm:$0xff]
      %v478 = vld [vmem:[%s402 + $0xd8] sm:$0xff]
      %v479 = vld [vmem:[%s402 + $0xe0] sm:$0xff]
      %v480 = vld [vmem:[%s402 + $0xe8] sm:$0xff]
      %v481 = vld [vmem:[%s402 + $0xf0] sm:$0xff]
      %v482 = vld [vmem:[%s402 + $0xf8] sm:$0xff]
      %515 = vrot.lane.b32.xlu0 %v451, 3
      %v516 = vpop.permute.xlu0 %515
      %517 = vrot.lane.b32.xlu0 %v452, 3
      %v518 = vpop.permute.xlu0 %517
      %519 = vrot.lane.b32.xlu0 %v453, 3
      %v520 = vpop.permute.xlu0 %519
      %521 = vrot.lane.b32.xlu0 %v454, 3
      %v522 = vpop.permute.xlu0 %521
      %523 = vrot.lane.b32.xlu0 %v455, 3
      %v524 = vpop.permute.xlu0 %523
      %525 = vrot.lane.b32.xlu0 %v456, 3
      %v526 = vpop.permute.xlu0 %525
      %527 = vrot.lane.b32.xlu0 %v457, 3
      %v528 = vpop.permute.xlu0 %527
      %529 = vrot.lane.b32.xlu0 %v458, 3
      %v530 = vpop.permute.xlu0 %529
      %531 = vrot.lane.b32.xlu0 %v459, 3
      %v532 = vpop.permute.xlu0 %531
      %533 = vrot.lane.b32.xlu0 %v460, 3
      %v534 = vpop.permute.xlu0 %533
      %535 = vrot.lane.b32.xlu0 %v461, 3
      %v536 = vpop.permute.xlu0 %535
      %537 = vrot.lane.b32.xlu0 %v462, 3
      %v538 = vpop.permute.xlu0 %537
      %539 = vrot.lane.b32.xlu0 %v463, 3
      %v540 = vpop.permute.xlu0 %539
      %541 = vrot.lane.b32.xlu0 %v464, 3
      %v542 = vpop.permute.xlu0 %541
      %543 = vrot.lane.b32.xlu0 %v465, 3
      %v544 = vpop.permute.xlu0 %543
      %545 = vrot.lane.b32.xlu0 %v466, 3
      %v546 = vpop.permute.xlu0 %545
      %547 = vrot.lane.b32.xlu0 %v467, 3
      %v548 = vpop.permute.xlu0 %547
      %549 = vrot.lane.b32.xlu0 %v468, 3
      %v550 = vpop.permute.xlu0 %549
      %551 = vrot.lane.b32.xlu0 %v469, 3
      %v552 = vpop.permute.xlu0 %551
      %553 = vrot.lane.b32.xlu0 %v470, 3
      %v554 = vpop.permute.xlu0 %553
      %555 = vrot.lane.b32.xlu0 %v471, 3
      %v556 = vpop.permute.xlu0 %555
      %557 = vrot.lane.b32.xlu0 %v472, 3
      %v558 = vpop.permute.xlu0 %557
      %559 = vrot.lane.b32.xlu0 %v473, 3
      %v560 = vpop.permute.xlu0 %559
      %561 = vrot.lane.b32.xlu0 %v474, 3
      %v562 = vpop.permute.xlu0 %561
      %563 = vrot.lane.b32.xlu0 %v475, 3
      %v564 = vpop.permute.xlu0 %563
      %565 = vrot.lane.b32.xlu0 %v476, 3
      %v566 = vpop.permute.xlu0 %565
      %567 = vrot.lane.b32.xlu0 %v477, 3
      %v568 = vpop.permute.xlu0 %567
      %569 = vrot.lane.b32.xlu0 %v478, 3
      %v570 = vpop.permute.xlu0 %569
      %571 = vrot.lane.b32.xlu0 %v479, 3
      %v572 = vpop.permute.xlu0 %571
      %573 = vrot.lane.b32.xlu0 %v480, 3
      %v574 = vpop.permute.xlu0 %573
      %575 = vrot.lane.b32.xlu0 %v481, 3
      %v576 = vpop.permute.xlu0 %575
      %577 = vrot.lane.b32.xlu0 %v482, 3
      %v578 = vpop.permute.xlu0 %577
      %613 = vrot.lane.b32.xlu0 %v453, 6
      %v614 = vpop.permute.xlu0 %613
      %615 = vrot.lane.b32.xlu0 %v454, 6
      %v616 = vpop.permute.xlu0 %615
      %617 = vrot.lane.b32.xlu0 %v455, 6
      %v618 = vpop.permute.xlu0 %617
      %619 = vrot.lane.b32.xlu0 %v456, 6
      %v620 = vpop.permute.xlu0 %619
      %621 = vrot.lane.b32.xlu0 %v457, 6
      %v622 = vpop.permute.xlu0 %621
      %623 = vrot.lane.b32.xlu0 %v458, 6
      %v624 = vpop.permute.xlu0 %623
      %625 = vrot.lane.b32.xlu0 %v459, 6
      %v626 = vpop.permute.xlu0 %625
      %627 = vrot.lane.b32.xlu0 %v460, 6
      %v628 = vpop.permute.xlu0 %627
      %629 = vrot.lane.b32.xlu0 %v461, 6
      %v630 = vpop.permute.xlu0 %629
      %631 = vrot.lane.b32.xlu0 %v462, 6
      %v632 = vpop.permute.xlu0 %631
      %633 = vrot.lane.b32.xlu0 %v463, 6
      %v634 = vpop.permute.xlu0 %633
      %635 = vrot.lane.b32.xlu0 %v464, 6
      %v636 = vpop.permute.xlu0 %635
      %637 = vrot.lane.b32.xlu0 %v465, 6
      %v638 = vpop.permute.xlu0 %637
      %639 = vrot.lane.b32.xlu0 %v466, 6
      %v640 = vpop.permute.xlu0 %639
      %641 = vrot.lane.b32.xlu0 %v467, 6
      %v642 = vpop.permute.xlu0 %641
      %643 = vrot.lane.b32.xlu0 %v468, 6
      %v644 = vpop.permute.xlu0 %643
      %645 = vrot.lane.b32.xlu0 %v469, 6
      %v646 = vpop.permute.xlu0 %645
      %647 = vrot.lane.b32.xlu0 %v470, 6
      %v648 = vpop.permute.xlu0 %647
      %649 = vrot.lane.b32.xlu0 %v471, 6
      %v650 = vpop.permute.xlu0 %649
      %651 = vrot.lane.b32.xlu0 %v472, 6
      %v652 = vpop.permute.xlu0 %651
      %653 = vrot.lane.b32.xlu0 %v473, 6
      %v654 = vpop.permute.xlu0 %653
      %655 = vrot.lane.b32.xlu0 %v474, 6
      %v656 = vpop.permute.xlu0 %655
      %657 = vrot.lane.b32.xlu0 %v475, 6
      %v658 = vpop.permute.xlu0 %657
      %659 = vrot.lane.b32.xlu0 %v476, 6
      %v660 = vpop.permute.xlu0 %659
      %661 = vrot.lane.b32.xlu0 %v477, 6
      %v662 = vpop.permute.xlu0 %661
      %663 = vrot.lane.b32.xlu0 %v478, 6
      %v664 = vpop.permute.xlu0 %663
      %665 = vrot.lane.b32.xlu0 %v479, 6
      %v666 = vpop.permute.xlu0 %665
      %667 = vrot.lane.b32.xlu0 %v480, 6
      %v668 = vpop.permute.xlu0 %667
      %669 = vrot.lane.b32.xlu0 %v481, 6
      %v670 = vpop.permute.xlu0 %669
      %671 = vrot.lane.b32.xlu0 %v482, 6
      %v672 = vpop.permute.xlu0 %671
      %673 = vrot.lane.b32.xlu0 %v449, 6
      %v674 = vpop.permute.xlu0 %673
      %675 = vrot.lane.b32.xlu0 %v450, 6
      %v676 = vpop.permute.xlu0 %675
      %vm709 = vcmask 23552
      %v710 = vsel %vm709, %v445, %v516
      %v711 = vsel %vm709, %v446, %v518
      %v712 = vsel %vm709, %v451, %v520
      %v713 = vsel %vm709, %v452, %v522
      %v714 = vsel %vm709, %v453, %v524
      %v715 = vsel %vm709, %v454, %v526
      %v716 = vsel %vm709, %v455, %v528
      %v717 = vsel %vm709, %v456, %v530
      %v718 = vsel %vm709, %v457, %v532
      %v719 = vsel %vm709, %v458, %v534
      %v720 = vsel %vm709, %v459, %v536
      %v721 = vsel %vm709, %v460, %v538
      %v722 = vsel %vm709, %v461, %v540
      %v723 = vsel %vm709, %v462, %v542
      %v724 = vsel %vm709, %v463, %v544
      %v725 = vsel %vm709, %v464, %v546
      %v726 = vsel %vm709, %v465, %v548
      %v727 = vsel %vm709, %v466, %v550
      %v728 = vsel %vm709, %v467, %v552
      %v729 = vsel %vm709, %v468, %v554
      %v730 = vsel %vm709, %v469, %v556
      %v731 = vsel %vm709, %v470, %v558
      %v732 = vsel %vm709, %v471, %v560
      %v733 = vsel %vm709, %v472, %v562
      %v734 = vsel %vm709, %v473, %v564
      %v735 = vsel %vm709, %v474, %v566
      %v736 = vsel %vm709, %v475, %v568
      %v737 = vsel %vm709, %v476, %v570
      %v738 = vsel %vm709, %v477, %v572
      %v739 = vsel %vm709, %v478, %v574
      %v740 = vsel %vm709, %v479, %v576
      %v741 = vsel %vm709, %v480, %v578
      %vm742 = vcmask 48128
      %v743 = vsel %vm742, %v710, %v614
      %v744 = vsel %vm742, %v711, %v616
      %v745 = vsel %vm742, %v712, %v618
      %v746 = vsel %vm742, %v713, %v620
      %v747 = vsel %vm742, %v714, %v622
      %v748 = vsel %vm742, %v715, %v624
      %v749 = vsel %vm742, %v716, %v626
      %v750 = vsel %vm742, %v717, %v628
      %v751 = vsel %vm742, %v718, %v630
      %v752 = vsel %vm742, %v719, %v632
      %v753 = vsel %vm742, %v720, %v634
      %v754 = vsel %vm742, %v721, %v636
      %v755 = vsel %vm742, %v722, %v638
      %v756 = vsel %vm742, %v723, %v640
      %v757 = vsel %vm742, %v724, %v642
      %v758 = vsel %vm742, %v725, %v644
      %v759 = vsel %vm742, %v726, %v646
      %v760 = vsel %vm742, %v727, %v648
      %v761 = vsel %vm742, %v728, %v650
      %v762 = vsel %vm742, %v729, %v652
      %v763 = vsel %vm742, %v730, %v654
      %v764 = vsel %vm742, %v731, %v656
      %v765 = vsel %vm742, %v732, %v658
      %v766 = vsel %vm742, %v733, %v660
      %v767 = vsel %vm742, %v734, %v662
      %v768 = vsel %vm742, %v735, %v664
      %v769 = vsel %vm742, %v736, %v666
      %v770 = vsel %vm742, %v737, %v668
      %v771 = vsel %vm742, %v738, %v670
      %v772 = vsel %vm742, %v739, %v672
      %v773 = vsel %vm742, %v740, %v674
      %v774 = vsel %vm742, %v741, %v676
      %v775 = vlaneseq
      %v776 = vshrl.u32 %v775, 7
      %v777 = vadd.s32 %v776, 8
      %s778 = scalar_lea.vmem %s3, 16
      %v779 = vld [vmem:[%s778] sm:$0xff]
      %v780 = vld [vmem:[%s778 + $0x8] sm:$0x1]
      %vm781 = vcmp.eq.s32.totalorder %v776, 0
      %vm782 = vcmp.eq.s32.totalorder %v777, 0
      %v783 = vrot.slane %v743, 7
      %v784 = vrot.slane %v744, 7
      %v785 = vrot.slane %v745, 7
      %v786 = vrot.slane %v746, 7
      %v787 = vrot.slane %v747, 7
      %v788 = vrot.slane %v748, 7
      %v789 = vrot.slane %v749, 7
      %v790 = vrot.slane %v750, 7
      %v791 = vrot.slane %v751, 7
      %v792 = vrot.slane %v752, 7
      %v793 = vrot.slane %v753, 7
      %v794 = vrot.slane %v754, 7
      %v795 = vrot.slane %v755, 7
      %v796 = vrot.slane %v756, 7
      %v797 = vrot.slane %v757, 7
      %v798 = vrot.slane %v758, 7
      %v799 = vrot.slane %v759, 7
      %v800 = vrot.slane %v760, 7
      %v801 = vrot.slane %v761, 7
      %v802 = vrot.slane %v762, 7
      %v803 = vrot.slane %v763, 7
      %v804 = vrot.slane %v764, 7
      %v805 = vrot.slane %v765, 7
      %v806 = vrot.slane %v766, 7
      %v807 = vrot.slane %v767, 7
      %v808 = vrot.slane %v768, 7
      %v809 = vrot.slane %v769, 7
      %v810 = vrot.slane %v770, 7
      %v811 = vrot.slane %v771, 7
      %v812 = vrot.slane %v772, 7
      %v813 = vrot.slane %v773, 7
      %v814 = vrot.slane %v774, 7
      %vm815 = vcmp.lt.s32.totalorder %v776, 1
      %v816 = vsel %vm815, %v813, %v814
      %v817 = vsel %vm815, %v812, %v813
      %v818 = vsel %vm815, %v811, %v812
      %v819 = vsel %vm815, %v810, %v811
      %v820 = vsel %vm815, %v809, %v810
      %v821 = vsel %vm815, %v808, %v809
      %v822 = vsel %vm815, %v807, %v808
      %v823 = vsel %vm815, %v806, %v807
      %v824 = vsel %vm815, %v805, %v806
      %v825 = vsel %vm815, %v804, %v805
      %v826 = vsel %vm815, %v803, %v804
      %v827 = vsel %vm815, %v802, %v803
      %v828 = vsel %vm815, %v801, %v802
      %v829 = vsel %vm815, %v800, %v801
      %v830 = vsel %vm815, %v799, %v800
      %v831 = vsel %vm815, %v798, %v799
      %v832 = vsel %vm815, %v797, %v798
      %v833 = vsel %vm815, %v796, %v797
      %v834 = vsel %vm815, %v795, %v796
      %v835 = vsel %vm815, %v794, %v795
      %v836 = vsel %vm815, %v793, %v794
      %v837 = vsel %vm815, %v792, %v793
      %v838 = vsel %vm815, %v791, %v792
      %v839 = vsel %vm815, %v790, %v791
      %v840 = vsel %vm815, %v789, %v790
      %v841 = vsel %vm815, %v788, %v789
      %v842 = vsel %vm815, %v787, %v788
      %v843 = vsel %vm815, %v786, %v787
      %v844 = vsel %vm815, %v785, %v786
      %v845 = vsel %vm815, %v784, %v785
      %v846 = vsel %vm815, %v783, %v784
      %v847 = vsel %vm815, %v814, %v783
      %v848 = vsel %vm781, 1, 0
      %v849 = vsel %vm782, 1, 0
      %vm850 = vcmp.eq.s32.totalorder %v848, 1
      %vm851 = vcmp.eq.s32.totalorder %v849, 1
      %v852 = vsel %vm850, 0.0, %v847
      %v853 = vsel %vm851, 0.0, %v846
      %v854 = vsel %vm850, 0.0, %v845
      %v855 = vsel %vm851, 0.0, %v844
      %v856 = vsel %vm850, 0.0, %v843
      %v857 = vsel %vm851, 0.0, %v842
      %v858 = vsel %vm850, 0.0, %v841
      %v859 = vsel %vm851, 0.0, %v840
      %v860 = vsel %vm850, 0.0, %v839
      %v861 = vsel %vm851, 0.0, %v838
      %v862 = vsel %vm850, 0.0, %v837
      %v863 = vsel %vm851, 0.0, %v836
      %v864 = vsel %vm850, 0.0, %v835
      %v865 = vsel %vm851, 0.0, %v834
      %v866 = vsel %vm850, 0.0, %v833
      %v867 = vsel %vm851, 0.0, %v832
      %v868 = vsel %vm850, 0.0, %v831
      %v869 = vsel %vm851, 0.0, %v830
      %v870 = vsel %vm850, 0.0, %v829
      %v871 = vsel %vm851, 0.0, %v828
      %v872 = vsel %vm850, 0.0, %v827
      %v873 = vsel %vm851, 0.0, %v826
      %v874 = vsel %vm850, 0.0, %v825
      %v875 = vsel %vm851, 0.0, %v824
      %v876 = vsel %vm850, 0.0, %v823
      %v877 = vsel %vm851, 0.0, %v822
      %v878 = vsel %vm850, 0.0, %v821
      %v879 = vsel %vm851, 0.0, %v820
      %v880 = vsel %vm850, 0.0, %v819
      %v881 = vsel %vm851, 0.0, %v818
      %v882 = vsel %vm850, 0.0, %v817
      %v883 = vsel %vm851, 0.0, %v816
      %v884 = vld [vmem:[%s3] sm:$0xff]
      %v885 = vld [vmem:[%s3 + $0x8] sm:$0x1]
      %vm886 = vcmask 72704
      %v888 = vsel %vm886, %v852, 0
      %v891 = vsel %vm886, %v853, 0
      %v894 = vsel %vm886, %v854, 0
      %v897 = vsel %vm886, %v855, 0
      %v900 = vsel %vm886, %v856, 0
      %v903 = vsel %vm886, %v857, 0
      %v906 = vsel %vm886, %v858, 0
      %v909 = vsel %vm886, %v859, 0
      %v912 = vsel %vm886, %v860, 0
      %v915 = vsel %vm886, %v861, 0
      %v918 = vsel %vm886, %v862, 0
      %v921 = vsel %vm886, %v863, 0
      %v924 = vsel %vm886, %v864, 0
      %v927 = vsel %vm886, %v865, 0
      %v930 = vsel %vm886, %v866, 0
      %v933 = vsel %vm886, %v867, 0
      %v936 = vsel %vm886, %v868, 0
      %v939 = vsel %vm886, %v869, 0
      %v942 = vsel %vm886, %v870, 0
      %v945 = vsel %vm886, %v871, 0
      %v948 = vsel %vm886, %v872, 0
      %v951 = vsel %vm886, %v873, 0
      %v954 = vsel %vm886, %v874, 0
      %v957 = vsel %vm886, %v875, 0
      %v960 = vsel %vm886, %v876, 0
      %v963 = vsel %vm886, %v877, 0
      %v966 = vsel %vm886, %v878, 0
      %v969 = vsel %vm886, %v879, 0
      %v972 = vsel %vm886, %v880, 0
      %v975 = vsel %vm886, %v881, 0
      %v978 = vsel %vm886, %v882, 0
      %v981 = vsel %vm886, %v883, 0
      %vm983 = vcmask 1040384
      %v985 = vsel %vm983, %v885, 0
      %987 = vmatprep.subr.mxu0 0.0
      %988 = vmatpush1.msra.mxu0 0.0
      %989 = vmatprep.subr.mxu0 0.0
      %990 = vmatpush1.msra.mxu0 0.0
      %991 = vmatprep.subr.mxu0 0.0
      %992 = vmatpush1.msra.mxu0 0.0
      %993 = vmatprep.subr.mxu0 0.0
      %994 = vmatpush1.msra.mxu0 0.0
      %995 = vmatprep.subr.mxu0 0.0
      %996 = vmatpush1.msra.mxu0 0.0
      %997 = vmatprep.subr.mxu0 0.0
      %998 = vmatpush1.msra.mxu0 0.0
      %999 = vmatprep.subr.mxu0 0.0
      %1000 = vmatpush1.msra.mxu0 0.0
      %1001 = vmatprep.subr.mxu0 0.0
      %1002 = vmatpush1.msra.mxu0 0.0
      %1003 = vmatprep.subr.mxu0 0.0
      %1004 = vmatpush1.msra.mxu0 0.0
      %1005 = vmatprep.subr.mxu0 0.0
      %1006 = vmatpush1.msra.mxu0 0.0
      %1007 = vmatprep.subr.mxu0 0.0
      %1008 = vmatpush1.msra.mxu0 0.0
      %1009 = vmatprep.subr.mxu0 0.0
      %1010 = vmatpush1.msra.mxu0 0.0
      %1011 = vmatprep.subr.mxu0 0.0
      %1012 = vmatpush1.msra.mxu0 0.0
      %1013 = vmatprep.subr.mxu0 0.0
      %1014 = vmatpush1.msra.mxu0 0.0
      %1015 = vmatprep.subr.mxu0 0.0
      %1016 = vmatpush1.msra.mxu0 %v985
      %1017 = vmatprep.subr.mxu0 0.0
      %1018 = vmatpush1.msra.mxu0 %v884
      %1019 = vmatprep.subr.mxu0 0.0
      %1020 = vmatpush2.msra.mxu0 0.0
      %1021 = vmatprep.subr.mxu0 0.0
      %1022 = vmatpush2.msra.mxu0 0.0
      %1023 = vmatprep.subr.mxu0 0.0
      %1024 = vmatpush2.msra.mxu0 0.0
      %1025 = vmatprep.subr.mxu0 0.0
      %1026 = vmatpush2.msra.mxu0 0.0
      %1027 = vmatprep.subr.mxu0 0.0
      %1028 = vmatpush2.msra.mxu0 0.0
      %1029 = vmatprep.subr.mxu0 0.0
      %1030 = vmatpush2.msra.mxu0 0.0
      %1031 = vmatprep.subr.mxu0 0.0
      %1032 = vmatpush2.msra.mxu0 0.0
      %1033 = vmatprep.subr.mxu0 0.0
      %1034 = vmatpush2.msra.mxu0 0.0
      %1035 = vmatprep.subr.mxu0 0.0
      %1036 = vmatpush2.msra.mxu0 0.0
      %1037 = vmatprep.subr.mxu0 0.0
      %1038 = vmatpush2.msra.mxu0 0.0
      %1039 = vmatprep.subr.mxu0 0.0
      %1040 = vmatpush2.msra.mxu0 0.0
      %1041 = vmatprep.subr.mxu0 0.0
      %1042 = vmatpush2.msra.mxu0 0.0
      %1043 = vmatprep.subr.mxu0 0.0
      %1044 = vmatpush2.msra.mxu0 0.0
      %1045 = vmatprep.subr.mxu0 0.0
      %1046 = vmatpush2.msra.mxu0 0.0
      %1047 = vmatprep.subr.mxu0 0.0
      %1048 = vmatpush2.msra.mxu0 0.0
      %1049 = vmatprep.subr.mxu0 0.0
      %1050 = vmatpush2.msra.mxu0 0.0
      %1051 = vmatprep.mubr.f32.mxu0 0.0
      %1052 = vmatmul.mubr.f32.gmra.mxu0 %v888
      %v1053 = vpop.f32.mrf.mxu0
      %v1054 = vadd.f32 0.0, %v1053
      %v1055 = vpop.f32.mrf.mxu0
      %1056 = vmatprep.mubr.f32.mxu0 0.0
      %1057 = vmatmul.mubr.f32.gmra.mxu0 %v891
      %v1058 = vpop.f32.mrf.mxu0
      %v1059 = vadd.f32 0.0, %v1058
      %v1060 = vpop.f32.mrf.mxu0
      %1061 = vmatprep.mubr.f32.mxu0 0.0
      %1062 = vmatmul.mubr.f32.gmra.mxu0 %v894
      %v1063 = vpop.f32.mrf.mxu0
      %v1064 = vadd.f32 0.0, %v1063
      %v1065 = vpop.f32.mrf.mxu0
      %1066 = vmatprep.mubr.f32.mxu0 0.0
      %1067 = vmatmul.mubr.f32.gmra.mxu0 %v897
      %v1068 = vpop.f32.mrf.mxu0
      %v1069 = vadd.f32 0.0, %v1068
      %v1070 = vpop.f32.mrf.mxu0
      %1071 = vmatprep.mubr.f32.mxu0 0.0
      %1072 = vmatmul.mubr.f32.gmra.mxu0 %v900
      %v1073 = vpop.f32.mrf.mxu0
      %v1074 = vadd.f32 0.0, %v1073
      %v1075 = vpop.f32.mrf.mxu0
      %1076 = vmatprep.mubr.f32.mxu0 0.0
      %1077 = vmatmul.mubr.f32.gmra.mxu0 %v903
      %v1078 = vpop.f32.mrf.mxu0
      %v1079 = vadd.f32 0.0, %v1078
      %v1080 = vpop.f32.mrf.mxu0
      %1081 = vmatprep.mubr.f32.mxu0 0.0
      %1082 = vmatmul.mubr.f32.gmra.mxu0 %v906
      %v1083 = vpop.f32.mrf.mxu0
      %v1084 = vadd.f32 0.0, %v1083
      %v1085 = vpop.f32.mrf.mxu0
      %1086 = vmatprep.mubr.f32.mxu0 0.0
      %1087 = vmatmul.mubr.f32.gmra.mxu0 %v909
      %v1088 = vpop.f32.mrf.mxu0
      %v1089 = vadd.f32 0.0, %v1088
      %v1090 = vpop.f32.mrf.mxu0
      %1091 = vmatprep.mubr.f32.mxu0 0.0
      %1092 = vmatmul.mubr.f32.gmra.mxu0 %v912
      %v1093 = vpop.f32.mrf.mxu0
      %v1094 = vadd.f32 0.0, %v1093
      %v1095 = vpop.f32.mrf.mxu0
      %1096 = vmatprep.mubr.f32.mxu0 0.0
      %1097 = vmatmul.mubr.f32.gmra.mxu0 %v915
      %v1098 = vpop.f32.mrf.mxu0
      %v1099 = vadd.f32 0.0, %v1098
      %v1100 = vpop.f32.mrf.mxu0
      %1101 = vmatprep.mubr.f32.mxu0 0.0
      %1102 = vmatmul.mubr.f32.gmra.mxu0 %v918
      %v1103 = vpop.f32.mrf.mxu0
      %v1104 = vadd.f32 0.0, %v1103
      %v1105 = vpop.f32.mrf.mxu0
      %1106 = vmatprep.mubr.f32.mxu0 0.0
      %1107 = vmatmul.mubr.f32.gmra.mxu0 %v921
      %v1108 = vpop.f32.mrf.mxu0
      %v1109 = vadd.f32 0.0, %v1108
      %v1110 = vpop.f32.mrf.mxu0
      %1111 = vmatprep.mubr.f32.mxu0 0.0
      %1112 = vmatmul.mubr.f32.gmra.mxu0 %v924
      %v1113 = vpop.f32.mrf.mxu0
      %v1114 = vadd.f32 0.0, %v1113
      %v1115 = vpop.f32.mrf.mxu0
      %1116 = vmatprep.mubr.f32.mxu0 0.0
      %1117 = vmatmul.mubr.f32.gmra.mxu0 %v927
      %v1118 = vpop.f32.mrf.mxu0
      %v1119 = vadd.f32 0.0, %v1118
      %v1120 = vpop.f32.mrf.mxu0
      %1121 = vmatprep.mubr.f32.mxu0 0.0
      %1122 = vmatmul.mubr.f32.gmra.mxu0 %v930
      %v1123 = vpop.f32.mrf.mxu0
      %v1124 = vadd.f32 0.0, %v1123
      %v1125 = vpop.f32.mrf.mxu0
      %1126 = vmatprep.mubr.f32.mxu0 0.0
      %1127 = vmatmul.mubr.f32.gmra.mxu0 %v933
      %v1128 = vpop.f32.mrf.mxu0
      %v1129 = vadd.f32 0.0, %v1128
      %v1130 = vpop.f32.mrf.mxu0
      %1131 = vmatprep.mubr.f32.mxu0 0.0
      %1132 = vmatmul.mubr.f32.gmra.mxu0 %v936
      %v1133 = vpop.f32.mrf.mxu0
      %v1134 = vadd.f32 0.0, %v1133
      %v1135 = vpop.f32.mrf.mxu0
      %1136 = vmatprep.mubr.f32.mxu0 0.0
      %1137 = vmatmul.mubr.f32.gmra.mxu0 %v939
      %v1138 = vpop.f32.mrf.mxu0
      %v1139 = vadd.f32 0.0, %v1138
      %v1140 = vpop.f32.mrf.mxu0
      %1141 = vmatprep.mubr.f32.mxu0 0.0
      %1142 = vmatmul.mubr.f32.gmra.mxu0 %v942
      %v1143 = vpop.f32.mrf.mxu0
      %v1144 = vadd.f32 0.0, %v1143
      %v1145 = vpop.f32.mrf.mxu0
      %1146 = vmatprep.mubr.f32.mxu0 0.0
      %1147 = vmatmul.mubr.f32.gmra.mxu0 %v945
      %v1148 = vpop.f32.mrf.mxu0
      %v1149 = vadd.f32 0.0, %v1148
      %v1150 = vpop.f32.mrf.mxu0
      %1151 = vmatprep.mubr.f32.mxu0 0.0
      %1152 = vmatmul.mubr.f32.gmra.mxu0 %v948
      %v1153 = vpop.f32.mrf.mxu0
      %v1154 = vadd.f32 0.0, %v1153
      %v1155 = vpop.f32.mrf.mxu0
      %1156 = vmatprep.mubr.f32.mxu0 0.0
      %1157 = vmatmul.mubr.f32.gmra.mxu0 %v951
      %v1158 = vpop.f32.mrf.mxu0
      %v1159 = vadd.f32 0.0, %v1158
      %v1160 = vpop.f32.mrf.mxu0
      %1161 = vmatprep.mubr.f32.mxu0 0.0
      %1162 = vmatmul.mubr.f32.gmra.mxu0 %v954
      %v1163 = vpop.f32.mrf.mxu0
      %v1164 = vadd.f32 0.0, %v1163
      %v1165 = vpop.f32.mrf.mxu0
      %1166 = vmatprep.mubr.f32.mxu0 0.0
      %1167 = vmatmul.mubr.f32.gmra.mxu0 %v957
      %v1168 = vpop.f32.mrf.mxu0
      %v1169 = vadd.f32 0.0, %v1168
      %v1170 = vpop.f32.mrf.mxu0
      %1171 = vmatprep.mubr.f32.mxu0 0.0
      %1172 = vmatmul.mubr.f32.gmra.mxu0 %v960
      %v1173 = vpop.f32.mrf.mxu0
      %v1174 = vadd.f32 0.0, %v1173
      %v1175 = vpop.f32.mrf.mxu0
      %1176 = vmatprep.mubr.f32.mxu0 0.0
      %1177 = vmatmul.mubr.f32.gmra.mxu0 %v963
      %v1178 = vpop.f32.mrf.mxu0
      %v1179 = vadd.f32 0.0, %v1178
      %v1180 = vpop.f32.mrf.mxu0
      %1181 = vmatprep.mubr.f32.mxu0 0.0
      %1182 = vmatmul.mubr.f32.gmra.mxu0 %v966
      %v1183 = vpop.f32.mrf.mxu0
      %v1184 = vadd.f32 0.0, %v1183
      %v1185 = vpop.f32.mrf.mxu0
      %1186 = vmatprep.mubr.f32.mxu0 0.0
      %1187 = vmatmul.mubr.f32.gmra.mxu0 %v969
      %v1188 = vpop.f32.mrf.mxu0
      %v1189 = vadd.f32 0.0, %v1188
      %v1190 = vpop.f32.mrf.mxu0
      %1191 = vmatprep.mubr.f32.mxu0 0.0
      %1192 = vmatmul.mubr.f32.gmra.mxu0 %v972
      %v1193 = vpop.f32.mrf.mxu0
      %v1194 = vadd.f32 0.0, %v1193
      %v1195 = vpop.f32.mrf.mxu0
      %1196 = vmatprep.mubr.f32.mxu0 0.0
      %1197 = vmatmul.mubr.f32.gmra.mxu0 %v975
      %v1198 = vpop.f32.mrf.mxu0
      %v1199 = vadd.f32 0.0, %v1198
      %v1200 = vpop.f32.mrf.mxu0
      %1201 = vmatprep.mubr.f32.mxu0 0.0
      %1202 = vmatmul.mubr.f32.gmra.mxu0 %v978
      %v1203 = vpop.f32.mrf.mxu0
      %v1204 = vadd.f32 0.0, %v1203
      %v1205 = vpop.f32.mrf.mxu0
      %1206 = vmatprep.mubr.f32.mxu0 0.0
      %1207 = vmatmul.mubr.f32.gmra.mxu0 %v981
      %v1208 = vpop.f32.mrf.mxu0
      %v1209 = vadd.f32 0.0, %v1208
      %v1210 = vpop.f32.mrf.mxu0
      %1211 = vdwg.mxu0
      %v1213 = vsel %vm886, %v743, 0
      %v1216 = vsel %vm886, %v744, 0
      %v1219 = vsel %vm886, %v745, 0
      %v1222 = vsel %vm886, %v746, 0
      %v1225 = vsel %vm886, %v747, 0
      %v1228 = vsel %vm886, %v748, 0
      %v1231 = vsel %vm886, %v749, 0
      %v1234 = vsel %vm886, %v750, 0
      %v1237 = vsel %vm886, %v751, 0
      %v1240 = vsel %vm886, %v752, 0
      %v1243 = vsel %vm886, %v753, 0
      %v1246 = vsel %vm886, %v754, 0
      %v1249 = vsel %vm886, %v755, 0
      %v1252 = vsel %vm886, %v756, 0
      %v1255 = vsel %vm886, %v757, 0
      %v1258 = vsel %vm886, %v758, 0
      %v1261 = vsel %vm886, %v759, 0
      %v1264 = vsel %vm886, %v760, 0
      %v1267 = vsel %vm886, %v761, 0
      %v1270 = vsel %vm886, %v762, 0
      %v1273 = vsel %vm886, %v763, 0
      %v1276 = vsel %vm886, %v764, 0
      %v1279 = vsel %vm886, %v765, 0
      %v1282 = vsel %vm886, %v766, 0
      %v1285 = vsel %vm886, %v767, 0
      %v1288 = vsel %vm886, %v768, 0
      %v1291 = vsel %vm886, %v769, 0
      %v1294 = vsel %vm886, %v770, 0
      %v1297 = vsel %vm886, %v771, 0
      %v1300 = vsel %vm886, %v772, 0
      %v1303 = vsel %vm886, %v773, 0
      %v1306 = vsel %vm886, %v774, 0
      %v1309 = vsel %vm983, %v780, 0
      %1311 = vmatprep.subr.mxu0 0.0
      %1312 = vmatpush1.msra.mxu0 0.0
      %1313 = vmatprep.subr.mxu0 0.0
      %1314 = vmatpush1.msra.mxu0 0.0
      %1315 = vmatprep.subr.mxu0 0.0
      %1316 = vmatpush1.msra.mxu0 0.0
      %1317 = vmatprep.subr.mxu0 0.0
      %1318 = vmatpush1.msra.mxu0 0.0
      %1319 = vmatprep.subr.mxu0 0.0
      %1320 = vmatpush1.msra.mxu0 0.0
      %1321 = vmatprep.subr.mxu0 0.0
      %1322 = vmatpush1.msra.mxu0 0.0
      %1323 = vmatprep.subr.mxu0 0.0
      %1324 = vmatpush1.msra.mxu0 0.0
      %1325 = vmatprep.subr.mxu0 0.0
      %1326 = vmatpush1.msra.mxu0 0.0
      %1327 = vmatprep.subr.mxu0 0.0
      %1328 = vmatpush1.msra.mxu0 0.0
      %1329 = vmatprep.subr.mxu0 0.0
      %1330 = vmatpush1.msra.mxu0 0.0
      %1331 = vmatprep.subr.mxu0 0.0
      %1332 = vmatpush1.msra.mxu0 0.0
      %1333 = vmatprep.subr.mxu0 0.0
      %1334 = vmatpush1.msra.mxu0 0.0
      %1335 = vmatprep.subr.mxu0 0.0
      %1336 = vmatpush1.msra.mxu0 0.0
      %1337 = vmatprep.subr.mxu0 0.0
      %1338 = vmatpush1.msra.mxu0 0.0
      %1339 = vmatprep.subr.mxu0 0.0
      %1340 = vmatpush1.msra.mxu0 %v1309
      %1341 = vmatprep.subr.mxu0 0.0
      %1342 = vmatpush1.msra.mxu0 %v779
      %1343 = vmatprep.subr.mxu0 0.0
      %1344 = vmatpush2.msra.mxu0 0.0
      %1345 = vmatprep.subr.mxu0 0.0
      %1346 = vmatpush2.msra.mxu0 0.0
      %1347 = vmatprep.subr.mxu0 0.0
      %1348 = vmatpush2.msra.mxu0 0.0
      %1349 = vmatprep.subr.mxu0 0.0
      %1350 = vmatpush2.msra.mxu0 0.0
      %1351 = vmatprep.subr.mxu0 0.0
      %1352 = vmatpush2.msra.mxu0 0.0
      %1353 = vmatprep.subr.mxu0 0.0
      %1354 = vmatpush2.msra.mxu0 0.0
      %1355 = vmatprep.subr.mxu0 0.0
      %1356 = vmatpush2.msra.mxu0 0.0
      %1357 = vmatprep.subr.mxu0 0.0
      %1358 = vmatpush2.msra.mxu0 0.0
      %1359 = vmatprep.subr.mxu0 0.0
      %1360 = vmatpush2.msra.mxu0 0.0
      %1361 = vmatprep.subr.mxu0 0.0
      %1362 = vmatpush2.msra.mxu0 0.0
      %1363 = vmatprep.subr.mxu0 0.0
      %1364 = vmatpush2.msra.mxu0 0.0
      %1365 = vmatprep.subr.mxu0 0.0
      %1366 = vmatpush2.msra.mxu0 0.0
      %1367 = vmatprep.subr.mxu0 0.0
      %1368 = vmatpush2.msra.mxu0 0.0
      %1369 = vmatprep.subr.mxu0 0.0
      %1370 = vmatpush2.msra.mxu0 0.0
      %1371 = vmatprep.subr.mxu0 0.0
      %1372 = vmatpush2.msra.mxu0 0.0
      %1373 = vmatprep.subr.mxu0 0.0
      %1374 = vmatpush2.msra.mxu0 0.0
      %1375 = vmatprep.mubr.f32.mxu0 0.0
      %1376 = vmatmul.mubr.f32.gmra.mxu0 %v1213
      %v1377 = vpop.f32.mrf.mxu0
      %v1378 = vadd.f32 %v1054, %v1377
      %v1379 = vpop.f32.mrf.mxu0
      %1380 = vmatprep.mubr.f32.mxu0 0.0
      %1381 = vmatmul.mubr.f32.gmra.mxu0 %v1216
      %v1382 = vpop.f32.mrf.mxu0
      %v1383 = vadd.f32 %v1059, %v1382
      %v1384 = vpop.f32.mrf.mxu0
      %1385 = vmatprep.mubr.f32.mxu0 0.0
      %1386 = vmatmul.mubr.f32.gmra.mxu0 %v1219
      %v1387 = vpop.f32.mrf.mxu0
      %v1388 = vadd.f32 %v1064, %v1387
      %v1389 = vpop.f32.mrf.mxu0
      %1390 = vmatprep.mubr.f32.mxu0 0.0
      %1391 = vmatmul.mubr.f32.gmra.mxu0 %v1222
      %v1392 = vpop.f32.mrf.mxu0
      %v1393 = vadd.f32 %v1069, %v1392
      %v1394 = vpop.f32.mrf.mxu0
      %1395 = vmatprep.mubr.f32.mxu0 0.0
      %1396 = vmatmul.mubr.f32.gmra.mxu0 %v1225
      %v1397 = vpop.f32.mrf.mxu0
      %v1398 = vadd.f32 %v1074, %v1397
      %v1399 = vpop.f32.mrf.mxu0
      %1400 = vmatprep.mubr.f32.mxu0 0.0
      %1401 = vmatmul.mubr.f32.gmra.mxu0 %v1228
      %v1402 = vpop.f32.mrf.mxu0
      %v1403 = vadd.f32 %v1079, %v1402
      %v1404 = vpop.f32.mrf.mxu0
      %1405 = vmatprep.mubr.f32.mxu0 0.0
      %1406 = vmatmul.mubr.f32.gmra.mxu0 %v1231
      %v1407 = vpop.f32.mrf.mxu0
      %v1408 = vadd.f32 %v1084, %v1407
      %v1409 = vpop.f32.mrf.mxu0
      %1410 = vmatprep.mubr.f32.mxu0 0.0
      %1411 = vmatmul.mubr.f32.gmra.mxu0 %v1234
      %v1412 = vpop.f32.mrf.mxu0
      %v1413 = vadd.f32 %v1089, %v1412
      %v1414 = vpop.f32.mrf.mxu0
      %1415 = vmatprep.mubr.f32.mxu0 0.0
      %1416 = vmatmul.mubr.f32.gmra.mxu0 %v1237
      %v1417 = vpop.f32.mrf.mxu0
      %v1418 = vadd.f32 %v1094, %v1417
      %v1419 = vpop.f32.mrf.mxu0
      %1420 = vmatprep.mubr.f32.mxu0 0.0
      %1421 = vmatmul.mubr.f32.gmra.mxu0 %v1240
      %v1422 = vpop.f32.mrf.mxu0
      %v1423 = vadd.f32 %v1099, %v1422
      %v1424 = vpop.f32.mrf.mxu0
      %1425 = vmatprep.mubr.f32.mxu0 0.0
      %1426 = vmatmul.mubr.f32.gmra.mxu0 %v1243
      %v1427 = vpop.f32.mrf.mxu0
      %v1428 = vadd.f32 %v1104, %v1427
      %v1429 = vpop.f32.mrf.mxu0
      %1430 = vmatprep.mubr.f32.mxu0 0.0
      %1431 = vmatmul.mubr.f32.gmra.mxu0 %v1246
      %v1432 = vpop.f32.mrf.mxu0
      %v1433 = vadd.f32 %v1109, %v1432
      %v1434 = vpop.f32.mrf.mxu0
      %1435 = vmatprep.mubr.f32.mxu0 0.0
      %1436 = vmatmul.mubr.f32.gmra.mxu0 %v1249
      %v1437 = vpop.f32.mrf.mxu0
      %v1438 = vadd.f32 %v1114, %v1437
      %v1439 = vpop.f32.mrf.mxu0
      %1440 = vmatprep.mubr.f32.mxu0 0.0
      %1441 = vmatmul.mubr.f32.gmra.mxu0 %v1252
      %v1442 = vpop.f32.mrf.mxu0
      %v1443 = vadd.f32 %v1119, %v1442
      %v1444 = vpop.f32.mrf.mxu0
      %1445 = vmatprep.mubr.f32.mxu0 0.0
      %1446 = vmatmul.mubr.f32.gmra.mxu0 %v1255
      %v1447 = vpop.f32.mrf.mxu0
      %v1448 = vadd.f32 %v1124, %v1447
      %v1449 = vpop.f32.mrf.mxu0
      %1450 = vmatprep.mubr.f32.mxu0 0.0
      %1451 = vmatmul.mubr.f32.gmra.mxu0 %v1258
      %v1452 = vpop.f32.mrf.mxu0
      %v1453 = vadd.f32 %v1129, %v1452
      %v1454 = vpop.f32.mrf.mxu0
      %1455 = vmatprep.mubr.f32.mxu0 0.0
      %1456 = vmatmul.mubr.f32.gmra.mxu0 %v1261
      %v1457 = vpop.f32.mrf.mxu0
      %v1458 = vadd.f32 %v1134, %v1457
      %v1459 = vpop.f32.mrf.mxu0
      %1460 = vmatprep.mubr.f32.mxu0 0.0
      %1461 = vmatmul.mubr.f32.gmra.mxu0 %v1264
      %v1462 = vpop.f32.mrf.mxu0
      %v1463 = vadd.f32 %v1139, %v1462
      %v1464 = vpop.f32.mrf.mxu0
      %1465 = vmatprep.mubr.f32.mxu0 0.0
      %1466 = vmatmul.mubr.f32.gmra.mxu0 %v1267
      %v1467 = vpop.f32.mrf.mxu0
      %v1468 = vadd.f32 %v1144, %v1467
      %v1469 = vpop.f32.mrf.mxu0
      %1470 = vmatprep.mubr.f32.mxu0 0.0
      %1471 = vmatmul.mubr.f32.gmra.mxu0 %v1270
      %v1472 = vpop.f32.mrf.mxu0
      %v1473 = vadd.f32 %v1149, %v1472
      %v1474 = vpop.f32.mrf.mxu0
      %1475 = vmatprep.mubr.f32.mxu0 0.0
      %1476 = vmatmul.mubr.f32.gmra.mxu0 %v1273
      %v1477 = vpop.f32.mrf.mxu0
      %v1478 = vadd.f32 %v1154, %v1477
      %v1479 = vpop.f32.mrf.mxu0
      %1480 = vmatprep.mubr.f32.mxu0 0.0
      %1481 = vmatmul.mubr.f32.gmra.mxu0 %v1276
      %v1482 = vpop.f32.mrf.mxu0
      %v1483 = vadd.f32 %v1159, %v1482
      %v1484 = vpop.f32.mrf.mxu0
      %1485 = vmatprep.mubr.f32.mxu0 0.0
      %1486 = vmatmul.mubr.f32.gmra.mxu0 %v1279
      %v1487 = vpop.f32.mrf.mxu0
      %v1488 = vadd.f32 %v1164, %v1487
      %v1489 = vpop.f32.mrf.mxu0
      %1490 = vmatprep.mubr.f32.mxu0 0.0
      %1491 = vmatmul.mubr.f32.gmra.mxu0 %v1282
      %v1492 = vpop.f32.mrf.mxu0
      %v1493 = vadd.f32 %v1169, %v1492
      %v1494 = vpop.f32.mrf.mxu0
      %1495 = vmatprep.mubr.f32.mxu0 0.0
      %1496 = vmatmul.mubr.f32.gmra.mxu0 %v1285
      %v1497 = vpop.f32.mrf.mxu0
      %v1498 = vadd.f32 %v1174, %v1497
      %v1499 = vpop.f32.mrf.mxu0
      %1500 = vmatprep.mubr.f32.mxu0 0.0
      %1501 = vmatmul.mubr.f32.gmra.mxu0 %v1288
      %v1502 = vpop.f32.mrf.mxu0
      %v1503 = vadd.f32 %v1179, %v1502
      %v1504 = vpop.f32.mrf.mxu0
      %1505 = vmatprep.mubr.f32.mxu0 0.0
      %1506 = vmatmul.mubr.f32.gmra.mxu0 %v1291
      %v1507 = vpop.f32.mrf.mxu0
      %v1508 = vadd.f32 %v1184, %v1507
      %v1509 = vpop.f32.mrf.mxu0
      %1510 = vmatprep.mubr.f32.mxu0 0.0
      %1511 = vmatmul.mubr.f32.gmra.mxu0 %v1294
      %v1512 = vpop.f32.mrf.mxu0
      %v1513 = vadd.f32 %v1189, %v1512
      %v1514 = vpop.f32.mrf.mxu0
      %1515 = vmatprep.mubr.f32.mxu0 0.0
      %1516 = vmatmul.mubr.f32.gmra.mxu0 %v1297
      %v1517 = vpop.f32.mrf.mxu0
      %v1518 = vadd.f32 %v1194, %v1517
      %v1519 = vpop.f32.mrf.mxu0
      %1520 = vmatprep.mubr.f32.mxu0 0.0
      %1521 = vmatmul.mubr.f32.gmra.mxu0 %v1300
      %v1522 = vpop.f32.mrf.mxu0
      %v1523 = vadd.f32 %v1199, %v1522
      %v1524 = vpop.f32.mrf.mxu0
      %1525 = vmatprep.mubr.f32.mxu0 0.0
      %1526 = vmatmul.mubr.f32.gmra.mxu0 %v1303
      %v1527 = vpop.f32.mrf.mxu0
      %v1528 = vadd.f32 %v1204, %v1527
      %v1529 = vpop.f32.mrf.mxu0
      %1530 = vmatprep.mubr.f32.mxu0 0.0
      %1531 = vmatmul.mubr.f32.gmra.mxu0 %v1306
      %v1532 = vpop.f32.mrf.mxu0
      %v1533 = vadd.f32 %v1209, %v1532
      %v1534 = vpop.f32.mrf.mxu0
      %1535 = vdwg.mxu0
      %vm1536 = vcmp.eq.s32.totalorder %v776, 15
      %vm1537 = vcmp.eq.s32.totalorder %v777, 15
      %v1538 = vrot.slane %v743, 1
      %v1539 = vrot.slane %v744, 1
      %v1540 = vrot.slane %v745, 1
      %v1541 = vrot.slane %v746, 1
      %v1542 = vrot.slane %v747, 1
      %v1543 = vrot.slane %v748, 1
      %v1544 = vrot.slane %v749, 1
      %v1545 = vrot.slane %v750, 1
      %v1546 = vrot.slane %v751, 1
      %v1547 = vrot.slane %v752, 1
      %v1548 = vrot.slane %v753, 1
      %v1549 = vrot.slane %v754, 1
      %v1550 = vrot.slane %v755, 1
      %v1551 = vrot.slane %v756, 1
      %v1552 = vrot.slane %v757, 1
      %v1553 = vrot.slane %v758, 1
      %v1554 = vrot.slane %v759, 1
      %v1555 = vrot.slane %v760, 1
      %v1556 = vrot.slane %v761, 1
      %v1557 = vrot.slane %v762, 1
      %v1558 = vrot.slane %v763, 1
      %v1559 = vrot.slane %v764, 1
      %v1560 = vrot.slane %v765, 1
      %v1561 = vrot.slane %v766, 1
      %v1562 = vrot.slane %v767, 1
      %v1563 = vrot.slane %v768, 1
      %v1564 = vrot.slane %v769, 1
      %v1565 = vrot.slane %v770, 1
      %v1566 = vrot.slane %v771, 1
      %v1567 = vrot.slane %v772, 1
      %v1568 = vrot.slane %v773, 1
      %v1569 = vrot.slane %v774, 1
      %vm1570 = vcmp.lt.s32.totalorder %v776, 7
      %v1571 = vsel %vm1570, %v1568, %v1569
      %v1572 = vsel %vm1570, %v1567, %v1568
      %v1573 = vsel %vm1570, %v1566, %v1567
      %v1574 = vsel %vm1570, %v1565, %v1566
      %v1575 = vsel %vm1570, %v1564, %v1565
      %v1576 = vsel %vm1570, %v1563, %v1564
      %v1577 = vsel %vm1570, %v1562, %v1563
      %v1578 = vsel %vm1570, %v1561, %v1562
      %v1579 = vsel %vm1570, %v1560, %v1561
      %v1580 = vsel %vm1570, %v1559, %v1560
      %v1581 = vsel %vm1570, %v1558, %v1559
      %v1582 = vsel %vm1570, %v1557, %v1558
      %v1583 = vsel %vm1570, %v1556, %v1557
      %v1584 = vsel %vm1570, %v1555, %v1556
      %v1585 = vsel %vm1570, %v1554, %v1555
      %v1586 = vsel %vm1570, %v1553, %v1554
      %v1587 = vsel %vm1570, %v1552, %v1553
      %v1588 = vsel %vm1570, %v1551, %v1552
      %v1589 = vsel %vm1570, %v1550, %v1551
      %v1590 = vsel %vm1570, %v1549, %v1550
      %v1591 = vsel %vm1570, %v1548, %v1549
      %v1592 = vsel %vm1570, %v1547, %v1548
      %v1593 = vsel %vm1570, %v1546, %v1547
      %v1594 = vsel %vm1570, %v1545, %v1546
      %v1595 = vsel %vm1570, %v1544, %v1545
      %v1596 = vsel %vm1570, %v1543, %v1544
      %v1597 = vsel %vm1570, %v1542, %v1543
      %v1598 = vsel %vm1570, %v1541, %v1542
      %v1599 = vsel %vm1570, %v1540, %v1541
      %v1600 = vsel %vm1570, %v1539, %v1540
      %v1601 = vsel %vm1570, %v1538, %v1539
      %v1602 = vsel %vm1570, %v1569, %v1538
      %v1603 = vsel %vm1536, 1, 0
      %v1604 = vsel %vm1537, 1, 0
      %vm1605 = vcmp.eq.s32.totalorder %v1603, 1
      %vm1606 = vcmp.eq.s32.totalorder %v1604, 1
      %v1607 = vsel %vm1605, 0.0, %v1601
      %v1608 = vsel %vm1606, 0.0, %v1600
      %v1609 = vsel %vm1605, 0.0, %v1599
      %v1610 = vsel %vm1606, 0.0, %v1598
      %v1611 = vsel %vm1605, 0.0, %v1597
      %v1612 = vsel %vm1606, 0.0, %v1596
      %v1613 = vsel %vm1605, 0.0, %v1595
      %v1614 = vsel %vm1606, 0.0, %v1594
      %v1615 = vsel %vm1605, 0.0, %v1593
      %v1616 = vsel %vm1606, 0.0, %v1592
      %v1617 = vsel %vm1605, 0.0, %v1591
      %v1618 = vsel %vm1606, 0.0, %v1590
      %v1619 = vsel %vm1605, 0.0, %v1589
      %v1620 = vsel %vm1606, 0.0, %v1588
      %v1621 = vsel %vm1605, 0.0, %v1587
      %v1622 = vsel %vm1606, 0.0, %v1586
      %v1623 = vsel %vm1605, 0.0, %v1585
      %v1624 = vsel %vm1606, 0.0, %v1584
      %v1625 = vsel %vm1605, 0.0, %v1583
      %v1626 = vsel %vm1606, 0.0, %v1582
      %v1627 = vsel %vm1605, 0.0, %v1581
      %v1628 = vsel %vm1606, 0.0, %v1580
      %v1629 = vsel %vm1605, 0.0, %v1579
      %v1630 = vsel %vm1606, 0.0, %v1578
      %v1631 = vsel %vm1605, 0.0, %v1577
      %v1632 = vsel %vm1606, 0.0, %v1576
      %v1633 = vsel %vm1605, 0.0, %v1575
      %v1634 = vsel %vm1606, 0.0, %v1574
      %v1635 = vsel %vm1605, 0.0, %v1573
      %v1636 = vsel %vm1606, 0.0, %v1572
      %v1637 = vsel %vm1605, 0.0, %v1571
      %v1638 = vsel %vm1606, 0.0, %v1602
      %s1639 = scalar_lea.vmem %s3, 32
      %v1640 = vld [vmem:[%s1639] sm:$0xff]
      %v1641 = vld [vmem:[%s1639 + $0x8] sm:$0x1]
      %v1643 = vsel %vm886, %v1607, 0
      %v1646 = vsel %vm886, %v1608, 0
      %v1649 = vsel %vm886, %v1609, 0
      %v1652 = vsel %vm886, %v1610, 0
      %v1655 = vsel %vm886, %v1611, 0
      %v1658 = vsel %vm886, %v1612, 0
      %v1661 = vsel %vm886, %v1613, 0
      %v1664 = vsel %vm886, %v1614, 0
      %v1667 = vsel %vm886, %v1615, 0
      %v1670 = vsel %vm886, %v1616, 0
      %v1673 = vsel %vm886, %v1617, 0
      %v1676 = vsel %vm886, %v1618, 0
      %v1679 = vsel %vm886, %v1619, 0
      %v1682 = vsel %vm886, %v1620, 0
      %v1685 = vsel %vm886, %v1621, 0
      %v1688 = vsel %vm886, %v1622, 0
      %v1691 = vsel %vm886, %v1623, 0
      %v1694 = vsel %vm886, %v1624, 0
      %v1697 = vsel %vm886, %v1625, 0
      %v1700 = vsel %vm886, %v1626, 0
      %v1703 = vsel %vm886, %v1627, 0
      %v1706 = vsel %vm886, %v1628, 0
      %v1709 = vsel %vm886, %v1629, 0
      %v1712 = vsel %vm886, %v1630, 0
      %v1715 = vsel %vm886, %v1631, 0
      %v1718 = vsel %vm886, %v1632, 0
      %v1721 = vsel %vm886, %v1633, 0
      %v1724 = vsel %vm886, %v1634, 0
      %v1727 = vsel %vm886, %v1635, 0
      %v1730 = vsel %vm886, %v1636, 0
      %v1733 = vsel %vm886, %v1637, 0
      %v1736 = vsel %vm886, %v1638, 0
      %v1739 = vsel %vm983, %v1641, 0
      %1741 = vmatprep.subr.mxu0 0.0
      %1742 = vmatpush1.msra.mxu0 0.0
      %1743 = vmatprep.subr.mxu0 0.0
      %1744 = vmatpush1.msra.mxu0 0.0
      %1745 = vmatprep.subr.mxu0 0.0
      %1746 = vmatpush1.msra.mxu0 0.0
      %1747 = vmatprep.subr.mxu0 0.0
      %1748 = vmatpush1.msra.mxu0 0.0
      %1749 = vmatprep.subr.mxu0 0.0
      %1750 = vmatpush1.msra.mxu0 0.0
      %1751 = vmatprep.subr.mxu0 0.0
      %1752 = vmatpush1.msra.mxu0 0.0
      %1753 = vmatprep.subr.mxu0 0.0
      %1754 = vmatpush1.msra.mxu0 0.0
      %1755 = vmatprep.subr.mxu0 0.0
      %1756 = vmatpush1.msra.mxu0 0.0
      %1757 = vmatprep.subr.mxu0 0.0
      %1758 = vmatpush1.msra.mxu0 0.0
      %1759 = vmatprep.subr.mxu0 0.0
      %1760 = vmatpush1.msra.mxu0 0.0
      %1761 = vmatprep.subr.mxu0 0.0
      %1762 = vmatpush1.msra.mxu0 0.0
      %1763 = vmatprep.subr.mxu0 0.0
      %1764 = vmatpush1.msra.mxu0 0.0
      %1765 = vmatprep.subr.mxu0 0.0
      %1766 = vmatpush1.msra.mxu0 0.0
      %1767 = vmatprep.subr.mxu0 0.0
      %1768 = vmatpush1.msra.mxu0 0.0
      %1769 = vmatprep.subr.mxu0 0.0
      %1770 = vmatpush1.msra.mxu0 %v1739
      %1771 = vmatprep.subr.mxu0 0.0
      %1772 = vmatpush1.msra.mxu0 %v1640
      %1773 = vmatprep.subr.mxu0 0.0
      %1774 = vmatpush2.msra.mxu0 0.0
      %1775 = vmatprep.subr.mxu0 0.0
      %1776 = vmatpush2.msra.mxu0 0.0
      %1777 = vmatprep.subr.mxu0 0.0
      %1778 = vmatpush2.msra.mxu0 0.0
      %1779 = vmatprep.subr.mxu0 0.0
      %1780 = vmatpush2.msra.mxu0 0.0
      %1781 = vmatprep.subr.mxu0 0.0
      %1782 = vmatpush2.msra.mxu0 0.0
      %1783 = vmatprep.subr.mxu0 0.0
      %1784 = vmatpush2.msra.mxu0 0.0
      %1785 = vmatprep.subr.mxu0 0.0
      %1786 = vmatpush2.msra.mxu0 0.0
      %1787 = vmatprep.subr.mxu0 0.0
      %1788 = vmatpush2.msra.mxu0 0.0
      %1789 = vmatprep.subr.mxu0 0.0
      %1790 = vmatpush2.msra.mxu0 0.0
      %1791 = vmatprep.subr.mxu0 0.0
      %1792 = vmatpush2.msra.mxu0 0.0
      %1793 = vmatprep.subr.mxu0 0.0
      %1794 = vmatpush2.msra.mxu0 0.0
      %1795 = vmatprep.subr.mxu0 0.0
      %1796 = vmatpush2.msra.mxu0 0.0
      %1797 = vmatprep.subr.mxu0 0.0
      %1798 = vmatpush2.msra.mxu0 0.0
      %1799 = vmatprep.subr.mxu0 0.0
      %1800 = vmatpush2.msra.mxu0 0.0
      %1801 = vmatprep.subr.mxu0 0.0
      %1802 = vmatpush2.msra.mxu0 0.0
      %1803 = vmatprep.subr.mxu0 0.0
      %1804 = vmatpush2.msra.mxu0 0.0
      %1805 = vmatprep.mubr.f32.mxu0 0.0
      %1806 = vmatmul.mubr.f32.gmra.mxu0 %v1643
      %v1807 = vpop.f32.mrf.mxu0
      %v1808 = vadd.f32 0.0, %v1807
      %v1809 = vpop.f32.mrf.mxu0
      %1810 = vmatprep.mubr.f32.mxu0 0.0
      %1811 = vmatmul.mubr.f32.gmra.mxu0 %v1646
      %v1812 = vpop.f32.mrf.mxu0
      %v1813 = vadd.f32 0.0, %v1812
      %v1814 = vpop.f32.mrf.mxu0
      %1815 = vmatprep.mubr.f32.mxu0 0.0
      %1816 = vmatmul.mubr.f32.gmra.mxu0 %v1649
      %v1817 = vpop.f32.mrf.mxu0
      %v1818 = vadd.f32 0.0, %v1817
      %v1819 = vpop.f32.mrf.mxu0
      %1820 = vmatprep.mubr.f32.mxu0 0.0
      %1821 = vmatmul.mubr.f32.gmra.mxu0 %v1652
      %v1822 = vpop.f32.mrf.mxu0
      %v1823 = vadd.f32 0.0, %v1822
      %v1824 = vpop.f32.mrf.mxu0
      %1825 = vmatprep.mubr.f32.mxu0 0.0
      %1826 = vmatmul.mubr.f32.gmra.mxu0 %v1655
      %v1827 = vpop.f32.mrf.mxu0
      %v1828 = vadd.f32 0.0, %v1827
      %v1829 = vpop.f32.mrf.mxu0
      %1830 = vmatprep.mubr.f32.mxu0 0.0
      %1831 = vmatmul.mubr.f32.gmra.mxu0 %v1658
      %v1832 = vpop.f32.mrf.mxu0
      %v1833 = vadd.f32 0.0, %v1832
      %v1834 = vpop.f32.mrf.mxu0
      %1835 = vmatprep.mubr.f32.mxu0 0.0
      %1836 = vmatmul.mubr.f32.gmra.mxu0 %v1661
      %v1837 = vpop.f32.mrf.mxu0
      %v1838 = vadd.f32 0.0, %v1837
      %v1839 = vpop.f32.mrf.mxu0
      %1840 = vmatprep.mubr.f32.mxu0 0.0
      %1841 = vmatmul.mubr.f32.gmra.mxu0 %v1664
      %v1842 = vpop.f32.mrf.mxu0
      %v1843 = vadd.f32 0.0, %v1842
      %v1844 = vpop.f32.mrf.mxu0
      %1845 = vmatprep.mubr.f32.mxu0 0.0
      %1846 = vmatmul.mubr.f32.gmra.mxu0 %v1667
      %v1847 = vpop.f32.mrf.mxu0
      %v1848 = vadd.f32 0.0, %v1847
      %v1849 = vpop.f32.mrf.mxu0
      %1850 = vmatprep.mubr.f32.mxu0 0.0
      %1851 = vmatmul.mubr.f32.gmra.mxu0 %v1670
      %v1852 = vpop.f32.mrf.mxu0
      %v1853 = vadd.f32 0.0, %v1852
      %v1854 = vpop.f32.mrf.mxu0
      %1855 = vmatprep.mubr.f32.mxu0 0.0
      %1856 = vmatmul.mubr.f32.gmra.mxu0 %v1673
      %v1857 = vpop.f32.mrf.mxu0
      %v1858 = vadd.f32 0.0, %v1857
      %v1859 = vpop.f32.mrf.mxu0
      %1860 = vmatprep.mubr.f32.mxu0 0.0
      %1861 = vmatmul.mubr.f32.gmra.mxu0 %v1676
      %v1862 = vpop.f32.mrf.mxu0
      %v1863 = vadd.f32 0.0, %v1862
      %v1864 = vpop.f32.mrf.mxu0
      %1865 = vmatprep.mubr.f32.mxu0 0.0
      %1866 = vmatmul.mubr.f32.gmra.mxu0 %v1679
      %v1867 = vpop.f32.mrf.mxu0
      %v1868 = vadd.f32 0.0, %v1867
      %v1869 = vpop.f32.mrf.mxu0
      %1870 = vmatprep.mubr.f32.mxu0 0.0
      %1871 = vmatmul.mubr.f32.gmra.mxu0 %v1682
      %v1872 = vpop.f32.mrf.mxu0
      %v1873 = vadd.f32 0.0, %v1872
      %v1874 = vpop.f32.mrf.mxu0
      %1875 = vmatprep.mubr.f32.mxu0 0.0
      %1876 = vmatmul.mubr.f32.gmra.mxu0 %v1685
      %v1877 = vpop.f32.mrf.mxu0
      %v1878 = vadd.f32 0.0, %v1877
      %v1879 = vpop.f32.mrf.mxu0
      %1880 = vmatprep.mubr.f32.mxu0 0.0
      %1881 = vmatmul.mubr.f32.gmra.mxu0 %v1688
      %v1882 = vpop.f32.mrf.mxu0
      %v1883 = vadd.f32 0.0, %v1882
      %v1884 = vpop.f32.mrf.mxu0
      %1885 = vmatprep.mubr.f32.mxu0 0.0
      %1886 = vmatmul.mubr.f32.gmra.mxu0 %v1691
      %v1887 = vpop.f32.mrf.mxu0
      %v1888 = vadd.f32 0.0, %v1887
      %v1889 = vpop.f32.mrf.mxu0
      %1890 = vmatprep.mubr.f32.mxu0 0.0
      %1891 = vmatmul.mubr.f32.gmra.mxu0 %v1694
      %v1892 = vpop.f32.mrf.mxu0
      %v1893 = vadd.f32 0.0, %v1892
      %v1894 = vpop.f32.mrf.mxu0
      %1895 = vmatprep.mubr.f32.mxu0 0.0
      %1896 = vmatmul.mubr.f32.gmra.mxu0 %v1697
      %v1897 = vpop.f32.mrf.mxu0
      %v1898 = vadd.f32 0.0, %v1897
      %v1899 = vpop.f32.mrf.mxu0
      %1900 = vmatprep.mubr.f32.mxu0 0.0
      %1901 = vmatmul.mubr.f32.gmra.mxu0 %v1700
      %v1902 = vpop.f32.mrf.mxu0
      %v1903 = vadd.f32 0.0, %v1902
      %v1904 = vpop.f32.mrf.mxu0
      %1905 = vmatprep.mubr.f32.mxu0 0.0
      %1906 = vmatmul.mubr.f32.gmra.mxu0 %v1703
      %v1907 = vpop.f32.mrf.mxu0
      %v1908 = vadd.f32 0.0, %v1907
      %v1909 = vpop.f32.mrf.mxu0
      %1910 = vmatprep.mubr.f32.mxu0 0.0
      %1911 = vmatmul.mubr.f32.gmra.mxu0 %v1706
      %v1912 = vpop.f32.mrf.mxu0
      %v1913 = vadd.f32 0.0, %v1912
      %v1914 = vpop.f32.mrf.mxu0
      %1915 = vmatprep.mubr.f32.mxu0 0.0
      %1916 = vmatmul.mubr.f32.gmra.mxu0 %v1709
      %v1917 = vpop.f32.mrf.mxu0
      %v1918 = vadd.f32 0.0, %v1917
      %v1919 = vpop.f32.mrf.mxu0
      %1920 = vmatprep.mubr.f32.mxu0 0.0
      %1921 = vmatmul.mubr.f32.gmra.mxu0 %v1712
      %v1922 = vpop.f32.mrf.mxu0
      %v1923 = vadd.f32 0.0, %v1922
      %v1924 = vpop.f32.mrf.mxu0
      %1925 = vmatprep.mubr.f32.mxu0 0.0
      %1926 = vmatmul.mubr.f32.gmra.mxu0 %v1715
      %v1927 = vpop.f32.mrf.mxu0
      %v1928 = vadd.f32 0.0, %v1927
      %v1929 = vpop.f32.mrf.mxu0
      %1930 = vmatprep.mubr.f32.mxu0 0.0
      %1931 = vmatmul.mubr.f32.gmra.mxu0 %v1718
      %v1932 = vpop.f32.mrf.mxu0
      %v1933 = vadd.f32 0.0, %v1932
      %v1934 = vpop.f32.mrf.mxu0
      %1935 = vmatprep.mubr.f32.mxu0 0.0
      %1936 = vmatmul.mubr.f32.gmra.mxu0 %v1721
      %v1937 = vpop.f32.mrf.mxu0
      %v1938 = vadd.f32 0.0, %v1937
      %v1939 = vpop.f32.mrf.mxu0
      %1940 = vmatprep.mubr.f32.mxu0 0.0
      %1941 = vmatmul.mubr.f32.gmra.mxu0 %v1724
      %v1942 = vpop.f32.mrf.mxu0
      %v1943 = vadd.f32 0.0, %v1942
      %v1944 = vpop.f32.mrf.mxu0
      %1945 = vmatprep.mubr.f32.mxu0 0.0
      %1946 = vmatmul.mubr.f32.gmra.mxu0 %v1727
      %v1947 = vpop.f32.mrf.mxu0
      %v1948 = vadd.f32 0.0, %v1947
      %v1949 = vpop.f32.mrf.mxu0
      %1950 = vmatprep.mubr.f32.mxu0 0.0
      %1951 = vmatmul.mubr.f32.gmra.mxu0 %v1730
      %v1952 = vpop.f32.mrf.mxu0
      %v1953 = vadd.f32 0.0, %v1952
      %v1954 = vpop.f32.mrf.mxu0
      %1955 = vmatprep.mubr.f32.mxu0 0.0
      %1956 = vmatmul.mubr.f32.gmra.mxu0 %v1733
      %v1957 = vpop.f32.mrf.mxu0
      %v1958 = vadd.f32 0.0, %v1957
      %v1959 = vpop.f32.mrf.mxu0
      %1960 = vmatprep.mubr.f32.mxu0 0.0
      %1961 = vmatmul.mubr.f32.gmra.mxu0 %v1736
      %v1962 = vpop.f32.mrf.mxu0
      %v1963 = vadd.f32 0.0, %v1962
      %v1964 = vpop.f32.mrf.mxu0
      %1965 = vdwg.mxu0
      %v1966 = vadd.f32 %v1378, %v1808
      %v1967 = vadd.f32 %v1383, %v1813
      %v1968 = vadd.f32 %v1388, %v1818
      %v1969 = vadd.f32 %v1393, %v1823
      %v1970 = vadd.f32 %v1398, %v1828
      %v1971 = vadd.f32 %v1403, %v1833
      %v1972 = vadd.f32 %v1408, %v1838
      %v1973 = vadd.f32 %v1413, %v1843
      %v1974 = vadd.f32 %v1418, %v1848
      %v1975 = vadd.f32 %v1423, %v1853
      %v1976 = vadd.f32 %v1428, %v1858
      %v1977 = vadd.f32 %v1433, %v1863
      %v1978 = vadd.f32 %v1438, %v1868
      %v1979 = vadd.f32 %v1443, %v1873
      %v1980 = vadd.f32 %v1448, %v1878
      %v1981 = vadd.f32 %v1453, %v1883
      %v1982 = vadd.f32 %v1458, %v1888
      %v1983 = vadd.f32 %v1463, %v1893
      %v1984 = vadd.f32 %v1468, %v1898
      %v1985 = vadd.f32 %v1473, %v1903
      %v1986 = vadd.f32 %v1478, %v1908
      %v1987 = vadd.f32 %v1483, %v1913
      %v1988 = vadd.f32 %v1488, %v1918
      %v1989 = vadd.f32 %v1493, %v1923
      %v1990 = vadd.f32 %v1498, %v1928
      %v1991 = vadd.f32 %v1503, %v1933
      %v1992 = vadd.f32 %v1508, %v1938
      %v1993 = vadd.f32 %v1513, %v1943
      %v1994 = vadd.f32 %v1518, %v1948
      %v1995 = vadd.f32 %v1523, %v1953
      %v1996 = vadd.f32 %v1528, %v1958
      %v1997 = vadd.f32 %v1533, %v1963
      %v1998 = vld [vmem:[%s4] sm:$0x1]
      %v2000 = vlaneseq
      %v2001 = vshrl.u32 %v2000, 7
      %v2002 = vsub.s32 0, %v2001
      %v2003 = vrot.slane %v1998, %v2002
      %v2005 = vadd.f32 %v1966, %v2003
      %v2006 = vadd.f32 %v1967, %v2003
      %v2007 = vadd.f32 %v1968, %v2003
      %v2008 = vadd.f32 %v1969, %v2003
      %v2009 = vadd.f32 %v1970, %v2003
      %v2010 = vadd.f32 %v1971, %v2003
      %v2011 = vadd.f32 %v1972, %v2003
      %v2012 = vadd.f32 %v1973, %v2003
      %v2013 = vadd.f32 %v1974, %v2003
      %v2014 = vadd.f32 %v1975, %v2003
      %v2015 = vadd.f32 %v1976, %v2003
      %v2016 = vadd.f32 %v1977, %v2003
      %v2017 = vadd.f32 %v1978, %v2003
      %v2018 = vadd.f32 %v1979, %v2003
      %v2019 = vadd.f32 %v1980, %v2003
      %v2020 = vadd.f32 %v1981, %v2003
      %v2021 = vadd.f32 %v1982, %v2003
      %v2022 = vadd.f32 %v1983, %v2003
      %v2023 = vadd.f32 %v1984, %v2003
      %v2024 = vadd.f32 %v1985, %v2003
      %v2025 = vadd.f32 %v1986, %v2003
      %v2026 = vadd.f32 %v1987, %v2003
      %v2027 = vadd.f32 %v1988, %v2003
      %v2028 = vadd.f32 %v1989, %v2003
      %v2029 = vadd.f32 %v1990, %v2003
      %v2030 = vadd.f32 %v1991, %v2003
      %v2031 = vadd.f32 %v1992, %v2003
      %v2032 = vadd.f32 %v1993, %v2003
      %v2033 = vadd.f32 %v1994, %v2003
      %v2034 = vadd.f32 %v1995, %v2003
      %v2035 = vadd.f32 %v1996, %v2003
      %v2036 = vadd.f32 %v1997, %v2003
      %vm2037 = vcmask 97280
      %v2038 = vsel %vm2037, %v2005, 0.0
      %v2039 = vsel %vm2037, %v2006, 0.0
      %v2040 = vadd.f32 %v2038, %v2039
      %v2041 = vsel %vm2037, %v2007, 0.0
      %v2042 = vadd.f32 %v2040, %v2041
      %v2043 = vsel %vm2037, %v2008, 0.0
      %v2044 = vadd.f32 %v2042, %v2043
      %v2045 = vsel %vm2037, %v2009, 0.0
      %v2046 = vadd.f32 %v2044, %v2045
      %v2047 = vsel %vm2037, %v2010, 0.0
      %v2048 = vadd.f32 %v2046, %v2047
      %v2049 = vsel %vm2037, %v2011, 0.0
      %v2050 = vadd.f32 %v2048, %v2049
      %v2051 = vsel %vm2037, %v2012, 0.0
      %v2052 = vadd.f32 %v2050, %v2051
      %v2053 = vsel %vm2037, %v2013, 0.0
      %v2054 = vadd.f32 %v2052, %v2053
      %v2055 = vsel %vm2037, %v2014, 0.0
      %v2056 = vadd.f32 %v2054, %v2055
      %v2057 = vsel %vm2037, %v2015, 0.0
      %v2058 = vadd.f32 %v2056, %v2057
      %v2059 = vsel %vm2037, %v2016, 0.0
      %v2060 = vadd.f32 %v2058, %v2059
      %v2061 = vsel %vm2037, %v2017, 0.0
      %v2062 = vadd.f32 %v2060, %v2061
      %v2063 = vsel %vm2037, %v2018, 0.0
      %v2064 = vadd.f32 %v2062, %v2063
      %v2065 = vsel %vm2037, %v2019, 0.0
      %v2066 = vadd.f32 %v2064, %v2065
      %v2067 = vsel %vm2037, %v2020, 0.0
      %v2068 = vadd.f32 %v2066, %v2067
      %v2069 = vsel %vm2037, %v2021, 0.0
      %v2070 = vadd.f32 %v2068, %v2069
      %v2071 = vsel %vm2037, %v2022, 0.0
      %v2072 = vadd.f32 %v2070, %v2071
      %v2073 = vsel %vm2037, %v2023, 0.0
      %v2074 = vadd.f32 %v2072, %v2073
      %v2075 = vsel %vm2037, %v2024, 0.0
      %v2076 = vadd.f32 %v2074, %v2075
      %v2077 = vsel %vm2037, %v2025, 0.0
      %v2078 = vadd.f32 %v2076, %v2077
      %v2079 = vsel %vm2037, %v2026, 0.0
      %v2080 = vadd.f32 %v2078, %v2079
      %v2081 = vsel %vm2037, %v2027, 0.0
      %v2082 = vadd.f32 %v2080, %v2081
      %v2083 = vsel %vm2037, %v2028, 0.0
      %v2084 = vadd.f32 %v2082, %v2083
      %v2085 = vsel %vm2037, %v2029, 0.0
      %v2086 = vadd.f32 %v2084, %v2085
      %v2087 = vsel %vm2037, %v2030, 0.0
      %v2088 = vadd.f32 %v2086, %v2087
      %v2089 = vsel %vm2037, %v2031, 0.0
      %v2090 = vadd.f32 %v2088, %v2089
      %v2091 = vsel %vm2037, %v2032, 0.0
      %v2092 = vadd.f32 %v2090, %v2091
      %v2093 = vsel %vm2037, %v2033, 0.0
      %v2094 = vadd.f32 %v2092, %v2093
      %v2095 = vsel %vm2037, %v2034, 0.0
      %v2096 = vadd.f32 %v2094, %v2095
      %v2097 = vsel %vm2037, %v2035, 0.0
      %v2098 = vadd.f32 %v2096, %v2097
      %v2099 = vsel %vm2037, %v2036, 0.0
      %v2100 = vadd.f32 %v2098, %v2099
      %v2101 = vrot.slane %v2100, 4
      %v2102 = vadd.f32 %v2100, %v2101
      %v2103 = vrot.slane %v2102, 2
      %v2104 = vadd.f32 %v2102, %v2103
      %v2105 = vrot.slane %v2104, 1
      %v2106 = vadd.f32 %v2104, %v2105
      %v2107 = vmul.f32 %v2005, %v2005
      %v2108 = vmul.f32 %v2006, %v2006
      %v2109 = vmul.f32 %v2007, %v2007
      %v2110 = vmul.f32 %v2008, %v2008
      %v2111 = vmul.f32 %v2009, %v2009
      %v2112 = vmul.f32 %v2010, %v2010
      %v2113 = vmul.f32 %v2011, %v2011
      %v2114 = vmul.f32 %v2012, %v2012
      %v2115 = vmul.f32 %v2013, %v2013
      %v2116 = vmul.f32 %v2014, %v2014
      %v2117 = vmul.f32 %v2015, %v2015
      %v2118 = vmul.f32 %v2016, %v2016
      %v2119 = vmul.f32 %v2017, %v2017
      %v2120 = vmul.f32 %v2018, %v2018
      %v2121 = vmul.f32 %v2019, %v2019
      %v2122 = vmul.f32 %v2020, %v2020
      %v2123 = vmul.f32 %v2021, %v2021
      %v2124 = vmul.f32 %v2022, %v2022
      %v2125 = vmul.f32 %v2023, %v2023
      %v2126 = vmul.f32 %v2024, %v2024
      %v2127 = vmul.f32 %v2025, %v2025
      %v2128 = vmul.f32 %v2026, %v2026
      %v2129 = vmul.f32 %v2027, %v2027
      %v2130 = vmul.f32 %v2028, %v2028
      %v2131 = vmul.f32 %v2029, %v2029
      %v2132 = vmul.f32 %v2030, %v2030
      %v2133 = vmul.f32 %v2031, %v2031
      %v2134 = vmul.f32 %v2032, %v2032
      %v2135 = vmul.f32 %v2033, %v2033
      %v2136 = vmul.f32 %v2034, %v2034
      %v2137 = vmul.f32 %v2035, %v2035
      %v2138 = vmul.f32 %v2036, %v2036
      %v2139 = vsel %vm2037, %v2107, 0.0
      %v2140 = vsel %vm2037, %v2108, 0.0
      %v2141 = vadd.f32 %v2139, %v2140
      %v2142 = vsel %vm2037, %v2109, 0.0
      %v2143 = vadd.f32 %v2141, %v2142
      %v2144 = vsel %vm2037, %v2110, 0.0
      %v2145 = vadd.f32 %v2143, %v2144
      %v2146 = vsel %vm2037, %v2111, 0.0
      %v2147 = vadd.f32 %v2145, %v2146
      %v2148 = vsel %vm2037, %v2112, 0.0
      %v2149 = vadd.f32 %v2147, %v2148
      %v2150 = vsel %vm2037, %v2113, 0.0
      %v2151 = vadd.f32 %v2149, %v2150
      %v2152 = vsel %vm2037, %v2114, 0.0
      %v2153 = vadd.f32 %v2151, %v2152
      %v2154 = vsel %vm2037, %v2115, 0.0
      %v2155 = vadd.f32 %v2153, %v2154
      %v2156 = vsel %vm2037, %v2116, 0.0
      %v2157 = vadd.f32 %v2155, %v2156
      %v2158 = vsel %vm2037, %v2117, 0.0
      %v2159 = vadd.f32 %v2157, %v2158
      %v2160 = vsel %vm2037, %v2118, 0.0
      %v2161 = vadd.f32 %v2159, %v2160
      %v2162 = vsel %vm2037, %v2119, 0.0
      %v2163 = vadd.f32 %v2161, %v2162
      %v2164 = vsel %vm2037, %v2120, 0.0
      %v2165 = vadd.f32 %v2163, %v2164
      %v2166 = vsel %vm2037, %v2121, 0.0
      %v2167 = vadd.f32 %v2165, %v2166
      %v2168 = vsel %vm2037, %v2122, 0.0
      %v2169 = vadd.f32 %v2167, %v2168
      %v2170 = vsel %vm2037, %v2123, 0.0
      %v2171 = vadd.f32 %v2169, %v2170
      %v2172 = vsel %vm2037, %v2124, 0.0
      %v2173 = vadd.f32 %v2171, %v2172
      %v2174 = vsel %vm2037, %v2125, 0.0
      %v2175 = vadd.f32 %v2173, %v2174
      %v2176 = vsel %vm2037, %v2126, 0.0
      %v2177 = vadd.f32 %v2175, %v2176
      %v2178 = vsel %vm2037, %v2127, 0.0
      %v2179 = vadd.f32 %v2177, %v2178
      %v2180 = vsel %vm2037, %v2128, 0.0
      %v2181 = vadd.f32 %v2179, %v2180
      %v2182 = vsel %vm2037, %v2129, 0.0
      %v2183 = vadd.f32 %v2181, %v2182
      %v2184 = vsel %vm2037, %v2130, 0.0
      %v2185 = vadd.f32 %v2183, %v2184
      %v2186 = vsel %vm2037, %v2131, 0.0
      %v2187 = vadd.f32 %v2185, %v2186
      %v2188 = vsel %vm2037, %v2132, 0.0
      %v2189 = vadd.f32 %v2187, %v2188
      %v2190 = vsel %vm2037, %v2133, 0.0
      %v2191 = vadd.f32 %v2189, %v2190
      %v2192 = vsel %vm2037, %v2134, 0.0
      %v2193 = vadd.f32 %v2191, %v2192
      %v2194 = vsel %vm2037, %v2135, 0.0
      %v2195 = vadd.f32 %v2193, %v2194
      %v2196 = vsel %vm2037, %v2136, 0.0
      %v2197 = vadd.f32 %v2195, %v2196
      %v2198 = vsel %vm2037, %v2137, 0.0
      %v2199 = vadd.f32 %v2197, %v2198
      %v2200 = vsel %vm2037, %v2138, 0.0
      %v2201 = vadd.f32 %v2199, %v2200
      %v2202 = vrot.slane %v2201, 4
      %v2203 = vadd.f32 %v2201, %v2202
      %v2204 = vrot.slane %v2203, 2
      %v2205 = vadd.f32 %v2203, %v2204
      %v2206 = vrot.slane %v2205, 1
      %v2207 = vadd.f32 %v2205, %v2206
      %v2208 = vsel %vm983, %v2106, %v2207
      %vm2209 = vcmask 91136
      %2210 = vst.msk [vmem:[%s438] sm:$0x3] %vm2209, %v2208
      %2211 = vst.msk [vmem:[%s430] sm:$0xff] %vm2037, %v2005
      %2212 = vst.msk [vmem:[%s430 + $0x8] sm:$0xff] %vm2037, %v2006
      %2213 = vst.msk [vmem:[%s430 + $0x10] sm:$0xff] %vm2037, %v2007
      %2214 = vst.msk [vmem:[%s430 + $0x18] sm:$0xff] %vm2037, %v2008
      %2215 = vst.msk [vmem:[%s430 + $0x20] sm:$0xff] %vm2037, %v2009
      %2216 = vst.msk [vmem:[%s430 + $0x28] sm:$0xff] %vm2037, %v2010
      %2217 = vst.msk [vmem:[%s430 + $0x30] sm:$0xff] %vm2037, %v2011
      %2218 = vst.msk [vmem:[%s430 + $0x38] sm:$0xff] %vm2037, %v2012
      %2219 = vst.msk [vmem:[%s430 + $0x40] sm:$0xff] %vm2037, %v2013
      %2220 = vst.msk [vmem:[%s430 + $0x48] sm:$0xff] %vm2037, %v2014
      %2221 = vst.msk [vmem:[%s430 + $0x50] sm:$0xff] %vm2037, %v2015
      %2222 = vst.msk [vmem:[%s430 + $0x58] sm:$0xff] %vm2037, %v2016
      %2223 = vst.msk [vmem:[%s430 + $0x60] sm:$0xff] %vm2037, %v2017
      %2224 = vst.msk [vmem:[%s430 + $0x68] sm:$0xff] %vm2037, %v2018
      %2225 = vst.msk [vmem:[%s430 + $0x70] sm:$0xff] %vm2037, %v2019
      %2226 = vst.msk [vmem:[%s430 + $0x78] sm:$0xff] %vm2037, %v2020
      %2227 = vst.msk [vmem:[%s430 + $0x80] sm:$0xff] %vm2037, %v2021
      %2228 = vst.msk [vmem:[%s430 + $0x88] sm:$0xff] %vm2037, %v2022
      %2229 = vst.msk [vmem:[%s430 + $0x90] sm:$0xff] %vm2037, %v2023
      %2230 = vst.msk [vmem:[%s430 + $0x98] sm:$0xff] %vm2037, %v2024
      %2231 = vst.msk [vmem:[%s430 + $0xa0] sm:$0xff] %vm2037, %v2025
      %2232 = vst.msk [vmem:[%s430 + $0xa8] sm:$0xff] %vm2037, %v2026
      %2233 = vst.msk [vmem:[%s430 + $0xb0] sm:$0xff] %vm2037, %v2027
      %2234 = vst.msk [vmem:[%s430 + $0xb8] sm:$0xff] %vm2037, %v2028
      %2235 = vst.msk [vmem:[%s430 + $0xc0] sm:$0xff] %vm2037, %v2029
      %2236 = vst.msk [vmem:[%s430 + $0xc8] sm:$0xff] %vm2037, %v2030
      %2237 = vst.msk [vmem:[%s430 + $0xd0] sm:$0xff] %vm2037, %v2031
      %2238 = vst.msk [vmem:[%s430 + $0xd8] sm:$0xff] %vm2037, %v2032
      %2239 = vst.msk [vmem:[%s430 + $0xe0] sm:$0xff] %vm2037, %v2033
      %2240 = vst.msk [vmem:[%s430 + $0xe8] sm:$0xff] %vm2037, %v2034
      %2241 = vst.msk [vmem:[%s430 + $0xf0] sm:$0xff] %vm2037, %v2035
      %2242 = vst.msk [vmem:[%s430 + $0xf8] sm:$0xff] %vm2037, %v2036
      %s2243 = smul.u32 16, %s23
      %p2244 = scmp.lt.s32.totalorder %s22, 1
      %s2245 = scalar_select %p2244, %s22, 1
      %p2246 = scmp.lt.s32.totalorder %s2243, 15
      %s2247 = scalar_select %p2246, %s2243, 15
      %s2248 = smul.addr %s2247, 2
      %s2249 = smul.addr %s2245, 32
      %s2250 = sadd.s32 %s2248, %s2249
      %s2251 = smul.addr %s2250, 8
      %s2252 = scalar_lea.vmem %s5, %s2251
      %p2253 = scmp.lt.s32.totalorder %s22, 1
      %s2254 = scalar_select %p2253, %s22, 1
      %p2255 = scmp.lt.s32.totalorder %s23, 0
      %s2256 = scalar_select %p2255, %s23, 0
      %s2257 = sadd.s32 %s2256, %s2254
      %s2258 = smul.addr %s2257, 2
      %s2259 = scalar_lea.vmem %s6, %s2258
      // Predicated region
      $region41: #{classify_forward.6} parent=39 // pred_check
        %p2260 = pneg %p192
      $region42: #{classify_forward.6} parent=39 // pred_check_branch
        %2262 = sbr.rel (%p2260) target = $region44
      $region43: #{classify_forward.6} parent=39 // pred_region
        %s2263 = smul.u32 16, %s23
      $region44: #{classify_forward.6} parent=39 // pred_fallthru
        _
      // Predicated region
      $region45: #{classify_forward.6} parent=39 // pred_check
        %p2264 = pneg %p220
      $region46: #{classify_forward.6} parent=39 // pred_check_branch
        %2266 = sbr.rel (%p2264) target = $region48
      $region47: #{classify_forward.6} parent=39 // pred_region
        _
      $region48: #{classify_forward.6} parent=39 // pred_fallthru
        _
    $region40: #{classify_forward.6} parent=5 // pred_fallthru
      _
    %p2267 = scmp.le.s32.totalorder 2, %s13
    // Predicated region
    $region49: #{classify_forward.6} parent=5 // pred_check
      %p2268 = pneg %p2267
    $region50: #{classify_forward.6} parent=5 // pred_check_branch
      %2270 = sbr.rel (%p2268) target = $region52
    $region51: #{classify_forward.6} parent=5 // pred_region
      %s2271 = ssub.s32 %s13, 2
      // Predicated region
      $region53: #{classify_forward.6} parent=51 // pred_check
        %p2272 = pneg %p198
      $region54: #{classify_forward.6} parent=51 // pred_check_branch
        %2274 = sbr.rel (%p2272) target = $region56
      $region55: #{classify_forward.6} parent=51 // pred_region
        %s2275 = smul.u32 16, %s25
        %p2276 = scmp.lt.s32.totalorder %s24, 1
        %s2277 = scalar_select %p2276, %s24, 1
        %p2278 = scmp.lt.s32.totalorder %s2275, 15
        %s2279 = scalar_select %p2278, %s2275, 15
        %s2280 = smul.addr %s2279, 2
        %s2281 = smul.addr %s2277, 32
        %s2282 = sadd.s32 %s2280, %s2281
        %s2283 = smul.addr %s2282, 8
        %s2284 = scalar_lea.vmem %s5, %s2283
      $region56: #{classify_forward.6} parent=51 // pred_fallthru
        _
      // Predicated region
      $region57: #{classify_forward.6} parent=51 // pred_check
        %p2285 = pneg %p226
      $region58: #{classify_forward.6} parent=51 // pred_check_branch
        %2287 = sbr.rel (%p2285) target = $region60
      $region59: #{classify_forward.6} parent=51 // pred_region
        %p2288 = scmp.lt.s32.totalorder %s24, 1
        %s2289 = scalar_select %p2288, %s24, 1
        %p2290 = scmp.lt.s32.totalorder %s25, 0
        %s2291 = scalar_select %p2290, %s25, 0
        %s2292 = sadd.s32 %s2291, %s2289
        %s2293 = smul.addr %s2292, 2
        %s2294 = scalar_lea.vmem %s6, %s2293
      $region60: #{classify_forward.6} parent=51 // pred_fallthru
        _
    $region52: #{classify_forward.6} parent=5 // pred_fallthru
      _
  $region6: #{classify_forward.6} parent=0 // loop_footer
    %s17 = sadd.s32 1, %s13
  $region7: #{classify_forward.6} parent=0 // loop_footer_branch
    %12 = sbr.rel target = $region3
  $region8: #{classify_forward.6} parent=0 // loop_exit
    _

// kernel: classify_forward.9
$region0: #{classify_forward.9}
  #allocation0 [shape = 'u32[]', space=smem, size = 0x4, offset = 0x4, fixed_abs, tag = 'smem constant byte address 0x4 - core index']
  #allocation1 [shape = 'u32[144,128]{1,0:T(1,128)}', space=vmem, size = 0x12000, scoped, tag = 'internal scratch']
  %s0 = inlined_call_operand.vmem [shape: f32[2,8,8,20], index: 0, kind: input, shape index: {}, may-alias: {0,1,2}]
  %s1 = inlined_call_operand.vmem [shape: f32[2,8,8,20], index: 1, kind: input, shape index: {}, may-alias: {0,1,2}]
  %s2 = inlined_call_operand.vmem [shape: f32[2,8,8,20], index: 2, kind: input, shape index: {}, may-alias: {0,1,2}]
  %s3 = inlined_call_operand.vmem [shape: f32[3,60,32], index: 3, kind: input, shape index: {}]
  %s4 = inlined_call_operand.vmem [shape: f32[1,32], index: 4, kind: input, shape index: {}]
  %s5 = inlined_call_operand.vmem [shape: f32[2,8,8,32], index: 5, kind: output, shape index: {0}]
  %s6 = inlined_call_operand.vmem [shape: f32[2,1,2,32], index: 6, kind: output, shape index: {1}]
  %7 = xla_tuple %s5, %s6
  %s8 = sld [smem:[#allocation0]]
  $region61: #{classify_forward.9} parent=0
    _
  %s10 = ssub.s32 1, %s8
  %s11 = scalar_select 0, %s10, %s8
  loop: start=0, step=1, limit=4
  $region2: #{classify_forward.9} parent=0 // loop_pre_header
    _
  $region3: #{classify_forward.9} parent=0 // loop_header
    %s13 = sphi 0, %s17
    %p14 = scmp.ge.s32.totalorder %s13, 4
    %s20 = sphi 0, %s32
    %s21 = sphi 0, %s28
    %s22 = sphi 0, %s20
    %s23 = sphi 0, %s21
    %s24 = sphi 0, %s22
    %s25 = sphi 0, %s23
    %s45 = sphi 0, %s47
    %s48 = sphi 0, %s45
    %s49 = sphi 0, %s48
    %s65 = sphi 0, %s49
    %s73 = sphi 0, %s75
    %s76 = sphi 0, %s73
    %s77 = sphi 0, %s76
    %s93 = sphi 0, %s77
    %s109 = sphi 0, %s111
    %s112 = sphi 0, %s109
    %s113 = sphi 0, %s112
    %s129 = sphi 0, %s113
    %s133 = sphi 0, %s133
    %s135 = sphi 0, %s133
    %s136 = sphi 0, %s135
    %s150 = sphi 0, %s136
    %s154 = sphi 0, %s154
    %s156 = sphi 0, %s154
    %s157 = sphi 0, %s156
    %s171 = sphi 0, %s157
    %s179 = sphi 0, %s181
    %s182 = sphi 0, %s179
    %s183 = sphi 0, %s182
    %s199 = sphi 0, %s183
    %s207 = sphi 0, %s209
    %s210 = sphi 0, %s207
    %s211 = sphi 0, %s210
    %s227 = sphi 0, %s211
  $region4: #{classify_forward.9} parent=0 // loop_header_branch
    %16 = sbr.rel (%p14) target = $region8
  $region5: #{classify_forward.9} parent=0 // loop_body
    %s18 = ssub.s32 %s13, 1
    %s19 = ssub.s32 %s13, 2
    %s26 = sadd.s32 1, %s21
    %p27 = scmp.ge.s32.totalorder %s26, 1
    %s28 = scalar_select %p27, 0, %s26
    %s29 = sadd.s32 1, %s20
    %s30 = scalar_select %p27, %s29, %s20
    %p31 = scmp.ge.s32.totalorder %s30, 2
    %s32 = scalar_select %p31, 0, %s30
    %s33 = smul.u32 %s21, 8
    %s34 = ssub.s32 %s33, 1
    %p35 = scmp.gt.s32.totalorder %s34, 0
    %s36 = scalar_select %p35, %s34, 0
    %s37 = smul.u32 %s28, 8
    %s38 = ssub.s32 %s37, 1
    %p39 = scmp.gt.s32.totalorder %s38, 0
    %s40 = scalar_select %p39, %s38, 0
    %s41 = ssub.s32 %s20, %s32
    %s42 = ssub.s32 %s36, %s40
    %s43 = sor.u32 %s41, %s42
    %p44 = scmp.eq.s32.totalorder %s43, 0
    %s46 = sadd.s32 %s45, 1
    %s47 = scalar_select %p44, %s45, %s46
    %p50 = pneg %p44
    %p51 = scmp.eq.s32.totalorder %s13, 1
    %p52 = por %p50, %p51
    %p53 = scmp.ne.s32.totalorder %s45, %s48
    %p54 = scmp.eq.s32.totalorder %s13, 0
    %p55 = por %p53, %p54
    %p56 = scmp.ne.s32.totalorder %s45, %s48
    %p57 = scmp.eq.s32.totalorder %s18, 1
    %p58 = por %p56, %p57
    %p59 = scmp.ne.s32.totalorder %s48, %s49
    %p60 = scmp.eq.s32.totalorder %s18, 0
    %p61 = por %p59, %p60
    %p62 = scmp.ne.s32.totalorder %s48, %s49
    %p63 = scmp.eq.s32.totalorder %s19, 1
    %p64 = por %p62, %p63
    %p66 = scmp.ne.s32.totalorder %s49, %s65
    %p67 = scmp.eq.s32.totalorder %s19, 0
    %p68 = por %p66, %p67
    %s69 = ssub.s32 %s20, %s32
    %s70 = ssub.s32 %s21, %s28
    %s71 = sor.u32 %s69, %s70
    %p72 = scmp.eq.s32.totalorder %s71, 0
    %s74 = sadd.s32 %s73, 1
    %s75 = scalar_select %p72, %s73, %s74
    %p78 = pneg %p72
    %p79 = scmp.eq.s32.totalorder %s13, 1
    %p80 = por %p78, %p79
    %p81 = scmp.ne.s32.totalorder %s73, %s76
    %p82 = scmp.eq.s32.totalorder %s13, 0
    %p83 = por %p81, %p82
    %p84 = scmp.ne.s32.totalorder %s73, %s76
    %p85 = scmp.eq.s32.totalorder %s18, 1
    %p86 = por %p84, %p85
    %p87 = scmp.ne.s32.totalorder %s76, %s77
    %p88 = scmp.eq.s32.totalorder %s18, 0
    %p89 = por %p87, %p88
    %p90 = scmp.ne.s32.totalorder %s76, %s77
    %p91 = scmp.eq.s32.totalorder %s19, 1
    %p92 = por %p90, %p91
    %p94 = scmp.ne.s32.totalorder %s77, %s93
    %p95 = scmp.eq.s32.totalorder %s19, 0
    %p96 = por %p94, %p95
    %s97 = sadd.s32 %s21, 1
    %s98 = smul.u32 %s97, 8
    %p99 = scmp.lt.s32.totalorder %s98, 7
    %s100 = scalar_select %p99, %s98, 7
    %s101 = sadd.s32 %s28, 1
    %s102 = smul.u32 %s101, 8
    %p103 = scmp.lt.s32.totalorder %s102, 7
    %s104 = scalar_select %p103, %s102, 7
    %s105 = ssub.s32 %s20, %s32
    %s106 = ssub.s32 %s100, %s104
    %s107 = sor.u32 %s105, %s106
    %p108 = scmp.eq.s32.totalorder %s107, 0
    %s110 = sadd.s32 %s109, 1
    %s111 = scalar_select %p108, %s109, %s110
    %p114 = pneg %p108
    %p115 = scmp.eq.s32.totalorder %s13, 1
    %p116 = por %p114, %p115
    %p117 = scmp.ne.s32.totalorder %s109, %s112
    %p118 = scmp.eq.s32.totalorder %s13, 0
    %p119 = por %p117, %p118
    %p120 = scmp.ne.s32.totalorder %s109, %s112
    %p121 = scmp.eq.s32.totalorder %s18, 1
    %p122 = por %p120, %p121
    %p123 = scmp.ne.s32.totalorder %s112, %s113
    %p124 = scmp.eq.s32.totalorder %s18, 0
    %p125 = por %p123, %p124
    %p126 = scmp.ne.s32.totalorder %s112, %s113
    %p127 = scmp.eq.s32.totalorder %s19, 1
    %p128 = por %p126, %p127
    %p130 = scmp.ne.s32.totalorder %s113, %s129
    %p131 = scmp.eq.s32.totalorder %s19, 0
    %p132 = por %p130, %p131
    %s134 = sadd.s32 %s133, 1
    %p137 = scmp.eq.s32.totalorder %s13, 1
    %p138 = scmp.ne.s32.totalorder %s133, %s135
    %p139 = scmp.eq.s32.totalorder %s13, 0
    %p140 = por %p138, %p139
    %p141 = scmp.ne.s32.totalorder %s133, %s135
    %p142 = scmp.eq.s32.totalorder %s18, 1
    %p143 = por %p141, %p142
    %p144 = scmp.ne.s32.totalorder %s135, %s136
    %p145 = scmp.eq.s32.totalorder %s18, 0
    %p146 = por %p144, %p145
    %p147 = scmp.ne.s32.totalorder %s135, %s136
    %p148 = scmp.eq.s32.totalorder %s19, 1
    %p149 = por %p147, %p148
    %p151 = scmp.ne.s32.totalorder %s136, %s150
    %p152 = scmp.eq.s32.totalorder %s19, 0
    %p153 = por %p151, %p152
    %s155 = sadd.s32 %s154, 1
    %p158 = scmp.eq.s32.totalorder %s13, 1
    %p159 = scmp.ne.s32.totalorder %s154, %s156
    %p160 = scmp.eq.s32.totalorder %s13, 0
    %p161 = por %p159, %p160
    %p162 = scmp.ne.s32.totalorder %s154, %s156
    %p163 = scmp.eq.s32.totalorder %s18, 1
    %p164 = por %p162, %p163
    %p165 = scmp.ne.s32.totalorder %s156, %s157
    %p166 = scmp.eq.s32.totalorder %s18, 0
    %p167 = por %p165, %p166
    %p168 = scmp.ne.s32.totalorder %s156, %s157
    %p169 = scmp.eq.s32.totalorder %s19, 1
    %p170 = por %p168, %p169
    %p172 = scmp.ne.s32.totalorder %s157, %s171
    %p173 = scmp.eq.s32.totalorder %s19, 0
    %p174 = por %p172, %p173
    %s175 = ssub.s32 %s20, %s32
    %s176 = ssub.s32 %s21, %s28
    %s177 = sor.u32 %s175, %s176
    %p178 = scmp.eq.s32.totalorder %s177, 0
    %s180 = sadd.s32 %s179, 1
    %s181 = scalar_select %p178, %s179, %s180
    %p184 = pneg %p178
    %p185 = scmp.eq.s32.totalorder %s13, 1
    %p186 = por %p184, %p185
    %p187 = scmp.ne.s32.totalorder %s179, %s182
    %p188 = scmp.eq.s32.totalorder %s13, 0
    %p189 = por %p187, %p188
    %p190 = scmp.ne.s32.totalorder %s179, %s182
    %p191 = scmp.eq.s32.totalorder %s18, 1
    %p192 = por %p190, %p191
    %p193 = scmp.ne.s32.totalorder %s182, %s183
    %p194 = scmp.eq.s32.totalorder %s18, 0
    %p195 = por %p193, %p194
    %p196 = scmp.ne.s32.totalorder %s182, %s183
    %p197 = scmp.eq.s32.totalorder %s19, 1
    %p198 = por %p196, %p197
    %p200 = scmp.ne.s32.totalorder %s183, %s199
    %p201 = scmp.eq.s32.totalorder %s19, 0
    %p202 = por %p200, %p201
    %s203 = ssub.s32 %s20, %s32
    %s204 = ssub.s32 %s21, %s28
    %s205 = sor.u32 %s203, %s204
    %p206 = scmp.eq.s32.totalorder %s205, 0
    %s208 = sadd.s32 %s207, 1
    %s209 = scalar_select %p206, %s207, %s208
    %p212 = pneg %p206
    %p213 = scmp.eq.s32.totalorder %s13, 1
    %p214 = por %p212, %p213
    %p215 = scmp.ne.s32.totalorder %s207, %s210
    %p216 = scmp.eq.s32.totalorder %s13, 0
    %p217 = por %p215, %p216
    %p218 = scmp.ne.s32.totalorder %s207, %s210
    %p219 = scmp.eq.s32.totalorder %s18, 1
    %p220 = por %p218, %p219
    %p221 = scmp.ne.s32.totalorder %s210, %s211
    %p222 = scmp.eq.s32.totalorder %s18, 0
    %p223 = por %p221, %p222
    %p224 = scmp.ne.s32.totalorder %s210, %s211
    %p225 = scmp.eq.s32.totalorder %s19, 1
    %p226 = por %p224, %p225
    %p228 = scmp.ne.s32.totalorder %s211, %s227
    %p229 = scmp.eq.s32.totalorder %s19, 0
    %p230 = por %p228, %p229
    %p231 = scmp.le.s32.totalorder 1, %s13
    %p232 = scmp.lt.s32.totalorder %s13, 3
    %p233 = pnand %p231, %p232
    %p234 = pneg %p233
    // Predicated region
    $region9: #{classify_forward.9} parent=5 // pred_check
      _
    $region10: #{classify_forward.9} parent=5 // pred_check_branch
      %236 = sbr.rel (%p233) target = $region12
    $region11: #{classify_forward.9} parent=5 // pred_region
      %s237 = ssub.s32 %s13, 1
      // Predicated region
      $region13: #{classify_forward.9} parent=11 // pred_check
        %p238 = pneg %p146
      $region14: #{classify_forward.9} parent=11 // pred_check_branch
        %240 = sbr.rel (%p238) target = $region16
      $region15: #{classify_forward.9} parent=11 // pred_region
        _
      $region16: #{classify_forward.9} parent=11 // pred_fallthru
        _
      // Predicated region
      $region17: #{classify_forward.9} parent=11 // pred_check
        %p241 = pneg %p167
      $region18: #{classify_forward.9} parent=11 // pred_check_branch
        %243 = sbr.rel (%p241) target = $region20
      $region19: #{classify_forward.9} parent=11 // pred_region
        _
      $region20: #{classify_forward.9} parent=11 // pred_fallthru
        _
    $region12: #{classify_forward.9} parent=5 // pred_fallthru
      _
    %p244 = scmp.lt.s32.totalorder %s13, 2
    // Predicated region
    $region21: #{classify_forward.9} parent=5 // pred_check
      %p245 = pneg %p244
    $region22: #{classify_forward.9} parent=5 // pred_check_branch
      %247 = sbr.rel (%p245) target = $region24
    $region23: #{classify_forward.9} parent=5 // pred_region
      // Predicated region
      $region25: #{classify_forward.9} parent=23 // pred_check
        %p248 = pneg %p55
      $region26: #{classify_forward.9} parent=23 // pred_check_branch
        %250 = sbr.rel (%p248) target = $region28
      $region27: #{classify_forward.9} parent=23 // pred_region
        %s251 = smul.u32 %s21, 8
        %s252 = ssub.s32 %s251, 1
        %p253 = scmp.gt.s32.totalorder %s252, 0
        %s254 = scalar_select %p253, %s252, 0
        %p255 = scmp.lt.s32.totalorder %s20, 1
        %s256 = scalar_select %p255, %s20, 1
        %p257 = scmp.lt.s32.totalorder %s254, 7
        %s258 = scalar_select %p257, %s254, 7
        %s259 = smul.addr %s256, 8
        %s260 = sadd.s32 %s258, %s259
        %s261 = smul.addr %s260, 8
        %s262 = scalar_lea.vmem %s0, %s261
        %s263 = smul.u32 %s21, 8
        %s264 = ssub.s32 %s263, 1
        %p265 = scmp.gt.s32.totalorder %s264, 0
        %s266 = scalar_select %p265, %s264, 0
      $region28: #{classify_forward.9} parent=23 // pred_fallthru
        _
      // Predicated region
      $region29: #{classify_forward.9} parent=23 // pred_check
        %p267 = pneg %p83
      $region30: #{classify_forward.9} parent=23 // pred_check_branch
        %269 = sbr.rel (%p267) target = $region32
      $region31: #{classify_forward.9} parent=23 // pred_region
        %s270 = smul.u32 8, %s21
        %p271 = scmp.lt.s32.totalorder %s20, 1
        %s272 = scalar_select %p271, %s20, 1
        %p273 = scmp.lt.s32.totalorder %s270, 7
        %s274 = scalar_select %p273, %s270, 7
        %s275 = smul.addr %s272, 8
        %s276 = sadd.s32 %s274, %s275
        %s277 = smul.addr %s276, 8
        %s278 = scalar_lea.vmem %s1, %s277
        %s279 = smul.u32 8, %s21
      $region32: #{classify_forward.9} parent=23 // pred_fallthru
        _
      // Predicated region
      $region33: #{classify_forward.9} parent=23 // pred_check
        %p280 = pneg %p119
      $region34: #{classify_forward.9} parent=23 // pred_check_branch
        %282 = sbr.rel (%p280) target = $region36
      $region35: #{classify_forward.9} parent=23 // pred_region
        %s283 = sadd.s32 %s21, 1
        %s284 = smul.u32 %s283, 8
        %p285 = scmp.lt.s32.totalorder %s284, 7
        %s286 = scalar_select %p285, %s284, 7
        %p287 = scmp.lt.s32.totalorder %s20, 1
        %s288 = scalar_select %p287, %s20, 1
        %p289 = scmp.lt.s32.totalorder %s286, 7
        %s290 = scalar_select %p289, %s286, 7
        %s291 = smul.addr %s288, 8
        %s292 = sadd.s32 %s290, %s291
        %s293 = smul.addr %s292, 8
        %s294 = scalar_lea.vmem %s2, %s293
        %s295 = sadd.s32 %s21, 1
        %s296 = smul.u32 %s295, 8
        %p297 = scmp.lt.s32.totalorder %s296, 7
        %s298 = scalar_select %p297, %s296, 7
      $region36: #{classify_forward.9} parent=23 // pred_fallthru
        _
    $region24: #{classify_forward.9} parent=5 // pred_fallthru
      _
    %p299 = scmp.le.s32.totalorder 1, %s13
    %p300 = scmp.lt.s32.totalorder %s13, 3
    %p301 = pnand %p299, %p300
    %p302 = pneg %p301
    // Predicated region
    $region37: #{classify_forward.9} parent=5 // pred_check
      _
    $region38: #{classify_forward.9} parent=5 // pred_check_branch
      %304 = sbr.rel (%p301) target = $region40
    $region39: #{classify_forward.9} parent=5 // pred_region
      %s305 = ssub.s32 %s13, 1
      %s306 = smul.u32 %s23, 8
      %s307 = ssub.s32 %s306, 1
      %p308 = scmp.gt.s32.totalorder %s307, 0
      %s309 = scalar_select %p308, %s307, 0
      %p310 = scmp.lt.s32.totalorder %s22, 1
      %s311 = scalar_select %p310, %s22, 1
      %p312 = scmp.lt.s32.totalorder %s309, 7
      %s313 = scalar_select %p312, %s309, 7
      %s314 = smul.addr %s311, 8
      %s315 = sadd.s32 %s313, %s314
      %s316 = smul.addr %s315, 8
      %s317 = scalar_lea.vmem %s0, %s316
      %p318 = pneg %p61
      %p319 = pneg %p58
      %s320 = smul.u32 8, %s23
      %p321 = scmp.lt.s32.totalorder %s22, 1
      %s322 = scalar_select %p321, %s22, 1
      %p323 = scmp.lt.s32.totalorder %s320, 7
      %s324 = scalar_select %p323, %s320, 7
      %s325 = smul.addr %s322, 8
      %s326 = sadd.s32 %s324, %s325
      %s327 = smul.addr %s326, 8
      %s328 = scalar_lea.vmem %s1, %s327
      %p329 = pneg %p89
      %p330 = pneg %p86
      %s331 = sadd.s32 %s23, 1
      %s332 = smul.u32 %s331, 8
      %p333 = scmp.lt.s32.totalorder %s332, 7
      %s334 = scalar_select %p333, %s332, 7
      %p335 = scmp.lt.s32.totalorder %s22, 1
      %s336 = scalar_select %p335, %s22, 1
      %p337 = scmp.lt.s32.totalorder %s334, 7
      %s338 = scalar_select %p337, %s334, 7
      %s339 = smul.addr %s336, 8
      %s340 = sadd.s32 %s338, %s339
      %s341 = smul.addr %s340, 8
      %s342 = scalar_lea.vmem %s2, %s341
      %p343 = pneg %p125
      %p344 = pneg %p122
      %p345 = pneg %p146
      %p346 = pneg %p143
      %p347 = pneg %p167
      %p348 = pneg %p164
      %p349 = pneg %p195
      %p350 = pneg %p192
      %s351 = smul.u32 8, %s23
      %p352 = scmp.lt.s32.totalorder %s22, 1
      %s353 = scalar_select %p352, %s22, 1
      %p354 = scmp.lt.s32.totalorder %s351, 7
      %s355 = scalar_select %p354, %s351, 7
      %s356 = smul.addr %s353, 8
      %s357 = sadd.s32 %s355, %s356
      %s358 = smul.addr %s357, 8
      %s359 = scalar_lea.vmem %s5, %s358
      %p360 = pneg %p223
      %p361 = pneg %p220
      %p362 = scmp.lt.s32.totalorder %s22, 1
      %s363 = scalar_select %p362, %s22, 1
      %p364 = scmp.lt.s32.totalorder %s23, 0
      %s365 = scalar_select %p364, %s23, 0
      %s366 = sadd.s32 %s365, %s363
      %s367 = smul.addr %s366, 2
      %s368 = scalar_lea.vmem %s6, %s367
      %s369 = smul.u32 %s23, 8
      %s370 = ssub.s32 %s369, 1
      %p371 = scmp.gt.s32.totalorder %s370, 0
      %s372 = scalar_select %p371, %s370, 0
      %p373 = scmp.lt.s32.totalorder %s22, 1
      %s374 = scalar_select %p373, %s22, 1
      %p375 = scmp.lt.s32.totalorder %s372, 7
      %s376 = scalar_select %p375, %s372, 7
      %s377 = smul.addr %s374, 8
      %s378 = sadd.s32 %s376, %s377
      %s379 = smul.addr %s378, 8
      %s380 = scalar_lea.vmem %s0, %s379
      %s381 = smul.u32 %s23, 8
      %s382 = ssub.s32 %s381, 1
      %p383 = scmp.gt.s32.totalorder %s382, 0
      %s384 = scalar_select %p383, %s382, 0
      %s385 = smul.u32 8, %s23
      %p386 = scmp.lt.s32.totalorder %s22, 1
      %s387 = scalar_select %p386, %s22, 1
      %p388 = scmp.lt.s32.totalorder %s385, 7
      %s389 = scalar_select %p388, %s385, 7
      %s390 = smul.addr %s387, 8
      %s391 = sadd.s32 %s389, %s390
      %s392 = smul.addr %s391, 8
      %s393 = scalar_lea.vmem %s1, %s392
      %s394 = smul.u32 8, %s23
      %s395 = sadd.s32 %s23, 1
      %s396 = smul.u32 %s395, 8
      %p397 = scmp.lt.s32.totalorder %s396, 7
      %s398 = scalar_select %p397, %s396, 7
      %p399 = scmp.lt.s32.totalorder %s22, 1
      %s400 = scalar_select %p399, %s22, 1
      %p401 = scmp.lt.s32.totalorder %s398, 7
      %s402 = scalar_select %p401, %s398, 7
      %s403 = smul.addr %s400, 8
      %s404 = sadd.s32 %s402, %s403
      %s405 = smul.addr %s404, 8
      %s406 = scalar_lea.vmem %s2, %s405
      %s407 = sadd.s32 %s23, 1
      %s408 = smul.u32 %s407, 8
      %p409 = scmp.lt.s32.totalorder %s408, 7
      %s410 = scalar_select %p409, %s408, 7
      %s411 = smul.u32 8, %s23
      %p412 = scmp.lt.s32.totalorder %s22, 1
      %s413 = scalar_select %p412, %s22, 1
      %p414 = scmp.lt.s32.totalorder %s411, 7
      %s415 = scalar_select %p414, %s411, 7
      %s416 = smul.addr %s413, 8
      %s417 = sadd.s32 %s415, %s416
      %s418 = smul.addr %s417, 8
      %s419 = scalar_lea.vmem %s5, %s418
      %s420 = smul.u32 8, %s23
      %p421 = scmp.lt.s32.totalorder %s22, 1
      %s422 = scalar_select %p421, %s22, 1
      %p423 = scmp.lt.s32.totalorder %s23, 0
      %s424 = scalar_select %p423, %s23, 0
      %s425 = sadd.s32 %s424, %s422
      %s426 = smul.addr %s425, 2
      %s427 = scalar_lea.vmem %s6, %s426
      %p428 = scmp.eq.s32.totalorder %s23, 0
      %v429 = vld [vmem:[%s380] sm:$0xff]
      %s430 = scalar_select %p428, 1, 0
      %v431 = vstv %s430
      %vm432 = vcmp.eq.s32.totalorder %v431, 1
      %v433 = vsel %vm432, 0.0, %v429
      %v434 = vld [vmem:[%s406] sm:$0xff]
      %v435 = vsel %vm432, 0.0, %v434
      %v436 = vld [vmem:[%s393] sm:$0xff]
      %v437 = vld [vmem:[%s393 + $0x8] sm:$0xff]
      %v438 = vld [vmem:[%s393 + $0x10] sm:$0xff]
      %v439 = vld [vmem:[%s393 + $0x18] sm:$0xff]
      %v440 = vld [vmem:[%s393 + $0x20] sm:$0xff]
      %v441 = vld [vmem:[%s393 + $0x28] sm:$0xff]
      %v442 = vld [vmem:[%s393 + $0x30] sm:$0xff]
      %v443 = vld [vmem:[%s393 + $0x38] sm:$0xff]
      %452 = vrot.lane.b32.xlu0 %v436, 20
      %v453 = vpop.permute.xlu0 %452
      %454 = vrot.lane.b32.xlu0 %v437, 20
      %v455 = vpop.permute.xlu0 %454
      %456 = vrot.lane.b32.xlu0 %v438, 20
      %v457 = vpop.permute.xlu0 %456
      %458 = vrot.lane.b32.xlu0 %v439, 20
      %v459 = vpop.permute.xlu0 %458
      %460 = vrot.lane.b32.xlu0 %v440, 20
      %v461 = vpop.permute.xlu0 %460
      %462 = vrot.lane.b32.xlu0 %v441, 20
      %v463 = vpop.permute.xlu0 %462
      %464 = vrot.lane.b32.xlu0 %v442, 20
      %v465 = vpop.permute.xlu0 %464
      %466 = vrot.lane.b32.xlu0 %v443, 20
      %v467 = vpop.permute.xlu0 %466
      %477 = vrot.lane.b32.xlu0 %v437, 40
      %v478 = vpop.permute.xlu0 %477
      %479 = vrot.lane.b32.xlu0 %v438, 40
      %v480 = vpop.permute.xlu0 %479
      %481 = vrot.lane.b32.xlu0 %v439, 40
      %v482 = vpop.permute.xlu0 %481
      %483 = vrot.lane.b32.xlu0 %v440, 40
      %v484 = vpop.permute.xlu0 %483
      %485 = vrot.lane.b32.xlu0 %v441, 40
      %v486 = vpop.permute.xlu0 %485
      %487 = vrot.lane.b32.xlu0 %v442, 40
      %v488 = vpop.permute.xlu0 %487
      %489 = vrot.lane.b32.xlu0 %v443, 40
      %v490 = vpop.permute.xlu0 %489
      %491 = vrot.lane.b32.xlu0 %v435, 40
      %v492 = vpop.permute.xlu0 %491
      %vm501 = vcmask 162816
      %v502 = vsel %vm501, %v433, %v453
      %v503 = vsel %vm501, %v436, %v455
      %v504 = vsel %vm501, %v437, %v457
      %v505 = vsel %vm501, %v438, %v459
      %v506 = vsel %vm501, %v439, %v461
      %v507 = vsel %vm501, %v440, %v463
      %v508 = vsel %vm501, %v441, %v465
      %v509 = vsel %vm501, %v442, %v467
      %vm510 = vcmask 326656
      %v511 = vsel %vm510, %v502, %v478
      %v512 = vsel %vm510, %v503, %v480
      %v513 = vsel %vm510, %v504, %v482
      %v514 = vsel %vm510, %v505, %v484
      %v515 = vsel %vm510, %v506, %v486
      %v516 = vsel %vm510, %v507, %v488
      %v517 = vsel %vm510, %v508, %v490
      %v518 = vsel %vm510, %v509, %v492
      %v519 = vlaneseq
      %v520 = vshrl.u32 %v519, 7
      %s521 = scalar_lea.vmem %s3, 64
      %v522 = vld [vmem:[%s521] sm:$0xff]
      %v523 = vld [vmem:[%s521 + $0x8] sm:$0xff]
      %v524 = vld [vmem:[%s521 + $0x10] sm:$0xff]
      %v525 = vld [vmem:[%s521 + $0x18] sm:$0xff]
      %v526 = vld [vmem:[%s521 + $0x20] sm:$0xff]
      %v527 = vld [vmem:[%s521 + $0x28] sm:$0xff]
      %v528 = vld [vmem:[%s521 + $0x30] sm:$0xff]
      %v529 = vld [vmem:[%s521 + $0x38] sm:$0xf]
      %vm530 = vcmp.eq.s32.totalorder %v520, 0
      %v531 = vrot.slane %v511, 7
      %v532 = vrot.slane %v512, 7
      %v533 = vrot.slane %v513, 7
      %v534 = vrot.slane %v514, 7
      %v535 = vrot.slane %v515, 7
      %v536 = vrot.slane %v516, 7
      %v537 = vrot.slane %v517, 7
      %v538 = vrot.slane %v518, 7
      %vm539 = vcmp.lt.s32.totalorder %v520, 1
      %v540 = vsel %vm539, %v537, %v538
      %v541 = vsel %vm539, %v536, %v537
      %v542 = vsel %vm539, %v535, %v536
      %v543 = vsel %vm539, %v534, %v535
      %v544 = vsel %vm539, %v533, %v534
      %v545 = vsel %vm539, %v532, %v533
      %v546 = vsel %vm539, %v531, %v532
      %v547 = vsel %vm539, %v538, %v531
      %v548 = vsel %vm530, 1, 0
      %vm549 = vcmp.eq.s32.totalorder %v548, 1
      %v550 = vsel %vm549, 0.0, %v547
      %v551 = vsel %vm549, 0.0, %v546
      %v552 = vsel %vm549, 0.0, %v545
      %v553 = vsel %vm549, 0.0, %v544
      %v554 = vsel %vm549, 0.0, %v543
      %v555 = vsel %vm549, 0.0, %v542
      %v556 = vsel %vm549, 0.0, %v541
      %v557 = vsel %vm549, 0.0, %v540
      %v558 = vld [vmem:[%s3] sm:$0xff]
      %v559 = vld [vmem:[%s3 + $0x8] sm:$0xff]
      %v560 = vld [vmem:[%s3 + $0x10] sm:$0xff]
      %v561 = vld [vmem:[%s3 + $0x18] sm:$0xff]
      %v562 = vld [vmem:[%s3 + $0x20] sm:$0xff]
      %v563 = vld [vmem:[%s3 + $0x28] sm:$0xff]
      %v564 = vld [vmem:[%s3 + $0x30] sm:$0xff]
      %v565 = vld [vmem:[%s3 + $0x38] sm:$0xf]
      %vm566 = vcmask 490496
      %v568 = vsel %vm566, %v550, 0
      %v571 = vsel %vm566, %v551, 0
      %v574 = vsel %vm566, %v552, 0
      %v577 = vsel %vm566, %v553, 0
      %v580 = vsel %vm566, %v554, 0
      %v583 = vsel %vm566, %v555, 0
      %v586 = vsel %vm566, %v556, 0
      %v589 = vsel %vm566, %v557, 0
      %vm591 = vcmask 1043456
      %v593 = vsel %vm591, %v565, 0
      %595 = vmatprep.subr.mxu0 0.0
      %596 = vmatpush1.msra.mxu0 0.0
      %597 = vmatprep.subr.mxu0 0.0
      %598 = vmatpush1.msra.mxu0 0.0
      %599 = vmatprep.subr.mxu0 0.0
      %600 = vmatpush1.msra.mxu0 0.0
      %601 = vmatprep.subr.mxu0 0.0
      %602 = vmatpush1.msra.mxu0 0.0
      %603 = vmatprep.subr.mxu0 0.0
      %604 = vmatpush1.msra.mxu0 0.0
      %605 = vmatprep.subr.mxu0 0.0
      %606 = vmatpush1.msra.mxu0 0.0
      %607 = vmatprep.subr.mxu0 0.0
      %608 = vmatpush1.msra.mxu0 0.0
      %609 = vmatprep.subr.mxu0 0.0
      %610 = vmatpush1.msra.mxu0 0.0
      %611 = vmatprep.subr.mxu0 0.0
      %612 = vmatpush1.msra.mxu0 %v593
      %613 = vmatprep.subr.mxu0 0.0
      %614 = vmatpush1.msra.mxu0 %v564
      %615 = vmatprep.subr.mxu0 0.0
      %616 = vmatpush1.msra.mxu0 %v563
      %617 = vmatprep.subr.mxu0 0.0
      %618 = vmatpush1.msra.mxu0 %v562
      %619 = vmatprep.subr.mxu0 0.0
      %620 = vmatpush1.msra.mxu0 %v561
      %621 = vmatprep.subr.mxu0 0.0
      %622 = vmatpush1.msra.mxu0 %v560
      %623 = vmatprep.subr.mxu0 0.0
      %624 = vmatpush1.msra.mxu0 %v559
      %625 = vmatprep.subr.mxu0 0.0
      %626 = vmatpush1.msra.mxu0 %v558
      %627 = vmatprep.subr.mxu0 0.0
      %628 = vmatpush2.msra.mxu0 0.0
      %629 = vmatprep.subr.mxu0 0.0
      %630 = vmatpush2.msra.mxu0 0.0
      %631 = vmatprep.subr.mxu0 0.0
      %632 = vmatpush2.msra.mxu0 0.0
      %633 = vmatprep.subr.mxu0 0.0
      %634 = vmatpush2.msra.mxu0 0.0
      %635 = vmatprep.subr.mxu0 0.0
      %636 = vmatpush2.msra.mxu0 0.0
      %637 = vmatprep.subr.mxu0 0.0
      %638 = vmatpush2.msra.mxu0 0.0
      %639 = vmatprep.subr.mxu0 0.0
      %640 = vmatpush2.msra.mxu0 0.0
      %641 = vmatprep.subr.mxu0 0.0
      %642 = vmatpush2.msra.mxu0 0.0
      %643 = vmatprep.subr.mxu0 0.0
      %644 = vmatpush2.msra.mxu0 0.0
      %645 = vmatprep.subr.mxu0 0.0
      %646 = vmatpush2.msra.mxu0 0.0
      %647 = vmatprep.subr.mxu0 0.0
      %648 = vmatpush2.msra.mxu0 0.0
      %649 = vmatprep.subr.mxu0 0.0
      %650 = vmatpush2.msra.mxu0 0.0
      %651 = vmatprep.subr.mxu0 0.0
      %652 = vmatpush2.msra.mxu0 0.0
      %653 = vmatprep.subr.mxu0 0.0
      %654 = vmatpush2.msra.mxu0 0.0
      %655 = vmatprep.subr.mxu0 0.0
      %656 = vmatpush2.msra.mxu0 0.0
      %657 = vmatprep.subr.mxu0 0.0
      %658 = vmatpush2.msra.mxu0 0.0
      %659 = vmatprep.mubr.f32.mxu0 0.0
      %660 = vmatmul.mubr.f32.gmra.mxu0 %v568
      %v661 = vpop.f32.mrf.mxu0
      %v662 = vadd.f32 0.0, %v661
      %v663 = vpop.f32.mrf.mxu0
      %664 = vmatprep.mubr.f32.mxu0 0.0
      %665 = vmatmul.mubr.f32.gmra.mxu0 %v571
      %v666 = vpop.f32.mrf.mxu0
      %v667 = vadd.f32 0.0, %v666
      %v668 = vpop.f32.mrf.mxu0
      %669 = vmatprep.mubr.f32.mxu0 0.0
      %670 = vmatmul.mubr.f32.gmra.mxu0 %v574
      %v671 = vpop.f32.mrf.mxu0
      %v672 = vadd.f32 0.0, %v671
      %v673 = vpop.f32.mrf.mxu0
      %674 = vmatprep.mubr.f32.mxu0 0.0
      %675 = vmatmul.mubr.f32.gmra.mxu0 %v577
      %v676 = vpop.f32.mrf.mxu0
      %v677 = vadd.f32 0.0, %v676
      %v678 = vpop.f32.mrf.mxu0
      %679 = vmatprep.mubr.f32.mxu0 0.0
      %680 = vmatmul.mubr.f32.gmra.mxu0 %v580
      %v681 = vpop.f32.mrf.mxu0
      %v682 = vadd.f32 0.0, %v681
      %v683 = vpop.f32.mrf.mxu0
      %684 = vmatprep.mubr.f32.mxu0 0.0
      %685 = vmatmul.mubr.f32.gmra.mxu0 %v583
      %v686 = vpop.f32.mrf.mxu0
      %v687 = vadd.f32 0.0, %v686
      %v688 = vpop.f32.mrf.mxu0
      %689 = vmatprep.mubr.f32.mxu0 0.0
      %690 = vmatmul.mubr.f32.gmra.mxu0 %v586
      %v691 = vpop.f32.mrf.mxu0
      %v692 = vadd.f32 0.0, %v691
      %v693 = vpop.f32.mrf.mxu0
      %694 = vmatprep.mubr.f32.mxu0 0.0
      %695 = vmatmul.mubr.f32.gmra.mxu0 %v589
      %v696 = vpop.f32.mrf.mxu0
      %v697 = vadd.f32 0.0, %v696
      %v698 = vpop.f32.mrf.mxu0
      %699 = vdwg.mxu0
      %v701 = vsel %vm566, %v511, 0
      %v704 = vsel %vm566, %v512, 0
      %v707 = vsel %vm566, %v513, 0
      %v710 = vsel %vm566, %v514, 0
      %v713 = vsel %vm566, %v515, 0
      %v716 = vsel %vm566, %v516, 0
      %v719 = vsel %vm566, %v517, 0
      %v722 = vsel %vm566, %v518, 0
      %v725 = vsel %vm591, %v529, 0
      %727 = vmatprep.subr.mxu0 0.0
      %728 = vmatpush1.msra.mxu0 0.0
      %729 = vmatprep.subr.mxu0 0.0
      %730 = vmatpush1.msra.mxu0 0.0
      %731 = vmatprep.subr.mxu0 0.0
      %732 = vmatpush1.msra.mxu0 0.0
      %733 = vmatprep.subr.mxu0 0.0
      %734 = vmatpush1.msra.mxu0 0.0
      %735 = vmatprep.subr.mxu0 0.0
      %736 = vmatpush1.msra.mxu0 0.0
      %737 = vmatprep.subr.mxu0 0.0
      %738 = vmatpush1.msra.mxu0 0.0
      %739 = vmatprep.subr.mxu0 0.0
      %740 = vmatpush1.msra.mxu0 0.0
      %741 = vmatprep.subr.mxu0 0.0
      %742 = vmatpush1.msra.mxu0 0.0
      %743 = vmatprep.subr.mxu0 0.0
      %744 = vmatpush1.msra.mxu0 %v725
      %745 = vmatprep.subr.mxu0 0.0
      %746 = vmatpush1.msra.mxu0 %v528
      %747 = vmatprep.subr.mxu0 0.0
      %748 = vmatpush1.msra.mxu0 %v527
      %749 = vmatprep.subr.mxu0 0.0
      %750 = vmatpush1.msra.mxu0 %v526
      %751 = vmatprep.subr.mxu0 0.0
      %752 = vmatpush1.msra.mxu0 %v525
      %753 = vmatprep.subr.mxu0 0.0
      %754 = vmatpush1.msra.mxu0 %v524
      %755 = vmatprep.subr.mxu0 0.0
      %756 = vmatpush1.msra.mxu0 %v523
      %757 = vmatprep.subr.mxu0 0.0
      %758 = vmatpush1.msra.mxu0 %v522
      %759 = vmatprep.subr.mxu0 0.0
      %760 = vmatpush2.msra.mxu0 0.0
      %761 = vmatprep.subr.mxu0 0.0
      %762 = vmatpush2.msra.mxu0 0.0
      %763 = vmatprep.subr.mxu0 0.0
      %764 = vmatpush2.msra.mxu0 0.0
      %765 = vmatprep.subr.mxu0 0.0
      %766 = vmatpush2.msra.mxu0 0.0
      %767 = vmatprep.subr.mxu0 0.0
      %768 = vmatpush2.msra.mxu0 0.0
      %769 = vmatprep.subr.mxu0 0.0
      %770 = vmatpush2.msra.mxu0 0.0
      %771 = vmatprep.subr.mxu0 0.0
      %772 = vmatpush2.msra.mxu0 0.0
      %773 = vmatprep.subr.mxu0 0.0
      %774 = vmatpush2.msra.mxu0 0.0
      %775 = vmatprep.subr.mxu0 0.0
      %776 = vmatpush2.msra.mxu0 0.0
      %777 = vmatprep.subr.mxu0 0.0
      %778 = vmatpush2.msra.mxu0 0.0
      %779 = vmatprep.subr.mxu0 0.0
      %780 = vmatpush2.msra.mxu0 0.0
      %781 = vmatprep.subr.mxu0 0.0
      %782 = vmatpush2.msra.mxu0 0.0
      %783 = vmatprep.subr.mxu0 0.0
      %784 = vmatpush2.msra.mxu0 0.0
      %785 = vmatprep.subr.mxu0 0.0
      %786 = vmatpush2.msra.mxu0 0.0
      %787 = vmatprep.subr.mxu0 0.0
      %788 = vmatpush2.msra.mxu0 0.0
      %789 = vmatprep.subr.mxu0 0.0
      %790 = vmatpush2.msra.mxu0 0.0
      %791 = vmatprep.mubr.f32.mxu0 0.0
      %792 = vmatmul.mubr.f32.gmra.mxu0 %v701
      %v793 = vpop.f32.mrf.mxu0
      %v794 = vadd.f32 %v662, %v793
      %v795 = vpop.f32.mrf.mxu0
      %796 = vmatprep.mubr.f32.mxu0 0.0
      %797 = vmatmul.mubr.f32.gmra.mxu0 %v704
      %v798 = vpop.f32.mrf.mxu0
      %v799 = vadd.f32 %v667, %v798
      %v800 = vpop.f32.mrf.mxu0
      %801 = vmatprep.mubr.f32.mxu0 0.0
      %802 = vmatmul.mubr.f32.gmra.mxu0 %v707
      %v803 = vpop.f32.mrf.mxu0
      %v804 = vadd.f32 %v672, %v803
      %v805 = vpop.f32.mrf.mxu0
      %806 = vmatprep.mubr.f32.mxu0 0.0
      %807 = vmatmul.mubr.f32.gmra.mxu0 %v710
      %v808 = vpop.f32.mrf.mxu0
      %v809 = vadd.f32 %v677, %v808
      %v810 = vpop.f32.mrf.mxu0
      %811 = vmatprep.mubr.f32.mxu0 0.0
      %812 = vmatmul.mubr.f32.gmra.mxu0 %v713
      %v813 = vpop.f32.mrf.mxu0
      %v814 = vadd.f32 %v682, %v813
      %v815 = vpop.f32.mrf.mxu0
      %816 = vmatprep.mubr.f32.mxu0 0.0
      %817 = vmatmul.mubr.f32.gmra.mxu0 %v716
      %v818 = vpop.f32.mrf.mxu0
      %v819 = vadd.f32 %v687, %v818
      %v820 = vpop.f32.mrf.mxu0
      %821 = vmatprep.mubr.f32.mxu0 0.0
      %822 = vmatmul.mubr.f32.gmra.mxu0 %v719
      %v823 = vpop.f32.mrf.mxu0
      %v824 = vadd.f32 %v692, %v823
      %v825 = vpop.f32.mrf.mxu0
      %826 = vmatprep.mubr.f32.mxu0 0.0
      %827 = vmatmul.mubr.f32.gmra.mxu0 %v722
      %v828 = vpop.f32.mrf.mxu0
      %v829 = vadd.f32 %v697, %v828
      %v830 = vpop.f32.mrf.mxu0
      %831 = vdwg.mxu0
      %vm832 = vcmp.eq.s32.totalorder %v520, 7
      %v833 = vrot.slane %v511, 1
      %v834 = vrot.slane %v512, 1
      %v835 = vrot.slane %v513, 1
      %v836 = vrot.slane %v514, 1
      %v837 = vrot.slane %v515, 1
      %v838 = vrot.slane %v516, 1
      %v839 = vrot.slane %v517, 1
      %v840 = vrot.slane %v518, 1
      %vm841 = vcmp.lt.s32.totalorder %v520, 7
      %v842 = vsel %vm841, %v839, %v840
      %v843 = vsel %vm841, %v838, %v839
      %v844 = vsel %vm841, %v837, %v838
      %v845 = vsel %vm841, %v836, %v837
      %v846 = vsel %vm841, %v835, %v836
      %v847 = vsel %vm841, %v834, %v835
      %v848 = vsel %vm841, %v833, %v834
      %v849 = vsel %vm841, %v840, %v833
      %v850 = vsel %vm832, 1, 0
      %vm851 = vcmp.eq.s32.totalorder %v850, 1
      %v852 = vsel %vm851, 0.0, %v848
      %v853 = vsel %vm851, 0.0, %v847
      %v854 = vsel %vm851, 0.0, %v846
      %v855 = vsel %vm851, 0.0, %v845
      %v856 = vsel %vm851, 0.0, %v844
      %v857 = vsel %vm851, 0.0, %v843
      %v858 = vsel %vm851, 0.0, %v842
      %v859 = vsel %vm851, 0.0, %v849
      %s860 = scalar_lea.vmem %s3, 128
      %v861 = vld [vmem:[%s860] sm:$0xff]
      %v862 = vld [vmem:[%s860 + $0x8] sm:$0xff]
      %v863 = vld [vmem:[%s860 + $0x10] sm:$0xff]
      %v864 = vld [vmem:[%s860 + $0x18] sm:$0xff]
      %v865 = vld [vmem:[%s860 + $0x20] sm:$0xff]
      %v866 = vld [vmem:[%s860 + $0x28] sm:$0xff]
      %v867 = vld [vmem:[%s860 + $0x30] sm:$0xff]
      %v868 = vld [vmem:[%s860 + $0x38] sm:$0xf]
      %v870 = vsel %vm566, %v852, 0
      %v873 = vsel %vm566, %v853, 0
      %v876 = vsel %vm566, %v854, 0
      %v879 = vsel %vm566, %v855, 0
      %v882 = vsel %vm566, %v856, 0
      %v885 = vsel %vm566, %v857, 0
      %v888 = vsel %vm566, %v858, 0
      %v891 = vsel %vm566, %v859, 0
      %v894 = vsel %vm591, %v868, 0
      %896 = vmatprep.subr.mxu0 0.0
      %897 = vmatpush1.msra.mxu0 0.0
      %898 = vmatprep.subr.mxu0 0.0
      %899 = vmatpush1.msra.mxu0 0.0
      %900 = vmatprep.subr.mxu0 0.0
      %901 = vmatpush1.msra.mxu0 0.0
      %902 = vmatprep.subr.mxu0 0.0
      %903 = vmatpush1.msra.mxu0 0.0
      %904 = vmatprep.subr.mxu0 0.0
      %905 = vmatpush1.msra.mxu0 0.0
      %906 = vmatprep.subr.mxu0 0.0
      %907 = vmatpush1.msra.mxu0 0.0
      %908 = vmatprep.subr.mxu0 0.0
      %909 = vmatpush1.msra.mxu0 0.0
      %910 = vmatprep.subr.mxu0 0.0
      %911 = vmatpush1.msra.mxu0 0.0
      %912 = vmatprep.subr.mxu0 0.0
      %913 = vmatpush1.msra.mxu0 %v894
      %914 = vmatprep.subr.mxu0 0.0
      %915 = vmatpush1.msra.mxu0 %v867
      %916 = vmatprep.subr.mxu0 0.0
      %917 = vmatpush1.msra.mxu0 %v866
      %918 = vmatprep.subr.mxu0 0.0
      %919 = vmatpush1.msra.mxu0 %v865
      %920 = vmatprep.subr.mxu0 0.0
      %921 = vmatpush1.msra.mxu0 %v864
      %922 = vmatprep.subr.mxu0 0.0
      %923 = vmatpush1.msra.mxu0 %v863
      %924 = vmatprep.subr.mxu0 0.0
      %925 = vmatpush1.msra.mxu0 %v862
      %926 = vmatprep.subr.mxu0 0.0
      %927 = vmatpush1.msra.mxu0 %v861
      %928 = vmatprep.subr.mxu0 0.0
      %929 = vmatpush2.msra.mxu0 0.0
      %930 = vmatprep.subr.mxu0 0.0
      %931 = vmatpush2.msra.mxu0 0.0
      %932 = vmatprep.subr.mxu0 0.0
      %933 = vmatpush2.msra.mxu0 0.0
      %934 = vmatprep.subr.mxu0 0.0
      %935 = vmatpush2.msra.mxu0 0.0
      %936 = vmatprep.subr.mxu0 0.0
      %937 = vmatpush2.msra.mxu0 0.0
      %938 = vmatprep.subr.mxu0 0.0
      %939 = vmatpush2.msra.mxu0 0.0
      %940 = vmatprep.subr.mxu0 0.0
      %941 = vmatpush2.msra.mxu0 0.0
      %942 = vmatprep.subr.mxu0 0.0
      %943 = vmatpush2.msra.mxu0 0.0
      %944 = vmatprep.subr.mxu0 0.0
      %945 = vmatpush2.msra.mxu0 0.0
      %946 = vmatprep.subr.mxu0 0.0
      %947 = vmatpush2.msra.mxu0 0.0
      %948 = vmatprep.subr.mxu0 0.0
      %949 = vmatpush2.msra.mxu0 0.0
      %950 = vmatprep.subr.mxu0 0.0
      %951 = vmatpush2.msra.mxu0 0.0
      %952 = vmatprep.subr.mxu0 0.0
      %953 = vmatpush2.msra.mxu0 0.0
      %954 = vmatprep.subr.mxu0 0.0
      %955 = vmatpush2.msra.mxu0 0.0
      %956 = vmatprep.subr.mxu0 0.0
      %957 = vmatpush2.msra.mxu0 0.0
      %958 = vmatprep.subr.mxu0 0.0
      %959 = vmatpush2.msra.mxu0 0.0
      %960 = vmatprep.mubr.f32.mxu0 0.0
      %961 = vmatmul.mubr.f32.gmra.mxu0 %v870
      %v962 = vpop.f32.mrf.mxu0
      %v963 = vadd.f32 0.0, %v962
      %v964 = vpop.f32.mrf.mxu0
      %965 = vmatprep.mubr.f32.mxu0 0.0
      %966 = vmatmul.mubr.f32.gmra.mxu0 %v873
      %v967 = vpop.f32.mrf.mxu0
      %v968 = vadd.f32 0.0, %v967
      %v969 = vpop.f32.mrf.mxu0
      %970 = vmatprep.mubr.f32.mxu0 0.0
      %971 = vmatmul.mubr.f32.gmra.mxu0 %v876
      %v972 = vpop.f32.mrf.mxu0
      %v973 = vadd.f32 0.0, %v972
      %v974 = vpop.f32.mrf.mxu0
      %975 = vmatprep.mubr.f32.mxu0 0.0
      %976 = vmatmul.mubr.f32.gmra.mxu0 %v879
      %v977 = vpop.f32.mrf.mxu0
      %v978 = vadd.f32 0.0, %v977
      %v979 = vpop.f32.mrf.mxu0
      %980 = vmatprep.mubr.f32.mxu0 0.0
      %981 = vmatmul.mubr.f32.gmra.mxu0 %v882
      %v982 = vpop.f32.mrf.mxu0
      %v983 = vadd.f32 0.0, %v982
      %v984 = vpop.f32.mrf.mxu0
      %985 = vmatprep.mubr.f32.mxu0 0.0
      %986 = vmatmul.mubr.f32.gmra.mxu0 %v885
      %v987 = vpop.f32.mrf.mxu0
      %v988 = vadd.f32 0.0, %v987
      %v989 = vpop.f32.mrf.mxu0
      %990 = vmatprep.mubr.f32.mxu0 0.0
      %991 = vmatmul.mubr.f32.gmra.mxu0 %v888
      %v992 = vpop.f32.mrf.mxu0
      %v993 = vadd.f32 0.0, %v992
      %v994 = vpop.f32.mrf.mxu0
      %995 = vmatprep.mubr.f32.mxu0 0.0
      %996 = vmatmul.mubr.f32.gmra.mxu0 %v891
      %v997 = vpop.f32.mrf.mxu0
      %v998 = vadd.f32 0.0, %v997
      %v999 = vpop.f32.mrf.mxu0
      %1000 = vdwg.mxu0
      %v1001 = vadd.f32 %v794, %v963
      %v1002 = vadd.f32 %v799, %v968
      %v1003 = vadd.f32 %v804, %v973
      %v1004 = vadd.f32 %v809, %v978
      %v1005 = vadd.f32 %v814, %v983
      %v1006 = vadd.f32 %v819, %v988
      %v1007 = vadd.f32 %v824, %v993
      %v1008 = vadd.f32 %v829, %v998
      %v1009 = vld [vmem:[%s4] sm:$0x1]
      %v1011 = vlaneseq
      %v1012 = vshrl.u32 %v1011, 7
      %v1013 = vsub.s32 0, %v1012
      %v1014 = vrot.slane %v1009, %v1013
      %v1016 = vadd.f32 %v1001, %v1014
      %v1017 = vadd.f32 %v1002, %v1014
      %v1018 = vadd.f32 %v1003, %v1014
      %v1019 = vadd.f32 %v1004, %v1014
      %v1020 = vadd.f32 %v1005, %v1014
      %v1021 = vadd.f32 %v1006, %v1014
      %v1022 = vadd.f32 %v1007, %v1014
      %v1023 = vadd.f32 %v1008, %v1014
      %vm1024 = vcmask 261120
      %v1025 = vsel %vm1024, %v1016, 0.0
      %v1026 = vsel %vm1024, %v1017, 0.0
      %v1027 = vadd.f32 %v1025, %v1026
      %v1028 = vsel %vm1024, %v1018, 0.0
      %v1029 = vadd.f32 %v1027, %v1028
      %v1030 = vsel %vm1024, %v1019, 0.0
      %v1031 = vadd.f32 %v1029, %v1030
      %v1032 = vsel %vm1024, %v1020, 0.0
      %v1033 = vadd.f32 %v1031, %v1032
      %v1034 = vsel %vm1024, %v1021, 0.0
      %v1035 = vadd.f32 %v1033, %v1034
      %v1036 = vsel %vm1024, %v1022, 0.0
      %v1037 = vadd.f32 %v1035, %v1036
      %v1038 = vsel %vm1024, %v1023, 0.0
      %v1039 = vadd.f32 %v1037, %v1038
      %v1040 = vrot.slane %v1039, 4
      %v1041 = vadd.f32 %v1039, %v1040
      %v1042 = vrot.slane %v1041, 2
      %v1043 = vadd.f32 %v1041, %v1042
      %v1044 = vrot.slane %v1043, 1
      %v1045 = vadd.f32 %v1043, %v1044
      %v1046 = vmul.f32 %v1016, %v1016
      %v1047 = vmul.f32 %v1017, %v1017
      %v1048 = vmul.f32 %v1018, %v1018
      %v1049 = vmul.f32 %v1019, %v1019
      %v1050 = vmul.f32 %v1020, %v1020
      %v1051 = vmul.f32 %v1021, %v1021
      %v1052 = vmul.f32 %v1022, %v1022
      %v1053 = vmul.f32 %v1023, %v1023
      %v1054 = vsel %vm1024, %v1046, 0.0
      %v1055 = vsel %vm1024, %v1047, 0.0
      %v1056 = vadd.f32 %v1054, %v1055
      %v1057 = vsel %vm1024, %v1048, 0.0
      %v1058 = vadd.f32 %v1056, %v1057
      %v1059 = vsel %vm1024, %v1049, 0.0
      %v1060 = vadd.f32 %v1058, %v1059
      %v1061 = vsel %vm1024, %v1050, 0.0
      %v1062 = vadd.f32 %v1060, %v1061
      %v1063 = vsel %vm1024, %v1051, 0.0
      %v1064 = vadd.f32 %v1062, %v1063
      %v1065 = vsel %vm1024, %v1052, 0.0
      %v1066 = vadd.f32 %v1064, %v1065
      %v1067 = vsel %vm1024, %v1053, 0.0
      %v1068 = vadd.f32 %v1066, %v1067
      %v1069 = vrot.slane %v1068, 4
      %v1070 = vadd.f32 %v1068, %v1069
      %v1071 = vrot.slane %v1070, 2
      %v1072 = vadd.f32 %v1070, %v1071
      %v1073 = vrot.slane %v1072, 1
      %v1074 = vadd.f32 %v1072, %v1073
      %vm1075 = vcmask 1040384
      %v1076 = vsel %vm1075, %v1045, %v1074
      %vm1077 = vcmask 254976
      %1078 = vst.msk [vmem:[%s427] sm:$0x3] %vm1077, %v1076
      %1079 = vst.msk [vmem:[%s419] sm:$0xff] %vm1024, %v1016
      %1080 = vst.msk [vmem:[%s419 + $0x8] sm:$0xff] %vm1024, %v1017
      %1081 = vst.msk [vmem:[%s419 + $0x10] sm:$0xff] %vm1024, %v1018
      %1082 = vst.msk [vmem:[%s419 + $0x18] sm:$0xff] %vm1024, %v1019
      %1083 = vst.msk [vmem:[%s419 + $0x20] sm:$0xff] %vm1024, %v1020
      %1084 = vst.msk [vmem:[%s419 + $0x28] sm:$0xff] %vm1024, %v1021
      %1085 = vst.msk [vmem:[%s419 + $0x30] sm:$0xff] %vm1024, %v1022
      %1086 = vst.msk [vmem:[%s419 + $0x38] sm:$0xff] %vm1024, %v1023
      %s1087 = smul.u32 8, %s23
      %p1088 = scmp.lt.s32.totalorder %s22, 1
      %s1089 = scalar_select %p1088, %s22, 1
      %p1090 = scmp.lt.s32.totalorder %s1087, 7
      %s1091 = scalar_select %p1090, %s1087, 7
      %s1092 = smul.addr %s1089, 8
      %s1093 = sadd.s32 %s1091, %s1092
      %s1094 = smul.addr %s1093, 8
      %s1095 = scalar_lea.vmem %s5, %s1094
      %p1096 = scmp.lt.s32.totalorder %s22, 1
      %s1097 = scalar_select %p1096, %s22, 1
      %p1098 = scmp.lt.s32.totalorder %s23, 0
      %s1099 = scalar_select %p1098, %s23, 0
      %s1100 = sadd.s32 %s1099, %s1097
      %s1101 = smul.addr %s1100, 2
      %s1102 = scalar_lea.vmem %s6, %s1101
      // Predicated region
      $region41: #{classify_forward.9} parent=39 // pred_check
        %p1103 = pneg %p192
      $region42: #{classify_forward.9} parent=39 // pred_check_branch
        %1105 = sbr.rel (%p1103) target = $region44
      $region43: #{classify_forward.9} parent=39 // pred_region
        %s1106 = smul.u32 8, %s23
      $region44: #{classify_forward.9} parent=39 // pred_fallthru
        _
      // Predicated region
      $region45: #{classify_forward.9} parent=39 // pred_check
        %p1107 = pneg %p220
      $region46: #{classify_forward.9} parent=39 // pred_check_branch
        %1109 = sbr.rel (%p1107) target = $region48
      $region47: #{classify_forward.9} parent=39 // pred_region
        _
      $region48: #{classify_forward.9} parent=39 // pred_fallthru
        _
    $region40: #{classify_forward.9} parent=5 // pred_fallthru
      _
    %p1110 = scmp.le.s32.totalorder 2, %s13
    // Predicated region
    $region49: #{classify_forward.9} parent=5 // pred_check
      %p1111 = pneg %p1110
    $region50: #{classify_forward.9} parent=5 // pred_check_branch
      %1113 = sbr.rel (%p1111) target = $region52
    $region51: #{classify_forward.9} parent=5 // pred_region
      %s1114 = ssub.s32 %s13, 2
      // Predicated region
      $region53: #{classify_forward.9} parent=51 // pred_check
        %p1115 = pneg %p198
      $region54: #{classify_forward.9} parent=51 // pred_check_branch
        %1117 = sbr.rel (%p1115) target = $region56
      $region55: #{classify_forward.9} parent=51 // pred_region
        %s1118 = smul.u32 8, %s25
        %p1119 = scmp.lt.s32.totalorder %s24, 1
        %s1120 = scalar_select %p1119, %s24, 1
        %p1121 = scmp.lt.s32.totalorder %s1118, 7
        %s1122 = scalar_select %p1121, %s1118, 7
        %s1123 = smul.addr %s1120, 8
        %s1124 = sadd.s32 %s1122, %s1123
        %s1125 = smul.addr %s1124, 8
        %s1126 = scalar_lea.vmem %s5, %s1125
      $region56: #{classify_forward.9} parent=51 // pred_fallthru
        _
      // Predicated region
      $region57: #{classify_forward.9} parent=51 // pred_check
        %p1127 = pneg %p226
      $region58: #{classify_forward.9} parent=51 // pred_check_branch
        %1129 = sbr.rel (%p1127) target = $region60
      $region59: #{classify_forward.9} parent=51 // pred_region
        %p1130 = scmp.lt.s32.totalorder %s24, 1
        %s1131 = scalar_select %p1130, %s24, 1
        %p1132 = scmp.lt.s32.totalorder %s25, 0
        %s1133 = scalar_select %p1132, %s25, 0
        %s1134 = sadd.s32 %s1133, %s1131
        %s1135 = smul.addr %s1134, 2
        %s1136 = scalar_lea.vmem %s6, %s1135
      $region60: #{classify_forward.9} parent=51 // pred_fallthru
        _
    $region52: #{classify_forward.9} parent=5 // pred_fallthru
      _
  $region6: #{classify_forward.9} parent=0 // loop_footer
    %s17 = sadd.s32 1, %s13
  $region7: #{classify_forward.9} parent=0 // loop_footer_branch
    %12 = sbr.rel target = $region3
  $region8: #{classify_forward.9} parent=0 // loop_exit
    _

// kernel: classify_forward.10
$region0: #{classify_forward.10}
  #allocation0 [shape = 'u32[]', space=smem, size = 0x4, offset = 0x4, fixed_abs, tag = 'smem constant byte address 0x4 - core index']
  #allocation1 [shape = 'u32[144,128]{1,0:T(1,128)}', space=vmem, size = 0x12000, scoped, tag = 'internal scratch']
  %s0 = inlined_call_operand.vmem [shape: f32[2,8,8,32], index: 0, kind: input, shape index: {}]
  %s1 = inlined_call_operand.vmem [shape: f32[1,32], index: 1, kind: input, shape index: {}]
  %s2 = inlined_call_operand.vmem [shape: f32[1,32], index: 2, kind: input, shape index: {}]
  %s3 = inlined_call_operand.vmem [shape: f32[2,8,8,32], index: 3, kind: output, shape index: {}]
  %s4 = sld [smem:[#allocation0]]
  $region45: #{classify_forward.10} parent=0
    _
  %s6 = ssub.s32 1, %s4
  %s7 = scalar_select 0, %s6, %s4
  loop: start=0, step=1, limit=4
  $region2: #{classify_forward.10} parent=0 // loop_pre_header
    _
  $region3: #{classify_forward.10} parent=0 // loop_header
    %s9 = sphi 0, %s13
    %p10 = scmp.ge.s32.totalorder %s9, 4
    %s16 = sphi 0, %s28
    %s17 = sphi 0, %s24
    %s18 = sphi 0, %s16
    %s19 = sphi 0, %s17
    %s20 = sphi 0, %s18
    %s21 = sphi 0, %s19
    %s33 = sphi 0, %s35
    %s36 = sphi 0, %s33
    %s37 = sphi 0, %s36
    %s53 = sphi 0, %s37
    %s57 = sphi 0, %s57
    %s59 = sphi 0, %s57
    %s60 = sphi 0, %s59
    %s74 = sphi 0, %s60
    %s78 = sphi 0, %s78
    %s80 = sphi 0, %s78
    %s81 = sphi 0, %s80
    %s95 = sphi 0, %s81
    %s103 = sphi 0, %s105
    %s106 = sphi 0, %s103
    %s107 = sphi 0, %s106
    %s123 = sphi 0, %s107
  $region4: #{classify_forward.10} parent=0 // loop_header_branch
    %12 = sbr.rel (%p10) target = $region8
  $region5: #{classify_forward.10} parent=0 // loop_body
    %s14 = ssub.s32 %s9, 1
    %s15 = ssub.s32 %s9, 2
    %s22 = sadd.s32 1, %s17
    %p23 = scmp.ge.s32.totalorder %s22, 1
    %s24 = scalar_select %p23, 0, %s22
    %s25 = sadd.s32 1, %s16
    %s26 = scalar_select %p23, %s25, %s16
    %p27 = scmp.ge.s32.totalorder %s26, 2
    %s28 = scalar_select %p27, 0, %s26
    %s29 = ssub.s32 %s16, %s28
    %s30 = ssub.s32 %s17, %s24
    %s31 = sor.u32 %s29, %s30
    %p32 = scmp.eq.s32.totalorder %s31, 0
    %s34 = sadd.s32 %s33, 1
    %s35 = scalar_select %p32, %s33, %s34
    %p38 = pneg %p32
    %p39 = scmp.eq.s32.totalorder %s9, 1
    %p40 = por %p38, %p39
    %p41 = scmp.ne.s32.totalorder %s33, %s36
    %p42 = scmp.eq.s32.totalorder %s9, 0
    %p43 = por %p41, %p42
    %p44 = scmp.ne.s32.totalorder %s33, %s36
    %p45 = scmp.eq.s32.totalorder %s14, 1
    %p46 = por %p44, %p45
    %p47 = scmp.ne.s32.totalorder %s36, %s37
    %p48 = scmp.eq.s32.totalorder %s14, 0
    %p49 = por %p47, %p48
    %p50 = scmp.ne.s32.totalorder %s36, %s37
    %p51 = scmp.eq.s32.totalorder %s15, 1
    %p52 = por %p50, %p51
    %p54 = scmp.ne.s32.totalorder %s37, %s53
    %p55 = scmp.eq.s32.totalorder %s15, 0
    %p56 = por %p54, %p55
    %s58 = sadd.s32 %s57, 1
    %p61 = scmp.eq.s32.totalorder %s9, 1
    %p62 = scmp.ne.s32.totalorder %s57, %s59
    %p63 = scmp.eq.s32.totalorder %s9, 0
    %p64 = por %p62, %p63
    %p65 = scmp.ne.s32.totalorder %s57, %s59
    %p66 = scmp.eq.s32.totalorder %s14, 1
    %p67 = por %p65, %p66
    %p68 = scmp.ne.s32.totalorder %s59, %s60
    %p69 = scmp.eq.s32.totalorder %s14, 0
    %p70 = por %p68, %p69
    %p71 = scmp.ne.s32.totalorder %s59, %s60
    %p72 = scmp.eq.s32.totalorder %s15, 1
    %p73 = por %p71, %p72
    %p75 = scmp.ne.s32.totalorder %s60, %s74
    %p76 = scmp.eq.s32.totalorder %s15, 0
    %p77 = por %p75, %p76
    %s79 = sadd.s32 %s78, 1
    %p82 = scmp.eq.s32.totalorder %s9, 1
    %p83 = scmp.ne.s32.totalorder %s78, %s80
    %p84 = scmp.eq.s32.totalorder %s9, 0
    %p85 = por %p83, %p84
    %p86 = scmp.ne.s32.totalorder %s78, %s80
    %p87 = scmp.eq.s32.totalorder %s14, 1
    %p88 = por %p86, %p87
    %p89 = scmp.ne.s32.totalorder %s80, %s81
    %p90 = scmp.eq.s32.totalorder %s14, 0
    %p91 = por %p89, %p90
    %p92 = scmp.ne.s32.totalorder %s80, %s81
    %p93 = scmp.eq.s32.totalorder %s15, 1
    %p94 = por %p92, %p93
    %p96 = scmp.ne.s32.totalorder %s81, %s95
    %p97 = scmp.eq.s32.totalorder %s15, 0
    %p98 = por %p96, %p97
    %s99 = ssub.s32 %s16, %s28
    %s100 = ssub.s32 %s17, %s24
    %s101 = sor.u32 %s99, %s100
    %p102 = scmp.eq.s32.totalorder %s101, 0
    %s104 = sadd.s32 %s103, 1
    %s105 = scalar_select %p102, %s103, %s104
    %p108 = pneg %p102
    %p109 = scmp.eq.s32.totalorder %s9, 1
    %p110 = por %p108, %p109
    %p111 = scmp.ne.s32.totalorder %s103, %s106
    %p112 = scmp.eq.s32.totalorder %s9, 0
    %p113 = por %p111, %p112
    %p114 = scmp.ne.s32.totalorder %s103, %s106
    %p115 = scmp.eq.s32.totalorder %s14, 1
    %p116 = por %p114, %p115
    %p117 = scmp.ne.s32.totalorder %s106, %s107
    %p118 = scmp.eq.s32.totalorder %s14, 0
    %p119 = por %p117, %p118
    %p120 = scmp.ne.s32.totalorder %s106, %s107
    %p121 = scmp.eq.s32.totalorder %s15, 1
    %p122 = por %p120, %p121
    %p124 = scmp.ne.s32.totalorder %s107, %s123
    %p125 = scmp.eq.s32.totalorder %s15, 0
    %p126 = por %p124, %p125
    %p127 = scmp.le.s32.totalorder 1, %s9
    %p128 = scmp.lt.s32.totalorder %s9, 3
    %p129 = pnand %p127, %p128
    %p130 = pneg %p129
    // Predicated region
    $region9: #{classify_forward.10} parent=5 // pred_check
      _
    $region10: #{classify_forward.10} parent=5 // pred_check_branch
      %132 = sbr.rel (%p129) target = $region12
    $region11: #{classify_forward.10} parent=5 // pred_region
      %s133 = ssub.s32 %s9, 1
      // Predicated region
      $region13: #{classify_forward.10} parent=11 // pred_check
        %p134 = pneg %p70
      $region14: #{classify_forward.10} parent=11 // pred_check_branch
        %136 = sbr.rel (%p134) target = $region16
      $region15: #{classify_forward.10} parent=11 // pred_region
        _
      $region16: #{classify_forward.10} parent=11 // pred_fallthru
        _
      // Predicated region
      $region17: #{classify_forward.10} parent=11 // pred_check
        %p137 = pneg %p91
      $region18: #{classify_forward.10} parent=11 // pred_check_branch
        %139 = sbr.rel (%p137) target = $region20
      $region19: #{classify_forward.10} parent=11 // pred_region
        _
      $region20: #{classify_forward.10} parent=11 // pred_fallthru
        _
    $region12: #{classify_forward.10} parent=5 // pred_fallthru
      _
    %p140 = scmp.lt.s32.totalorder %s9, 2
    // Predicated region
    $region21: #{classify_forward.10} parent=5 // pred_check
      %p141 = pneg %p140
    $region22: #{classify_forward.10} parent=5 // pred_check_branch
      %143 = sbr.rel (%p141) target = $region24
    $region23: #{classify_forward.10} parent=5 // pred_region
      // Predicated region
      $region25: #{classify_forward.10} parent=23 // pred_check
        %p144 = pneg %p43
      $region26: #{classify_forward.10} parent=23 // pred_check_branch
        %146 = sbr.rel (%p144) target = $region28
      $region27: #{classify_forward.10} parent=23 // pred_region
        %s147 = smul.u32 8, %s17
        %p148 = scmp.lt.s32.totalorder %s16, 1
        %s149 = scalar_select %p148, %s16, 1
        %p150 = scmp.lt.s32.totalorder %s147, 7
        %s151 = scalar_select %p150, %s147, 7
        %s152 = smul.addr %s149, 8
        %s153 = sadd.s32 %s151, %s152
        %s154 = smul.addr %s153, 8
        %s155 = scalar_lea.vmem %s0, %s154
        %s156 = smul.u32 8, %s17
      $region28: #{classify_forward.10} parent=23 // pred_fallthru
        _
    $region24: #{classify_forward.10} parent=5 // pred_fallthru
      _
    %p157 = scmp.le.s32.totalorder 1, %s9
    %p158 = scmp.lt.s32.totalorder %s9, 3
    %p159 = pnand %p157, %p158
    %p160 = pneg %p159
    // Predicated region
    $region29: #{classify_forward.10} parent=5 // pred_check
      _
    $region30: #{classify_forward.10} parent=5 // pred_check_branch
      %162 = sbr.rel (%p159) target = $region32
    $region31: #{classify_forward.10} parent=5 // pred_region
      %s163 = ssub.s32 %s9, 1
      %s164 = smul.u32 8, %s19
      %p165 = scmp.lt.s32.totalorder %s18, 1
      %s166 = scalar_select %p165, %s18, 1
      %p167 = scmp.lt.s32.totalorder %s164, 7
      %s168 = scalar_select %p167, %s164, 7
      %s169 = smul.addr %s166, 8
      %s170 = sadd.s32 %s168, %s169
      %s171 = smul.addr %s170, 8
      %s172 = scalar_lea.vmem %s0, %s171
      %p173 = pneg %p49
      %p174 = pneg %p46
      %p175 = pneg %p70
      %p176 = pneg %p67
      %p177 = pneg %p91
      %p178 = pneg %p88
      %p179 = pneg %p119
      %p180 = pneg %p116
      %s181 = smul.u32 8, %s19
      %p182 = scmp.lt.s32.totalorder %s18, 1
      %s183 = scalar_select %p182, %s18, 1
      %p184 = scmp.lt.s32.totalorder %s181, 7
      %s185 = scalar_select %p184, %s181, 7
      %s186 = smul.addr %s183, 8
      %s187 = sadd.s32 %s185, %s186
      %s188 = smul.addr %s187, 8
      %s189 = scalar_lea.vmem %s3, %s188
      %s190 = smul.u32 8, %s19
      %p191 = scmp.lt.s32.totalorder %s18, 1
      %s192 = scalar_select %p191, %s18, 1
      %p193 = scmp.lt.s32.totalorder %s190, 7
      %s194 = scalar_select %p193, %s190, 7
      %s195 = smul.addr %s192, 8
      %s196 = sadd.s32 %s194, %s195
      %s197 = smul.addr %s196, 8
      %s198 = scalar_lea.vmem %s0, %s197
      %s199 = smul.u32 8, %s19
      %s200 = smul.u32 8, %s19
      %p201 = scmp.lt.s32.totalorder %s18, 1
      %s202 = scalar_select %p201, %s18, 1
      %p203 = scmp.lt.s32.totalorder %s200, 7
      %s204 = scalar_select %p203, %s200, 7
      %s205 = smul.addr %s202, 8
      %s206 = sadd.s32 %s204, %s205
      %s207 = smul.addr %s206, 8
      %s208 = scalar_lea.vmem %s3, %s207
      %s209 = smul.u32 8, %s19
      %v210 = vld [vmem:[%s198] sm:$0xff]
      %v211 = vld [vmem:[%s198 + $0x8] sm:$0xff]
      %v212 = vld [vmem:[%s198 + $0x10] sm:$0xff]
      %v213 = vld [vmem:[%s198 + $0x18] sm:$0xff]
      %v214 = vld [vmem:[%s198 + $0x20] sm:$0xff]
      %v215 = vld [vmem:[%s198 + $0x28] sm:$0xff]
      %v216 = vld [vmem:[%s198 + $0x30] sm:$0xff]
      %v217 = vld [vmem:[%s198 + $0x38] sm:$0xff]
      %v218 = vld [vmem:[%s1] sm:$0x1]
      %v220 = vlaneseq
      %v221 = vshrl.u32 %v220, 7
      %v222 = vsub.s32 0, %v221
      %v223 = vrot.slane %v218, %v222
      %v225 = vmul.f32 %v210, %v223
      %v226 = vmul.f32 %v211, %v223
      %v227 = vmul.f32 %v212, %v223
      %v228 = vmul.f32 %v213, %v223
      %v229 = vmul.f32 %v214, %v223
      %v230 = vmul.f32 %v215, %v223
      %v231 = vmul.f32 %v216, %v223
      %v232 = vmul.f32 %v217, %v223
      %v233 = vld [vmem:[%s2] sm:$0x1]
      %v235 = vlaneseq
      %v236 = vshrl.u32 %v235, 7
      %v237 = vsub.s32 0, %v236
      %v238 = vrot.slane %v233, %v237
      %v240 = vadd.f32 %v225, %v238
      %v241 = vadd.f32 %v226, %v238
      %v242 = vadd.f32 %v227, %v238
      %v243 = vadd.f32 %v228, %v238
      %v244 = vadd.f32 %v229, %v238
      %v245 = vadd.f32 %v230, %v238
      %v246 = vadd.f32 %v231, %v238
      %v247 = vadd.f32 %v232, %v238
      %v248 = vmax.f32 %v240, 0.0
      %v249 = vmax.f32 %v241, 0.0
      %v250 = vmax.f32 %v242, 0.0
      %v251 = vmax.f32 %v243, 0.0
      %v252 = vmax.f32 %v244, 0.0
      %v253 = vmax.f32 %v245, 0.0
      %v254 = vmax.f32 %v246, 0.0
      %v255 = vmax.f32 %v247, 0.0
      %vm256 = vcmask 261120
      %257 = vst.msk [vmem:[%s208] sm:$0xff] %vm256, %v248
      %258 = vst.msk [vmem:[%s208 + $0x8] sm:$0xff] %vm256, %v249
      %259 = vst.msk [vmem:[%s208 + $0x10] sm:$0xff] %vm256, %v250
      %260 = vst.msk [vmem:[%s208 + $0x18] sm:$0xff] %vm256, %v251
      %261 = vst.msk [vmem:[%s208 + $0x20] sm:$0xff] %vm256, %v252
      %262 = vst.msk [vmem:[%s208 + $0x28] sm:$0xff] %vm256, %v253
      %263 = vst.msk [vmem:[%s208 + $0x30] sm:$0xff] %vm256, %v254
      %264 = vst.msk [vmem:[%s208 + $0x38] sm:$0xff] %vm256, %v255
      %s265 = smul.u32 8, %s19
      %p266 = scmp.lt.s32.totalorder %s18, 1
      %s267 = scalar_select %p266, %s18, 1
      %p268 = scmp.lt.s32.totalorder %s265, 7
      %s269 = scalar_select %p268, %s265, 7
      %s270 = smul.addr %s267, 8
      %s271 = sadd.s32 %s269, %s270
      %s272 = smul.addr %s271, 8
      %s273 = scalar_lea.vmem %s3, %s272
      // Predicated region
      $region33: #{classify_forward.10} parent=31 // pred_check
        %p274 = pneg %p116
      $region34: #{classify_forward.10} parent=31 // pred_check_branch
        %276 = sbr.rel (%p274) target = $region36
      $region35: #{classify_forward.10} parent=31 // pred_region
        %s277 = smul.u32 8, %s19
      $region36: #{classify_forward.10} parent=31 // pred_fallthru
        _
    $region32: #{classify_forward.10} parent=5 // pred_fallthru
      _
    %p278 = scmp.le.s32.totalorder 2, %s9
    // Predicated region
    $region37: #{classify_forward.10} parent=5 // pred_check
      %p279 = pneg %p278
    $region38: #{classify_forward.10} parent=5 // pred_check_branch
      %281 = sbr.rel (%p279) target = $region40
    $region39: #{classify_forward.10} parent=5 // pred_region
      %s282 = ssub.s32 %s9, 2
      // Predicated region
      $region41: #{classify_forward.10} parent=39 // pred_check
        %p283 = pneg %p122
      $region42: #{classify_forward.10} parent=39 // pred_check_branch
        %285 = sbr.rel (%p283) target = $region44
      $region43: #{classify_forward.10} parent=39 // pred_region
        %s286 = smul.u32 8, %s21
        %p287 = scmp.lt.s32.totalorder %s20, 1
        %s288 = scalar_select %p287, %s20, 1
        %p289 = scmp.lt.s32.totalorder %s286, 7
        %s290 = scalar_select %p289, %s286, 7
        %s291 = smul.addr %s288, 8
        %s292 = sadd.s32 %s290, %s291
        %s293 = smul.addr %s292, 8
        %s294 = scalar_lea.vmem %s3, %s293
      $region44: #{classify_forward.10} parent=39 // pred_fallthru
        _
    $region40: #{classify_forward.10} parent=5 // pred_fallthru
      _
  $region6: #{classify_forward.10} parent=0 // loop_footer
    %s13 = sadd.s32 1, %s9
  $region7: #{classify_forward.10} parent=0 // loop_footer_branch
    %8 = sbr.rel target = $region3
  $region8: #{classify_forward.10} parent=0 // loop_exit
    _

// kernel: classify_forward.11
$region0: #{classify_forward.11}
  #allocation0 [shape = 'u32[]', space=smem, size = 0x4, offset = 0x4, fixed_abs, tag = 'smem constant byte address 0x4 - core index']
  #allocation1 [shape = 'u32[144,128]{1,0:T(1,128)}', space=vmem, size = 0x12000, scoped, tag = 'internal scratch']
  #allocation2 [shape = 'f32[2,128]{1,0:T(2,128)}', space=vmem, size = 0x400, scoped, tag = 'scratch operand']
  %s0 = inlined_call_operand.vmem [shape: f32[2,2048], index: 0, kind: input, shape index: {}]
  %s1 = inlined_call_operand.vmem [shape: f32[2048,128], index: 1, kind: input, shape index: {}]
  %s2 = inlined_call_operand.vmem [shape: f32[1,2,128], index: 2, kind: output, shape index: {}]
  %s3 = sld [smem:[#allocation0]]
  $region26: #{classify_forward.11} parent=0
    _
  %s5 = ssub.s32 1, %s3
  %s6 = scalar_select 0, %s5, %s3
  // Predicated region
  $region2: #{classify_forward.11} parent=0 // pred_check
    _
  $region3: #{classify_forward.11} parent=0 // pred_check_branch
    %8 = sbr.rel (0) target = $region5
  $region4: #{classify_forward.11} parent=0 // pred_region
    %s9 = sadd.s32 0, 0
    %s10 = smul.u32 16, %s9
    %p11 = scmp.lt.s32.totalorder %s10, 15
    %s12 = scalar_select %p11, %s10, 15
    %s13 = smul.addr %s12, 2
    %s14 = scalar_lea.vmem %s0, %s13
    %s15 = sadd.s32 0, 0
    %s16 = smul.u32 16, %s15
  $region5: #{classify_forward.11} parent=0 // pred_fallthru
    _
  // Predicated region
  $region6: #{classify_forward.11} parent=0 // pred_check
    _
  $region7: #{classify_forward.11} parent=0 // pred_check_branch
    %18 = sbr.rel (0) target = $region9
  $region8: #{classify_forward.11} parent=0 // pred_region
    %s19 = sadd.s32 0, 0
    %s20 = smul.u32 256, %s19
    %p21 = scmp.lt.s32.totalorder %s20, 255
    %s22 = scalar_select %p21, %s20, 255
    %s23 = smul.addr %s22, 8
    %s24 = scalar_lea.vmem %s1, %s23
    %s25 = sadd.s32 0, 0
    %s26 = smul.u32 256, %s25
  $region9: #{classify_forward.11} parent=0 // pred_fallthru
    _
  %s27 = sadd.s32 0, 0
  %s28 = smul.u32 16, %s27
  %p29 = scmp.lt.s32.totalorder %s28, 15
  %s30 = scalar_select %p29, %s28, 15
  %s31 = smul.addr %s30, 2
  %s32 = scalar_lea.vmem %s0, %s31
  %s33 = sadd.s32 0, 0
  %s34 = smul.u32 256, %s33
  %p35 = scmp.lt.s32.totalorder %s34, 255
  %s36 = scalar_select %p35, %s34, 255
  %s37 = smul.addr %s36, 8
  %s38 = scalar_lea.vmem %s1, %s37
  %s39 = sadd.s32 0, 0
  %s40 = smul.u32 16, %s39
  %p41 = scmp.lt.s32.totalorder %s40, 15
  %s42 = scalar_select %p41, %s40, 15
  %s43 = smul.addr %s42, 2
  %s44 = scalar_lea.vmem %s0, %s43
  %s45 = sadd.s32 0, 0
  %s46 = smul.u32 16, %s45
  %s47 = sadd.s32 0, 0
  %s48 = smul.u32 256, %s47
  %p49 = scmp.lt.s32.totalorder %s48, 255
  %s50 = scalar_select %p49, %s48, 255
  %s51 = smul.addr %s50, 8
  %s52 = scalar_lea.vmem %s1, %s51
  %s53 = sadd.s32 0, 0
  %s54 = smul.u32 256, %s53
  %p55 = scmp.eq.s32.totalorder 0, 0
  // Predicated region
  $region10: #{classify_forward.11} parent=0 // pred_check
    %p56 = pneg %p55
  $region11: #{classify_forward.11} parent=0 // pred_check_branch
    %58 = sbr.rel (%p56) target = $region13
  $region12: #{classify_forward.11} parent=0 // pred_region
    %59 = vst [vmem:[#allocation2] sm:$0x3] 0.0
  $region13: #{classify_forward.11} parent=0 // pred_fallthru
    _
  %v60 = vld [vmem:[#allocation2] sm:$0x3]
  %v61 = vld [vmem:[%s44] sm:$0xff]
  %v62 = vld [vmem:[%s44 + $0x8] sm:$0xff]
  %v63 = vld [vmem:[%s44 + $0x10] sm:$0xff]
  %v64 = vld [vmem:[%s44 + $0x18] sm:$0xff]
  %v65 = vld [vmem:[%s52] sm:$0xff]
  %v66 = vld [vmem:[%s52 + $0x8] sm:$0xff]
  %v67 = vld [vmem:[%s52 + $0x10] sm:$0xff]
  %v68 = vld [vmem:[%s52 + $0x18] sm:$0xff]
  %v69 = vld [vmem:[%s52 + $0x20] sm:$0xff]
  %v70 = vld [vmem:[%s52 + $0x28] sm:$0xff]
  %v71 = vld [vmem:[%s52 + $0x30] sm:$0xff]
  %v72 = vld [vmem:[%s52 + $0x38] sm:$0xff]
  %v73 = vld [vmem:[%s52 + $0x40] sm:$0xff]
  %v74 = vld [vmem:[%s52 + $0x48] sm:$0xff]
  %v75 = vld [vmem:[%s52 + $0x50] sm:$0xff]
  %v76 = vld [vmem:[%s52 + $0x58] sm:$0xff]
  %v77 = vld [vmem:[%s52 + $0x60] sm:$0xff]
  %v78 = vld [vmem:[%s52 + $0x68] sm:$0xff]
  %v79 = vld [vmem:[%s52 + $0x70] sm:$0xff]
  %v80 = vld [vmem:[%s52 + $0x78] sm:$0xff]
  %v81 = vld [vmem:[%s52 + $0x80] sm:$0xff]
  %v82 = vld [vmem:[%s52 + $0x88] sm:$0xff]
  %v83 = vld [vmem:[%s52 + $0x90] sm:$0xff]
  %v84 = vld [vmem:[%s52 + $0x98] sm:$0xff]
  %v85 = vld [vmem:[%s52 + $0xa0] sm:$0xff]
  %v86 = vld [vmem:[%s52 + $0xa8] sm:$0xff]
  %v87 = vld [vmem:[%s52 + $0xb0] sm:$0xff]
  %v88 = vld [vmem:[%s52 + $0xb8] sm:$0xff]
  %v89 = vld [vmem:[%s52 + $0xc0] sm:$0xff]
  %v90 = vld [vmem:[%s52 + $0xc8] sm:$0xff]
  %v91 = vld [vmem:[%s52 + $0xd0] sm:$0xff]
  %v92 = vld [vmem:[%s52 + $0xd8] sm:$0xff]
  %v93 = vld [vmem:[%s52 + $0xe0] sm:$0xff]
  %v94 = vld [vmem:[%s52 + $0xe8] sm:$0xff]
  %v95 = vld [vmem:[%s52 + $0xf0] sm:$0xff]
  %v96 = vld [vmem:[%s52 + $0xf8] sm:$0xff]
  %v97 = vld [vmem:[%s52 + $0x100] sm:$0xff]
  %v98 = vld [vmem:[%s52 + $0x108] sm:$0xff]
  %v99 = vld [vmem:[%s52 + $0x110] sm:$0xff]
  %v100 = vld [vmem:[%s52 + $0x118] sm:$0xff]
  %v101 = vld [vmem:[%s52 + $0x120] sm:$0xff]
  %v102 = vld [vmem:[%s52 + $0x128] sm:$0xff]
  %v103 = vld [vmem:[%s52 + $0x130] sm:$0xff]
  %v104 = vld [vmem:[%s52 + $0x138] sm:$0xff]
  %v105 = vld [vmem:[%s52 + $0x140] sm:$0xff]
  %v106 = vld [vmem:[%s52 + $0x148] sm:$0xff]
  %v107 = vld [vmem:[%s52 + $0x150] sm:$0xff]
  %v108 = vld [vmem:[%s52 + $0x158] sm:$0xff]
  %v109 = vld [vmem:[%s52 + $0x160] sm:$0xff]
  %v110 = vld [vmem:[%s52 + $0x168] sm:$0xff]
  %v111 = vld [vmem:[%s52 + $0x170] sm:$0xff]
  %v112 = vld [vmem:[%s52 + $0x178] sm:$0xff]
  %v113 = vld [vmem:[%s52 + $0x180] sm:$0xff]
  %v114 = vld [vmem:[%s52 + $0x188] sm:$0xff]
  %v115 = vld [vmem:[%s52 + $0x190] sm:$0xff]
  %v116 = vld [vmem:[%s52 + $0x198] sm:$0xff]
  %v117 = vld [vmem:[%s52 + $0x1a0] sm:$0xff]
  %v118 = vld [vmem:[%s52 + $0x1a8] sm:$0xff]
  %v119 = vld [vmem:[%s52 + $0x1b0] sm:$0xff]
  %v120 = vld [vmem:[%s52 + $0x1b8] sm:$0xff]
  %v121 = vld [vmem:[%s52 + $0x1c0] sm:$0xff]
  %v122 = vld [vmem:[%s52 + $0x1c8] sm:$0xff]
  %v123 = vld [vmem:[%s52 + $0x1d0] sm:$0xff]
  %v124 = vld [vmem:[%s52 + $0x1d8] sm:$0xff]
  %v125 = vld [vmem:[%s52 + $0x1e0] sm:$0xff]
  %v126 = vld [vmem:[%s52 + $0x1e8] sm:$0xff]
  %v127 = vld [vmem:[%s52 + $0x1f0] sm:$0xff]
  %v128 = vld [vmem:[%s52 + $0x1f8] sm:$0xff]
  %v129 = vld [vmem:[%s52 + $0x200] sm:$0xff]
  %v130 = vld [vmem:[%s52 + $0x208] sm:$0xff]
  %v131 = vld [vmem:[%s52 + $0x210] sm:$0xff]
  %v132 = vld [vmem:[%s52 + $0x218] sm:$0xff]
  %v133 = vld [vmem:[%s52 + $0x220] sm:$0xff]
  %v134 = vld [vmem:[%s52 + $0x228] sm:$0xff]
  %v135 = vld [vmem:[%s52 + $0x230] sm:$0xff]
  %v136 = vld [vmem:[%s52 + $0x238] sm:$0xff]
  %v137 = vld [vmem:[%s52 + $0x240] sm:$0xff]
  %v138 = vld [vmem:[%s52 + $0x248] sm:$0xff]
  %v139 = vld [vmem:[%s52 + $0x250] sm:$0xff]
  %v140 = vld [vmem:[%s52 + $0x258] sm:$0xff]
  %v141 = vld [vmem:[%s52 + $0x260] sm:$0xff]
  %v142 = vld [vmem:[%s52 + $0x268] sm:$0xff]
  %v143 = vld [vmem:[%s52 + $0x270] sm:$0xff]
  %v144 = vld [vmem:[%s52 + $0x278] sm:$0xff]
  %v145 = vld [vmem:[%s52 + $0x280] sm:$0xff]
  %v146 = vld [vmem:[%s52 + $0x288] sm:$0xff]
  %v147 = vld [vmem:[%s52 + $0x290] sm:$0xff]
  %v148 = vld [vmem:[%s52 + $0x298] sm:$0xff]
  %v149 = vld [vmem:[%s52 + $0x2a0] sm:$0xff]
  %v150 = vld [vmem:[%s52 + $0x2a8] sm:$0xff]
  %v151 = vld [vmem:[%s52 + $0x2b0] sm:$0xff]
  %v152 = vld [vmem:[%s52 + $0x2b8] sm:$0xff]
  %v153 = vld [vmem:[%s52 + $0x2c0] sm:$0xff]
  %v154 = vld [vmem:[%s52 + $0x2c8] sm:$0xff]
  %v155 = vld [vmem:[%s52 + $0x2d0] sm:$0xff]
  %v156 = vld [vmem:[%s52 + $0x2d8] sm:$0xff]
  %v157 = vld [vmem:[%s52 + $0x2e0] sm:$0xff]
  %v158 = vld [vmem:[%s52 + $0x2e8] sm:$0xff]
  %v159 = vld [vmem:[%s52 + $0x2f0] sm:$0xff]
  %v160 = vld [vmem:[%s52 + $0x2f8] sm:$0xff]
  %v161 = vld [vmem:[%s52 + $0x300] sm:$0xff]
  %v162 = vld [vmem:[%s52 + $0x308] sm:$0xff]
  %v163 = vld [vmem:[%s52 + $0x310] sm:$0xff]
  %v164 = vld [vmem:[%s52 + $0x318] sm:$0xff]
  %v165 = vld [vmem:[%s52 + $0x320] sm:$0xff]
  %v166 = vld [vmem:[%s52 + $0x328] sm:$0xff]
  %v167 = vld [vmem:[%s52 + $0x330] sm:$0xff]
  %v168 = vld [vmem:[%s52 + $0x338] sm:$0xff]
  %v169 = vld [vmem:[%s52 + $0x340] sm:$0xff]
  %v170 = vld [vmem:[%s52 + $0x348] sm:$0xff]
  %v171 = vld [vmem:[%s52 + $0x350] sm:$0xff]
  %v172 = vld [vmem:[%s52 + $0x358] sm:$0xff]
  %v173 = vld [vmem:[%s52 + $0x360] sm:$0xff]
  %v174 = vld [vmem:[%s52 + $0x368] sm:$0xff]
  %v175 = vld [vmem:[%s52 + $0x370] sm:$0xff]
  %v176 = vld [vmem:[%s52 + $0x378] sm:$0xff]
  %v177 = vld [vmem:[%s52 + $0x380] sm:$0xff]
  %v178 = vld [vmem:[%s52 + $0x388] sm:$0xff]
  %v179 = vld [vmem:[%s52 + $0x390] sm:$0xff]
  %v180 = vld [vmem:[%s52 + $0x398] sm:$0xff]
  %v181 = vld [vmem:[%s52 + $0x3a0] sm:$0xff]
  %v182 = vld [vmem:[%s52 + $0x3a8] sm:$0xff]
  %v183 = vld [vmem:[%s52 + $0x3b0] sm:$0xff]
  %v184 = vld [vmem:[%s52 + $0x3b8] sm:$0xff]
  %v185 = vld [vmem:[%s52 + $0x3c0] sm:$0xff]
  %v186 = vld [vmem:[%s52 + $0x3c8] sm:$0xff]
  %v187 = vld [vmem:[%s52 + $0x3d0] sm:$0xff]
  %v188 = vld [vmem:[%s52 + $0x3d8] sm:$0xff]
  %v189 = vld [vmem:[%s52 + $0x3e0] sm:$0xff]
  %v190 = vld [vmem:[%s52 + $0x3e8] sm:$0xff]
  %v191 = vld [vmem:[%s52 + $0x3f0] sm:$0xff]
  %v192 = vld [vmem:[%s52 + $0x3f8] sm:$0xff]
  %v193 = vld [vmem:[%s52 + $0x400] sm:$0xff]
  %v194 = vld [vmem:[%s52 + $0x408] sm:$0xff]
  %v195 = vld [vmem:[%s52 + $0x410] sm:$0xff]
  %v196 = vld [vmem:[%s52 + $0x418] sm:$0xff]
  %v197 = vld [vmem:[%s52 + $0x420] sm:$0xff]
  %v198 = vld [vmem:[%s52 + $0x428] sm:$0xff]
  %v199 = vld [vmem:[%s52 + $0x430] sm:$0xff]
  %v200 = vld [vmem:[%s52 + $0x438] sm:$0xff]
  %v201 = vld [vmem:[%s52 + $0x440] sm:$0xff]
  %v202 = vld [vmem:[%s52 + $0x448] sm:$0xff]
  %v203 = vld [vmem:[%s52 + $0x450] sm:$0xff]
  %v204 = vld [vmem:[%s52 + $0x458] sm:$0xff]
  %v205 = vld [vmem:[%s52 + $0x460] sm:$0xff]
  %v206 = vld [vmem:[%s52 + $0x468] sm:$0xff]
  %v207 = vld [vmem:[%s52 + $0x470] sm:$0xff]
  %v208 = vld [vmem:[%s52 + $0x478] sm:$0xff]
  %v209 = vld [vmem:[%s52 + $0x480] sm:$0xff]
  %v210 = vld [vmem:[%s52 + $0x488] sm:$0xff]
  %v211 = vld [vmem:[%s52 + $0x490] sm:$0xff]
  %v212 = vld [vmem:[%s52 + $0x498] sm:$0xff]
  %v213 = vld [vmem:[%s52 + $0x4a0] sm:$0xff]
  %v214 = vld [vmem:[%s52 + $0x4a8] sm:$0xff]
  %v215 = vld [vmem:[%s52 + $0x4b0] sm:$0xff]
  %v216 = vld [vmem:[%s52 + $0x4b8] sm:$0xff]
  %v217 = vld [vmem:[%s52 + $0x4c0] sm:$0xff]
  %v218 = vld [vmem:[%s52 + $0x4c8] sm:$0xff]
  %v219 = vld [vmem:[%s52 + $0x4d0] sm:$0xff]
  %v220 = vld [vmem:[%s52 + $0x4d8] sm:$0xff]
  %v221 = vld [vmem:[%s52 + $0x4e0] sm:$0xff]
  %v222 = vld [vmem:[%s52 + $0x4e8] sm:$0xff]
  %v223 = vld [vmem:[%s52 + $0x4f0] sm:$0xff]
  %v224 = vld [vmem:[%s52 + $0x4f8] sm:$0xff]
  %v225 = vld [vmem:[%s52 + $0x500] sm:$0xff]
  %v226 = vld [vmem:[%s52 + $0x508] sm:$0xff]
  %v227 = vld [vmem:[%s52 + $0x510] sm:$0xff]
  %v228 = vld [vmem:[%s52 + $0x518] sm:$0xff]
  %v229 = vld [vmem:[%s52 + $0x520] sm:$0xff]
  %v230 = vld [vmem:[%s52 + $0x528] sm:$0xff]
  %v231 = vld [vmem:[%s52 + $0x530] sm:$0xff]
  %v232 = vld [vmem:[%s52 + $0x538] sm:$0xff]
  %v233 = vld [vmem:[%s52 + $0x540] sm:$0xff]
  %v234 = vld [vmem:[%s52 + $0x548] sm:$0xff]
  %v235 = vld [vmem:[%s52 + $0x550] sm:$0xff]
  %v236 = vld [vmem:[%s52 + $0x558] sm:$0xff]
  %v237 = vld [vmem:[%s52 + $0x560] sm:$0xff]
  %v238 = vld [vmem:[%s52 + $0x568] sm:$0xff]
  %v239 = vld [vmem:[%s52 + $0x570] sm:$0xff]
  %v240 = vld [vmem:[%s52 + $0x578] sm:$0xff]
  %v241 = vld [vmem:[%s52 + $0x580] sm:$0xff]
  %v242 = vld [vmem:[%s52 + $0x588] sm:$0xff]
  %v243 = vld [vmem:[%s52 + $0x590] sm:$0xff]
  %v244 = vld [vmem:[%s52 + $0x598] sm:$0xff]
  %v245 = vld [vmem:[%s52 + $0x5a0] sm:$0xff]
  %v246 = vld [vmem:[%s52 + $0x5a8] sm:$0xff]
  %v247 = vld [vmem:[%s52 + $0x5b0] sm:$0xff]
  %v248 = vld [vmem:[%s52 + $0x5b8] sm:$0xff]
  %v249 = vld [vmem:[%s52 + $0x5c0] sm:$0xff]
  %v250 = vld [vmem:[%s52 + $0x5c8] sm:$0xff]
  %v251 = vld [vmem:[%s52 + $0x5d0] sm:$0xff]
  %v252 = vld [vmem:[%s52 + $0x5d8] sm:$0xff]
  %v253 = vld [vmem:[%s52 + $0x5e0] sm:$0xff]
  %v254 = vld [vmem:[%s52 + $0x5e8] sm:$0xff]
  %v255 = vld [vmem:[%s52 + $0x5f0] sm:$0xff]
  %v256 = vld [vmem:[%s52 + $0x5f8] sm:$0xff]
  %v257 = vld [vmem:[%s52 + $0x600] sm:$0xff]
  %v258 = vld [vmem:[%s52 + $0x608] sm:$0xff]
  %v259 = vld [vmem:[%s52 + $0x610] sm:$0xff]
  %v260 = vld [vmem:[%s52 + $0x618] sm:$0xff]
  %v261 = vld [vmem:[%s52 + $0x620] sm:$0xff]
  %v262 = vld [vmem:[%s52 + $0x628] sm:$0xff]
  %v263 = vld [vmem:[%s52 + $0x630] sm:$0xff]
  %v264 = vld [vmem:[%s52 + $0x638] sm:$0xff]
  %v265 = vld [vmem:[%s52 + $0x640] sm:$0xff]
  %v266 = vld [vmem:[%s52 + $0x648] sm:$0xff]
  %v267 = vld [vmem:[%s52 + $0x650] sm:$0xff]
  %v268 = vld [vmem:[%s52 + $0x658] sm:$0xff]
  %v269 = vld [vmem:[%s52 + $0x660] sm:$0xff]
  %v270 = vld [vmem:[%s52 + $0x668] sm:$0xff]
  %v271 = vld [vmem:[%s52 + $0x670] sm:$0xff]
  %v272 = vld [vmem:[%s52 + $0x678] sm:$0xff]
  %v273 = vld [vmem:[%s52 + $0x680] sm:$0xff]
  %v274 = vld [vmem:[%s52 + $0x688] sm:$0xff]
  %v275 = vld [vmem:[%s52 + $0x690] sm:$0xff]
  %v276 = vld [vmem:[%s52 + $0x698] sm:$0xff]
  %v277 = vld [vmem:[%s52 + $0x6a0] sm:$0xff]
  %v278 = vld [vmem:[%s52 + $0x6a8] sm:$0xff]
  %v279 = vld [vmem:[%s52 + $0x6b0] sm:$0xff]
  %v280 = vld [vmem:[%s52 + $0x6b8] sm:$0xff]
  %v281 = vld [vmem:[%s52 + $0x6c0] sm:$0xff]
  %v282 = vld [vmem:[%s52 + $0x6c8] sm:$0xff]
  %v283 = vld [vmem:[%s52 + $0x6d0] sm:$0xff]
  %v284 = vld [vmem:[%s52 + $0x6d8] sm:$0xff]
  %v285 = vld [vmem:[%s52 + $0x6e0] sm:$0xff]
  %v286 = vld [vmem:[%s52 + $0x6e8] sm:$0xff]
  %v287 = vld [vmem:[%s52 + $0x6f0] sm:$0xff]
  %v288 = vld [vmem:[%s52 + $0x6f8] sm:$0xff]
  %v289 = vld [vmem:[%s52 + $0x700] sm:$0xff]
  %v290 = vld [vmem:[%s52 + $0x708] sm:$0xff]
  %v291 = vld [vmem:[%s52 + $0x710] sm:$0xff]
  %v292 = vld [vmem:[%s52 + $0x718] sm:$0xff]
  %v293 = vld [vmem:[%s52 + $0x720] sm:$0xff]
  %v294 = vld [vmem:[%s52 + $0x728] sm:$0xff]
  %v295 = vld [vmem:[%s52 + $0x730] sm:$0xff]
  %v296 = vld [vmem:[%s52 + $0x738] sm:$0xff]
  %v297 = vld [vmem:[%s52 + $0x740] sm:$0xff]
  %v298 = vld [vmem:[%s52 + $0x748] sm:$0xff]
  %v299 = vld [vmem:[%s52 + $0x750] sm:$0xff]
  %v300 = vld [vmem:[%s52 + $0x758] sm:$0xff]
  %v301 = vld [vmem:[%s52 + $0x760] sm:$0xff]
  %v302 = vld [vmem:[%s52 + $0x768] sm:$0xff]
  %v303 = vld [vmem:[%s52 + $0x770] sm:$0xff]
  %v304 = vld [vmem:[%s52 + $0x778] sm:$0xff]
  %v305 = vld [vmem:[%s52 + $0x780] sm:$0xff]
  %v306 = vld [vmem:[%s52 + $0x788] sm:$0xff]
  %v307 = vld [vmem:[%s52 + $0x790] sm:$0xff]
  %v308 = vld [vmem:[%s52 + $0x798] sm:$0xff]
  %v309 = vld [vmem:[%s52 + $0x7a0] sm:$0xff]
  %v310 = vld [vmem:[%s52 + $0x7a8] sm:$0xff]
  %v311 = vld [vmem:[%s52 + $0x7b0] sm:$0xff]
  %v312 = vld [vmem:[%s52 + $0x7b8] sm:$0xff]
  %v313 = vld [vmem:[%s52 + $0x7c0] sm:$0xff]
  %v314 = vld [vmem:[%s52 + $0x7c8] sm:$0xff]
  %v315 = vld [vmem:[%s52 + $0x7d0] sm:$0xff]
  %v316 = vld [vmem:[%s52 + $0x7d8] sm:$0xff]
  %v317 = vld [vmem:[%s52 + $0x7e0] sm:$0xff]
  %v318 = vld [vmem:[%s52 + $0x7e8] sm:$0xff]
  %v319 = vld [vmem:[%s52 + $0x7f0] sm:$0xff]
  %v320 = vld [vmem:[%s52 + $0x7f8] sm:$0xff]
  %v325 = vcombine.high %v61, %v61
  %v327 = vunpack.c.l.s4 1983009808
  %v328 = vunpack.c.0.s8 %v327
  %v329 = vlaneseq
  %v330 = vshrl.u32 %v329, 7
  %v331 = vsub.s32 %v328, %v330
  %v332 = vrot.slane %v61, %v331
  %v334 = vunpack.c.l.s4 1983009808
  %v335 = vunpack.c.0.s8 %v334
  %v336 = vlaneseq
  %v337 = vshrl.u32 %v336, 7
  %v338 = vsub.s32 %v335, %v337
  %v339 = vrot.slane %v325, %v338
  %v340 = vcombine.high %v332, %v332
  %v341 = vcombine.high %v339, %v339
  %v342 = vcombine.high %v62, %v62
  %v344 = vunpack.c.l.s4 1983009808
  %v345 = vunpack.c.0.s8 %v344
  %v346 = vlaneseq
  %v347 = vshrl.u32 %v346, 7
  %v348 = vsub.s32 %v345, %v347
  %v349 = vrot.slane %v62, %v348
  %v351 = vunpack.c.l.s4 1983009808
  %v352 = vunpack.c.0.s8 %v351
  %v353 = vlaneseq
  %v354 = vshrl.u32 %v353, 7
  %v355 = vsub.s32 %v352, %v354
  %v356 = vrot.slane %v342, %v355
  %v357 = vcombine.high %v349, %v349
  %v358 = vcombine.high %v356, %v356
  %v359 = vcombine.high %v63, %v63
  %v361 = vunpack.c.l.s4 1983009808
  %v362 = vunpack.c.0.s8 %v361
  %v363 = vlaneseq
  %v364 = vshrl.u32 %v363, 7
  %v365 = vsub.s32 %v362, %v364
  %v366 = vrot.slane %v63, %v365
  %v368 = vunpack.c.l.s4 1983009808
  %v369 = vunpack.c.0.s8 %v368
  %v370 = vlaneseq
  %v371 = vshrl.u32 %v370, 7
  %v372 = vsub.s32 %v369, %v371
  %v373 = vrot.slane %v359, %v372
  %v374 = vcombine.high %v366, %v366
  %v375 = vcombine.high %v373, %v373
  %v376 = vcombine.high %v64, %v64
  %v378 = vunpack.c.l.s4 1983009808
  %v379 = vunpack.c.0.s8 %v378
  %v380 = vlaneseq
  %v381 = vshrl.u32 %v380, 7
  %v382 = vsub.s32 %v379, %v381
  %v383 = vrot.slane %v64, %v382
  %v385 = vunpack.c.l.s4 1983009808
  %v386 = vunpack.c.0.s8 %v385
  %v387 = vlaneseq
  %v388 = vshrl.u32 %v387, 7
  %v389 = vsub.s32 %v386, %v388
  %v390 = vrot.slane %v376, %v389
  %v391 = vcombine.high %v383, %v383
  %v392 = vcombine.high %v390, %v390
  %409 = vmatprep.subr.mxu0 0.0
  %410 = vmatpush1.msra.mxu0 %v80
  %411 = vmatprep.subr.mxu0 0.0
  %412 = vmatpush1.msra.mxu0 %v79
  %413 = vmatprep.subr.mxu0 0.0
  %414 = vmatpush1.msra.mxu0 %v78
  %415 = vmatprep.subr.mxu0 0.0
  %416 = vmatpush1.msra.mxu0 %v77
  %417 = vmatprep.subr.mxu0 0.0
  %418 = vmatpush1.msra.mxu0 %v76
  %419 = vmatprep.subr.mxu0 0.0
  %420 = vmatpush1.msra.mxu0 %v75
  %421 = vmatprep.subr.mxu0 0.0
  %422 = vmatpush1.msra.mxu0 %v74
  %423 = vmatprep.subr.mxu0 0.0
  %424 = vmatpush1.msra.mxu0 %v73
  %425 = vmatprep.subr.mxu0 0.0
  %426 = vmatpush1.msra.mxu0 %v72
  %427 = vmatprep.subr.mxu0 0.0
  %428 = vmatpush1.msra.mxu0 %v71
  %429 = vmatprep.subr.mxu0 0.0
  %430 = vmatpush1.msra.mxu0 %v70
  %431 = vmatprep.subr.mxu0 0.0
  %432 = vmatpush1.msra.mxu0 %v69
  %433 = vmatprep.subr.mxu0 0.0
  %434 = vmatpush1.msra.mxu0 %v68
  %435 = vmatprep.subr.mxu0 0.0
  %436 = vmatpush1.msra.mxu0 %v67
  %437 = vmatprep.subr.mxu0 0.0
  %438 = vmatpush1.msra.mxu0 %v66
  %439 = vmatprep.subr.mxu0 0.0
  %440 = vmatpush1.msra.mxu0 %v65
  %441 = vmatprep.subr.mxu0 0.0
  %442 = vmatpush2.msra.mxu0 %v96
  %443 = vmatprep.subr.mxu0 0.0
  %444 = vmatpush2.msra.mxu0 %v95
  %445 = vmatprep.subr.mxu0 0.0
  %446 = vmatpush2.msra.mxu0 %v94
  %447 = vmatprep.subr.mxu0 0.0
  %448 = vmatpush2.msra.mxu0 %v93
  %449 = vmatprep.subr.mxu0 0.0
  %450 = vmatpush2.msra.mxu0 %v92
  %451 = vmatprep.subr.mxu0 0.0
  %452 = vmatpush2.msra.mxu0 %v91
  %453 = vmatprep.subr.mxu0 0.0
  %454 = vmatpush2.msra.mxu0 %v90
  %455 = vmatprep.subr.mxu0 0.0
  %456 = vmatpush2.msra.mxu0 %v89
  %457 = vmatprep.subr.mxu0 0.0
  %458 = vmatpush2.msra.mxu0 %v88
  %459 = vmatprep.subr.mxu0 0.0
  %460 = vmatpush2.msra.mxu0 %v87
  %461 = vmatprep.subr.mxu0 0.0
  %462 = vmatpush2.msra.mxu0 %v86
  %463 = vmatprep.subr.mxu0 0.0
  %464 = vmatpush2.msra.mxu0 %v85
  %465 = vmatprep.subr.mxu0 0.0
  %466 = vmatpush2.msra.mxu0 %v84
  %467 = vmatprep.subr.mxu0 0.0
  %468 = vmatpush2.msra.mxu0 %v83
  %469 = vmatprep.subr.mxu0 0.0
  %470 = vmatpush2.msra.mxu0 %v82
  %471 = vmatprep.subr.mxu0 0.0
  %472 = vmatpush2.msra.mxu0 %v81
  %473 = vmatprep.mubr.f32.mxu0 %v340
  %474 = vmatmul.mubr.f32.gmra.mxu0 %v332
  %v475 = vpop.f32.mrf.mxu0
  %v476 = vadd.f32 0.0, %v475
  %v477 = vpop.f32.mrf.mxu0
  %478 = vdwg.mxu0
  %479 = vmatprep.subr.mxu0 0.0
  %480 = vmatpush1.msra.mxu0 %v112
  %481 = vmatprep.subr.mxu0 0.0
  %482 = vmatpush1.msra.mxu0 %v111
  %483 = vmatprep.subr.mxu0 0.0
  %484 = vmatpush1.msra.mxu0 %v110
  %485 = vmatprep.subr.mxu0 0.0
  %486 = vmatpush1.msra.mxu0 %v109
  %487 = vmatprep.subr.mxu0 0.0
  %488 = vmatpush1.msra.mxu0 %v108
  %489 = vmatprep.subr.mxu0 0.0
  %490 = vmatpush1.msra.mxu0 %v107
  %491 = vmatprep.subr.mxu0 0.0
  %492 = vmatpush1.msra.mxu0 %v106
  %493 = vmatprep.subr.mxu0 0.0
  %494 = vmatpush1.msra.mxu0 %v105
  %495 = vmatprep.subr.mxu0 0.0
  %496 = vmatpush1.msra.mxu0 %v104
  %497 = vmatprep.subr.mxu0 0.0
  %498 = vmatpush1.msra.mxu0 %v103
  %499 = vmatprep.subr.mxu0 0.0
  %500 = vmatpush1.msra.mxu0 %v102
  %501 = vmatprep.subr.mxu0 0.0
  %502 = vmatpush1.msra.mxu0 %v101
  %503 = vmatprep.subr.mxu0 0.0
  %504 = vmatpush1.msra.mxu0 %v100
  %505 = vmatprep.subr.mxu0 0.0
  %506 = vmatpush1.msra.mxu0 %v99
  %507 = vmatprep.subr.mxu0 0.0
  %508 = vmatpush1.msra.mxu0 %v98
  %509 = vmatprep.subr.mxu0 0.0
  %510 = vmatpush1.msra.mxu0 %v97
  %511 = vmatprep.subr.mxu0 0.0
  %512 = vmatpush2.msra.mxu0 %v128
  %513 = vmatprep.subr.mxu0 0.0
  %514 = vmatpush2.msra.mxu0 %v127
  %515 = vmatprep.subr.mxu0 0.0
  %516 = vmatpush2.msra.mxu0 %v126
  %517 = vmatprep.subr.mxu0 0.0
  %518 = vmatpush2.msra.mxu0 %v125
  %519 = vmatprep.subr.mxu0 0.0
  %520 = vmatpush2.msra.mxu0 %v124
  %521 = vmatprep.subr.mxu0 0.0
  %522 = vmatpush2.msra.mxu0 %v123
  %523 = vmatprep.subr.mxu0 0.0
  %524 = vmatpush2.msra.mxu0 %v122
  %525 = vmatprep.subr.mxu0 0.0
  %526 = vmatpush2.msra.mxu0 %v121
  %527 = vmatprep.subr.mxu0 0.0
  %528 = vmatpush2.msra.mxu0 %v120
  %529 = vmatprep.subr.mxu0 0.0
  %530 = vmatpush2.msra.mxu0 %v119
  %531 = vmatprep.subr.mxu0 0.0
  %532 = vmatpush2.msra.mxu0 %v118
  %533 = vmatprep.subr.mxu0 0.0
  %534 = vmatpush2.msra.mxu0 %v117
  %535 = vmatprep.subr.mxu0 0.0
  %536 = vmatpush2.msra.mxu0 %v116
  %537 = vmatprep.subr.mxu0 0.0
  %538 = vmatpush2.msra.mxu0 %v115
  %539 = vmatprep.subr.mxu0 0.0
  %540 = vmatpush2.msra.mxu0 %v114
  %541 = vmatprep.subr.mxu0 0.0
  %542 = vmatpush2.msra.mxu0 %v113
  %543 = vmatprep.mubr.f32.mxu0 %v341
  %544 = vmatmul.mubr.f32.gmra.mxu0 %v339
  %v545 = vpop.f32.mrf.mxu0
  %v546 = vadd.f32 %v476, %v545
  %v547 = vpop.f32.mrf.mxu0
  %548 = vdwg.mxu0
  %549 = vmatprep.subr.mxu0 0.0
  %550 = vmatpush1.msra.mxu0 %v144
  %551 = vmatprep.subr.mxu0 0.0
  %552 = vmatpush1.msra.mxu0 %v143
  %553 = vmatprep.subr.mxu0 0.0
  %554 = vmatpush1.msra.mxu0 %v142
  %555 = vmatprep.subr.mxu0 0.0
  %556 = vmatpush1.msra.mxu0 %v141
  %557 = vmatprep.subr.mxu0 0.0
  %558 = vmatpush1.msra.mxu0 %v140
  %559 = vmatprep.subr.mxu0 0.0
  %560 = vmatpush1.msra.mxu0 %v139
  %561 = vmatprep.subr.mxu0 0.0
  %562 = vmatpush1.msra.mxu0 %v138
  %563 = vmatprep.subr.mxu0 0.0
  %564 = vmatpush1.msra.mxu0 %v137
  %565 = vmatprep.subr.mxu0 0.0
  %566 = vmatpush1.msra.mxu0 %v136
  %567 = vmatprep.subr.mxu0 0.0
  %568 = vmatpush1.msra.mxu0 %v135
  %569 = vmatprep.subr.mxu0 0.0
  %570 = vmatpush1.msra.mxu0 %v134
  %571 = vmatprep.subr.mxu0 0.0
  %572 = vmatpush1.msra.mxu0 %v133
  %573 = vmatprep.subr.mxu0 0.0
  %574 = vmatpush1.msra.mxu0 %v132
  %575 = vmatprep.subr.mxu0 0.0
  %576 = vmatpush1.msra.mxu0 %v131
  %577 = vmatprep.subr.mxu0 0.0
  %578 = vmatpush1.msra.mxu0 %v130
  %579 = vmatprep.subr.mxu0 0.0
  %580 = vmatpush1.msra.mxu0 %v129
  %581 = vmatprep.subr.mxu0 0.0
  %582 = vmatpush2.msra.mxu0 %v160
  %583 = vmatprep.subr.mxu0 0.0
  %584 = vmatpush2.msra.mxu0 %v159
  %585 = vmatprep.subr.mxu0 0.0
  %586 = vmatpush2.msra.mxu0 %v158
  %587 = vmatprep.subr.mxu0 0.0
  %588 = vmatpush2.msra.mxu0 %v157
  %589 = vmatprep.subr.mxu0 0.0
  %590 = vmatpush2.msra.mxu0 %v156
  %591 = vmatprep.subr.mxu0 0.0
  %592 = vmatpush2.msra.mxu0 %v155
  %593 = vmatprep.subr.mxu0 0.0
  %594 = vmatpush2.msra.mxu0 %v154
  %595 = vmatprep.subr.mxu0 0.0
  %596 = vmatpush2.msra.mxu0 %v153
  %597 = vmatprep.subr.mxu0 0.0
  %598 = vmatpush2.msra.mxu0 %v152
  %599 = vmatprep.subr.mxu0 0.0
  %600 = vmatpush2.msra.mxu0 %v151
  %601 = vmatprep.subr.mxu0 0.0
  %602 = vmatpush2.msra.mxu0 %v150
  %603 = vmatprep.subr.mxu0 0.0
  %604 = vmatpush2.msra.mxu0 %v149
  %605 = vmatprep.subr.mxu0 0.0
  %606 = vmatpush2.msra.mxu0 %v148
  %607 = vmatprep.subr.mxu0 0.0
  %608 = vmatpush2.msra.mxu0 %v147
  %609 = vmatprep.subr.mxu0 0.0
  %610 = vmatpush2.msra.mxu0 %v146
  %611 = vmatprep.subr.mxu0 0.0
  %612 = vmatpush2.msra.mxu0 %v145
  %613 = vmatprep.mubr.f32.mxu0 %v357
  %614 = vmatmul.mubr.f32.gmra.mxu0 %v349
  %v615 = vpop.f32.mrf.mxu0
  %v616 = vadd.f32 %v546, %v615
  %v617 = vpop.f32.mrf.mxu0
  %618 = vdwg.mxu0
  %619 = vmatprep.subr.mxu0 0.0
  %620 = vmatpush1.msra.mxu0 %v176
  %621 = vmatprep.subr.mxu0 0.0
  %622 = vmatpush1.msra.mxu0 %v175
  %623 = vmatprep.subr.mxu0 0.0
  %624 = vmatpush1.msra.mxu0 %v174
  %625 = vmatprep.subr.mxu0 0.0
  %626 = vmatpush1.msra.mxu0 %v173
  %627 = vmatprep.subr.mxu0 0.0
  %628 = vmatpush1.msra.mxu0 %v172
  %629 = vmatprep.subr.mxu0 0.0
  %630 = vmatpush1.msra.mxu0 %v171
  %631 = vmatprep.subr.mxu0 0.0
  %632 = vmatpush1.msra.mxu0 %v170
  %633 = vmatprep.subr.mxu0 0.0
  %634 = vmatpush1.msra.mxu0 %v169
  %635 = vmatprep.subr.mxu0 0.0
  %636 = vmatpush1.msra.mxu0 %v168
  %637 = vmatprep.subr.mxu0 0.0
  %638 = vmatpush1.msra.mxu0 %v167
  %639 = vmatprep.subr.mxu0 0.0
  %640 = vmatpush1.msra.mxu0 %v166
  %641 = vmatprep.subr.mxu0 0.0
  %642 = vmatpush1.msra.mxu0 %v165
  %643 = vmatprep.subr.mxu0 0.0
  %644 = vmatpush1.msra.mxu0 %v164
  %645 = vmatprep.subr.mxu0 0.0
  %646 = vmatpush1.msra.mxu0 %v163
  %647 = vmatprep.subr.mxu0 0.0
  %648 = vmatpush1.msra.mxu0 %v162
  %649 = vmatprep.subr.mxu0 0.0
  %650 = vmatpush1.msra.mxu0 %v161
  %651 = vmatprep.subr.mxu0 0.0
  %652 = vmatpush2.msra.mxu0 %v192
  %653 = vmatprep.subr.mxu0 0.0
  %654 = vmatpush2.msra.mxu0 %v191
  %655 = vmatprep.subr.mxu0 0.0
  %656 = vmatpush2.msra.mxu0 %v190
  %657 = vmatprep.subr.mxu0 0.0
  %658 = vmatpush2.msra.mxu0 %v189
  %659 = vmatprep.subr.mxu0 0.0
  %660 = vmatpush2.msra.mxu0 %v188
  %661 = vmatprep.subr.mxu0 0.0
  %662 = vmatpush2.msra.mxu0 %v187
  %663 = vmatprep.subr.mxu0 0.0
  %664 = vmatpush2.msra.mxu0 %v186
  %665 = vmatprep.subr.mxu0 0.0
  %666 = vmatpush2.msra.mxu0 %v185
  %667 = vmatprep.subr.mxu0 0.0
  %668 = vmatpush2.msra.mxu0 %v184
  %669 = vmatprep.subr.mxu0 0.0
  %670 = vmatpush2.msra.mxu0 %v183
  %671 = vmatprep.subr.mxu0 0.0
  %672 = vmatpush2.msra.mxu0 %v182
  %673 = vmatprep.subr.mxu0 0.0
  %674 = vmatpush2.msra.mxu0 %v181
  %675 = vmatprep.subr.mxu0 0.0
  %676 = vmatpush2.msra.mxu0 %v180
  %677 = vmatprep.subr.mxu0 0.0
  %678 = vmatpush2.msra.mxu0 %v179
  %679 = vmatprep.subr.mxu0 0.0
  %680 = vmatpush2.msra.mxu0 %v178
  %681 = vmatprep.subr.mxu0 0.0
  %682 = vmatpush2.msra.mxu0 %v177
  %683 = vmatprep.mubr.f32.mxu0 %v358
  %684 = vmatmul.mubr.f32.gmra.mxu0 %v356
  %v685 = vpop.f32.mrf.mxu0
  %v686 = vadd.f32 %v616, %v685
  %v687 = vpop.f32.mrf.mxu0
  %688 = vdwg.mxu0
  %689 = vmatprep.subr.mxu0 0.0
  %690 = vmatpush1.msra.mxu0 %v208
  %691 = vmatprep.subr.mxu0 0.0
  %692 = vmatpush1.msra.mxu0 %v207
  %693 = vmatprep.subr.mxu0 0.0
  %694 = vmatpush1.msra.mxu0 %v206
  %695 = vmatprep.subr.mxu0 0.0
  %696 = vmatpush1.msra.mxu0 %v205
  %697 = vmatprep.subr.mxu0 0.0
  %698 = vmatpush1.msra.mxu0 %v204
  %699 = vmatprep.subr.mxu0 0.0
  %700 = vmatpush1.msra.mxu0 %v203
  %701 = vmatprep.subr.mxu0 0.0
  %702 = vmatpush1.msra.mxu0 %v202
  %703 = vmatprep.subr.mxu0 0.0
  %704 = vmatpush1.msra.mxu0 %v201
  %705 = vmatprep.subr.mxu0 0.0
  %706 = vmatpush1.msra.mxu0 %v200
  %707 = vmatprep.subr.mxu0 0.0
  %708 = vmatpush1.msra.mxu0 %v199
  %709 = vmatprep.subr.mxu0 0.0
  %710 = vmatpush1.msra.mxu0 %v198
  %711 = vmatprep.subr.mxu0 0.0
  %712 = vmatpush1.msra.mxu0 %v197
  %713 = vmatprep.subr.mxu0 0.0
  %714 = vmatpush1.msra.mxu0 %v196
  %715 = vmatprep.subr.mxu0 0.0
  %716 = vmatpush1.msra.mxu0 %v195
  %717 = vmatprep.subr.mxu0 0.0
  %718 = vmatpush1.msra.mxu0 %v194
  %719 = vmatprep.subr.mxu0 0.0
  %720 = vmatpush1.msra.mxu0 %v193
  %721 = vmatprep.subr.mxu0 0.0
  %722 = vmatpush2.msra.mxu0 %v224
  %723 = vmatprep.subr.mxu0 0.0
  %724 = vmatpush2.msra.mxu0 %v223
  %725 = vmatprep.subr.mxu0 0.0
  %726 = vmatpush2.msra.mxu0 %v222
  %727 = vmatprep.subr.mxu0 0.0
  %728 = vmatpush2.msra.mxu0 %v221
  %729 = vmatprep.subr.mxu0 0.0
  %730 = vmatpush2.msra.mxu0 %v220
  %731 = vmatprep.subr.mxu0 0.0
  %732 = vmatpush2.msra.mxu0 %v219
  %733 = vmatprep.subr.mxu0 0.0
  %734 = vmatpush2.msra.mxu0 %v218
  %735 = vmatprep.subr.mxu0 0.0
  %736 = vmatpush2.msra.mxu0 %v217
  %737 = vmatprep.subr.mxu0 0.0
  %738 = vmatpush2.msra.mxu0 %v216
  %739 = vmatprep.subr.mxu0 0.0
  %740 = vmatpush2.msra.mxu0 %v215
  %741 = vmatprep.subr.mxu0 0.0
  %742 = vmatpush2.msra.mxu0 %v214
  %743 = vmatprep.subr.mxu0 0.0
  %744 = vmatpush2.msra.mxu0 %v213
  %745 = vmatprep.subr.mxu0 0.0
  %746 = vmatpush2.msra.mxu0 %v212
  %747 = vmatprep.subr.mxu0 0.0
  %748 = vmatpush2.msra.mxu0 %v211
  %749 = vmatprep.subr.mxu0 0.0
  %750 = vmatpush2.msra.mxu0 %v210
  %751 = vmatprep.subr.mxu0 0.0
  %752 = vmatpush2.msra.mxu0 %v209
  %753 = vmatprep.mubr.f32.mxu0 %v374
  %754 = vmatmul.mubr.f32.gmra.mxu0 %v366
  %v755 = vpop.f32.mrf.mxu0
  %v756 = vadd.f32 %v686, %v755
  %v757 = vpop.f32.mrf.mxu0
  %758 = vdwg.mxu0
  %759 = vmatprep.subr.mxu0 0.0
  %760 = vmatpush1.msra.mxu0 %v240
  %761 = vmatprep.subr.mxu0 0.0
  %762 = vmatpush1.msra.mxu0 %v239
  %763 = vmatprep.subr.mxu0 0.0
  %764 = vmatpush1.msra.mxu0 %v238
  %765 = vmatprep.subr.mxu0 0.0
  %766 = vmatpush1.msra.mxu0 %v237
  %767 = vmatprep.subr.mxu0 0.0
  %768 = vmatpush1.msra.mxu0 %v236
  %769 = vmatprep.subr.mxu0 0.0
  %770 = vmatpush1.msra.mxu0 %v235
  %771 = vmatprep.subr.mxu0 0.0
  %772 = vmatpush1.msra.mxu0 %v234
  %773 = vmatprep.subr.mxu0 0.0
  %774 = vmatpush1.msra.mxu0 %v233
  %775 = vmatprep.subr.mxu0 0.0
  %776 = vmatpush1.msra.mxu0 %v232
  %777 = vmatprep.subr.mxu0 0.0
  %778 = vmatpush1.msra.mxu0 %v231
  %779 = vmatprep.subr.mxu0 0.0
  %780 = vmatpush1.msra.mxu0 %v230
  %781 = vmatprep.subr.mxu0 0.0
  %782 = vmatpush1.msra.mxu0 %v229
  %783 = vmatprep.subr.mxu0 0.0
  %784 = vmatpush1.msra.mxu0 %v228
  %785 = vmatprep.subr.mxu0 0.0
  %786 = vmatpush1.msra.mxu0 %v227
  %787 = vmatprep.subr.mxu0 0.0
  %788 = vmatpush1.msra.mxu0 %v226
  %789 = vmatprep.subr.mxu0 0.0
  %790 = vmatpush1.msra.mxu0 %v225
  %791 = vmatprep.subr.mxu0 0.0
  %792 = vmatpush2.msra.mxu0 %v256
  %793 = vmatprep.subr.mxu0 0.0
  %794 = vmatpush2.msra.mxu0 %v255
  %795 = vmatprep.subr.mxu0 0.0
  %796 = vmatpush2.msra.mxu0 %v254
  %797 = vmatprep.subr.mxu0 0.0
  %798 = vmatpush2.msra.mxu0 %v253
  %799 = vmatprep.subr.mxu0 0.0
  %800 = vmatpush2.msra.mxu0 %v252
  %801 = vmatprep.subr.mxu0 0.0
  %802 = vmatpush2.msra.mxu0 %v251
  %803 = vmatprep.subr.mxu0 0.0
  %804 = vmatpush2.msra.mxu0 %v250
  %805 = vmatprep.subr.mxu0 0.0
  %806 = vmatpush2.msra.mxu0 %v249
  %807 = vmatprep.subr.mxu0 0.0
  %808 = vmatpush2.msra.mxu0 %v248
  %809 = vmatprep.subr.mxu0 0.0
  %810 = vmatpush2.msra.mxu0 %v247
  %811 = vmatprep.subr.mxu0 0.0
  %812 = vmatpush2.msra.mxu0 %v246
  %813 = vmatprep.subr.mxu0 0.0
  %814 = vmatpush2.msra.mxu0 %v245
  %815 = vmatprep.subr.mxu0 0.0
  %816 = vmatpush2.msra.mxu0 %v244
  %817 = vmatprep.subr.mxu0 0.0
  %818 = vmatpush2.msra.mxu0 %v243
  %819 = vmatprep.subr.mxu0 0.0
  %820 = vmatpush2.msra.mxu0 %v242
  %821 = vmatprep.subr.mxu0 0.0
  %822 = vmatpush2.msra.mxu0 %v241
  %823 = vmatprep.mubr.f32.mxu0 %v375
  %824 = vmatmul.mubr.f32.gmra.mxu0 %v373
  %v825 = vpop.f32.mrf.mxu0
  %v826 = vadd.f32 %v756, %v825
  %v827 = vpop.f32.mrf.mxu0
  %828 = vdwg.mxu0
  %829 = vmatprep.subr.mxu0 0.0
  %830 = vmatpush1.msra.mxu0 %v272
  %831 = vmatprep.subr.mxu0 0.0
  %832 = vmatpush1.msra.mxu0 %v271
  %833 = vmatprep.subr.mxu0 0.0
  %834 = vmatpush1.msra.mxu0 %v270
  %835 = vmatprep.subr.mxu0 0.0
  %836 = vmatpush1.msra.mxu0 %v269
  %837 = vmatprep.subr.mxu0 0.0
  %838 = vmatpush1.msra.mxu0 %v268
  %839 = vmatprep.subr.mxu0 0.0
  %840 = vmatpush1.msra.mxu0 %v267
  %841 = vmatprep.subr.mxu0 0.0
  %842 = vmatpush1.msra.mxu0 %v266
  %843 = vmatprep.subr.mxu0 0.0
  %844 = vmatpush1.msra.mxu0 %v265
  %845 = vmatprep.subr.mxu0 0.0
  %846 = vmatpush1.msra.mxu0 %v264
  %847 = vmatprep.subr.mxu0 0.0
  %848 = vmatpush1.msra.mxu0 %v263
  %849 = vmatprep.subr.mxu0 0.0
  %850 = vmatpush1.msra.mxu0 %v262
  %851 = vmatprep.subr.mxu0 0.0
  %852 = vmatpush1.msra.mxu0 %v261
  %853 = vmatprep.subr.mxu0 0.0
  %854 = vmatpush1.msra.mxu0 %v260
  %855 = vmatprep.subr.mxu0 0.0
  %856 = vmatpush1.msra.mxu0 %v259
  %857 = vmatprep.subr.mxu0 0.0
  %858 = vmatpush1.msra.mxu0 %v258
  %859 = vmatprep.subr.mxu0 0.0
  %860 = vmatpush1.msra.mxu0 %v257
  %861 = vmatprep.subr.mxu0 0.0
  %862 = vmatpush2.msra.mxu0 %v288
  %863 = vmatprep.subr.mxu0 0.0
  %864 = vmatpush2.msra.mxu0 %v287
  %865 = vmatprep.subr.mxu0 0.0
  %866 = vmatpush2.msra.mxu0 %v286
  %867 = vmatprep.subr.mxu0 0.0
  %868 = vmatpush2.msra.mxu0 %v285
  %869 = vmatprep.subr.mxu0 0.0
  %870 = vmatpush2.msra.mxu0 %v284
  %871 = vmatprep.subr.mxu0 0.0
  %872 = vmatpush2.msra.mxu0 %v283
  %873 = vmatprep.subr.mxu0 0.0
  %874 = vmatpush2.msra.mxu0 %v282
  %875 = vmatprep.subr.mxu0 0.0
  %876 = vmatpush2.msra.mxu0 %v281
  %877 = vmatprep.subr.mxu0 0.0
  %878 = vmatpush2.msra.mxu0 %v280
  %879 = vmatprep.subr.mxu0 0.0
  %880 = vmatpush2.msra.mxu0 %v279
  %881 = vmatprep.subr.mxu0 0.0
  %882 = vmatpush2.msra.mxu0 %v278
  %883 = vmatprep.subr.mxu0 0.0
  %884 = vmatpush2.msra.mxu0 %v277
  %885 = vmatprep.subr.mxu0 0.0
  %886 = vmatpush2.msra.mxu0 %v276
  %887 = vmatprep.subr.mxu0 0.0
  %888 = vmatpush2.msra.mxu0 %v275
  %889 = vmatprep.subr.mxu0 0.0
  %890 = vmatpush2.msra.mxu0 %v274
  %891 = vmatprep.subr.mxu0 0.0
  %892 = vmatpush2.msra.mxu0 %v273
  %893 = vmatprep.mubr.f32.mxu0 %v391
  %894 = vmatmul.mubr.f32.gmra.mxu0 %v383
  %v895 = vpop.f32.mrf.mxu0
  %v896 = vadd.f32 %v826, %v895
  %v897 = vpop.f32.mrf.mxu0
  %898 = vdwg.mxu0
  %899 = vmatprep.subr.mxu0 0.0
  %900 = vmatpush1.msra.mxu0 %v304
  %901 = vmatprep.subr.mxu0 0.0
  %902 = vmatpush1.msra.mxu0 %v303
  %903 = vmatprep.subr.mxu0 0.0
  %904 = vmatpush1.msra.mxu0 %v302
  %905 = vmatprep.subr.mxu0 0.0
  %906 = vmatpush1.msra.mxu0 %v301
  %907 = vmatprep.subr.mxu0 0.0
  %908 = vmatpush1.msra.mxu0 %v300
  %909 = vmatprep.subr.mxu0 0.0
  %910 = vmatpush1.msra.mxu0 %v299
  %911 = vmatprep.subr.mxu0 0.0
  %912 = vmatpush1.msra.mxu0 %v298
  %913 = vmatprep.subr.mxu0 0.0
  %914 = vmatpush1.msra.mxu0 %v297
  %915 = vmatprep.subr.mxu0 0.0
  %916 = vmatpush1.msra.mxu0 %v296
  %917 = vmatprep.subr.mxu0 0.0
  %918 = vmatpush1.msra.mxu0 %v295
  %919 = vmatprep.subr.mxu0 0.0
  %920 = vmatpush1.msra.mxu0 %v294
  %921 = vmatprep.subr.mxu0 0.0
  %922 = vmatpush1.msra.mxu0 %v293
  %923 = vmatprep.subr.mxu0 0.0
  %924 = vmatpush1.msra.mxu0 %v292
  %925 = vmatprep.subr.mxu0 0.0
  %926 = vmatpush1.msra.mxu0 %v291
  %927 = vmatprep.subr.mxu0 0.0
  %928 = vmatpush1.msra.mxu0 %v290
  %929 = vmatprep.subr.mxu0 0.0
  %930 = vmatpush1.msra.mxu0 %v289
  %931 = vmatprep.subr.mxu0 0.0
  %932 = vmatpush2.msra.mxu0 %v320
  %933 = vmatprep.subr.mxu0 0.0
  %934 = vmatpush2.msra.mxu0 %v319
  %935 = vmatprep.subr.mxu0 0.0
  %936 = vmatpush2.msra.mxu0 %v318
  %937 = vmatprep.subr.mxu0 0.0
  %938 = vmatpush2.msra.mxu0 %v317
  %939 = vmatprep.subr.mxu0 0.0
  %940 = vmatpush2.msra.mxu0 %v316
  %941 = vmatprep.subr.mxu0 0.0
  %942 = vmatpush2.msra.mxu0 %v315
  %943 = vmatprep.subr.mxu0 0.0
  %944 = vmatpush2.msra.mxu0 %v314
  %945 = vmatprep.subr.mxu0 0.0
  %946 = vmatpush2.msra.mxu0 %v313
  %947 = vmatprep.subr.mxu0 0.0
  %948 = vmatpush2.msra.mxu0 %v312
  %949 = vmatprep.subr.mxu0 0.0
  %950 = vmatpush2.msra.mxu0 %v311
  %951 = vmatprep.subr.mxu0 0.0
  %952 = vmatpush2.msra.mxu0 %v310
  %953 = vmatprep.subr.mxu0 0.0
  %954 = vmatpush2.msra.mxu0 %v309
  %955 = vmatprep.subr.mxu0 0.0
  %956 = vmatpush2.msra.mxu0 %v308
  %957 = vmatprep.subr.mxu0 0.0
  %958 = vmatpush2.msra.mxu0 %v307
  %959 = vmatprep.subr.mxu0 0.0
  %960 = vmatpush2.msra.mxu0 %v306
  %961 = vmatprep.subr.mxu0 0.0
  %962 = vmatpush2.msra.mxu0 %v305
  %963 = vmatprep.mubr.f32.mxu0 %v392
  %964 = vmatmul.mubr.f32.gmra.mxu0 %v390
  %v965 = vpop.f32.mrf.mxu0
  %v966 = vadd.f32 %v896, %v965
  %v967 = vpop.f32.mrf.mxu0
  %968 = vdwg.mxu0
  %v969 = vadd.f32 %v60, %v966
  %970 = vst [vmem:[#allocation2] sm:$0x3] %v969
  // Predicated region
  $region14: #{classify_forward.11} parent=0 // pred_check
    %p971 = pneg %p55
  $region15: #{classify_forward.11} parent=0 // pred_check_branch
    %973 = sbr.rel (%p971) target = $region17
  $region16: #{classify_forward.11} parent=0 // pred_region
    %v974 = vld [vmem:[#allocation2] sm:$0x3]
    %975 = vst [vmem:[%s2] sm:$0x3] %v974
  $region17: #{classify_forward.11} parent=0 // pred_fallthru
    _
  // Predicated region
  $region18: #{classify_forward.11} parent=0 // pred_check
    _
  $region19: #{classify_forward.11} parent=0 // pred_check_branch
    %977 = sbr.rel (0) target = $region21
  $region20: #{classify_forward.11} parent=0 // pred_region
    _
  $region21: #{classify_forward.11} parent=0 // pred_fallthru
    _
  // Predicated region
  $region22: #{classify_forward.11} parent=0 // pred_check
    _
  $region23: #{classify_forward.11} parent=0 // pred_check_branch
    %979 = sbr.rel (0) target = $region25
  $region24: #{classify_forward.11} parent=0 // pred_region
    _
  $region25: #{classify_forward.11} parent=0 // pred_fallthru
    _

</llo_original>
